<compile_context>
chip_gen: v5e
topology: v5e:2x2
jax: 0.10.0
libtpu: 0.0.40
codegen_flags: <defaults>
</compile_context>

<pallas_src>
import jax
import jax.numpy as jnp
from jax.experimental import pallas as pl
from jax.experimental.pallas import tpu as pltpu

# Logical layer widths (match nn.Linear) and lane-dense padded widths.
H1, H2, H3 = 1000, 100, 19
H1P, H2P, H3P = 1024, 128, 128

TB = 256        # batch tile (rows fed to the MXU per grid step)
TK_MAX = 2048   # max layer-1 reduction tile (bf16 W1 tile = TK*1024*2 bytes)


def _round_up(x, m):
    return (x + m - 1) // m * m


def _pad2d(a, shape, dtype=None):
    out = jnp.pad(a, [(0, s - d) for d, s in zip(a.shape, shape)])
    return out.astype(dtype) if dtype is not None else out


def ffnn_kernel(x_ref, w1_ref, b1_ref, w2_ref, b2_ref, w3_ref, b3_ref,
                o_ref, acc_ref):
    k = pl.program_id(1)

    @pl.when(k == 0)
    def _():
        acc_ref[...] = jnp.zeros_like(acc_ref)

    # Layer 1 partial product: (TB, TK) bf16 @ (TK, H1P) bf16 -> f32 accumulate.
    acc_ref[...] += jnp.dot(x_ref[...], w1_ref[...],
                            preferred_element_type=jnp.float32)

    @pl.when(k == pl.num_programs(1) - 1)
    def _():
        # Epilogue in f32 (VPU): bias + ReLU, then the two small layers.
        h1 = jnp.maximum(acc_ref[...] + b1_ref[...], 0.0)
        # Dropout -> identity (inference).
        h2 = jnp.dot(h1.astype(jnp.bfloat16), w2_ref[...],
                     preferred_element_type=jnp.float32)
        h2 = jnp.maximum(h2 + b2_ref[...], 0.0)
        # Dropout -> identity (inference).
        logits = jnp.dot(h2.astype(jnp.bfloat16), w3_ref[...],
                         preferred_element_type=jnp.float32)
        o_ref[...] = (logits + b3_ref[...]).astype(o_ref.dtype)


def ffnn_forward(x, params):
    """x: (batch, 20, vocab_size) float32.  Returns logits (batch, 19) f32."""
    w1, b1, w2, b2, w3, b3 = params
    batch = x.shape[0]
    d_in = x.shape[1] * x.shape[2]
    x_flat = x.reshape(batch, d_in)          # same flattening order as torch .view

    # --- choose K tile and padded sizes -----------------------------------
    if d_in <= TK_MAX:
        tk = _round_up(d_in, 256)            # single K step for small inputs
    else:
        tk = TK_MAX
    d_in_p = _round_up(d_in, tk)
    batch_p = _round_up(batch, TB)
    nb, nk = batch_p // TB, d_in_p // tk

    # --- pad + cast operands (zero padding keeps the math exact) ----------
    x_p = _pad2d(x_flat, (batch_p, d_in_p), jnp.bfloat16)
    w1_p = _pad2d(w1, (d_in_p, H1P), jnp.bfloat16)
    w2_p = _pad2d(w2, (H1P, H2P), jnp.bfloat16)
    w3_p = _pad2d(w3, (H2P, H3P), jnp.bfloat16)
    b1_p = _pad2d(b1, (1, H1P), jnp.float32)
    b2_p = _pad2d(b2, (1, H2P), jnp.float32)
    b3_p = _pad2d(b3, (1, H3P), jnp.float32)

    flops = 2 * batch * (d_in * H1 + H1 * H2 + H2 * H3)
    bytes_accessed = (x_p.size * 2 + w1_p.size * 2 + w2_p.size * 2 +
                      w3_p.size * 2 + (b1_p.size + b2_p.size + b3_p.size) * 4 +
                      batch_p * H3P * 4)

    out = pl.pallas_call(
        ffnn_kernel,
        out_shape=jax.ShapeDtypeStruct((batch_p, H3P), jnp.float32),
        grid_spec=pltpu.PrefetchScalarGridSpec(
            num_scalar_prefetch=0,
            grid=(nb, nk),
            in_specs=[
                pl.BlockSpec((TB, tk), lambda b, k: (b, k)),      # x tile
                pl.BlockSpec((tk, H1P), lambda b, k: (k, 0)),     # W1 K-tile
                pl.BlockSpec((1, H1P), lambda b, k: (0, 0)),      # b1 (resident)
                pl.BlockSpec((H1P, H2P), lambda b, k: (0, 0)),    # W2 (resident)
                pl.BlockSpec((1, H2P), lambda b, k: (0, 0)),      # b2
                pl.BlockSpec((H2P, H3P), lambda b, k: (0, 0)),    # W3 (resident)
                pl.BlockSpec((1, H3P), lambda b, k: (0, 0)),      # b3
            ],
            out_specs=pl.BlockSpec((TB, H3P), lambda b, k: (b, 0)),
            scratch_shapes=[pltpu.VMEM((TB, H1P), jnp.float32)],  # layer-1 acc
        ),
        compiler_params=pltpu.CompilerParams(
            dimension_semantics=("parallel", "arbitrary"),
            vmem_limit_bytes=48 << 20,      # fits v7x's 64 MiB physical VMEM
        ),
        cost_estimate=pl.CostEstimate(
            flops=flops, transcendentals=0, bytes_accessed=bytes_accessed),
    )(x_p, w1_p, b1_p, w2_p, b2_p, w3_p, b3_p)

    return out[:batch, :H3]


def init_params(key, vocab_size):
    """Deterministic parameter init matching the nn.Linear shapes."""
    d_in = vocab_size * 20
    dims = [(d_in, H1), (H1, H2), (H2, H3)]
    params = []
    keys = jax.random.split(key, 2 * len(dims))
    for i, (fan_in, fan_out) in enumerate(dims):
        bound = 1.0 / jnp.sqrt(fan_in)
        w = jax.random.uniform(keys[2 * i], (fan_in, fan_out),
                               minval=-bound, maxval=bound, dtype=jnp.float32)
        b = jax.random.uniform(keys[2 * i + 1], (1, fan_out),
                               minval=-bound, maxval=bound, dtype=jnp.float32)
        params += [w, b]
    return tuple(params)


if __name__ == "__main__":
    key = jax.random.PRNGKey(0)
    vocab_size = 32           # small synthetic vocab
    batch = 2
    k_x, k_p = jax.random.split(key)

    # Input: (batch, 20, vocab_size), e.g. 20 token slots.
    x = jax.random.normal(k_x, (batch, 20, vocab_size), dtype=jnp.float32)
    params = init_params(k_p, vocab_size)

    logits = ffnn_forward(x, params)
    logits = jax.block_until_ready(logits)

    # Reference with the same bf16 weight/activation casts, f32 accumulation.
    w1, b1, w2, b2, w3, b3 = params
    xf = x.reshape(batch, -1)
    h = jnp.dot(xf.astype(jnp.bfloat16), w1.astype(jnp.bfloat16),
                preferred_element_type=jnp.float32)
    h = jnp.maximum(h + b1, 0.0)
    h = jnp.dot(h.astype(jnp.bfloat16), w2.astype(jnp.bfloat16),
                preferred_element_type=jnp.float32)
    h = jnp.maximum(h + b2, 0.0)
    ref = jnp.dot(h.astype(jnp.bfloat16), w3.astype(jnp.bfloat16),
                  preferred_element_type=jnp.float32) + b3

    assert logits.shape == (batch, 19)
    assert jnp.allclose(logits, ref, atol=1e-2, rtol=1e-2)

    print("KERNEL_OK")
</pallas_src>

<mosaic_0001>
module attributes {stable_mosaic.version = 11 : i64} {
  func.func @ffnn_kernel(%arg0: i32, %arg1: i32, %arg2: memref<256x768xbf16, #tpu.memory_space<vmem>>, %arg3: memref<768x1024xbf16, #tpu.memory_space<vmem>>, %arg4: memref<1x1024xf32, #tpu.memory_space<vmem>>, %arg5: memref<1024x128xbf16, #tpu.memory_space<vmem>>, %arg6: memref<1x128xf32, #tpu.memory_space<vmem>>, %arg7: memref<128x128xbf16, #tpu.memory_space<vmem>>, %arg8: memref<1x128xf32, #tpu.memory_space<vmem>>, %arg9: memref<256x128xf32, #tpu.memory_space<vmem>>, %arg10: memref<256x1024xf32, #tpu.memory_space<vmem>>) attributes {dimension_semantics = [#tpu.dimension_semantics<parallel>, #tpu.dimension_semantics<arbitrary>], iteration_bounds = array<i64: 1, 1>, scalar_prefetch = 0 : i64, scratch_operands = 1 : i64, tpu.core_type = #tpu.core_type<tc>, window_params = [{transform_indices = @transform_0, window_bounds = array<i64: 256, 768>}, {transform_indices = @transform_1, window_bounds = array<i64: 768, 1024>}, {pipeline_mode = #tpu.pipeline_mode<synchronous>, transform_indices = @transform_2, window_bounds = array<i64: 1, 1024>}, {pipeline_mode = #tpu.pipeline_mode<synchronous>, transform_indices = @transform_3, window_bounds = array<i64: 1024, 128>}, {pipeline_mode = #tpu.pipeline_mode<synchronous>, transform_indices = @transform_4, window_bounds = array<i64: 1, 128>}, {pipeline_mode = #tpu.pipeline_mode<synchronous>, transform_indices = @transform_5, window_bounds = array<i64: 128, 128>}, {pipeline_mode = #tpu.pipeline_mode<synchronous>, transform_indices = @transform_6, window_bounds = array<i64: 1, 128>}, {transform_indices = @transform_7, window_bounds = array<i64: 256, 128>}]} {
    %c0_i32 = arith.constant 0 : i32
    %0 = arith.cmpi eq, %arg1, %c0_i32 : i32
    %1 = arith.extui %0 : i1 to i32
    %c0_i32_0 = arith.constant 0 : i32
    %2 = arith.cmpi ne, %1, %c0_i32_0 : i32
    scf.if %2 {
      %cst_10 = arith.constant 0.000000e+00 : f32
      %12 = vector.broadcast %cst_10 : f32 to vector<256x1024xf32>
      %c0_11 = arith.constant 0 : index
      %c0_12 = arith.constant 0 : index
      %13 = vector.load %arg10[%c0_11, %c0_12] : memref<256x1024xf32, #tpu.memory_space<vmem>>, vector<256x1024xf32>
      tpu.vector_store %arg10[%c0_11, %c0_12], %12 {strides = array<i32>} : memref<256x1024xf32, #tpu.memory_space<vmem>>, vector<256x1024xf32>,
    } else {
    }
    %c0 = arith.constant 0 : index
    %c0_1 = arith.constant 0 : index
    %3 = vector.load %arg10[%c0, %c0_1] : memref<256x1024xf32, #tpu.memory_space<vmem>>, vector<256x1024xf32>
    %c0_2 = arith.constant 0 : index
    %c0_3 = arith.constant 0 : index
    %4 = vector.load %arg2[%c0_2, %c0_3] : memref<256x768xbf16, #tpu.memory_space<vmem>>, vector<256x768xbf16>
    %c0_4 = arith.constant 0 : index
    %c0_5 = arith.constant 0 : index
    %5 = vector.load %arg3[%c0_4, %c0_5] : memref<768x1024xbf16, #tpu.memory_space<vmem>>, vector<768x1024xbf16>
    %cst = arith.constant dense<0.000000e+00> : vector<256x1024xf32>
    %6 = tpu.matmul %4, %5, %cst {dimension_numbers = #tpu.dot_dimension_numbers<[1], [0], [0], [1], [0, 0, 1, 1], [], []>} : vector<256x768xbf16>, vector<768x1024xbf16>, vector<256x1024xf32> -> vector<256x1024xf32>
    %7 = arith.addf %3, %6 : vector<256x1024xf32>
    %c0_6 = arith.constant 0 : index
    %c0_7 = arith.constant 0 : index
    %8 = vector.load %arg10[%c0_6, %c0_7] : memref<256x1024xf32, #tpu.memory_space<vmem>>, vector<256x1024xf32>
    tpu.vector_store %arg10[%c0_6, %c0_7], %7 {strides = array<i32>} : memref<256x1024xf32, #tpu.memory_space<vmem>>, vector<256x1024xf32>,
    %c0_i32_8 = arith.constant 0 : i32
    %9 = arith.cmpi eq, %arg1, %c0_i32_8 : i32
    %10 = arith.extui %9 : i1 to i32
    %c0_i32_9 = arith.constant 0 : i32
    %11 = arith.cmpi ne, %10, %c0_i32_9 : i32
    scf.if %11 {
      %c0_10 = arith.constant 0 : index
      %c0_11 = arith.constant 0 : index
      %12 = vector.load %arg10[%c0_10, %c0_11] : memref<256x1024xf32, #tpu.memory_space<vmem>>, vector<256x1024xf32>
      %c0_12 = arith.constant 0 : index
      %c0_13 = arith.constant 0 : index
      %13 = vector.load %arg4[%c0_12, %c0_13] : memref<1x1024xf32, #tpu.memory_space<vmem>>, vector<1x1024xf32>
      %14 = vector.broadcast %13 : vector<1x1024xf32> to vector<256x1024xf32>
      %15 = arith.addf %12, %14 : vector<256x1024xf32>
      %cst_14 = arith.constant 0.000000e+00 : f32
      %16 = vector.broadcast %cst_14 : f32 to vector<256x1024xf32>
      %17 = arith.maximumf %15, %16 : vector<256x1024xf32>
      %18 = arith.truncf %17 : vector<256x1024xf32> to vector<256x1024xbf16>
      %c0_15 = arith.constant 0 : index
      %c0_16 = arith.constant 0 : index
      %19 = vector.load %arg5[%c0_15, %c0_16] : memref<1024x128xbf16, #tpu.memory_space<vmem>>, vector<1024x128xbf16>
      %cst_17 = arith.constant dense<0.000000e+00> : vector<256x128xf32>
      %20 = tpu.matmul %18, %19, %cst_17 {dimension_numbers = #tpu.dot_dimension_numbers<[1], [0], [0], [1], [0, 0, 1, 1], [], []>} : vector<256x1024xbf16>, vector<1024x128xbf16>, vector<256x128xf32> -> vector<256x128xf32>
      %c0_18 = arith.constant 0 : index
      %c0_19 = arith.constant 0 : index
      %21 = vector.load %arg6[%c0_18, %c0_19] : memref<1x128xf32, #tpu.memory_space<vmem>>, vector<1x128xf32>
      %22 = vector.broadcast %21 : vector<1x128xf32> to vector<256x128xf32>
      %23 = arith.addf %20, %22 : vector<256x128xf32>
      %cst_20 = arith.constant 0.000000e+00 : f32
      %24 = vector.broadcast %cst_20 : f32 to vector<256x128xf32>
      %25 = arith.maximumf %23, %24 : vector<256x128xf32>
      %26 = arith.truncf %25 : vector<256x128xf32> to vector<256x128xbf16>
      %c0_21 = arith.constant 0 : index
      %c0_22 = arith.constant 0 : index
      %27 = vector.load %arg7[%c0_21, %c0_22] : memref<128x128xbf16, #tpu.memory_space<vmem>>, vector<128x128xbf16>
      %cst_23 = arith.constant dense<0.000000e+00> : vector<256x128xf32>
      %28 = tpu.matmul %26, %27, %cst_23 {dimension_numbers = #tpu.dot_dimension_numbers<[1], [0], [0], [1], [0, 0, 1, 1], [], []>} : vector<256x128xbf16>, vector<128x128xbf16>, vector<256x128xf32> -> vector<256x128xf32>
      %c0_24 = arith.constant 0 : index
      %c0_25 = arith.constant 0 : index
      %29 = vector.load %arg8[%c0_24, %c0_25] : memref<1x128xf32, #tpu.memory_space<vmem>>, vector<1x128xf32>
      %30 = vector.broadcast %29 : vector<1x128xf32> to vector<256x128xf32>
      %31 = arith.addf %28, %30 : vector<256x128xf32>
      %c0_26 = arith.constant 0 : index
      %c0_27 = arith.constant 0 : index
      %32 = vector.load %arg9[%c0_26, %c0_27] : memref<256x128xf32, #tpu.memory_space<vmem>>, vector<256x128xf32>
      tpu.vector_store %arg9[%c0_26, %c0_27], %31 {strides = array<i32>} : memref<256x128xf32, #tpu.memory_space<vmem>>, vector<256x128xf32>,
    } else {
    }
    return
  }
  func.func @transform_0(%arg0: i32, %arg1: i32) -> (i32, i32) {
    %c0_i32 = arith.constant 0 : i32
    return %arg0, %arg1 : i32, i32
  }
  func.func @transform_1(%arg0: i32, %arg1: i32) -> (i32, i32) {
    %c0_i32 = arith.constant 0 : i32
    %c0_i32_0 = arith.constant 0 : i32
    return %arg1, %c0_i32 : i32, i32
  }
  func.func @transform_2(%arg0: i32, %arg1: i32) -> (i32, i32) {
    %c0_i32 = arith.constant 0 : i32
    %c0_i32_0 = arith.constant 0 : i32
    %c0_i32_1 = arith.constant 0 : i32
    return %c0_i32, %c0_i32_0 : i32, i32
  }
  func.func @transform_3(%arg0: i32, %arg1: i32) -> (i32, i32) {
    %c0_i32 = arith.constant 0 : i32
    %c0_i32_0 = arith.constant 0 : i32
    %c0_i32_1 = arith.constant 0 : i32
    return %c0_i32, %c0_i32_0 : i32, i32
  }
  func.func @transform_4(%arg0: i32, %arg1: i32) -> (i32, i32) {
    %c0_i32 = arith.constant 0 : i32
    %c0_i32_0 = arith.constant 0 : i32
    %c0_i32_1 = arith.constant 0 : i32
    return %c0_i32, %c0_i32_0 : i32, i32
  }
  func.func @transform_5(%arg0: i32, %arg1: i32) -> (i32, i32) {
    %c0_i32 = arith.constant 0 : i32
    %c0_i32_0 = arith.constant 0 : i32
    %c0_i32_1 = arith.constant 0 : i32
    return %c0_i32, %c0_i32_0 : i32, i32
  }
  func.func @transform_6(%arg0: i32, %arg1: i32) -> (i32, i32) {
    %c0_i32 = arith.constant 0 : i32
    %c0_i32_0 = arith.constant 0 : i32
    %c0_i32_1 = arith.constant 0 : i32
    return %c0_i32, %c0_i32_0 : i32, i32
  }
  func.func @transform_7(%arg0: i32, %arg1: i32) -> (i32, i32) {
    %c0_i32 = arith.constant 0 : i32
    %c0_i32_0 = arith.constant 0 : i32
    return %arg0, %c0_i32 : i32, i32
  }
}

</mosaic_0001>

<llo_original>
// kernel: tpu_custom_call.1
$region0: #{tpu_custom_call.1}
  #allocation0 [shape = 'u32[]', space=smem, size = 0x4, offset = 0x4, fixed_abs, tag = 'smem constant byte address 0x4 - core index']
  #allocation1 [shape = 'u32[72,128]{1,0:T(1,128)}', space=vmem, size = 0x9000, scoped, tag = 'internal scratch']
  #allocation2 [shape = 'f32[256,1024]{1,0:T(8,128)}', space=vmem, size = 0x100000, scoped, tag = 'scratch operand']
  %s0 = inlined_call_operand.hbm [shape: bf16[256,768], index: 0, kind: input, shape index: {}]
  %s1 = inlined_call_operand.hbm [shape: bf16[768,1024], index: 1, kind: input, shape index: {}]
  %s2 = inlined_call_operand.hbm [shape: f32[1,1024], index: 2, kind: input, shape index: {}]
  %s3 = inlined_call_operand.hbm [shape: bf16[1024,128], index: 3, kind: input, shape index: {}]
  %s4 = inlined_call_operand.hbm [shape: f32[1,128], index: 4, kind: input, shape index: {}]
  %s5 = inlined_call_operand.hbm [shape: bf16[128,128], index: 5, kind: input, shape index: {}]
  %s6 = inlined_call_operand.hbm [shape: f32[1,128], index: 6, kind: input, shape index: {}]
  %s7 = inlined_call_operand.hbm [shape: f32[256,128], index: 7, kind: output, shape index: {}]
  %s8 = sld [smem:[#allocation0]]
  $region74: #{tpu_custom_call.1} parent=0
    _
  %s10 = ssub.s32 1, %s8
  %s11 = scalar_select 0, %s10, %s8
  $region1: #{tpu_custom_call.1} parent=0
    #allocation3 [shape = 'u8[393216]{0}', space=vmem, size = 0x60000, scoped, tag = 'input window, operand 0, single buffered']
    #allocation4 [shape = 's32[1]{0}', space=sflag, size = 0x4, scoped, tag = 'scoped memory for tpu_custom_call.1']
    #allocation5 [shape = 's32[1]{0}', space=sflag, size = 0x4, scoped, tag = 'scoped memory for tpu_custom_call.1']
    #allocation6 [shape = 'u8[1572864]{0}', space=vmem, size = 0x180000, scoped, tag = 'input window, operand 1, single buffered']
    #allocation7 [shape = 's32[1]{0}', space=sflag, size = 0x4, scoped, tag = 'scoped memory for tpu_custom_call.1']
    #allocation8 [shape = 'u8[4096]{0}', space=vmem, size = 0x1000, scoped, tag = 'input window, operand 2, single buffered']
    #allocation9 [shape = 'u8[262144]{0}', space=vmem, size = 0x40000, scoped, tag = 'input window, operand 3, single buffered']
    #allocation10 [shape = 's32[1]{0}', space=sflag, size = 0x4, scoped, tag = 'scoped memory for tpu_custom_call.1']
    #allocation11 [shape = 'u8[512]{0}', space=vmem, size = 0x400, scoped, tag = 'input window, operand 4, single buffered']
    #allocation12 [shape = 'u8[32768]{0}', space=vmem, size = 0x8000, scoped, tag = 'input window, operand 5, single buffered']
    #allocation13 [shape = 's32[1]{0}', space=sflag, size = 0x4, scoped, tag = 'scoped memory for tpu_custom_call.1']
    #allocation14 [shape = 'u8[512]{0}', space=vmem, size = 0x400, scoped, tag = 'input window, operand 6, single buffered']
    #allocation15 [shape = 'u8[131072]{0}', space=vmem, size = 0x20000, scoped, tag = 'output window, operand 0, single buffered']
    %12 = vsyncpa [#allocation4], 0
    %13 = vsyncpa [#allocation7], 0
    %14 = vsyncpa [#allocation10], 0
    %15 = vsyncpa [#allocation13], 0
    %16 = vsyncpa [#allocation5], 0
    // Predicated region
    $region2: #{tpu_custom_call.1} parent=1 // pred_check
      _
    $region3: #{tpu_custom_call.1} parent=1 // pred_check_branch
      %18 = sbr.rel (0) target = $region5
    $region4: #{tpu_custom_call.1} parent=1 // pred_region
      %20 = vsyncadd [#allocation4], 0
      %s21 = sshll.u32 %s0, 4
      %s22 = int_to_ptr.hbm [resolvable:$true] %s21
      %s23 = sshll.u32 [#allocation3], 4
      %s24 = int_to_ptr.vmem [resolvable:$true] %s23
      %29 = dma.hbm_to_vmem [thread:$0]  %s22, 12288, %s24, [#allocation4], 384, 384, 24
    $region5: #{tpu_custom_call.1} parent=1 // pred_fallthru
      _
    // Predicated region
    $region6: #{tpu_custom_call.1} parent=1 // pred_check
      _
    $region7: #{tpu_custom_call.1} parent=1 // pred_check_branch
      %31 = sbr.rel (0) target = $region9
    $region8: #{tpu_custom_call.1} parent=1 // pred_region
      %33 = vsyncadd [#allocation7], 0
      %s34 = sshll.u32 %s1, 4
      %s35 = int_to_ptr.hbm [resolvable:$true] %s34
      %s36 = sshll.u32 [#allocation6], 4
      %s37 = int_to_ptr.vmem [resolvable:$true] %s36
      %42 = dma.hbm_to_vmem [thread:$0]  %s35, 49152, %s37, [#allocation7], 512, 512, 32
    $region9: #{tpu_custom_call.1} parent=1 // pred_fallthru
      _
    // Predicated region
    $region10: #{tpu_custom_call.1} parent=1 // pred_check
      _
    $region11: #{tpu_custom_call.1} parent=1 // pred_check_branch
      %44 = sbr.rel (0) target = $region13
    $region12: #{tpu_custom_call.1} parent=1 // pred_region
      %46 = vsyncadd [#allocation7], 0
      %s48 = sshll.u32 %s2, 4
      %s49 = int_to_ptr.hbm [resolvable:$true] %s48
      %s50 = sshll.u32 [#allocation8], 4
      %s51 = int_to_ptr.vmem [resolvable:$true] %s50
      %53 = dma.hbm_to_vmem [thread:$0]  %s49, 128, %s51, [#allocation7]
    $region13: #{tpu_custom_call.1} parent=1 // pred_fallthru
      _
    // Predicated region
    $region14: #{tpu_custom_call.1} parent=1 // pred_check
      _
    $region15: #{tpu_custom_call.1} parent=1 // pred_check_branch
      %55 = sbr.rel (0) target = $region17
    $region16: #{tpu_custom_call.1} parent=1 // pred_region
      %57 = vsyncadd [#allocation10], 0
      %s58 = sshll.u32 %s3, 4
      %s59 = int_to_ptr.hbm [resolvable:$true] %s58
      %s60 = sshll.u32 [#allocation9], 4
      %s61 = int_to_ptr.vmem [resolvable:$true] %s60
      %66 = dma.hbm_to_vmem [thread:$0]  %s59, 8192, %s61, [#allocation10], 64, 64, 4
    $region17: #{tpu_custom_call.1} parent=1 // pred_fallthru
      _
    // Predicated region
    $region18: #{tpu_custom_call.1} parent=1 // pred_check
      _
    $region19: #{tpu_custom_call.1} parent=1 // pred_check_branch
      %68 = sbr.rel (0) target = $region21
    $region20: #{tpu_custom_call.1} parent=1 // pred_region
      %70 = vsyncadd [#allocation10], 0
      %s72 = sshll.u32 %s4, 4
      %s73 = int_to_ptr.hbm [resolvable:$true] %s72
      %s74 = sshll.u32 [#allocation11], 4
      %s75 = int_to_ptr.vmem [resolvable:$true] %s74
      %77 = dma.hbm_to_vmem [thread:$0]  %s73, 16, %s75, [#allocation10]
    $region21: #{tpu_custom_call.1} parent=1 // pred_fallthru
      _
    // Predicated region
    $region22: #{tpu_custom_call.1} parent=1 // pred_check
      _
    $region23: #{tpu_custom_call.1} parent=1 // pred_check_branch
      %79 = sbr.rel (0) target = $region25
    $region24: #{tpu_custom_call.1} parent=1 // pred_region
      %81 = vsyncadd [#allocation13], 0
      %s82 = sshll.u32 %s5, 4
      %s83 = int_to_ptr.hbm [resolvable:$true] %s82
      %s84 = sshll.u32 [#allocation12], 4
      %s85 = int_to_ptr.vmem [resolvable:$true] %s84
      %90 = dma.hbm_to_vmem [thread:$0]  %s83, 1024, %s85, [#allocation13], 64, 64, 4
    $region25: #{tpu_custom_call.1} parent=1 // pred_fallthru
      _
    // Predicated region
    $region26: #{tpu_custom_call.1} parent=1 // pred_check
      _
    $region27: #{tpu_custom_call.1} parent=1 // pred_check_branch
      %92 = sbr.rel (0) target = $region29
    $region28: #{tpu_custom_call.1} parent=1 // pred_region
      %94 = vsyncadd [#allocation13], 0
      %s96 = sshll.u32 %s6, 4
      %s97 = int_to_ptr.hbm [resolvable:$true] %s96
      %s98 = sshll.u32 [#allocation14], 4
      %s99 = int_to_ptr.vmem [resolvable:$true] %s98
      %101 = dma.hbm_to_vmem [thread:$0]  %s97, 16, %s99, [#allocation13]
    $region29: #{tpu_custom_call.1} parent=1 // pred_fallthru
      _
    // Predicated region
    $region30: #{tpu_custom_call.1} parent=1 // pred_check
      _
    $region31: #{tpu_custom_call.1} parent=1 // pred_check_branch
      %103 = sbr.rel (0) target = $region33
    $region32: #{tpu_custom_call.1} parent=1 // pred_region
      %105 = dma.done [#allocation4], 12288
    $region33: #{tpu_custom_call.1} parent=1 // pred_fallthru
      _
    // Predicated region
    $region34: #{tpu_custom_call.1} parent=1 // pred_check
      _
    $region35: #{tpu_custom_call.1} parent=1 // pred_check_branch
      %107 = sbr.rel (0) target = $region37
    $region36: #{tpu_custom_call.1} parent=1 // pred_region
      %109 = dma.done [#allocation7], 49152
    $region37: #{tpu_custom_call.1} parent=1 // pred_fallthru
      _
    // Predicated region
    $region38: #{tpu_custom_call.1} parent=1 // pred_check
      _
    $region39: #{tpu_custom_call.1} parent=1 // pred_check_branch
      %111 = sbr.rel (0) target = $region41
    $region40: #{tpu_custom_call.1} parent=1 // pred_region
      %113 = dma.done [#allocation7], 128
    $region41: #{tpu_custom_call.1} parent=1 // pred_fallthru
      _
    // Predicated region
    $region42: #{tpu_custom_call.1} parent=1 // pred_check
      _
    $region43: #{tpu_custom_call.1} parent=1 // pred_check_branch
      %115 = sbr.rel (0) target = $region45
    $region44: #{tpu_custom_call.1} parent=1 // pred_region
      %117 = dma.done [#allocation10], 8192
    $region45: #{tpu_custom_call.1} parent=1 // pred_fallthru
      _
    // Predicated region
    $region46: #{tpu_custom_call.1} parent=1 // pred_check
      _
    $region47: #{tpu_custom_call.1} parent=1 // pred_check_branch
      %119 = sbr.rel (0) target = $region49
    $region48: #{tpu_custom_call.1} parent=1 // pred_region
      %121 = dma.done [#allocation10], 16
    $region49: #{tpu_custom_call.1} parent=1 // pred_fallthru
      _
    // Predicated region
    $region50: #{tpu_custom_call.1} parent=1 // pred_check
      _
    $region51: #{tpu_custom_call.1} parent=1 // pred_check_branch
      %123 = sbr.rel (0) target = $region53
    $region52: #{tpu_custom_call.1} parent=1 // pred_region
      %125 = dma.done [#allocation13], 1024
    $region53: #{tpu_custom_call.1} parent=1 // pred_fallthru
      _
    // Predicated region
    $region54: #{tpu_custom_call.1} parent=1 // pred_check
      _
    $region55: #{tpu_custom_call.1} parent=1 // pred_check_branch
      %127 = sbr.rel (0) target = $region57
    $region56: #{tpu_custom_call.1} parent=1 // pred_region
      %129 = dma.done [#allocation13], 16
    $region57: #{tpu_custom_call.1} parent=1 // pred_fallthru
      _
    %p130 = scmp.eq.s32.totalorder 0, 0
    // Predicated region
    $region58: #{tpu_custom_call.1} parent=1 // pred_check
      %p131 = pneg %p130
    $region59: #{tpu_custom_call.1} parent=1 // pred_check_branch
      %133 = sbr.rel (%p131) target = $region61
    $region60: #{tpu_custom_call.1} parent=1 // pred_region
      %134 = vst [vmem:[#allocation2] sm:$0xff] 0.0
      %135 = vst [vmem:[#allocation2 + $0x8] sm:$0xff] 0.0
      %136 = vst [vmem:[#allocation2 + $0x10] sm:$0xff] 0.0
      %137 = vst [vmem:[#allocation2 + $0x18] sm:$0xff] 0.0
      %138 = vst [vmem:[#allocation2 + $0x20] sm:$0xff] 0.0
      %139 = vst [vmem:[#allocation2 + $0x28] sm:$0xff] 0.0
      %140 = vst [vmem:[#allocation2 + $0x30] sm:$0xff] 0.0
      %141 = vst [vmem:[#allocation2 + $0x38] sm:$0xff] 0.0
      %142 = vst [vmem:[#allocation2 + $0x40] sm:$0xff] 0.0
      %143 = vst [vmem:[#allocation2 + $0x48] sm:$0xff] 0.0
      %144 = vst [vmem:[#allocation2 + $0x50] sm:$0xff] 0.0
      %145 = vst [vmem:[#allocation2 + $0x58] sm:$0xff] 0.0
      %146 = vst [vmem:[#allocation2 + $0x60] sm:$0xff] 0.0
      %147 = vst [vmem:[#allocation2 + $0x68] sm:$0xff] 0.0
      %148 = vst [vmem:[#allocation2 + $0x70] sm:$0xff] 0.0
      %149 = vst [vmem:[#allocation2 + $0x78] sm:$0xff] 0.0
      %150 = vst [vmem:[#allocation2 + $0x80] sm:$0xff] 0.0
      %151 = vst [vmem:[#allocation2 + $0x88] sm:$0xff] 0.0
      %152 = vst [vmem:[#allocation2 + $0x90] sm:$0xff] 0.0
      %153 = vst [vmem:[#allocation2 + $0x98] sm:$0xff] 0.0
      %154 = vst [vmem:[#allocation2 + $0xa0] sm:$0xff] 0.0
      %155 = vst [vmem:[#allocation2 + $0xa8] sm:$0xff] 0.0
      %156 = vst [vmem:[#allocation2 + $0xb0] sm:$0xff] 0.0
      %157 = vst [vmem:[#allocation2 + $0xb8] sm:$0xff] 0.0
      %158 = vst [vmem:[#allocation2 + $0xc0] sm:$0xff] 0.0
      %159 = vst [vmem:[#allocation2 + $0xc8] sm:$0xff] 0.0
      %160 = vst [vmem:[#allocation2 + $0xd0] sm:$0xff] 0.0
      %161 = vst [vmem:[#allocation2 + $0xd8] sm:$0xff] 0.0
      %162 = vst [vmem:[#allocation2 + $0xe0] sm:$0xff] 0.0
      %163 = vst [vmem:[#allocation2 + $0xe8] sm:$0xff] 0.0
      %164 = vst [vmem:[#allocation2 + $0xf0] sm:$0xff] 0.0
      %165 = vst [vmem:[#allocation2 + $0xf8] sm:$0xff] 0.0
      %166 = vst [vmem:[#allocation2 + $0x100] sm:$0xff] 0.0
      %167 = vst [vmem:[#allocation2 + $0x108] sm:$0xff] 0.0
      %168 = vst [vmem:[#allocation2 + $0x110] sm:$0xff] 0.0
      %169 = vst [vmem:[#allocation2 + $0x118] sm:$0xff] 0.0
      %170 = vst [vmem:[#allocation2 + $0x120] sm:$0xff] 0.0
      %171 = vst [vmem:[#allocation2 + $0x128] sm:$0xff] 0.0
      %172 = vst [vmem:[#allocation2 + $0x130] sm:$0xff] 0.0
      %173 = vst [vmem:[#allocation2 + $0x138] sm:$0xff] 0.0
      %174 = vst [vmem:[#allocation2 + $0x140] sm:$0xff] 0.0
      %175 = vst [vmem:[#allocation2 + $0x148] sm:$0xff] 0.0
      %176 = vst [vmem:[#allocation2 + $0x150] sm:$0xff] 0.0
      %177 = vst [vmem:[#allocation2 + $0x158] sm:$0xff] 0.0
      %178 = vst [vmem:[#allocation2 + $0x160] sm:$0xff] 0.0
      %179 = vst [vmem:[#allocation2 + $0x168] sm:$0xff] 0.0
      %180 = vst [vmem:[#allocation2 + $0x170] sm:$0xff] 0.0
      %181 = vst [vmem:[#allocation2 + $0x178] sm:$0xff] 0.0
      %182 = vst [vmem:[#allocation2 + $0x180] sm:$0xff] 0.0
      %183 = vst [vmem:[#allocation2 + $0x188] sm:$0xff] 0.0
      %184 = vst [vmem:[#allocation2 + $0x190] sm:$0xff] 0.0
      %185 = vst [vmem:[#allocation2 + $0x198] sm:$0xff] 0.0
      %186 = vst [vmem:[#allocation2 + $0x1a0] sm:$0xff] 0.0
      %187 = vst [vmem:[#allocation2 + $0x1a8] sm:$0xff] 0.0
      %188 = vst [vmem:[#allocation2 + $0x1b0] sm:$0xff] 0.0
      %189 = vst [vmem:[#allocation2 + $0x1b8] sm:$0xff] 0.0
      %190 = vst [vmem:[#allocation2 + $0x1c0] sm:$0xff] 0.0
      %191 = vst [vmem:[#allocation2 + $0x1c8] sm:$0xff] 0.0
      %192 = vst [vmem:[#allocation2 + $0x1d0] sm:$0xff] 0.0
      %193 = vst [vmem:[#allocation2 + $0x1d8] sm:$0xff] 0.0
      %194 = vst [vmem:[#allocation2 + $0x1e0] sm:$0xff] 0.0
      %195 = vst [vmem:[#allocation2 + $0x1e8] sm:$0xff] 0.0
      %196 = vst [vmem:[#allocation2 + $0x1f0] sm:$0xff] 0.0
      %197 = vst [vmem:[#allocation2 + $0x1f8] sm:$0xff] 0.0
      %198 = vst [vmem:[#allocation2 + $0x200] sm:$0xff] 0.0
      %199 = vst [vmem:[#allocation2 + $0x208] sm:$0xff] 0.0
      %200 = vst [vmem:[#allocation2 + $0x210] sm:$0xff] 0.0
      %201 = vst [vmem:[#allocation2 + $0x218] sm:$0xff] 0.0
      %202 = vst [vmem:[#allocation2 + $0x220] sm:$0xff] 0.0
      %203 = vst [vmem:[#allocation2 + $0x228] sm:$0xff] 0.0
      %204 = vst [vmem:[#allocation2 + $0x230] sm:$0xff] 0.0
      %205 = vst [vmem:[#allocation2 + $0x238] sm:$0xff] 0.0
      %206 = vst [vmem:[#allocation2 + $0x240] sm:$0xff] 0.0
      %207 = vst [vmem:[#allocation2 + $0x248] sm:$0xff] 0.0
      %208 = vst [vmem:[#allocation2 + $0x250] sm:$0xff] 0.0
      %209 = vst [vmem:[#allocation2 + $0x258] sm:$0xff] 0.0
      %210 = vst [vmem:[#allocation2 + $0x260] sm:$0xff] 0.0
      %211 = vst [vmem:[#allocation2 + $0x268] sm:$0xff] 0.0
      %212 = vst [vmem:[#allocation2 + $0x270] sm:$0xff] 0.0
      %213 = vst [vmem:[#allocation2 + $0x278] sm:$0xff] 0.0
      %214 = vst [vmem:[#allocation2 + $0x280] sm:$0xff] 0.0
      %215 = vst [vmem:[#allocation2 + $0x288] sm:$0xff] 0.0
      %216 = vst [vmem:[#allocation2 + $0x290] sm:$0xff] 0.0
      %217 = vst [vmem:[#allocation2 + $0x298] sm:$0xff] 0.0
      %218 = vst [vmem:[#allocation2 + $0x2a0] sm:$0xff] 0.0
      %219 = vst [vmem:[#allocation2 + $0x2a8] sm:$0xff] 0.0
      %220 = vst [vmem:[#allocation2 + $0x2b0] sm:$0xff] 0.0
      %221 = vst [vmem:[#allocation2 + $0x2b8] sm:$0xff] 0.0
      %222 = vst [vmem:[#allocation2 + $0x2c0] sm:$0xff] 0.0
      %223 = vst [vmem:[#allocation2 + $0x2c8] sm:$0xff] 0.0
      %224 = vst [vmem:[#allocation2 + $0x2d0] sm:$0xff] 0.0
      %225 = vst [vmem:[#allocation2 + $0x2d8] sm:$0xff] 0.0
      %226 = vst [vmem:[#allocation2 + $0x2e0] sm:$0xff] 0.0
      %227 = vst [vmem:[#allocation2 + $0x2e8] sm:$0xff] 0.0
      %228 = vst [vmem:[#allocation2 + $0x2f0] sm:$0xff] 0.0
      %229 = vst [vmem:[#allocation2 + $0x2f8] sm:$0xff] 0.0
      %230 = vst [vmem:[#allocation2 + $0x300] sm:$0xff] 0.0
      %231 = vst [vmem:[#allocation2 + $0x308] sm:$0xff] 0.0
      %232 = vst [vmem:[#allocation2 + $0x310] sm:$0xff] 0.0
      %233 = vst [vmem:[#allocation2 + $0x318] sm:$0xff] 0.0
      %234 = vst [vmem:[#allocation2 + $0x320] sm:$0xff] 0.0
      %235 = vst [vmem:[#allocation2 + $0x328] sm:$0xff] 0.0
      %236 = vst [vmem:[#allocation2 + $0x330] sm:$0xff] 0.0
      %237 = vst [vmem:[#allocation2 + $0x338] sm:$0xff] 0.0
      %238 = vst [vmem:[#allocation2 + $0x340] sm:$0xff] 0.0
      %239 = vst [vmem:[#allocation2 + $0x348] sm:$0xff] 0.0
      %240 = vst [vmem:[#allocation2 + $0x350] sm:$0xff] 0.0
      %241 = vst [vmem:[#allocation2 + $0x358] sm:$0xff] 0.0
      %242 = vst [vmem:[#allocation2 + $0x360] sm:$0xff] 0.0
      %243 = vst [vmem:[#allocation2 + $0x368] sm:$0xff] 0.0
      %244 = vst [vmem:[#allocation2 + $0x370] sm:$0xff] 0.0
      %245 = vst [vmem:[#allocation2 + $0x378] sm:$0xff] 0.0
      %246 = vst [vmem:[#allocation2 + $0x380] sm:$0xff] 0.0
      %247 = vst [vmem:[#allocation2 + $0x388] sm:$0xff] 0.0
      %248 = vst [vmem:[#allocation2 + $0x390] sm:$0xff] 0.0
      %249 = vst [vmem:[#allocation2 + $0x398] sm:$0xff] 0.0
      %250 = vst [vmem:[#allocation2 + $0x3a0] sm:$0xff] 0.0
      %251 = vst [vmem:[#allocation2 + $0x3a8] sm:$0xff] 0.0
      %252 = vst [vmem:[#allocation2 + $0x3b0] sm:$0xff] 0.0
      %253 = vst [vmem:[#allocation2 + $0x3b8] sm:$0xff] 0.0
      %254 = vst [vmem:[#allocation2 + $0x3c0] sm:$0xff] 0.0
      %255 = vst [vmem:[#allocation2 + $0x3c8] sm:$0xff] 0.0
      %256 = vst [vmem:[#allocation2 + $0x3d0] sm:$0xff] 0.0
      %257 = vst [vmem:[#allocation2 + $0x3d8] sm:$0xff] 0.0
      %258 = vst [vmem:[#allocation2 + $0x3e0] sm:$0xff] 0.0
      %259 = vst [vmem:[#allocation2 + $0x3e8] sm:$0xff] 0.0
      %260 = vst [vmem:[#allocation2 + $0x3f0] sm:$0xff] 0.0
      %261 = vst [vmem:[#allocation2 + $0x3f8] sm:$0xff] 0.0
      %262 = vst [vmem:[#allocation2 + $0x400] sm:$0xff] 0.0
      %263 = vst [vmem:[#allocation2 + $0x408] sm:$0xff] 0.0
      %264 = vst [vmem:[#allocation2 + $0x410] sm:$0xff] 0.0
      %265 = vst [vmem:[#allocation2 + $0x418] sm:$0xff] 0.0
      %266 = vst [vmem:[#allocation2 + $0x420] sm:$0xff] 0.0
      %267 = vst [vmem:[#allocation2 + $0x428] sm:$0xff] 0.0
      %268 = vst [vmem:[#allocation2 + $0x430] sm:$0xff] 0.0
      %269 = vst [vmem:[#allocation2 + $0x438] sm:$0xff] 0.0
      %270 = vst [vmem:[#allocation2 + $0x440] sm:$0xff] 0.0
      %271 = vst [vmem:[#allocation2 + $0x448] sm:$0xff] 0.0
      %272 = vst [vmem:[#allocation2 + $0x450] sm:$0xff] 0.0
      %273 = vst [vmem:[#allocation2 + $0x458] sm:$0xff] 0.0
      %274 = vst [vmem:[#allocation2 + $0x460] sm:$0xff] 0.0
      %275 = vst [vmem:[#allocation2 + $0x468] sm:$0xff] 0.0
      %276 = vst [vmem:[#allocation2 + $0x470] sm:$0xff] 0.0
      %277 = vst [vmem:[#allocation2 + $0x478] sm:$0xff] 0.0
      %278 = vst [vmem:[#allocation2 + $0x480] sm:$0xff] 0.0
      %279 = vst [vmem:[#allocation2 + $0x488] sm:$0xff] 0.0
      %280 = vst [vmem:[#allocation2 + $0x490] sm:$0xff] 0.0
      %281 = vst [vmem:[#allocation2 + $0x498] sm:$0xff] 0.0
      %282 = vst [vmem:[#allocation2 + $0x4a0] sm:$0xff] 0.0
      %283 = vst [vmem:[#allocation2 + $0x4a8] sm:$0xff] 0.0
      %284 = vst [vmem:[#allocation2 + $0x4b0] sm:$0xff] 0.0
      %285 = vst [vmem:[#allocation2 + $0x4b8] sm:$0xff] 0.0
      %286 = vst [vmem:[#allocation2 + $0x4c0] sm:$0xff] 0.0
      %287 = vst [vmem:[#allocation2 + $0x4c8] sm:$0xff] 0.0
      %288 = vst [vmem:[#allocation2 + $0x4d0] sm:$0xff] 0.0
      %289 = vst [vmem:[#allocation2 + $0x4d8] sm:$0xff] 0.0
      %290 = vst [vmem:[#allocation2 + $0x4e0] sm:$0xff] 0.0
      %291 = vst [vmem:[#allocation2 + $0x4e8] sm:$0xff] 0.0
      %292 = vst [vmem:[#allocation2 + $0x4f0] sm:$0xff] 0.0
      %293 = vst [vmem:[#allocation2 + $0x4f8] sm:$0xff] 0.0
      %294 = vst [vmem:[#allocation2 + $0x500] sm:$0xff] 0.0
      %295 = vst [vmem:[#allocation2 + $0x508] sm:$0xff] 0.0
      %296 = vst [vmem:[#allocation2 + $0x510] sm:$0xff] 0.0
      %297 = vst [vmem:[#allocation2 + $0x518] sm:$0xff] 0.0
      %298 = vst [vmem:[#allocation2 + $0x520] sm:$0xff] 0.0
      %299 = vst [vmem:[#allocation2 + $0x528] sm:$0xff] 0.0
      %300 = vst [vmem:[#allocation2 + $0x530] sm:$0xff] 0.0
      %301 = vst [vmem:[#allocation2 + $0x538] sm:$0xff] 0.0
      %302 = vst [vmem:[#allocation2 + $0x540] sm:$0xff] 0.0
      %303 = vst [vmem:[#allocation2 + $0x548] sm:$0xff] 0.0
      %304 = vst [vmem:[#allocation2 + $0x550] sm:$0xff] 0.0
      %305 = vst [vmem:[#allocation2 + $0x558] sm:$0xff] 0.0
      %306 = vst [vmem:[#allocation2 + $0x560] sm:$0xff] 0.0
      %307 = vst [vmem:[#allocation2 + $0x568] sm:$0xff] 0.0
      %308 = vst [vmem:[#allocation2 + $0x570] sm:$0xff] 0.0
      %309 = vst [vmem:[#allocation2 + $0x578] sm:$0xff] 0.0
      %310 = vst [vmem:[#allocation2 + $0x580] sm:$0xff] 0.0
      %311 = vst [vmem:[#allocation2 + $0x588] sm:$0xff] 0.0
      %312 = vst [vmem:[#allocation2 + $0x590] sm:$0xff] 0.0
      %313 = vst [vmem:[#allocation2 + $0x598] sm:$0xff] 0.0
      %314 = vst [vmem:[#allocation2 + $0x5a0] sm:$0xff] 0.0
      %315 = vst [vmem:[#allocation2 + $0x5a8] sm:$0xff] 0.0
      %316 = vst [vmem:[#allocation2 + $0x5b0] sm:$0xff] 0.0
      %317 = vst [vmem:[#allocation2 + $0x5b8] sm:$0xff] 0.0
      %318 = vst [vmem:[#allocation2 + $0x5c0] sm:$0xff] 0.0
      %319 = vst [vmem:[#allocation2 + $0x5c8] sm:$0xff] 0.0
      %320 = vst [vmem:[#allocation2 + $0x5d0] sm:$0xff] 0.0
      %321 = vst [vmem:[#allocation2 + $0x5d8] sm:$0xff] 0.0
      %322 = vst [vmem:[#allocation2 + $0x5e0] sm:$0xff] 0.0
      %323 = vst [vmem:[#allocation2 + $0x5e8] sm:$0xff] 0.0
      %324 = vst [vmem:[#allocation2 + $0x5f0] sm:$0xff] 0.0
      %325 = vst [vmem:[#allocation2 + $0x5f8] sm:$0xff] 0.0
      %326 = vst [vmem:[#allocation2 + $0x600] sm:$0xff] 0.0
      %327 = vst [vmem:[#allocation2 + $0x608] sm:$0xff] 0.0
      %328 = vst [vmem:[#allocation2 + $0x610] sm:$0xff] 0.0
      %329 = vst [vmem:[#allocation2 + $0x618] sm:$0xff] 0.0
      %330 = vst [vmem:[#allocation2 + $0x620] sm:$0xff] 0.0
      %331 = vst [vmem:[#allocation2 + $0x628] sm:$0xff] 0.0
      %332 = vst [vmem:[#allocation2 + $0x630] sm:$0xff] 0.0
      %333 = vst [vmem:[#allocation2 + $0x638] sm:$0xff] 0.0
      %334 = vst [vmem:[#allocation2 + $0x640] sm:$0xff] 0.0
      %335 = vst [vmem:[#allocation2 + $0x648] sm:$0xff] 0.0
      %336 = vst [vmem:[#allocation2 + $0x650] sm:$0xff] 0.0
      %337 = vst [vmem:[#allocation2 + $0x658] sm:$0xff] 0.0
      %338 = vst [vmem:[#allocation2 + $0x660] sm:$0xff] 0.0
      %339 = vst [vmem:[#allocation2 + $0x668] sm:$0xff] 0.0
      %340 = vst [vmem:[#allocation2 + $0x670] sm:$0xff] 0.0
      %341 = vst [vmem:[#allocation2 + $0x678] sm:$0xff] 0.0
      %342 = vst [vmem:[#allocation2 + $0x680] sm:$0xff] 0.0
      %343 = vst [vmem:[#allocation2 + $0x688] sm:$0xff] 0.0
      %344 = vst [vmem:[#allocation2 + $0x690] sm:$0xff] 0.0
      %345 = vst [vmem:[#allocation2 + $0x698] sm:$0xff] 0.0
      %346 = vst [vmem:[#allocation2 + $0x6a0] sm:$0xff] 0.0
      %347 = vst [vmem:[#allocation2 + $0x6a8] sm:$0xff] 0.0
      %348 = vst [vmem:[#allocation2 + $0x6b0] sm:$0xff] 0.0
      %349 = vst [vmem:[#allocation2 + $0x6b8] sm:$0xff] 0.0
      %350 = vst [vmem:[#allocation2 + $0x6c0] sm:$0xff] 0.0
      %351 = vst [vmem:[#allocation2 + $0x6c8] sm:$0xff] 0.0
      %352 = vst [vmem:[#allocation2 + $0x6d0] sm:$0xff] 0.0
      %353 = vst [vmem:[#allocation2 + $0x6d8] sm:$0xff] 0.0
      %354 = vst [vmem:[#allocation2 + $0x6e0] sm:$0xff] 0.0
      %355 = vst [vmem:[#allocation2 + $0x6e8] sm:$0xff] 0.0
      %356 = vst [vmem:[#allocation2 + $0x6f0] sm:$0xff] 0.0
      %357 = vst [vmem:[#allocation2 + $0x6f8] sm:$0xff] 0.0
      %358 = vst [vmem:[#allocation2 + $0x700] sm:$0xff] 0.0
      %359 = vst [vmem:[#allocation2 + $0x708] sm:$0xff] 0.0
      %360 = vst [vmem:[#allocation2 + $0x710] sm:$0xff] 0.0
      %361 = vst [vmem:[#allocation2 + $0x718] sm:$0xff] 0.0
      %362 = vst [vmem:[#allocation2 + $0x720] sm:$0xff] 0.0
      %363 = vst [vmem:[#allocation2 + $0x728] sm:$0xff] 0.0
      %364 = vst [vmem:[#allocation2 + $0x730] sm:$0xff] 0.0
      %365 = vst [vmem:[#allocation2 + $0x738] sm:$0xff] 0.0
      %366 = vst [vmem:[#allocation2 + $0x740] sm:$0xff] 0.0
      %367 = vst [vmem:[#allocation2 + $0x748] sm:$0xff] 0.0
      %368 = vst [vmem:[#allocation2 + $0x750] sm:$0xff] 0.0
      %369 = vst [vmem:[#allocation2 + $0x758] sm:$0xff] 0.0
      %370 = vst [vmem:[#allocation2 + $0x760] sm:$0xff] 0.0
      %371 = vst [vmem:[#allocation2 + $0x768] sm:$0xff] 0.0
      %372 = vst [vmem:[#allocation2 + $0x770] sm:$0xff] 0.0
      %373 = vst [vmem:[#allocation2 + $0x778] sm:$0xff] 0.0
      %374 = vst [vmem:[#allocation2 + $0x780] sm:$0xff] 0.0
      %375 = vst [vmem:[#allocation2 + $0x788] sm:$0xff] 0.0
      %376 = vst [vmem:[#allocation2 + $0x790] sm:$0xff] 0.0
      %377 = vst [vmem:[#allocation2 + $0x798] sm:$0xff] 0.0
      %378 = vst [vmem:[#allocation2 + $0x7a0] sm:$0xff] 0.0
      %379 = vst [vmem:[#allocation2 + $0x7a8] sm:$0xff] 0.0
      %380 = vst [vmem:[#allocation2 + $0x7b0] sm:$0xff] 0.0
      %381 = vst [vmem:[#allocation2 + $0x7b8] sm:$0xff] 0.0
      %382 = vst [vmem:[#allocation2 + $0x7c0] sm:$0xff] 0.0
      %383 = vst [vmem:[#allocation2 + $0x7c8] sm:$0xff] 0.0
      %384 = vst [vmem:[#allocation2 + $0x7d0] sm:$0xff] 0.0
      %385 = vst [vmem:[#allocation2 + $0x7d8] sm:$0xff] 0.0
      %386 = vst [vmem:[#allocation2 + $0x7e0] sm:$0xff] 0.0
      %387 = vst [vmem:[#allocation2 + $0x7e8] sm:$0xff] 0.0
      %388 = vst [vmem:[#allocation2 + $0x7f0] sm:$0xff] 0.0
      %389 = vst [vmem:[#allocation2 + $0x7f8] sm:$0xff] 0.0
    $region61: #{tpu_custom_call.1} parent=1 // pred_fallthru
      _
    %v390 = vld [vmem:[#allocation2] sm:$0xff]
    %v391 = vld [vmem:[#allocation2 + $0x8] sm:$0xff]
    %v392 = vld [vmem:[#allocation2 + $0x10] sm:$0xff]
    %v393 = vld [vmem:[#allocation2 + $0x18] sm:$0xff]
    %v394 = vld [vmem:[#allocation2 + $0x20] sm:$0xff]
    %v395 = vld [vmem:[#allocation2 + $0x28] sm:$0xff]
    %v396 = vld [vmem:[#allocation2 + $0x30] sm:$0xff]
    %v397 = vld [vmem:[#allocation2 + $0x38] sm:$0xff]
    %v398 = vld [vmem:[#allocation2 + $0x40] sm:$0xff]
    %v399 = vld [vmem:[#allocation2 + $0x48] sm:$0xff]
    %v400 = vld [vmem:[#allocation2 + $0x50] sm:$0xff]
    %v401 = vld [vmem:[#allocation2 + $0x58] sm:$0xff]
    %v402 = vld [vmem:[#allocation2 + $0x60] sm:$0xff]
    %v403 = vld [vmem:[#allocation2 + $0x68] sm:$0xff]
    %v404 = vld [vmem:[#allocation2 + $0x70] sm:$0xff]
    %v405 = vld [vmem:[#allocation2 + $0x78] sm:$0xff]
    %v406 = vld [vmem:[#allocation2 + $0x80] sm:$0xff]
    %v407 = vld [vmem:[#allocation2 + $0x88] sm:$0xff]
    %v408 = vld [vmem:[#allocation2 + $0x90] sm:$0xff]
    %v409 = vld [vmem:[#allocation2 + $0x98] sm:$0xff]
    %v410 = vld [vmem:[#allocation2 + $0xa0] sm:$0xff]
    %v411 = vld [vmem:[#allocation2 + $0xa8] sm:$0xff]
    %v412 = vld [vmem:[#allocation2 + $0xb0] sm:$0xff]
    %v413 = vld [vmem:[#allocation2 + $0xb8] sm:$0xff]
    %v414 = vld [vmem:[#allocation2 + $0xc0] sm:$0xff]
    %v415 = vld [vmem:[#allocation2 + $0xc8] sm:$0xff]
    %v416 = vld [vmem:[#allocation2 + $0xd0] sm:$0xff]
    %v417 = vld [vmem:[#allocation2 + $0xd8] sm:$0xff]
    %v418 = vld [vmem:[#allocation2 + $0xe0] sm:$0xff]
    %v419 = vld [vmem:[#allocation2 + $0xe8] sm:$0xff]
    %v420 = vld [vmem:[#allocation2 + $0xf0] sm:$0xff]
    %v421 = vld [vmem:[#allocation2 + $0xf8] sm:$0xff]
    %v422 = vld [vmem:[#allocation2 + $0x100] sm:$0xff]
    %v423 = vld [vmem:[#allocation2 + $0x108] sm:$0xff]
    %v424 = vld [vmem:[#allocation2 + $0x110] sm:$0xff]
    %v425 = vld [vmem:[#allocation2 + $0x118] sm:$0xff]
    %v426 = vld [vmem:[#allocation2 + $0x120] sm:$0xff]
    %v427 = vld [vmem:[#allocation2 + $0x128] sm:$0xff]
    %v428 = vld [vmem:[#allocation2 + $0x130] sm:$0xff]
    %v429 = vld [vmem:[#allocation2 + $0x138] sm:$0xff]
    %v430 = vld [vmem:[#allocation2 + $0x140] sm:$0xff]
    %v431 = vld [vmem:[#allocation2 + $0x148] sm:$0xff]
    %v432 = vld [vmem:[#allocation2 + $0x150] sm:$0xff]
    %v433 = vld [vmem:[#allocation2 + $0x158] sm:$0xff]
    %v434 = vld [vmem:[#allocation2 + $0x160] sm:$0xff]
    %v435 = vld [vmem:[#allocation2 + $0x168] sm:$0xff]
    %v436 = vld [vmem:[#allocation2 + $0x170] sm:$0xff]
    %v437 = vld [vmem:[#allocation2 + $0x178] sm:$0xff]
    %v438 = vld [vmem:[#allocation2 + $0x180] sm:$0xff]
    %v439 = vld [vmem:[#allocation2 + $0x188] sm:$0xff]
    %v440 = vld [vmem:[#allocation2 + $0x190] sm:$0xff]
    %v441 = vld [vmem:[#allocation2 + $0x198] sm:$0xff]
    %v442 = vld [vmem:[#allocation2 + $0x1a0] sm:$0xff]
    %v443 = vld [vmem:[#allocation2 + $0x1a8] sm:$0xff]
    %v444 = vld [vmem:[#allocation2 + $0x1b0] sm:$0xff]
    %v445 = vld [vmem:[#allocation2 + $0x1b8] sm:$0xff]
    %v446 = vld [vmem:[#allocation2 + $0x1c0] sm:$0xff]
    %v447 = vld [vmem:[#allocation2 + $0x1c8] sm:$0xff]
    %v448 = vld [vmem:[#allocation2 + $0x1d0] sm:$0xff]
    %v449 = vld [vmem:[#allocation2 + $0x1d8] sm:$0xff]
    %v450 = vld [vmem:[#allocation2 + $0x1e0] sm:$0xff]
    %v451 = vld [vmem:[#allocation2 + $0x1e8] sm:$0xff]
    %v452 = vld [vmem:[#allocation2 + $0x1f0] sm:$0xff]
    %v453 = vld [vmem:[#allocation2 + $0x1f8] sm:$0xff]
    %v454 = vld [vmem:[#allocation2 + $0x200] sm:$0xff]
    %v455 = vld [vmem:[#allocation2 + $0x208] sm:$0xff]
    %v456 = vld [vmem:[#allocation2 + $0x210] sm:$0xff]
    %v457 = vld [vmem:[#allocation2 + $0x218] sm:$0xff]
    %v458 = vld [vmem:[#allocation2 + $0x220] sm:$0xff]
    %v459 = vld [vmem:[#allocation2 + $0x228] sm:$0xff]
    %v460 = vld [vmem:[#allocation2 + $0x230] sm:$0xff]
    %v461 = vld [vmem:[#allocation2 + $0x238] sm:$0xff]
    %v462 = vld [vmem:[#allocation2 + $0x240] sm:$0xff]
    %v463 = vld [vmem:[#allocation2 + $0x248] sm:$0xff]
    %v464 = vld [vmem:[#allocation2 + $0x250] sm:$0xff]
    %v465 = vld [vmem:[#allocation2 + $0x258] sm:$0xff]
    %v466 = vld [vmem:[#allocation2 + $0x260] sm:$0xff]
    %v467 = vld [vmem:[#allocation2 + $0x268] sm:$0xff]
    %v468 = vld [vmem:[#allocation2 + $0x270] sm:$0xff]
    %v469 = vld [vmem:[#allocation2 + $0x278] sm:$0xff]
    %v470 = vld [vmem:[#allocation2 + $0x280] sm:$0xff]
    %v471 = vld [vmem:[#allocation2 + $0x288] sm:$0xff]
    %v472 = vld [vmem:[#allocation2 + $0x290] sm:$0xff]
    %v473 = vld [vmem:[#allocation2 + $0x298] sm:$0xff]
    %v474 = vld [vmem:[#allocation2 + $0x2a0] sm:$0xff]
    %v475 = vld [vmem:[#allocation2 + $0x2a8] sm:$0xff]
    %v476 = vld [vmem:[#allocation2 + $0x2b0] sm:$0xff]
    %v477 = vld [vmem:[#allocation2 + $0x2b8] sm:$0xff]
    %v478 = vld [vmem:[#allocation2 + $0x2c0] sm:$0xff]
    %v479 = vld [vmem:[#allocation2 + $0x2c8] sm:$0xff]
    %v480 = vld [vmem:[#allocation2 + $0x2d0] sm:$0xff]
    %v481 = vld [vmem:[#allocation2 + $0x2d8] sm:$0xff]
    %v482 = vld [vmem:[#allocation2 + $0x2e0] sm:$0xff]
    %v483 = vld [vmem:[#allocation2 + $0x2e8] sm:$0xff]
    %v484 = vld [vmem:[#allocation2 + $0x2f0] sm:$0xff]
    %v485 = vld [vmem:[#allocation2 + $0x2f8] sm:$0xff]
    %v486 = vld [vmem:[#allocation2 + $0x300] sm:$0xff]
    %v487 = vld [vmem:[#allocation2 + $0x308] sm:$0xff]
    %v488 = vld [vmem:[#allocation2 + $0x310] sm:$0xff]
    %v489 = vld [vmem:[#allocation2 + $0x318] sm:$0xff]
    %v490 = vld [vmem:[#allocation2 + $0x320] sm:$0xff]
    %v491 = vld [vmem:[#allocation2 + $0x328] sm:$0xff]
    %v492 = vld [vmem:[#allocation2 + $0x330] sm:$0xff]
    %v493 = vld [vmem:[#allocation2 + $0x338] sm:$0xff]
    %v494 = vld [vmem:[#allocation2 + $0x340] sm:$0xff]
    %v495 = vld [vmem:[#allocation2 + $0x348] sm:$0xff]
    %v496 = vld [vmem:[#allocation2 + $0x350] sm:$0xff]
    %v497 = vld [vmem:[#allocation2 + $0x358] sm:$0xff]
    %v498 = vld [vmem:[#allocation2 + $0x360] sm:$0xff]
    %v499 = vld [vmem:[#allocation2 + $0x368] sm:$0xff]
    %v500 = vld [vmem:[#allocation2 + $0x370] sm:$0xff]
    %v501 = vld [vmem:[#allocation2 + $0x378] sm:$0xff]
    %v502 = vld [vmem:[#allocation2 + $0x380] sm:$0xff]
    %v503 = vld [vmem:[#allocation2 + $0x388] sm:$0xff]
    %v504 = vld [vmem:[#allocation2 + $0x390] sm:$0xff]
    %v505 = vld [vmem:[#allocation2 + $0x398] sm:$0xff]
    %v506 = vld [vmem:[#allocation2 + $0x3a0] sm:$0xff]
    %v507 = vld [vmem:[#allocation2 + $0x3a8] sm:$0xff]
    %v508 = vld [vmem:[#allocation2 + $0x3b0] sm:$0xff]
    %v509 = vld [vmem:[#allocation2 + $0x3b8] sm:$0xff]
    %v510 = vld [vmem:[#allocation2 + $0x3c0] sm:$0xff]
    %v511 = vld [vmem:[#allocation2 + $0x3c8] sm:$0xff]
    %v512 = vld [vmem:[#allocation2 + $0x3d0] sm:$0xff]
    %v513 = vld [vmem:[#allocation2 + $0x3d8] sm:$0xff]
    %v514 = vld [vmem:[#allocation2 + $0x3e0] sm:$0xff]
    %v515 = vld [vmem:[#allocation2 + $0x3e8] sm:$0xff]
    %v516 = vld [vmem:[#allocation2 + $0x3f0] sm:$0xff]
    %v517 = vld [vmem:[#allocation2 + $0x3f8] sm:$0xff]
    %v518 = vld [vmem:[#allocation2 + $0x400] sm:$0xff]
    %v519 = vld [vmem:[#allocation2 + $0x408] sm:$0xff]
    %v520 = vld [vmem:[#allocation2 + $0x410] sm:$0xff]
    %v521 = vld [vmem:[#allocation2 + $0x418] sm:$0xff]
    %v522 = vld [vmem:[#allocation2 + $0x420] sm:$0xff]
    %v523 = vld [vmem:[#allocation2 + $0x428] sm:$0xff]
    %v524 = vld [vmem:[#allocation2 + $0x430] sm:$0xff]
    %v525 = vld [vmem:[#allocation2 + $0x438] sm:$0xff]
    %v526 = vld [vmem:[#allocation2 + $0x440] sm:$0xff]
    %v527 = vld [vmem:[#allocation2 + $0x448] sm:$0xff]
    %v528 = vld [vmem:[#allocation2 + $0x450] sm:$0xff]
    %v529 = vld [vmem:[#allocation2 + $0x458] sm:$0xff]
    %v530 = vld [vmem:[#allocation2 + $0x460] sm:$0xff]
    %v531 = vld [vmem:[#allocation2 + $0x468] sm:$0xff]
    %v532 = vld [vmem:[#allocation2 + $0x470] sm:$0xff]
    %v533 = vld [vmem:[#allocation2 + $0x478] sm:$0xff]
    %v534 = vld [vmem:[#allocation2 + $0x480] sm:$0xff]
    %v535 = vld [vmem:[#allocation2 + $0x488] sm:$0xff]
    %v536 = vld [vmem:[#allocation2 + $0x490] sm:$0xff]
    %v537 = vld [vmem:[#allocation2 + $0x498] sm:$0xff]
    %v538 = vld [vmem:[#allocation2 + $0x4a0] sm:$0xff]
    %v539 = vld [vmem:[#allocation2 + $0x4a8] sm:$0xff]
    %v540 = vld [vmem:[#allocation2 + $0x4b0] sm:$0xff]
    %v541 = vld [vmem:[#allocation2 + $0x4b8] sm:$0xff]
    %v542 = vld [vmem:[#allocation2 + $0x4c0] sm:$0xff]
    %v543 = vld [vmem:[#allocation2 + $0x4c8] sm:$0xff]
    %v544 = vld [vmem:[#allocation2 + $0x4d0] sm:$0xff]
    %v545 = vld [vmem:[#allocation2 + $0x4d8] sm:$0xff]
    %v546 = vld [vmem:[#allocation2 + $0x4e0] sm:$0xff]
    %v547 = vld [vmem:[#allocation2 + $0x4e8] sm:$0xff]
    %v548 = vld [vmem:[#allocation2 + $0x4f0] sm:$0xff]
    %v549 = vld [vmem:[#allocation2 + $0x4f8] sm:$0xff]
    %v550 = vld [vmem:[#allocation2 + $0x500] sm:$0xff]
    %v551 = vld [vmem:[#allocation2 + $0x508] sm:$0xff]
    %v552 = vld [vmem:[#allocation2 + $0x510] sm:$0xff]
    %v553 = vld [vmem:[#allocation2 + $0x518] sm:$0xff]
    %v554 = vld [vmem:[#allocation2 + $0x520] sm:$0xff]
    %v555 = vld [vmem:[#allocation2 + $0x528] sm:$0xff]
    %v556 = vld [vmem:[#allocation2 + $0x530] sm:$0xff]
    %v557 = vld [vmem:[#allocation2 + $0x538] sm:$0xff]
    %v558 = vld [vmem:[#allocation2 + $0x540] sm:$0xff]
    %v559 = vld [vmem:[#allocation2 + $0x548] sm:$0xff]
    %v560 = vld [vmem:[#allocation2 + $0x550] sm:$0xff]
    %v561 = vld [vmem:[#allocation2 + $0x558] sm:$0xff]
    %v562 = vld [vmem:[#allocation2 + $0x560] sm:$0xff]
    %v563 = vld [vmem:[#allocation2 + $0x568] sm:$0xff]
    %v564 = vld [vmem:[#allocation2 + $0x570] sm:$0xff]
    %v565 = vld [vmem:[#allocation2 + $0x578] sm:$0xff]
    %v566 = vld [vmem:[#allocation2 + $0x580] sm:$0xff]
    %v567 = vld [vmem:[#allocation2 + $0x588] sm:$0xff]
    %v568 = vld [vmem:[#allocation2 + $0x590] sm:$0xff]
    %v569 = vld [vmem:[#allocation2 + $0x598] sm:$0xff]
    %v570 = vld [vmem:[#allocation2 + $0x5a0] sm:$0xff]
    %v571 = vld [vmem:[#allocation2 + $0x5a8] sm:$0xff]
    %v572 = vld [vmem:[#allocation2 + $0x5b0] sm:$0xff]
    %v573 = vld [vmem:[#allocation2 + $0x5b8] sm:$0xff]
    %v574 = vld [vmem:[#allocation2 + $0x5c0] sm:$0xff]
    %v575 = vld [vmem:[#allocation2 + $0x5c8] sm:$0xff]
    %v576 = vld [vmem:[#allocation2 + $0x5d0] sm:$0xff]
    %v577 = vld [vmem:[#allocation2 + $0x5d8] sm:$0xff]
    %v578 = vld [vmem:[#allocation2 + $0x5e0] sm:$0xff]
    %v579 = vld [vmem:[#allocation2 + $0x5e8] sm:$0xff]
    %v580 = vld [vmem:[#allocation2 + $0x5f0] sm:$0xff]
    %v581 = vld [vmem:[#allocation2 + $0x5f8] sm:$0xff]
    %v582 = vld [vmem:[#allocation2 + $0x600] sm:$0xff]
    %v583 = vld [vmem:[#allocation2 + $0x608] sm:$0xff]
    %v584 = vld [vmem:[#allocation2 + $0x610] sm:$0xff]
    %v585 = vld [vmem:[#allocation2 + $0x618] sm:$0xff]
    %v586 = vld [vmem:[#allocation2 + $0x620] sm:$0xff]
    %v587 = vld [vmem:[#allocation2 + $0x628] sm:$0xff]
    %v588 = vld [vmem:[#allocation2 + $0x630] sm:$0xff]
    %v589 = vld [vmem:[#allocation2 + $0x638] sm:$0xff]
    %v590 = vld [vmem:[#allocation2 + $0x640] sm:$0xff]
    %v591 = vld [vmem:[#allocation2 + $0x648] sm:$0xff]
    %v592 = vld [vmem:[#allocation2 + $0x650] sm:$0xff]
    %v593 = vld [vmem:[#allocation2 + $0x658] sm:$0xff]
    %v594 = vld [vmem:[#allocation2 + $0x660] sm:$0xff]
    %v595 = vld [vmem:[#allocation2 + $0x668] sm:$0xff]
    %v596 = vld [vmem:[#allocation2 + $0x670] sm:$0xff]
    %v597 = vld [vmem:[#allocation2 + $0x678] sm:$0xff]
    %v598 = vld [vmem:[#allocation2 + $0x680] sm:$0xff]
    %v599 = vld [vmem:[#allocation2 + $0x688] sm:$0xff]
    %v600 = vld [vmem:[#allocation2 + $0x690] sm:$0xff]
    %v601 = vld [vmem:[#allocation2 + $0x698] sm:$0xff]
    %v602 = vld [vmem:[#allocation2 + $0x6a0] sm:$0xff]
    %v603 = vld [vmem:[#allocation2 + $0x6a8] sm:$0xff]
    %v604 = vld [vmem:[#allocation2 + $0x6b0] sm:$0xff]
    %v605 = vld [vmem:[#allocation2 + $0x6b8] sm:$0xff]
    %v606 = vld [vmem:[#allocation2 + $0x6c0] sm:$0xff]
    %v607 = vld [vmem:[#allocation2 + $0x6c8] sm:$0xff]
    %v608 = vld [vmem:[#allocation2 + $0x6d0] sm:$0xff]
    %v609 = vld [vmem:[#allocation2 + $0x6d8] sm:$0xff]
    %v610 = vld [vmem:[#allocation2 + $0x6e0] sm:$0xff]
    %v611 = vld [vmem:[#allocation2 + $0x6e8] sm:$0xff]
    %v612 = vld [vmem:[#allocation2 + $0x6f0] sm:$0xff]
    %v613 = vld [vmem:[#allocation2 + $0x6f8] sm:$0xff]
    %v614 = vld [vmem:[#allocation2 + $0x700] sm:$0xff]
    %v615 = vld [vmem:[#allocation2 + $0x708] sm:$0xff]
    %v616 = vld [vmem:[#allocation2 + $0x710] sm:$0xff]
    %v617 = vld [vmem:[#allocation2 + $0x718] sm:$0xff]
    %v618 = vld [vmem:[#allocation2 + $0x720] sm:$0xff]
    %v619 = vld [vmem:[#allocation2 + $0x728] sm:$0xff]
    %v620 = vld [vmem:[#allocation2 + $0x730] sm:$0xff]
    %v621 = vld [vmem:[#allocation2 + $0x738] sm:$0xff]
    %v622 = vld [vmem:[#allocation2 + $0x740] sm:$0xff]
    %v623 = vld [vmem:[#allocation2 + $0x748] sm:$0xff]
    %v624 = vld [vmem:[#allocation2 + $0x750] sm:$0xff]
    %v625 = vld [vmem:[#allocation2 + $0x758] sm:$0xff]
    %v626 = vld [vmem:[#allocation2 + $0x760] sm:$0xff]
    %v627 = vld [vmem:[#allocation2 + $0x768] sm:$0xff]
    %v628 = vld [vmem:[#allocation2 + $0x770] sm:$0xff]
    %v629 = vld [vmem:[#allocation2 + $0x778] sm:$0xff]
    %v630 = vld [vmem:[#allocation2 + $0x780] sm:$0xff]
    %v631 = vld [vmem:[#allocation2 + $0x788] sm:$0xff]
    %v632 = vld [vmem:[#allocation2 + $0x790] sm:$0xff]
    %v633 = vld [vmem:[#allocation2 + $0x798] sm:$0xff]
    %v634 = vld [vmem:[#allocation2 + $0x7a0] sm:$0xff]
    %v635 = vld [vmem:[#allocation2 + $0x7a8] sm:$0xff]
    %v636 = vld [vmem:[#allocation2 + $0x7b0] sm:$0xff]
    %v637 = vld [vmem:[#allocation2 + $0x7b8] sm:$0xff]
    %v638 = vld [vmem:[#allocation2 + $0x7c0] sm:$0xff]
    %v639 = vld [vmem:[#allocation2 + $0x7c8] sm:$0xff]
    %v640 = vld [vmem:[#allocation2 + $0x7d0] sm:$0xff]
    %v641 = vld [vmem:[#allocation2 + $0x7d8] sm:$0xff]
    %v642 = vld [vmem:[#allocation2 + $0x7e0] sm:$0xff]
    %v643 = vld [vmem:[#allocation2 + $0x7e8] sm:$0xff]
    %v644 = vld [vmem:[#allocation2 + $0x7f0] sm:$0xff]
    %v645 = vld [vmem:[#allocation2 + $0x7f8] sm:$0xff]
    %v646 = vld [vmem:[#allocation3] sm:$0xff]
    %v647 = vld [vmem:[#allocation3 + $0x8] sm:$0xff]
    %v648 = vld [vmem:[#allocation3 + $0x10] sm:$0xff]
    %v649 = vld [vmem:[#allocation3 + $0x18] sm:$0xff]
    %v650 = vld [vmem:[#allocation3 + $0x20] sm:$0xff]
    %v651 = vld [vmem:[#allocation3 + $0x28] sm:$0xff]
    %v652 = vld [vmem:[#allocation3 + $0x30] sm:$0xff]
    %v653 = vld [vmem:[#allocation3 + $0x38] sm:$0xff]
    %v654 = vld [vmem:[#allocation3 + $0x40] sm:$0xff]
    %v655 = vld [vmem:[#allocation3 + $0x48] sm:$0xff]
    %v656 = vld [vmem:[#allocation3 + $0x50] sm:$0xff]
    %v657 = vld [vmem:[#allocation3 + $0x58] sm:$0xff]
    %v658 = vld [vmem:[#allocation3 + $0x60] sm:$0xff]
    %v659 = vld [vmem:[#allocation3 + $0x68] sm:$0xff]
    %v660 = vld [vmem:[#allocation3 + $0x70] sm:$0xff]
    %v661 = vld [vmem:[#allocation3 + $0x78] sm:$0xff]
    %v662 = vld [vmem:[#allocation3 + $0x80] sm:$0xff]
    %v663 = vld [vmem:[#allocation3 + $0x88] sm:$0xff]
    %v664 = vld [vmem:[#allocation3 + $0x90] sm:$0xff]
    %v665 = vld [vmem:[#allocation3 + $0x98] sm:$0xff]
    %v666 = vld [vmem:[#allocation3 + $0xa0] sm:$0xff]
    %v667 = vld [vmem:[#allocation3 + $0xa8] sm:$0xff]
    %v668 = vld [vmem:[#allocation3 + $0xb0] sm:$0xff]
    %v669 = vld [vmem:[#allocation3 + $0xb8] sm:$0xff]
    %v670 = vld [vmem:[#allocation3 + $0xc0] sm:$0xff]
    %v671 = vld [vmem:[#allocation3 + $0xc8] sm:$0xff]
    %v672 = vld [vmem:[#allocation3 + $0xd0] sm:$0xff]
    %v673 = vld [vmem:[#allocation3 + $0xd8] sm:$0xff]
    %v674 = vld [vmem:[#allocation3 + $0xe0] sm:$0xff]
    %v675 = vld [vmem:[#allocation3 + $0xe8] sm:$0xff]
    %v676 = vld [vmem:[#allocation3 + $0xf0] sm:$0xff]
    %v677 = vld [vmem:[#allocation3 + $0xf8] sm:$0xff]
    %v678 = vld [vmem:[#allocation3 + $0x100] sm:$0xff]
    %v679 = vld [vmem:[#allocation3 + $0x108] sm:$0xff]
    %v680 = vld [vmem:[#allocation3 + $0x110] sm:$0xff]
    %v681 = vld [vmem:[#allocation3 + $0x118] sm:$0xff]
    %v682 = vld [vmem:[#allocation3 + $0x120] sm:$0xff]
    %v683 = vld [vmem:[#allocation3 + $0x128] sm:$0xff]
    %v684 = vld [vmem:[#allocation3 + $0x130] sm:$0xff]
    %v685 = vld [vmem:[#allocation3 + $0x138] sm:$0xff]
    %v686 = vld [vmem:[#allocation3 + $0x140] sm:$0xff]
    %v687 = vld [vmem:[#allocation3 + $0x148] sm:$0xff]
    %v688 = vld [vmem:[#allocation3 + $0x150] sm:$0xff]
    %v689 = vld [vmem:[#allocation3 + $0x158] sm:$0xff]
    %v690 = vld [vmem:[#allocation3 + $0x160] sm:$0xff]
    %v691 = vld [vmem:[#allocation3 + $0x168] sm:$0xff]
    %v692 = vld [vmem:[#allocation3 + $0x170] sm:$0xff]
    %v693 = vld [vmem:[#allocation3 + $0x178] sm:$0xff]
    %v694 = vld [vmem:[#allocation3 + $0x180] sm:$0xff]
    %v695 = vld [vmem:[#allocation3 + $0x188] sm:$0xff]
    %v696 = vld [vmem:[#allocation3 + $0x190] sm:$0xff]
    %v697 = vld [vmem:[#allocation3 + $0x198] sm:$0xff]
    %v698 = vld [vmem:[#allocation3 + $0x1a0] sm:$0xff]
    %v699 = vld [vmem:[#allocation3 + $0x1a8] sm:$0xff]
    %v700 = vld [vmem:[#allocation3 + $0x1b0] sm:$0xff]
    %v701 = vld [vmem:[#allocation3 + $0x1b8] sm:$0xff]
    %v702 = vld [vmem:[#allocation3 + $0x1c0] sm:$0xff]
    %v703 = vld [vmem:[#allocation3 + $0x1c8] sm:$0xff]
    %v704 = vld [vmem:[#allocation3 + $0x1d0] sm:$0xff]
    %v705 = vld [vmem:[#allocation3 + $0x1d8] sm:$0xff]
    %v706 = vld [vmem:[#allocation3 + $0x1e0] sm:$0xff]
    %v707 = vld [vmem:[#allocation3 + $0x1e8] sm:$0xff]
    %v708 = vld [vmem:[#allocation3 + $0x1f0] sm:$0xff]
    %v709 = vld [vmem:[#allocation3 + $0x1f8] sm:$0xff]
    %v710 = vld [vmem:[#allocation3 + $0x200] sm:$0xff]
    %v711 = vld [vmem:[#allocation3 + $0x208] sm:$0xff]
    %v712 = vld [vmem:[#allocation3 + $0x210] sm:$0xff]
    %v713 = vld [vmem:[#allocation3 + $0x218] sm:$0xff]
    %v714 = vld [vmem:[#allocation3 + $0x220] sm:$0xff]
    %v715 = vld [vmem:[#allocation3 + $0x228] sm:$0xff]
    %v716 = vld [vmem:[#allocation3 + $0x230] sm:$0xff]
    %v717 = vld [vmem:[#allocation3 + $0x238] sm:$0xff]
    %v718 = vld [vmem:[#allocation3 + $0x240] sm:$0xff]
    %v719 = vld [vmem:[#allocation3 + $0x248] sm:$0xff]
    %v720 = vld [vmem:[#allocation3 + $0x250] sm:$0xff]
    %v721 = vld [vmem:[#allocation3 + $0x258] sm:$0xff]
    %v722 = vld [vmem:[#allocation3 + $0x260] sm:$0xff]
    %v723 = vld [vmem:[#allocation3 + $0x268] sm:$0xff]
    %v724 = vld [vmem:[#allocation3 + $0x270] sm:$0xff]
    %v725 = vld [vmem:[#allocation3 + $0x278] sm:$0xff]
    %v726 = vld [vmem:[#allocation3 + $0x280] sm:$0xff]
    %v727 = vld [vmem:[#allocation3 + $0x288] sm:$0xff]
    %v728 = vld [vmem:[#allocation3 + $0x290] sm:$0xff]
    %v729 = vld [vmem:[#allocation3 + $0x298] sm:$0xff]
    %v730 = vld [vmem:[#allocation3 + $0x2a0] sm:$0xff]
    %v731 = vld [vmem:[#allocation3 + $0x2a8] sm:$0xff]
    %v732 = vld [vmem:[#allocation3 + $0x2b0] sm:$0xff]
    %v733 = vld [vmem:[#allocation3 + $0x2b8] sm:$0xff]
    %v734 = vld [vmem:[#allocation3 + $0x2c0] sm:$0xff]
    %v735 = vld [vmem:[#allocation3 + $0x2c8] sm:$0xff]
    %v736 = vld [vmem:[#allocation3 + $0x2d0] sm:$0xff]
    %v737 = vld [vmem:[#allocation3 + $0x2d8] sm:$0xff]
    %v738 = vld [vmem:[#allocation3 + $0x2e0] sm:$0xff]
    %v739 = vld [vmem:[#allocation3 + $0x2e8] sm:$0xff]
    %v740 = vld [vmem:[#allocation3 + $0x2f0] sm:$0xff]
    %v741 = vld [vmem:[#allocation3 + $0x2f8] sm:$0xff]
    %v742 = vld [vmem:[#allocation6] sm:$0xff]
    %v743 = vld [vmem:[#allocation6 + $0x8] sm:$0xff]
    %v744 = vld [vmem:[#allocation6 + $0x10] sm:$0xff]
    %v745 = vld [vmem:[#allocation6 + $0x18] sm:$0xff]
    %v746 = vld [vmem:[#allocation6 + $0x20] sm:$0xff]
    %v747 = vld [vmem:[#allocation6 + $0x28] sm:$0xff]
    %v748 = vld [vmem:[#allocation6 + $0x30] sm:$0xff]
    %v749 = vld [vmem:[#allocation6 + $0x38] sm:$0xff]
    %v750 = vld [vmem:[#allocation6 + $0x40] sm:$0xff]
    %v751 = vld [vmem:[#allocation6 + $0x48] sm:$0xff]
    %v752 = vld [vmem:[#allocation6 + $0x50] sm:$0xff]
    %v753 = vld [vmem:[#allocation6 + $0x58] sm:$0xff]
    %v754 = vld [vmem:[#allocation6 + $0x60] sm:$0xff]
    %v755 = vld [vmem:[#allocation6 + $0x68] sm:$0xff]
    %v756 = vld [vmem:[#allocation6 + $0x70] sm:$0xff]
    %v757 = vld [vmem:[#allocation6 + $0x78] sm:$0xff]
    %v758 = vld [vmem:[#allocation6 + $0x80] sm:$0xff]
    %v759 = vld [vmem:[#allocation6 + $0x88] sm:$0xff]
    %v760 = vld [vmem:[#allocation6 + $0x90] sm:$0xff]
    %v761 = vld [vmem:[#allocation6 + $0x98] sm:$0xff]
    %v762 = vld [vmem:[#allocation6 + $0xa0] sm:$0xff]
    %v763 = vld [vmem:[#allocation6 + $0xa8] sm:$0xff]
    %v764 = vld [vmem:[#allocation6 + $0xb0] sm:$0xff]
    %v765 = vld [vmem:[#allocation6 + $0xb8] sm:$0xff]
    %v766 = vld [vmem:[#allocation6 + $0xc0] sm:$0xff]
    %v767 = vld [vmem:[#allocation6 + $0xc8] sm:$0xff]
    %v768 = vld [vmem:[#allocation6 + $0xd0] sm:$0xff]
    %v769 = vld [vmem:[#allocation6 + $0xd8] sm:$0xff]
    %v770 = vld [vmem:[#allocation6 + $0xe0] sm:$0xff]
    %v771 = vld [vmem:[#allocation6 + $0xe8] sm:$0xff]
    %v772 = vld [vmem:[#allocation6 + $0xf0] sm:$0xff]
    %v773 = vld [vmem:[#allocation6 + $0xf8] sm:$0xff]
    %v774 = vld [vmem:[#allocation6 + $0x100] sm:$0xff]
    %v775 = vld [vmem:[#allocation6 + $0x108] sm:$0xff]
    %v776 = vld [vmem:[#allocation6 + $0x110] sm:$0xff]
    %v777 = vld [vmem:[#allocation6 + $0x118] sm:$0xff]
    %v778 = vld [vmem:[#allocation6 + $0x120] sm:$0xff]
    %v779 = vld [vmem:[#allocation6 + $0x128] sm:$0xff]
    %v780 = vld [vmem:[#allocation6 + $0x130] sm:$0xff]
    %v781 = vld [vmem:[#allocation6 + $0x138] sm:$0xff]
    %v782 = vld [vmem:[#allocation6 + $0x140] sm:$0xff]
    %v783 = vld [vmem:[#allocation6 + $0x148] sm:$0xff]
    %v784 = vld [vmem:[#allocation6 + $0x150] sm:$0xff]
    %v785 = vld [vmem:[#allocation6 + $0x158] sm:$0xff]
    %v786 = vld [vmem:[#allocation6 + $0x160] sm:$0xff]
    %v787 = vld [vmem:[#allocation6 + $0x168] sm:$0xff]
    %v788 = vld [vmem:[#allocation6 + $0x170] sm:$0xff]
    %v789 = vld [vmem:[#allocation6 + $0x178] sm:$0xff]
    %v790 = vld [vmem:[#allocation6 + $0x180] sm:$0xff]
    %v791 = vld [vmem:[#allocation6 + $0x188] sm:$0xff]
    %v792 = vld [vmem:[#allocation6 + $0x190] sm:$0xff]
    %v793 = vld [vmem:[#allocation6 + $0x198] sm:$0xff]
    %v794 = vld [vmem:[#allocation6 + $0x1a0] sm:$0xff]
    %v795 = vld [vmem:[#allocation6 + $0x1a8] sm:$0xff]
    %v796 = vld [vmem:[#allocation6 + $0x1b0] sm:$0xff]
    %v797 = vld [vmem:[#allocation6 + $0x1b8] sm:$0xff]
    %v798 = vld [vmem:[#allocation6 + $0x1c0] sm:$0xff]
    %v799 = vld [vmem:[#allocation6 + $0x1c8] sm:$0xff]
    %v800 = vld [vmem:[#allocation6 + $0x1d0] sm:$0xff]
    %v801 = vld [vmem:[#allocation6 + $0x1d8] sm:$0xff]
    %v802 = vld [vmem:[#allocation6 + $0x1e0] sm:$0xff]
    %v803 = vld [vmem:[#allocation6 + $0x1e8] sm:$0xff]
    %v804 = vld [vmem:[#allocation6 + $0x1f0] sm:$0xff]
    %v805 = vld [vmem:[#allocation6 + $0x1f8] sm:$0xff]
    %v806 = vld [vmem:[#allocation6 + $0x200] sm:$0xff]
    %v807 = vld [vmem:[#allocation6 + $0x208] sm:$0xff]
    %v808 = vld [vmem:[#allocation6 + $0x210] sm:$0xff]
    %v809 = vld [vmem:[#allocation6 + $0x218] sm:$0xff]
    %v810 = vld [vmem:[#allocation6 + $0x220] sm:$0xff]
    %v811 = vld [vmem:[#allocation6 + $0x228] sm:$0xff]
    %v812 = vld [vmem:[#allocation6 + $0x230] sm:$0xff]
    %v813 = vld [vmem:[#allocation6 + $0x238] sm:$0xff]
    %v814 = vld [vmem:[#allocation6 + $0x240] sm:$0xff]
    %v815 = vld [vmem:[#allocation6 + $0x248] sm:$0xff]
    %v816 = vld [vmem:[#allocation6 + $0x250] sm:$0xff]
    %v817 = vld [vmem:[#allocation6 + $0x258] sm:$0xff]
    %v818 = vld [vmem:[#allocation6 + $0x260] sm:$0xff]
    %v819 = vld [vmem:[#allocation6 + $0x268] sm:$0xff]
    %v820 = vld [vmem:[#allocation6 + $0x270] sm:$0xff]
    %v821 = vld [vmem:[#allocation6 + $0x278] sm:$0xff]
    %v822 = vld [vmem:[#allocation6 + $0x280] sm:$0xff]
    %v823 = vld [vmem:[#allocation6 + $0x288] sm:$0xff]
    %v824 = vld [vmem:[#allocation6 + $0x290] sm:$0xff]
    %v825 = vld [vmem:[#allocation6 + $0x298] sm:$0xff]
    %v826 = vld [vmem:[#allocation6 + $0x2a0] sm:$0xff]
    %v827 = vld [vmem:[#allocation6 + $0x2a8] sm:$0xff]
    %v828 = vld [vmem:[#allocation6 + $0x2b0] sm:$0xff]
    %v829 = vld [vmem:[#allocation6 + $0x2b8] sm:$0xff]
    %v830 = vld [vmem:[#allocation6 + $0x2c0] sm:$0xff]
    %v831 = vld [vmem:[#allocation6 + $0x2c8] sm:$0xff]
    %v832 = vld [vmem:[#allocation6 + $0x2d0] sm:$0xff]
    %v833 = vld [vmem:[#allocation6 + $0x2d8] sm:$0xff]
    %v834 = vld [vmem:[#allocation6 + $0x2e0] sm:$0xff]
    %v835 = vld [vmem:[#allocation6 + $0x2e8] sm:$0xff]
    %v836 = vld [vmem:[#allocation6 + $0x2f0] sm:$0xff]
    %v837 = vld [vmem:[#allocation6 + $0x2f8] sm:$0xff]
    %v838 = vld [vmem:[#allocation6 + $0x300] sm:$0xff]
    %v839 = vld [vmem:[#allocation6 + $0x308] sm:$0xff]
    %v840 = vld [vmem:[#allocation6 + $0x310] sm:$0xff]
    %v841 = vld [vmem:[#allocation6 + $0x318] sm:$0xff]
    %v842 = vld [vmem:[#allocation6 + $0x320] sm:$0xff]
    %v843 = vld [vmem:[#allocation6 + $0x328] sm:$0xff]
    %v844 = vld [vmem:[#allocation6 + $0x330] sm:$0xff]
    %v845 = vld [vmem:[#allocation6 + $0x338] sm:$0xff]
    %v846 = vld [vmem:[#allocation6 + $0x340] sm:$0xff]
    %v847 = vld [vmem:[#allocation6 + $0x348] sm:$0xff]
    %v848 = vld [vmem:[#allocation6 + $0x350] sm:$0xff]
    %v849 = vld [vmem:[#allocation6 + $0x358] sm:$0xff]
    %v850 = vld [vmem:[#allocation6 + $0x360] sm:$0xff]
    %v851 = vld [vmem:[#allocation6 + $0x368] sm:$0xff]
    %v852 = vld [vmem:[#allocation6 + $0x370] sm:$0xff]
    %v853 = vld [vmem:[#allocation6 + $0x378] sm:$0xff]
    %v854 = vld [vmem:[#allocation6 + $0x380] sm:$0xff]
    %v855 = vld [vmem:[#allocation6 + $0x388] sm:$0xff]
    %v856 = vld [vmem:[#allocation6 + $0x390] sm:$0xff]
    %v857 = vld [vmem:[#allocation6 + $0x398] sm:$0xff]
    %v858 = vld [vmem:[#allocation6 + $0x3a0] sm:$0xff]
    %v859 = vld [vmem:[#allocation6 + $0x3a8] sm:$0xff]
    %v860 = vld [vmem:[#allocation6 + $0x3b0] sm:$0xff]
    %v861 = vld [vmem:[#allocation6 + $0x3b8] sm:$0xff]
    %v862 = vld [vmem:[#allocation6 + $0x3c0] sm:$0xff]
    %v863 = vld [vmem:[#allocation6 + $0x3c8] sm:$0xff]
    %v864 = vld [vmem:[#allocation6 + $0x3d0] sm:$0xff]
    %v865 = vld [vmem:[#allocation6 + $0x3d8] sm:$0xff]
    %v866 = vld [vmem:[#allocation6 + $0x3e0] sm:$0xff]
    %v867 = vld [vmem:[#allocation6 + $0x3e8] sm:$0xff]
    %v868 = vld [vmem:[#allocation6 + $0x3f0] sm:$0xff]
    %v869 = vld [vmem:[#allocation6 + $0x3f8] sm:$0xff]
    %v870 = vld [vmem:[#allocation6 + $0x400] sm:$0xff]
    %v871 = vld [vmem:[#allocation6 + $0x408] sm:$0xff]
    %v872 = vld [vmem:[#allocation6 + $0x410] sm:$0xff]
    %v873 = vld [vmem:[#allocation6 + $0x418] sm:$0xff]
    %v874 = vld [vmem:[#allocation6 + $0x420] sm:$0xff]
    %v875 = vld [vmem:[#allocation6 + $0x428] sm:$0xff]
    %v876 = vld [vmem:[#allocation6 + $0x430] sm:$0xff]
    %v877 = vld [vmem:[#allocation6 + $0x438] sm:$0xff]
    %v878 = vld [vmem:[#allocation6 + $0x440] sm:$0xff]
    %v879 = vld [vmem:[#allocation6 + $0x448] sm:$0xff]
    %v880 = vld [vmem:[#allocation6 + $0x450] sm:$0xff]
    %v881 = vld [vmem:[#allocation6 + $0x458] sm:$0xff]
    %v882 = vld [vmem:[#allocation6 + $0x460] sm:$0xff]
    %v883 = vld [vmem:[#allocation6 + $0x468] sm:$0xff]
    %v884 = vld [vmem:[#allocation6 + $0x470] sm:$0xff]
    %v885 = vld [vmem:[#allocation6 + $0x478] sm:$0xff]
    %v886 = vld [vmem:[#allocation6 + $0x480] sm:$0xff]
    %v887 = vld [vmem:[#allocation6 + $0x488] sm:$0xff]
    %v888 = vld [vmem:[#allocation6 + $0x490] sm:$0xff]
    %v889 = vld [vmem:[#allocation6 + $0x498] sm:$0xff]
    %v890 = vld [vmem:[#allocation6 + $0x4a0] sm:$0xff]
    %v891 = vld [vmem:[#allocation6 + $0x4a8] sm:$0xff]
    %v892 = vld [vmem:[#allocation6 + $0x4b0] sm:$0xff]
    %v893 = vld [vmem:[#allocation6 + $0x4b8] sm:$0xff]
    %v894 = vld [vmem:[#allocation6 + $0x4c0] sm:$0xff]
    %v895 = vld [vmem:[#allocation6 + $0x4c8] sm:$0xff]
    %v896 = vld [vmem:[#allocation6 + $0x4d0] sm:$0xff]
    %v897 = vld [vmem:[#allocation6 + $0x4d8] sm:$0xff]
    %v898 = vld [vmem:[#allocation6 + $0x4e0] sm:$0xff]
    %v899 = vld [vmem:[#allocation6 + $0x4e8] sm:$0xff]
    %v900 = vld [vmem:[#allocation6 + $0x4f0] sm:$0xff]
    %v901 = vld [vmem:[#allocation6 + $0x4f8] sm:$0xff]
    %v902 = vld [vmem:[#allocation6 + $0x500] sm:$0xff]
    %v903 = vld [vmem:[#allocation6 + $0x508] sm:$0xff]
    %v904 = vld [vmem:[#allocation6 + $0x510] sm:$0xff]
    %v905 = vld [vmem:[#allocation6 + $0x518] sm:$0xff]
    %v906 = vld [vmem:[#allocation6 + $0x520] sm:$0xff]
    %v907 = vld [vmem:[#allocation6 + $0x528] sm:$0xff]
    %v908 = vld [vmem:[#allocation6 + $0x530] sm:$0xff]
    %v909 = vld [vmem:[#allocation6 + $0x538] sm:$0xff]
    %v910 = vld [vmem:[#allocation6 + $0x540] sm:$0xff]
    %v911 = vld [vmem:[#allocation6 + $0x548] sm:$0xff]
    %v912 = vld [vmem:[#allocation6 + $0x550] sm:$0xff]
    %v913 = vld [vmem:[#allocation6 + $0x558] sm:$0xff]
    %v914 = vld [vmem:[#allocation6 + $0x560] sm:$0xff]
    %v915 = vld [vmem:[#allocation6 + $0x568] sm:$0xff]
    %v916 = vld [vmem:[#allocation6 + $0x570] sm:$0xff]
    %v917 = vld [vmem:[#allocation6 + $0x578] sm:$0xff]
    %v918 = vld [vmem:[#allocation6 + $0x580] sm:$0xff]
    %v919 = vld [vmem:[#allocation6 + $0x588] sm:$0xff]
    %v920 = vld [vmem:[#allocation6 + $0x590] sm:$0xff]
    %v921 = vld [vmem:[#allocation6 + $0x598] sm:$0xff]
    %v922 = vld [vmem:[#allocation6 + $0x5a0] sm:$0xff]
    %v923 = vld [vmem:[#allocation6 + $0x5a8] sm:$0xff]
    %v924 = vld [vmem:[#allocation6 + $0x5b0] sm:$0xff]
    %v925 = vld [vmem:[#allocation6 + $0x5b8] sm:$0xff]
    %v926 = vld [vmem:[#allocation6 + $0x5c0] sm:$0xff]
    %v927 = vld [vmem:[#allocation6 + $0x5c8] sm:$0xff]
    %v928 = vld [vmem:[#allocation6 + $0x5d0] sm:$0xff]
    %v929 = vld [vmem:[#allocation6 + $0x5d8] sm:$0xff]
    %v930 = vld [vmem:[#allocation6 + $0x5e0] sm:$0xff]
    %v931 = vld [vmem:[#allocation6 + $0x5e8] sm:$0xff]
    %v932 = vld [vmem:[#allocation6 + $0x5f0] sm:$0xff]
    %v933 = vld [vmem:[#allocation6 + $0x5f8] sm:$0xff]
    %v934 = vld [vmem:[#allocation6 + $0x600] sm:$0xff]
    %v935 = vld [vmem:[#allocation6 + $0x608] sm:$0xff]
    %v936 = vld [vmem:[#allocation6 + $0x610] sm:$0xff]
    %v937 = vld [vmem:[#allocation6 + $0x618] sm:$0xff]
    %v938 = vld [vmem:[#allocation6 + $0x620] sm:$0xff]
    %v939 = vld [vmem:[#allocation6 + $0x628] sm:$0xff]
    %v940 = vld [vmem:[#allocation6 + $0x630] sm:$0xff]
    %v941 = vld [vmem:[#allocation6 + $0x638] sm:$0xff]
    %v942 = vld [vmem:[#allocation6 + $0x640] sm:$0xff]
    %v943 = vld [vmem:[#allocation6 + $0x648] sm:$0xff]
    %v944 = vld [vmem:[#allocation6 + $0x650] sm:$0xff]
    %v945 = vld [vmem:[#allocation6 + $0x658] sm:$0xff]
    %v946 = vld [vmem:[#allocation6 + $0x660] sm:$0xff]
    %v947 = vld [vmem:[#allocation6 + $0x668] sm:$0xff]
    %v948 = vld [vmem:[#allocation6 + $0x670] sm:$0xff]
    %v949 = vld [vmem:[#allocation6 + $0x678] sm:$0xff]
    %v950 = vld [vmem:[#allocation6 + $0x680] sm:$0xff]
    %v951 = vld [vmem:[#allocation6 + $0x688] sm:$0xff]
    %v952 = vld [vmem:[#allocation6 + $0x690] sm:$0xff]
    %v953 = vld [vmem:[#allocation6 + $0x698] sm:$0xff]
    %v954 = vld [vmem:[#allocation6 + $0x6a0] sm:$0xff]
    %v955 = vld [vmem:[#allocation6 + $0x6a8] sm:$0xff]
    %v956 = vld [vmem:[#allocation6 + $0x6b0] sm:$0xff]
    %v957 = vld [vmem:[#allocation6 + $0x6b8] sm:$0xff]
    %v958 = vld [vmem:[#allocation6 + $0x6c0] sm:$0xff]
    %v959 = vld [vmem:[#allocation6 + $0x6c8] sm:$0xff]
    %v960 = vld [vmem:[#allocation6 + $0x6d0] sm:$0xff]
    %v961 = vld [vmem:[#allocation6 + $0x6d8] sm:$0xff]
    %v962 = vld [vmem:[#allocation6 + $0x6e0] sm:$0xff]
    %v963 = vld [vmem:[#allocation6 + $0x6e8] sm:$0xff]
    %v964 = vld [vmem:[#allocation6 + $0x6f0] sm:$0xff]
    %v965 = vld [vmem:[#allocation6 + $0x6f8] sm:$0xff]
    %v966 = vld [vmem:[#allocation6 + $0x700] sm:$0xff]
    %v967 = vld [vmem:[#allocation6 + $0x708] sm:$0xff]
    %v968 = vld [vmem:[#allocation6 + $0x710] sm:$0xff]
    %v969 = vld [vmem:[#allocation6 + $0x718] sm:$0xff]
    %v970 = vld [vmem:[#allocation6 + $0x720] sm:$0xff]
    %v971 = vld [vmem:[#allocation6 + $0x728] sm:$0xff]
    %v972 = vld [vmem:[#allocation6 + $0x730] sm:$0xff]
    %v973 = vld [vmem:[#allocation6 + $0x738] sm:$0xff]
    %v974 = vld [vmem:[#allocation6 + $0x740] sm:$0xff]
    %v975 = vld [vmem:[#allocation6 + $0x748] sm:$0xff]
    %v976 = vld [vmem:[#allocation6 + $0x750] sm:$0xff]
    %v977 = vld [vmem:[#allocation6 + $0x758] sm:$0xff]
    %v978 = vld [vmem:[#allocation6 + $0x760] sm:$0xff]
    %v979 = vld [vmem:[#allocation6 + $0x768] sm:$0xff]
    %v980 = vld [vmem:[#allocation6 + $0x770] sm:$0xff]
    %v981 = vld [vmem:[#allocation6 + $0x778] sm:$0xff]
    %v982 = vld [vmem:[#allocation6 + $0x780] sm:$0xff]
    %v983 = vld [vmem:[#allocation6 + $0x788] sm:$0xff]
    %v984 = vld [vmem:[#allocation6 + $0x790] sm:$0xff]
    %v985 = vld [vmem:[#allocation6 + $0x798] sm:$0xff]
    %v986 = vld [vmem:[#allocation6 + $0x7a0] sm:$0xff]
    %v987 = vld [vmem:[#allocation6 + $0x7a8] sm:$0xff]
    %v988 = vld [vmem:[#allocation6 + $0x7b0] sm:$0xff]
    %v989 = vld [vmem:[#allocation6 + $0x7b8] sm:$0xff]
    %v990 = vld [vmem:[#allocation6 + $0x7c0] sm:$0xff]
    %v991 = vld [vmem:[#allocation6 + $0x7c8] sm:$0xff]
    %v992 = vld [vmem:[#allocation6 + $0x7d0] sm:$0xff]
    %v993 = vld [vmem:[#allocation6 + $0x7d8] sm:$0xff]
    %v994 = vld [vmem:[#allocation6 + $0x7e0] sm:$0xff]
    %v995 = vld [vmem:[#allocation6 + $0x7e8] sm:$0xff]
    %v996 = vld [vmem:[#allocation6 + $0x7f0] sm:$0xff]
    %v997 = vld [vmem:[#allocation6 + $0x7f8] sm:$0xff]
    %v998 = vld [vmem:[#allocation6 + $0x800] sm:$0xff]
    %v999 = vld [vmem:[#allocation6 + $0x808] sm:$0xff]
    %v1000 = vld [vmem:[#allocation6 + $0x810] sm:$0xff]
    %v1001 = vld [vmem:[#allocation6 + $0x818] sm:$0xff]
    %v1002 = vld [vmem:[#allocation6 + $0x820] sm:$0xff]
    %v1003 = vld [vmem:[#allocation6 + $0x828] sm:$0xff]
    %v1004 = vld [vmem:[#allocation6 + $0x830] sm:$0xff]
    %v1005 = vld [vmem:[#allocation6 + $0x838] sm:$0xff]
    %v1006 = vld [vmem:[#allocation6 + $0x840] sm:$0xff]
    %v1007 = vld [vmem:[#allocation6 + $0x848] sm:$0xff]
    %v1008 = vld [vmem:[#allocation6 + $0x850] sm:$0xff]
    %v1009 = vld [vmem:[#allocation6 + $0x858] sm:$0xff]
    %v1010 = vld [vmem:[#allocation6 + $0x860] sm:$0xff]
    %v1011 = vld [vmem:[#allocation6 + $0x868] sm:$0xff]
    %v1012 = vld [vmem:[#allocation6 + $0x870] sm:$0xff]
    %v1013 = vld [vmem:[#allocation6 + $0x878] sm:$0xff]
    %v1014 = vld [vmem:[#allocation6 + $0x880] sm:$0xff]
    %v1015 = vld [vmem:[#allocation6 + $0x888] sm:$0xff]
    %v1016 = vld [vmem:[#allocation6 + $0x890] sm:$0xff]
    %v1017 = vld [vmem:[#allocation6 + $0x898] sm:$0xff]
    %v1018 = vld [vmem:[#allocation6 + $0x8a0] sm:$0xff]
    %v1019 = vld [vmem:[#allocation6 + $0x8a8] sm:$0xff]
    %v1020 = vld [vmem:[#allocation6 + $0x8b0] sm:$0xff]
    %v1021 = vld [vmem:[#allocation6 + $0x8b8] sm:$0xff]
    %v1022 = vld [vmem:[#allocation6 + $0x8c0] sm:$0xff]
    %v1023 = vld [vmem:[#allocation6 + $0x8c8] sm:$0xff]
    %v1024 = vld [vmem:[#allocation6 + $0x8d0] sm:$0xff]
    %v1025 = vld [vmem:[#allocation6 + $0x8d8] sm:$0xff]
    %v1026 = vld [vmem:[#allocation6 + $0x8e0] sm:$0xff]
    %v1027 = vld [vmem:[#allocation6 + $0x8e8] sm:$0xff]
    %v1028 = vld [vmem:[#allocation6 + $0x8f0] sm:$0xff]
    %v1029 = vld [vmem:[#allocation6 + $0x8f8] sm:$0xff]
    %v1030 = vld [vmem:[#allocation6 + $0x900] sm:$0xff]
    %v1031 = vld [vmem:[#allocation6 + $0x908] sm:$0xff]
    %v1032 = vld [vmem:[#allocation6 + $0x910] sm:$0xff]
    %v1033 = vld [vmem:[#allocation6 + $0x918] sm:$0xff]
    %v1034 = vld [vmem:[#allocation6 + $0x920] sm:$0xff]
    %v1035 = vld [vmem:[#allocation6 + $0x928] sm:$0xff]
    %v1036 = vld [vmem:[#allocation6 + $0x930] sm:$0xff]
    %v1037 = vld [vmem:[#allocation6 + $0x938] sm:$0xff]
    %v1038 = vld [vmem:[#allocation6 + $0x940] sm:$0xff]
    %v1039 = vld [vmem:[#allocation6 + $0x948] sm:$0xff]
    %v1040 = vld [vmem:[#allocation6 + $0x950] sm:$0xff]
    %v1041 = vld [vmem:[#allocation6 + $0x958] sm:$0xff]
    %v1042 = vld [vmem:[#allocation6 + $0x960] sm:$0xff]
    %v1043 = vld [vmem:[#allocation6 + $0x968] sm:$0xff]
    %v1044 = vld [vmem:[#allocation6 + $0x970] sm:$0xff]
    %v1045 = vld [vmem:[#allocation6 + $0x978] sm:$0xff]
    %v1046 = vld [vmem:[#allocation6 + $0x980] sm:$0xff]
    %v1047 = vld [vmem:[#allocation6 + $0x988] sm:$0xff]
    %v1048 = vld [vmem:[#allocation6 + $0x990] sm:$0xff]
    %v1049 = vld [vmem:[#allocation6 + $0x998] sm:$0xff]
    %v1050 = vld [vmem:[#allocation6 + $0x9a0] sm:$0xff]
    %v1051 = vld [vmem:[#allocation6 + $0x9a8] sm:$0xff]
    %v1052 = vld [vmem:[#allocation6 + $0x9b0] sm:$0xff]
    %v1053 = vld [vmem:[#allocation6 + $0x9b8] sm:$0xff]
    %v1054 = vld [vmem:[#allocation6 + $0x9c0] sm:$0xff]
    %v1055 = vld [vmem:[#allocation6 + $0x9c8] sm:$0xff]
    %v1056 = vld [vmem:[#allocation6 + $0x9d0] sm:$0xff]
    %v1057 = vld [vmem:[#allocation6 + $0x9d8] sm:$0xff]
    %v1058 = vld [vmem:[#allocation6 + $0x9e0] sm:$0xff]
    %v1059 = vld [vmem:[#allocation6 + $0x9e8] sm:$0xff]
    %v1060 = vld [vmem:[#allocation6 + $0x9f0] sm:$0xff]
    %v1061 = vld [vmem:[#allocation6 + $0x9f8] sm:$0xff]
    %v1062 = vld [vmem:[#allocation6 + $0xa00] sm:$0xff]
    %v1063 = vld [vmem:[#allocation6 + $0xa08] sm:$0xff]
    %v1064 = vld [vmem:[#allocation6 + $0xa10] sm:$0xff]
    %v1065 = vld [vmem:[#allocation6 + $0xa18] sm:$0xff]
    %v1066 = vld [vmem:[#allocation6 + $0xa20] sm:$0xff]
    %v1067 = vld [vmem:[#allocation6 + $0xa28] sm:$0xff]
    %v1068 = vld [vmem:[#allocation6 + $0xa30] sm:$0xff]
    %v1069 = vld [vmem:[#allocation6 + $0xa38] sm:$0xff]
    %v1070 = vld [vmem:[#allocation6 + $0xa40] sm:$0xff]
    %v1071 = vld [vmem:[#allocation6 + $0xa48] sm:$0xff]
    %v1072 = vld [vmem:[#allocation6 + $0xa50] sm:$0xff]
    %v1073 = vld [vmem:[#allocation6 + $0xa58] sm:$0xff]
    %v1074 = vld [vmem:[#allocation6 + $0xa60] sm:$0xff]
    %v1075 = vld [vmem:[#allocation6 + $0xa68] sm:$0xff]
    %v1076 = vld [vmem:[#allocation6 + $0xa70] sm:$0xff]
    %v1077 = vld [vmem:[#allocation6 + $0xa78] sm:$0xff]
    %v1078 = vld [vmem:[#allocation6 + $0xa80] sm:$0xff]
    %v1079 = vld [vmem:[#allocation6 + $0xa88] sm:$0xff]
    %v1080 = vld [vmem:[#allocation6 + $0xa90] sm:$0xff]
    %v1081 = vld [vmem:[#allocation6 + $0xa98] sm:$0xff]
    %v1082 = vld [vmem:[#allocation6 + $0xaa0] sm:$0xff]
    %v1083 = vld [vmem:[#allocation6 + $0xaa8] sm:$0xff]
    %v1084 = vld [vmem:[#allocation6 + $0xab0] sm:$0xff]
    %v1085 = vld [vmem:[#allocation6 + $0xab8] sm:$0xff]
    %v1086 = vld [vmem:[#allocation6 + $0xac0] sm:$0xff]
    %v1087 = vld [vmem:[#allocation6 + $0xac8] sm:$0xff]
    %v1088 = vld [vmem:[#allocation6 + $0xad0] sm:$0xff]
    %v1089 = vld [vmem:[#allocation6 + $0xad8] sm:$0xff]
    %v1090 = vld [vmem:[#allocation6 + $0xae0] sm:$0xff]
    %v1091 = vld [vmem:[#allocation6 + $0xae8] sm:$0xff]
    %v1092 = vld [vmem:[#allocation6 + $0xaf0] sm:$0xff]
    %v1093 = vld [vmem:[#allocation6 + $0xaf8] sm:$0xff]
    %v1094 = vld [vmem:[#allocation6 + $0xb00] sm:$0xff]
    %v1095 = vld [vmem:[#allocation6 + $0xb08] sm:$0xff]
    %v1096 = vld [vmem:[#allocation6 + $0xb10] sm:$0xff]
    %v1097 = vld [vmem:[#allocation6 + $0xb18] sm:$0xff]
    %v1098 = vld [vmem:[#allocation6 + $0xb20] sm:$0xff]
    %v1099 = vld [vmem:[#allocation6 + $0xb28] sm:$0xff]
    %v1100 = vld [vmem:[#allocation6 + $0xb30] sm:$0xff]
    %v1101 = vld [vmem:[#allocation6 + $0xb38] sm:$0xff]
    %v1102 = vld [vmem:[#allocation6 + $0xb40] sm:$0xff]
    %v1103 = vld [vmem:[#allocation6 + $0xb48] sm:$0xff]
    %v1104 = vld [vmem:[#allocation6 + $0xb50] sm:$0xff]
    %v1105 = vld [vmem:[#allocation6 + $0xb58] sm:$0xff]
    %v1106 = vld [vmem:[#allocation6 + $0xb60] sm:$0xff]
    %v1107 = vld [vmem:[#allocation6 + $0xb68] sm:$0xff]
    %v1108 = vld [vmem:[#allocation6 + $0xb70] sm:$0xff]
    %v1109 = vld [vmem:[#allocation6 + $0xb78] sm:$0xff]
    %v1110 = vld [vmem:[#allocation6 + $0xb80] sm:$0xff]
    %v1111 = vld [vmem:[#allocation6 + $0xb88] sm:$0xff]
    %v1112 = vld [vmem:[#allocation6 + $0xb90] sm:$0xff]
    %v1113 = vld [vmem:[#allocation6 + $0xb98] sm:$0xff]
    %v1114 = vld [vmem:[#allocation6 + $0xba0] sm:$0xff]
    %v1115 = vld [vmem:[#allocation6 + $0xba8] sm:$0xff]
    %v1116 = vld [vmem:[#allocation6 + $0xbb0] sm:$0xff]
    %v1117 = vld [vmem:[#allocation6 + $0xbb8] sm:$0xff]
    %v1118 = vld [vmem:[#allocation6 + $0xbc0] sm:$0xff]
    %v1119 = vld [vmem:[#allocation6 + $0xbc8] sm:$0xff]
    %v1120 = vld [vmem:[#allocation6 + $0xbd0] sm:$0xff]
    %v1121 = vld [vmem:[#allocation6 + $0xbd8] sm:$0xff]
    %v1122 = vld [vmem:[#allocation6 + $0xbe0] sm:$0xff]
    %v1123 = vld [vmem:[#allocation6 + $0xbe8] sm:$0xff]
    %v1124 = vld [vmem:[#allocation6 + $0xbf0] sm:$0xff]
    %v1125 = vld [vmem:[#allocation6 + $0xbf8] sm:$0xff]
    %v1222 = vunpack.c.l.b16 %v646
    %v1223 = vunpack.c.h.b16 %v646
    %v1224 = vunpack.c.l.b16 %v647
    %v1225 = vunpack.c.h.b16 %v647
    %v1226 = vunpack.c.l.b16 %v648
    %v1227 = vunpack.c.h.b16 %v648
    %v1228 = vunpack.c.l.b16 %v649
    %v1229 = vunpack.c.h.b16 %v649
    %v1230 = vunpack.c.l.b16 %v650
    %v1231 = vunpack.c.h.b16 %v650
    %v1232 = vunpack.c.l.b16 %v651
    %v1233 = vunpack.c.h.b16 %v651
    %v1234 = vunpack.c.l.b16 %v652
    %v1235 = vunpack.c.h.b16 %v652
    %v1236 = vunpack.c.l.b16 %v653
    %v1237 = vunpack.c.h.b16 %v653
    %v1238 = vunpack.c.l.b16 %v654
    %v1239 = vunpack.c.h.b16 %v654
    %v1240 = vunpack.c.l.b16 %v655
    %v1241 = vunpack.c.h.b16 %v655
    %v1242 = vunpack.c.l.b16 %v656
    %v1243 = vunpack.c.h.b16 %v656
    %v1244 = vunpack.c.l.b16 %v657
    %v1245 = vunpack.c.h.b16 %v657
    %v1246 = vunpack.c.l.b16 %v658
    %v1247 = vunpack.c.h.b16 %v658
    %v1248 = vunpack.c.l.b16 %v659
    %v1249 = vunpack.c.h.b16 %v659
    %v1250 = vunpack.c.l.b16 %v660
    %v1251 = vunpack.c.h.b16 %v660
    %v1252 = vunpack.c.l.b16 %v661
    %v1253 = vunpack.c.h.b16 %v661
    %v1254 = vunpack.c.l.b16 %v662
    %v1255 = vunpack.c.h.b16 %v662
    %v1256 = vunpack.c.l.b16 %v663
    %v1257 = vunpack.c.h.b16 %v663
    %v1258 = vunpack.c.l.b16 %v664
    %v1259 = vunpack.c.h.b16 %v664
    %v1260 = vunpack.c.l.b16 %v665
    %v1261 = vunpack.c.h.b16 %v665
    %v1262 = vunpack.c.l.b16 %v666
    %v1263 = vunpack.c.h.b16 %v666
    %v1264 = vunpack.c.l.b16 %v667
    %v1265 = vunpack.c.h.b16 %v667
    %v1266 = vunpack.c.l.b16 %v668
    %v1267 = vunpack.c.h.b16 %v668
    %v1268 = vunpack.c.l.b16 %v669
    %v1269 = vunpack.c.h.b16 %v669
    %v1270 = vunpack.c.l.b16 %v670
    %v1271 = vunpack.c.h.b16 %v670
    %v1272 = vunpack.c.l.b16 %v671
    %v1273 = vunpack.c.h.b16 %v671
    %v1274 = vunpack.c.l.b16 %v672
    %v1275 = vunpack.c.h.b16 %v672
    %v1276 = vunpack.c.l.b16 %v673
    %v1277 = vunpack.c.h.b16 %v673
    %v1278 = vunpack.c.l.b16 %v674
    %v1279 = vunpack.c.h.b16 %v674
    %v1280 = vunpack.c.l.b16 %v675
    %v1281 = vunpack.c.h.b16 %v675
    %v1282 = vunpack.c.l.b16 %v676
    %v1283 = vunpack.c.h.b16 %v676
    %v1284 = vunpack.c.l.b16 %v677
    %v1285 = vunpack.c.h.b16 %v677
    %v1286 = vunpack.c.l.b16 %v678
    %v1287 = vunpack.c.h.b16 %v678
    %v1288 = vunpack.c.l.b16 %v679
    %v1289 = vunpack.c.h.b16 %v679
    %v1290 = vunpack.c.l.b16 %v680
    %v1291 = vunpack.c.h.b16 %v680
    %v1292 = vunpack.c.l.b16 %v681
    %v1293 = vunpack.c.h.b16 %v681
    %v1294 = vunpack.c.l.b16 %v682
    %v1295 = vunpack.c.h.b16 %v682
    %v1296 = vunpack.c.l.b16 %v683
    %v1297 = vunpack.c.h.b16 %v683
    %v1298 = vunpack.c.l.b16 %v684
    %v1299 = vunpack.c.h.b16 %v684
    %v1300 = vunpack.c.l.b16 %v685
    %v1301 = vunpack.c.h.b16 %v685
    %v1302 = vunpack.c.l.b16 %v686
    %v1303 = vunpack.c.h.b16 %v686
    %v1304 = vunpack.c.l.b16 %v687
    %v1305 = vunpack.c.h.b16 %v687
    %v1306 = vunpack.c.l.b16 %v688
    %v1307 = vunpack.c.h.b16 %v688
    %v1308 = vunpack.c.l.b16 %v689
    %v1309 = vunpack.c.h.b16 %v689
    %v1310 = vunpack.c.l.b16 %v690
    %v1311 = vunpack.c.h.b16 %v690
    %v1312 = vunpack.c.l.b16 %v691
    %v1313 = vunpack.c.h.b16 %v691
    %v1314 = vunpack.c.l.b16 %v692
    %v1315 = vunpack.c.h.b16 %v692
    %v1316 = vunpack.c.l.b16 %v693
    %v1317 = vunpack.c.h.b16 %v693
    %v1318 = vunpack.c.l.b16 %v694
    %v1319 = vunpack.c.h.b16 %v694
    %v1320 = vunpack.c.l.b16 %v695
    %v1321 = vunpack.c.h.b16 %v695
    %v1322 = vunpack.c.l.b16 %v696
    %v1323 = vunpack.c.h.b16 %v696
    %v1324 = vunpack.c.l.b16 %v697
    %v1325 = vunpack.c.h.b16 %v697
    %v1326 = vunpack.c.l.b16 %v698
    %v1327 = vunpack.c.h.b16 %v698
    %v1328 = vunpack.c.l.b16 %v699
    %v1329 = vunpack.c.h.b16 %v699
    %v1330 = vunpack.c.l.b16 %v700
    %v1331 = vunpack.c.h.b16 %v700
    %v1332 = vunpack.c.l.b16 %v701
    %v1333 = vunpack.c.h.b16 %v701
    %v1334 = vunpack.c.l.b16 %v702
    %v1335 = vunpack.c.h.b16 %v702
    %v1336 = vunpack.c.l.b16 %v703
    %v1337 = vunpack.c.h.b16 %v703
    %v1338 = vunpack.c.l.b16 %v704
    %v1339 = vunpack.c.h.b16 %v704
    %v1340 = vunpack.c.l.b16 %v705
    %v1341 = vunpack.c.h.b16 %v705
    %v1342 = vunpack.c.l.b16 %v706
    %v1343 = vunpack.c.h.b16 %v706
    %v1344 = vunpack.c.l.b16 %v707
    %v1345 = vunpack.c.h.b16 %v707
    %v1346 = vunpack.c.l.b16 %v708
    %v1347 = vunpack.c.h.b16 %v708
    %v1348 = vunpack.c.l.b16 %v709
    %v1349 = vunpack.c.h.b16 %v709
    %v1350 = vunpack.c.l.b16 %v710
    %v1351 = vunpack.c.h.b16 %v710
    %v1352 = vunpack.c.l.b16 %v711
    %v1353 = vunpack.c.h.b16 %v711
    %v1354 = vunpack.c.l.b16 %v712
    %v1355 = vunpack.c.h.b16 %v712
    %v1356 = vunpack.c.l.b16 %v713
    %v1357 = vunpack.c.h.b16 %v713
    %v1358 = vunpack.c.l.b16 %v714
    %v1359 = vunpack.c.h.b16 %v714
    %v1360 = vunpack.c.l.b16 %v715
    %v1361 = vunpack.c.h.b16 %v715
    %v1362 = vunpack.c.l.b16 %v716
    %v1363 = vunpack.c.h.b16 %v716
    %v1364 = vunpack.c.l.b16 %v717
    %v1365 = vunpack.c.h.b16 %v717
    %v1366 = vunpack.c.l.b16 %v718
    %v1367 = vunpack.c.h.b16 %v718
    %v1368 = vunpack.c.l.b16 %v719
    %v1369 = vunpack.c.h.b16 %v719
    %v1370 = vunpack.c.l.b16 %v720
    %v1371 = vunpack.c.h.b16 %v720
    %v1372 = vunpack.c.l.b16 %v721
    %v1373 = vunpack.c.h.b16 %v721
    %v1374 = vunpack.c.l.b16 %v722
    %v1375 = vunpack.c.h.b16 %v722
    %v1376 = vunpack.c.l.b16 %v723
    %v1377 = vunpack.c.h.b16 %v723
    %v1378 = vunpack.c.l.b16 %v724
    %v1379 = vunpack.c.h.b16 %v724
    %v1380 = vunpack.c.l.b16 %v725
    %v1381 = vunpack.c.h.b16 %v725
    %v1382 = vunpack.c.l.b16 %v726
    %v1383 = vunpack.c.h.b16 %v726
    %v1384 = vunpack.c.l.b16 %v727
    %v1385 = vunpack.c.h.b16 %v727
    %v1386 = vunpack.c.l.b16 %v728
    %v1387 = vunpack.c.h.b16 %v728
    %v1388 = vunpack.c.l.b16 %v729
    %v1389 = vunpack.c.h.b16 %v729
    %v1390 = vunpack.c.l.b16 %v730
    %v1391 = vunpack.c.h.b16 %v730
    %v1392 = vunpack.c.l.b16 %v731
    %v1393 = vunpack.c.h.b16 %v731
    %v1394 = vunpack.c.l.b16 %v732
    %v1395 = vunpack.c.h.b16 %v732
    %v1396 = vunpack.c.l.b16 %v733
    %v1397 = vunpack.c.h.b16 %v733
    %v1398 = vunpack.c.l.b16 %v734
    %v1399 = vunpack.c.h.b16 %v734
    %v1400 = vunpack.c.l.b16 %v735
    %v1401 = vunpack.c.h.b16 %v735
    %v1402 = vunpack.c.l.b16 %v736
    %v1403 = vunpack.c.h.b16 %v736
    %v1404 = vunpack.c.l.b16 %v737
    %v1405 = vunpack.c.h.b16 %v737
    %v1406 = vunpack.c.l.b16 %v738
    %v1407 = vunpack.c.h.b16 %v738
    %v1408 = vunpack.c.l.b16 %v739
    %v1409 = vunpack.c.h.b16 %v739
    %v1410 = vunpack.c.l.b16 %v740
    %v1411 = vunpack.c.h.b16 %v740
    %v1412 = vunpack.c.l.b16 %v741
    %v1413 = vunpack.c.h.b16 %v741
    %v1414 = vpack.c.b16 %v1228, %v1222
    %v1415 = vpack.c.b16 %v1229, %v1223
    %v1416 = vpack.c.b16 %v1230, %v1224
    %v1417 = vpack.c.b16 %v1231, %v1225
    %v1418 = vpack.c.b16 %v1232, %v1226
    %v1419 = vpack.c.b16 %v1233, %v1227
    %v1420 = vpack.c.b16 %v1240, %v1234
    %v1421 = vpack.c.b16 %v1241, %v1235
    %v1422 = vpack.c.b16 %v1242, %v1236
    %v1423 = vpack.c.b16 %v1243, %v1237
    %v1424 = vpack.c.b16 %v1244, %v1238
    %v1425 = vpack.c.b16 %v1245, %v1239
    %v1426 = vpack.c.b16 %v1252, %v1246
    %v1427 = vpack.c.b16 %v1253, %v1247
    %v1428 = vpack.c.b16 %v1254, %v1248
    %v1429 = vpack.c.b16 %v1255, %v1249
    %v1430 = vpack.c.b16 %v1256, %v1250
    %v1431 = vpack.c.b16 %v1257, %v1251
    %v1432 = vpack.c.b16 %v1264, %v1258
    %v1433 = vpack.c.b16 %v1265, %v1259
    %v1434 = vpack.c.b16 %v1266, %v1260
    %v1435 = vpack.c.b16 %v1267, %v1261
    %v1436 = vpack.c.b16 %v1268, %v1262
    %v1437 = vpack.c.b16 %v1269, %v1263
    %v1438 = vpack.c.b16 %v1276, %v1270
    %v1439 = vpack.c.b16 %v1277, %v1271
    %v1440 = vpack.c.b16 %v1278, %v1272
    %v1441 = vpack.c.b16 %v1279, %v1273
    %v1442 = vpack.c.b16 %v1280, %v1274
    %v1443 = vpack.c.b16 %v1281, %v1275
    %v1444 = vpack.c.b16 %v1288, %v1282
    %v1445 = vpack.c.b16 %v1289, %v1283
    %v1446 = vpack.c.b16 %v1290, %v1284
    %v1447 = vpack.c.b16 %v1291, %v1285
    %v1448 = vpack.c.b16 %v1292, %v1286
    %v1449 = vpack.c.b16 %v1293, %v1287
    %v1450 = vpack.c.b16 %v1300, %v1294
    %v1451 = vpack.c.b16 %v1301, %v1295
    %v1452 = vpack.c.b16 %v1302, %v1296
    %v1453 = vpack.c.b16 %v1303, %v1297
    %v1454 = vpack.c.b16 %v1304, %v1298
    %v1455 = vpack.c.b16 %v1305, %v1299
    %v1456 = vpack.c.b16 %v1312, %v1306
    %v1457 = vpack.c.b16 %v1313, %v1307
    %v1458 = vpack.c.b16 %v1314, %v1308
    %v1459 = vpack.c.b16 %v1315, %v1309
    %v1460 = vpack.c.b16 %v1316, %v1310
    %v1461 = vpack.c.b16 %v1317, %v1311
    %v1462 = vpack.c.b16 %v1324, %v1318
    %v1463 = vpack.c.b16 %v1325, %v1319
    %v1464 = vpack.c.b16 %v1326, %v1320
    %v1465 = vpack.c.b16 %v1327, %v1321
    %v1466 = vpack.c.b16 %v1328, %v1322
    %v1467 = vpack.c.b16 %v1329, %v1323
    %v1468 = vpack.c.b16 %v1336, %v1330
    %v1469 = vpack.c.b16 %v1337, %v1331
    %v1470 = vpack.c.b16 %v1338, %v1332
    %v1471 = vpack.c.b16 %v1339, %v1333
    %v1472 = vpack.c.b16 %v1340, %v1334
    %v1473 = vpack.c.b16 %v1341, %v1335
    %v1474 = vpack.c.b16 %v1348, %v1342
    %v1475 = vpack.c.b16 %v1349, %v1343
    %v1476 = vpack.c.b16 %v1350, %v1344
    %v1477 = vpack.c.b16 %v1351, %v1345
    %v1478 = vpack.c.b16 %v1352, %v1346
    %v1479 = vpack.c.b16 %v1353, %v1347
    %v1480 = vpack.c.b16 %v1360, %v1354
    %v1481 = vpack.c.b16 %v1361, %v1355
    %v1482 = vpack.c.b16 %v1362, %v1356
    %v1483 = vpack.c.b16 %v1363, %v1357
    %v1484 = vpack.c.b16 %v1364, %v1358
    %v1485 = vpack.c.b16 %v1365, %v1359
    %v1486 = vpack.c.b16 %v1372, %v1366
    %v1487 = vpack.c.b16 %v1373, %v1367
    %v1488 = vpack.c.b16 %v1374, %v1368
    %v1489 = vpack.c.b16 %v1375, %v1369
    %v1490 = vpack.c.b16 %v1376, %v1370
    %v1491 = vpack.c.b16 %v1377, %v1371
    %v1492 = vpack.c.b16 %v1384, %v1378
    %v1493 = vpack.c.b16 %v1385, %v1379
    %v1494 = vpack.c.b16 %v1386, %v1380
    %v1495 = vpack.c.b16 %v1387, %v1381
    %v1496 = vpack.c.b16 %v1388, %v1382
    %v1497 = vpack.c.b16 %v1389, %v1383
    %v1498 = vpack.c.b16 %v1396, %v1390
    %v1499 = vpack.c.b16 %v1397, %v1391
    %v1500 = vpack.c.b16 %v1398, %v1392
    %v1501 = vpack.c.b16 %v1399, %v1393
    %v1502 = vpack.c.b16 %v1400, %v1394
    %v1503 = vpack.c.b16 %v1401, %v1395
    %v1504 = vpack.c.b16 %v1408, %v1402
    %v1505 = vpack.c.b16 %v1409, %v1403
    %v1506 = vpack.c.b16 %v1410, %v1404
    %v1507 = vpack.c.b16 %v1411, %v1405
    %v1508 = vpack.c.b16 %v1412, %v1406
    %v1509 = vpack.c.b16 %v1413, %v1407
    %v1990 = vunpack.c.l.b16 %v742
    %v1991 = vunpack.c.h.b16 %v742
    %v1992 = vunpack.c.l.b16 %v743
    %v1993 = vunpack.c.h.b16 %v743
    %v1994 = vunpack.c.l.b16 %v744
    %v1995 = vunpack.c.h.b16 %v744
    %v1996 = vunpack.c.l.b16 %v745
    %v1997 = vunpack.c.h.b16 %v745
    %v1998 = vunpack.c.l.b16 %v746
    %v1999 = vunpack.c.h.b16 %v746
    %v2000 = vunpack.c.l.b16 %v747
    %v2001 = vunpack.c.h.b16 %v747
    %v2002 = vunpack.c.l.b16 %v748
    %v2003 = vunpack.c.h.b16 %v748
    %v2004 = vunpack.c.l.b16 %v749
    %v2005 = vunpack.c.h.b16 %v749
    %v2006 = vunpack.c.l.b16 %v750
    %v2007 = vunpack.c.h.b16 %v750
    %v2008 = vunpack.c.l.b16 %v751
    %v2009 = vunpack.c.h.b16 %v751
    %v2010 = vunpack.c.l.b16 %v752
    %v2011 = vunpack.c.h.b16 %v752
    %v2012 = vunpack.c.l.b16 %v753
    %v2013 = vunpack.c.h.b16 %v753
    %v2014 = vunpack.c.l.b16 %v754
    %v2015 = vunpack.c.h.b16 %v754
    %v2016 = vunpack.c.l.b16 %v755
    %v2017 = vunpack.c.h.b16 %v755
    %v2018 = vunpack.c.l.b16 %v756
    %v2019 = vunpack.c.h.b16 %v756
    %v2020 = vunpack.c.l.b16 %v757
    %v2021 = vunpack.c.h.b16 %v757
    %v2022 = vunpack.c.l.b16 %v758
    %v2023 = vunpack.c.h.b16 %v758
    %v2024 = vunpack.c.l.b16 %v759
    %v2025 = vunpack.c.h.b16 %v759
    %v2026 = vunpack.c.l.b16 %v760
    %v2027 = vunpack.c.h.b16 %v760
    %v2028 = vunpack.c.l.b16 %v761
    %v2029 = vunpack.c.h.b16 %v761
    %v2030 = vunpack.c.l.b16 %v762
    %v2031 = vunpack.c.h.b16 %v762
    %v2032 = vunpack.c.l.b16 %v763
    %v2033 = vunpack.c.h.b16 %v763
    %v2034 = vunpack.c.l.b16 %v764
    %v2035 = vunpack.c.h.b16 %v764
    %v2036 = vunpack.c.l.b16 %v765
    %v2037 = vunpack.c.h.b16 %v765
    %v2038 = vunpack.c.l.b16 %v766
    %v2039 = vunpack.c.h.b16 %v766
    %v2040 = vunpack.c.l.b16 %v767
    %v2041 = vunpack.c.h.b16 %v767
    %v2042 = vunpack.c.l.b16 %v768
    %v2043 = vunpack.c.h.b16 %v768
    %v2044 = vunpack.c.l.b16 %v769
    %v2045 = vunpack.c.h.b16 %v769
    %v2046 = vunpack.c.l.b16 %v770
    %v2047 = vunpack.c.h.b16 %v770
    %v2048 = vunpack.c.l.b16 %v771
    %v2049 = vunpack.c.h.b16 %v771
    %v2050 = vunpack.c.l.b16 %v772
    %v2051 = vunpack.c.h.b16 %v772
    %v2052 = vunpack.c.l.b16 %v773
    %v2053 = vunpack.c.h.b16 %v773
    %v2054 = vunpack.c.l.b16 %v774
    %v2055 = vunpack.c.h.b16 %v774
    %v2056 = vunpack.c.l.b16 %v775
    %v2057 = vunpack.c.h.b16 %v775
    %v2058 = vunpack.c.l.b16 %v776
    %v2059 = vunpack.c.h.b16 %v776
    %v2060 = vunpack.c.l.b16 %v777
    %v2061 = vunpack.c.h.b16 %v777
    %v2062 = vunpack.c.l.b16 %v778
    %v2063 = vunpack.c.h.b16 %v778
    %v2064 = vunpack.c.l.b16 %v779
    %v2065 = vunpack.c.h.b16 %v779
    %v2066 = vunpack.c.l.b16 %v780
    %v2067 = vunpack.c.h.b16 %v780
    %v2068 = vunpack.c.l.b16 %v781
    %v2069 = vunpack.c.h.b16 %v781
    %v2070 = vunpack.c.l.b16 %v782
    %v2071 = vunpack.c.h.b16 %v782
    %v2072 = vunpack.c.l.b16 %v783
    %v2073 = vunpack.c.h.b16 %v783
    %v2074 = vunpack.c.l.b16 %v784
    %v2075 = vunpack.c.h.b16 %v784
    %v2076 = vunpack.c.l.b16 %v785
    %v2077 = vunpack.c.h.b16 %v785
    %v2078 = vunpack.c.l.b16 %v786
    %v2079 = vunpack.c.h.b16 %v786
    %v2080 = vunpack.c.l.b16 %v787
    %v2081 = vunpack.c.h.b16 %v787
    %v2082 = vunpack.c.l.b16 %v788
    %v2083 = vunpack.c.h.b16 %v788
    %v2084 = vunpack.c.l.b16 %v789
    %v2085 = vunpack.c.h.b16 %v789
    %v2086 = vunpack.c.l.b16 %v790
    %v2087 = vunpack.c.h.b16 %v790
    %v2088 = vunpack.c.l.b16 %v791
    %v2089 = vunpack.c.h.b16 %v791
    %v2090 = vunpack.c.l.b16 %v792
    %v2091 = vunpack.c.h.b16 %v792
    %v2092 = vunpack.c.l.b16 %v793
    %v2093 = vunpack.c.h.b16 %v793
    %v2094 = vunpack.c.l.b16 %v794
    %v2095 = vunpack.c.h.b16 %v794
    %v2096 = vunpack.c.l.b16 %v795
    %v2097 = vunpack.c.h.b16 %v795
    %v2098 = vunpack.c.l.b16 %v796
    %v2099 = vunpack.c.h.b16 %v796
    %v2100 = vunpack.c.l.b16 %v797
    %v2101 = vunpack.c.h.b16 %v797
    %v2102 = vunpack.c.l.b16 %v798
    %v2103 = vunpack.c.h.b16 %v798
    %v2104 = vunpack.c.l.b16 %v799
    %v2105 = vunpack.c.h.b16 %v799
    %v2106 = vunpack.c.l.b16 %v800
    %v2107 = vunpack.c.h.b16 %v800
    %v2108 = vunpack.c.l.b16 %v801
    %v2109 = vunpack.c.h.b16 %v801
    %v2110 = vunpack.c.l.b16 %v802
    %v2111 = vunpack.c.h.b16 %v802
    %v2112 = vunpack.c.l.b16 %v803
    %v2113 = vunpack.c.h.b16 %v803
    %v2114 = vunpack.c.l.b16 %v804
    %v2115 = vunpack.c.h.b16 %v804
    %v2116 = vunpack.c.l.b16 %v805
    %v2117 = vunpack.c.h.b16 %v805
    %v2118 = vunpack.c.l.b16 %v806
    %v2119 = vunpack.c.h.b16 %v806
    %v2120 = vunpack.c.l.b16 %v807
    %v2121 = vunpack.c.h.b16 %v807
    %v2122 = vunpack.c.l.b16 %v808
    %v2123 = vunpack.c.h.b16 %v808
    %v2124 = vunpack.c.l.b16 %v809
    %v2125 = vunpack.c.h.b16 %v809
    %v2126 = vunpack.c.l.b16 %v810
    %v2127 = vunpack.c.h.b16 %v810
    %v2128 = vunpack.c.l.b16 %v811
    %v2129 = vunpack.c.h.b16 %v811
    %v2130 = vunpack.c.l.b16 %v812
    %v2131 = vunpack.c.h.b16 %v812
    %v2132 = vunpack.c.l.b16 %v813
    %v2133 = vunpack.c.h.b16 %v813
    %v2134 = vunpack.c.l.b16 %v814
    %v2135 = vunpack.c.h.b16 %v814
    %v2136 = vunpack.c.l.b16 %v815
    %v2137 = vunpack.c.h.b16 %v815
    %v2138 = vunpack.c.l.b16 %v816
    %v2139 = vunpack.c.h.b16 %v816
    %v2140 = vunpack.c.l.b16 %v817
    %v2141 = vunpack.c.h.b16 %v817
    %v2142 = vunpack.c.l.b16 %v818
    %v2143 = vunpack.c.h.b16 %v818
    %v2144 = vunpack.c.l.b16 %v819
    %v2145 = vunpack.c.h.b16 %v819
    %v2146 = vunpack.c.l.b16 %v820
    %v2147 = vunpack.c.h.b16 %v820
    %v2148 = vunpack.c.l.b16 %v821
    %v2149 = vunpack.c.h.b16 %v821
    %v2150 = vunpack.c.l.b16 %v822
    %v2151 = vunpack.c.h.b16 %v822
    %v2152 = vunpack.c.l.b16 %v823
    %v2153 = vunpack.c.h.b16 %v823
    %v2154 = vunpack.c.l.b16 %v824
    %v2155 = vunpack.c.h.b16 %v824
    %v2156 = vunpack.c.l.b16 %v825
    %v2157 = vunpack.c.h.b16 %v825
    %v2158 = vunpack.c.l.b16 %v826
    %v2159 = vunpack.c.h.b16 %v826
    %v2160 = vunpack.c.l.b16 %v827
    %v2161 = vunpack.c.h.b16 %v827
    %v2162 = vunpack.c.l.b16 %v828
    %v2163 = vunpack.c.h.b16 %v828
    %v2164 = vunpack.c.l.b16 %v829
    %v2165 = vunpack.c.h.b16 %v829
    %v2166 = vunpack.c.l.b16 %v830
    %v2167 = vunpack.c.h.b16 %v830
    %v2168 = vunpack.c.l.b16 %v831
    %v2169 = vunpack.c.h.b16 %v831
    %v2170 = vunpack.c.l.b16 %v832
    %v2171 = vunpack.c.h.b16 %v832
    %v2172 = vunpack.c.l.b16 %v833
    %v2173 = vunpack.c.h.b16 %v833
    %v2174 = vunpack.c.l.b16 %v834
    %v2175 = vunpack.c.h.b16 %v834
    %v2176 = vunpack.c.l.b16 %v835
    %v2177 = vunpack.c.h.b16 %v835
    %v2178 = vunpack.c.l.b16 %v836
    %v2179 = vunpack.c.h.b16 %v836
    %v2180 = vunpack.c.l.b16 %v837
    %v2181 = vunpack.c.h.b16 %v837
    %v2182 = vunpack.c.l.b16 %v838
    %v2183 = vunpack.c.h.b16 %v838
    %v2184 = vunpack.c.l.b16 %v839
    %v2185 = vunpack.c.h.b16 %v839
    %v2186 = vunpack.c.l.b16 %v840
    %v2187 = vunpack.c.h.b16 %v840
    %v2188 = vunpack.c.l.b16 %v841
    %v2189 = vunpack.c.h.b16 %v841
    %v2190 = vunpack.c.l.b16 %v842
    %v2191 = vunpack.c.h.b16 %v842
    %v2192 = vunpack.c.l.b16 %v843
    %v2193 = vunpack.c.h.b16 %v843
    %v2194 = vunpack.c.l.b16 %v844
    %v2195 = vunpack.c.h.b16 %v844
    %v2196 = vunpack.c.l.b16 %v845
    %v2197 = vunpack.c.h.b16 %v845
    %v2198 = vunpack.c.l.b16 %v846
    %v2199 = vunpack.c.h.b16 %v846
    %v2200 = vunpack.c.l.b16 %v847
    %v2201 = vunpack.c.h.b16 %v847
    %v2202 = vunpack.c.l.b16 %v848
    %v2203 = vunpack.c.h.b16 %v848
    %v2204 = vunpack.c.l.b16 %v849
    %v2205 = vunpack.c.h.b16 %v849
    %v2206 = vunpack.c.l.b16 %v850
    %v2207 = vunpack.c.h.b16 %v850
    %v2208 = vunpack.c.l.b16 %v851
    %v2209 = vunpack.c.h.b16 %v851
    %v2210 = vunpack.c.l.b16 %v852
    %v2211 = vunpack.c.h.b16 %v852
    %v2212 = vunpack.c.l.b16 %v853
    %v2213 = vunpack.c.h.b16 %v853
    %v2214 = vunpack.c.l.b16 %v854
    %v2215 = vunpack.c.h.b16 %v854
    %v2216 = vunpack.c.l.b16 %v855
    %v2217 = vunpack.c.h.b16 %v855
    %v2218 = vunpack.c.l.b16 %v856
    %v2219 = vunpack.c.h.b16 %v856
    %v2220 = vunpack.c.l.b16 %v857
    %v2221 = vunpack.c.h.b16 %v857
    %v2222 = vunpack.c.l.b16 %v858
    %v2223 = vunpack.c.h.b16 %v858
    %v2224 = vunpack.c.l.b16 %v859
    %v2225 = vunpack.c.h.b16 %v859
    %v2226 = vunpack.c.l.b16 %v860
    %v2227 = vunpack.c.h.b16 %v860
    %v2228 = vunpack.c.l.b16 %v861
    %v2229 = vunpack.c.h.b16 %v861
    %v2230 = vunpack.c.l.b16 %v862
    %v2231 = vunpack.c.h.b16 %v862
    %v2232 = vunpack.c.l.b16 %v863
    %v2233 = vunpack.c.h.b16 %v863
    %v2234 = vunpack.c.l.b16 %v864
    %v2235 = vunpack.c.h.b16 %v864
    %v2236 = vunpack.c.l.b16 %v865
    %v2237 = vunpack.c.h.b16 %v865
    %v2238 = vunpack.c.l.b16 %v866
    %v2239 = vunpack.c.h.b16 %v866
    %v2240 = vunpack.c.l.b16 %v867
    %v2241 = vunpack.c.h.b16 %v867
    %v2242 = vunpack.c.l.b16 %v868
    %v2243 = vunpack.c.h.b16 %v868
    %v2244 = vunpack.c.l.b16 %v869
    %v2245 = vunpack.c.h.b16 %v869
    %v2246 = vunpack.c.l.b16 %v870
    %v2247 = vunpack.c.h.b16 %v870
    %v2248 = vunpack.c.l.b16 %v871
    %v2249 = vunpack.c.h.b16 %v871
    %v2250 = vunpack.c.l.b16 %v872
    %v2251 = vunpack.c.h.b16 %v872
    %v2252 = vunpack.c.l.b16 %v873
    %v2253 = vunpack.c.h.b16 %v873
    %v2254 = vunpack.c.l.b16 %v874
    %v2255 = vunpack.c.h.b16 %v874
    %v2256 = vunpack.c.l.b16 %v875
    %v2257 = vunpack.c.h.b16 %v875
    %v2258 = vunpack.c.l.b16 %v876
    %v2259 = vunpack.c.h.b16 %v876
    %v2260 = vunpack.c.l.b16 %v877
    %v2261 = vunpack.c.h.b16 %v877
    %v2262 = vunpack.c.l.b16 %v878
    %v2263 = vunpack.c.h.b16 %v878
    %v2264 = vunpack.c.l.b16 %v879
    %v2265 = vunpack.c.h.b16 %v879
    %v2266 = vunpack.c.l.b16 %v880
    %v2267 = vunpack.c.h.b16 %v880
    %v2268 = vunpack.c.l.b16 %v881
    %v2269 = vunpack.c.h.b16 %v881
    %v2270 = vunpack.c.l.b16 %v882
    %v2271 = vunpack.c.h.b16 %v882
    %v2272 = vunpack.c.l.b16 %v883
    %v2273 = vunpack.c.h.b16 %v883
    %v2274 = vunpack.c.l.b16 %v884
    %v2275 = vunpack.c.h.b16 %v884
    %v2276 = vunpack.c.l.b16 %v885
    %v2277 = vunpack.c.h.b16 %v885
    %v2278 = vunpack.c.l.b16 %v886
    %v2279 = vunpack.c.h.b16 %v886
    %v2280 = vunpack.c.l.b16 %v887
    %v2281 = vunpack.c.h.b16 %v887
    %v2282 = vunpack.c.l.b16 %v888
    %v2283 = vunpack.c.h.b16 %v888
    %v2284 = vunpack.c.l.b16 %v889
    %v2285 = vunpack.c.h.b16 %v889
    %v2286 = vunpack.c.l.b16 %v890
    %v2287 = vunpack.c.h.b16 %v890
    %v2288 = vunpack.c.l.b16 %v891
    %v2289 = vunpack.c.h.b16 %v891
    %v2290 = vunpack.c.l.b16 %v892
    %v2291 = vunpack.c.h.b16 %v892
    %v2292 = vunpack.c.l.b16 %v893
    %v2293 = vunpack.c.h.b16 %v893
    %v2294 = vunpack.c.l.b16 %v894
    %v2295 = vunpack.c.h.b16 %v894
    %v2296 = vunpack.c.l.b16 %v895
    %v2297 = vunpack.c.h.b16 %v895
    %v2298 = vunpack.c.l.b16 %v896
    %v2299 = vunpack.c.h.b16 %v896
    %v2300 = vunpack.c.l.b16 %v897
    %v2301 = vunpack.c.h.b16 %v897
    %v2302 = vunpack.c.l.b16 %v898
    %v2303 = vunpack.c.h.b16 %v898
    %v2304 = vunpack.c.l.b16 %v899
    %v2305 = vunpack.c.h.b16 %v899
    %v2306 = vunpack.c.l.b16 %v900
    %v2307 = vunpack.c.h.b16 %v900
    %v2308 = vunpack.c.l.b16 %v901
    %v2309 = vunpack.c.h.b16 %v901
    %v2310 = vunpack.c.l.b16 %v902
    %v2311 = vunpack.c.h.b16 %v902
    %v2312 = vunpack.c.l.b16 %v903
    %v2313 = vunpack.c.h.b16 %v903
    %v2314 = vunpack.c.l.b16 %v904
    %v2315 = vunpack.c.h.b16 %v904
    %v2316 = vunpack.c.l.b16 %v905
    %v2317 = vunpack.c.h.b16 %v905
    %v2318 = vunpack.c.l.b16 %v906
    %v2319 = vunpack.c.h.b16 %v906
    %v2320 = vunpack.c.l.b16 %v907
    %v2321 = vunpack.c.h.b16 %v907
    %v2322 = vunpack.c.l.b16 %v908
    %v2323 = vunpack.c.h.b16 %v908
    %v2324 = vunpack.c.l.b16 %v909
    %v2325 = vunpack.c.h.b16 %v909
    %v2326 = vunpack.c.l.b16 %v910
    %v2327 = vunpack.c.h.b16 %v910
    %v2328 = vunpack.c.l.b16 %v911
    %v2329 = vunpack.c.h.b16 %v911
    %v2330 = vunpack.c.l.b16 %v912
    %v2331 = vunpack.c.h.b16 %v912
    %v2332 = vunpack.c.l.b16 %v913
    %v2333 = vunpack.c.h.b16 %v913
    %v2334 = vunpack.c.l.b16 %v914
    %v2335 = vunpack.c.h.b16 %v914
    %v2336 = vunpack.c.l.b16 %v915
    %v2337 = vunpack.c.h.b16 %v915
    %v2338 = vunpack.c.l.b16 %v916
    %v2339 = vunpack.c.h.b16 %v916
    %v2340 = vunpack.c.l.b16 %v917
    %v2341 = vunpack.c.h.b16 %v917
    %v2342 = vunpack.c.l.b16 %v918
    %v2343 = vunpack.c.h.b16 %v918
    %v2344 = vunpack.c.l.b16 %v919
    %v2345 = vunpack.c.h.b16 %v919
    %v2346 = vunpack.c.l.b16 %v920
    %v2347 = vunpack.c.h.b16 %v920
    %v2348 = vunpack.c.l.b16 %v921
    %v2349 = vunpack.c.h.b16 %v921
    %v2350 = vunpack.c.l.b16 %v922
    %v2351 = vunpack.c.h.b16 %v922
    %v2352 = vunpack.c.l.b16 %v923
    %v2353 = vunpack.c.h.b16 %v923
    %v2354 = vunpack.c.l.b16 %v924
    %v2355 = vunpack.c.h.b16 %v924
    %v2356 = vunpack.c.l.b16 %v925
    %v2357 = vunpack.c.h.b16 %v925
    %v2358 = vunpack.c.l.b16 %v926
    %v2359 = vunpack.c.h.b16 %v926
    %v2360 = vunpack.c.l.b16 %v927
    %v2361 = vunpack.c.h.b16 %v927
    %v2362 = vunpack.c.l.b16 %v928
    %v2363 = vunpack.c.h.b16 %v928
    %v2364 = vunpack.c.l.b16 %v929
    %v2365 = vunpack.c.h.b16 %v929
    %v2366 = vunpack.c.l.b16 %v930
    %v2367 = vunpack.c.h.b16 %v930
    %v2368 = vunpack.c.l.b16 %v931
    %v2369 = vunpack.c.h.b16 %v931
    %v2370 = vunpack.c.l.b16 %v932
    %v2371 = vunpack.c.h.b16 %v932
    %v2372 = vunpack.c.l.b16 %v933
    %v2373 = vunpack.c.h.b16 %v933
    %v2374 = vunpack.c.l.b16 %v934
    %v2375 = vunpack.c.h.b16 %v934
    %v2376 = vunpack.c.l.b16 %v935
    %v2377 = vunpack.c.h.b16 %v935
    %v2378 = vunpack.c.l.b16 %v936
    %v2379 = vunpack.c.h.b16 %v936
    %v2380 = vunpack.c.l.b16 %v937
    %v2381 = vunpack.c.h.b16 %v937
    %v2382 = vunpack.c.l.b16 %v938
    %v2383 = vunpack.c.h.b16 %v938
    %v2384 = vunpack.c.l.b16 %v939
    %v2385 = vunpack.c.h.b16 %v939
    %v2386 = vunpack.c.l.b16 %v940
    %v2387 = vunpack.c.h.b16 %v940
    %v2388 = vunpack.c.l.b16 %v941
    %v2389 = vunpack.c.h.b16 %v941
    %v2390 = vunpack.c.l.b16 %v942
    %v2391 = vunpack.c.h.b16 %v942
    %v2392 = vunpack.c.l.b16 %v943
    %v2393 = vunpack.c.h.b16 %v943
    %v2394 = vunpack.c.l.b16 %v944
    %v2395 = vunpack.c.h.b16 %v944
    %v2396 = vunpack.c.l.b16 %v945
    %v2397 = vunpack.c.h.b16 %v945
    %v2398 = vunpack.c.l.b16 %v946
    %v2399 = vunpack.c.h.b16 %v946
    %v2400 = vunpack.c.l.b16 %v947
    %v2401 = vunpack.c.h.b16 %v947
    %v2402 = vunpack.c.l.b16 %v948
    %v2403 = vunpack.c.h.b16 %v948
    %v2404 = vunpack.c.l.b16 %v949
    %v2405 = vunpack.c.h.b16 %v949
    %v2406 = vunpack.c.l.b16 %v950
    %v2407 = vunpack.c.h.b16 %v950
    %v2408 = vunpack.c.l.b16 %v951
    %v2409 = vunpack.c.h.b16 %v951
    %v2410 = vunpack.c.l.b16 %v952
    %v2411 = vunpack.c.h.b16 %v952
    %v2412 = vunpack.c.l.b16 %v953
    %v2413 = vunpack.c.h.b16 %v953
    %v2414 = vunpack.c.l.b16 %v954
    %v2415 = vunpack.c.h.b16 %v954
    %v2416 = vunpack.c.l.b16 %v955
    %v2417 = vunpack.c.h.b16 %v955
    %v2418 = vunpack.c.l.b16 %v956
    %v2419 = vunpack.c.h.b16 %v956
    %v2420 = vunpack.c.l.b16 %v957
    %v2421 = vunpack.c.h.b16 %v957
    %v2422 = vunpack.c.l.b16 %v958
    %v2423 = vunpack.c.h.b16 %v958
    %v2424 = vunpack.c.l.b16 %v959
    %v2425 = vunpack.c.h.b16 %v959
    %v2426 = vunpack.c.l.b16 %v960
    %v2427 = vunpack.c.h.b16 %v960
    %v2428 = vunpack.c.l.b16 %v961
    %v2429 = vunpack.c.h.b16 %v961
    %v2430 = vunpack.c.l.b16 %v962
    %v2431 = vunpack.c.h.b16 %v962
    %v2432 = vunpack.c.l.b16 %v963
    %v2433 = vunpack.c.h.b16 %v963
    %v2434 = vunpack.c.l.b16 %v964
    %v2435 = vunpack.c.h.b16 %v964
    %v2436 = vunpack.c.l.b16 %v965
    %v2437 = vunpack.c.h.b16 %v965
    %v2438 = vunpack.c.l.b16 %v966
    %v2439 = vunpack.c.h.b16 %v966
    %v2440 = vunpack.c.l.b16 %v967
    %v2441 = vunpack.c.h.b16 %v967
    %v2442 = vunpack.c.l.b16 %v968
    %v2443 = vunpack.c.h.b16 %v968
    %v2444 = vunpack.c.l.b16 %v969
    %v2445 = vunpack.c.h.b16 %v969
    %v2446 = vunpack.c.l.b16 %v970
    %v2447 = vunpack.c.h.b16 %v970
    %v2448 = vunpack.c.l.b16 %v971
    %v2449 = vunpack.c.h.b16 %v971
    %v2450 = vunpack.c.l.b16 %v972
    %v2451 = vunpack.c.h.b16 %v972
    %v2452 = vunpack.c.l.b16 %v973
    %v2453 = vunpack.c.h.b16 %v973
    %v2454 = vunpack.c.l.b16 %v974
    %v2455 = vunpack.c.h.b16 %v974
    %v2456 = vunpack.c.l.b16 %v975
    %v2457 = vunpack.c.h.b16 %v975
    %v2458 = vunpack.c.l.b16 %v976
    %v2459 = vunpack.c.h.b16 %v976
    %v2460 = vunpack.c.l.b16 %v977
    %v2461 = vunpack.c.h.b16 %v977
    %v2462 = vunpack.c.l.b16 %v978
    %v2463 = vunpack.c.h.b16 %v978
    %v2464 = vunpack.c.l.b16 %v979
    %v2465 = vunpack.c.h.b16 %v979
    %v2466 = vunpack.c.l.b16 %v980
    %v2467 = vunpack.c.h.b16 %v980
    %v2468 = vunpack.c.l.b16 %v981
    %v2469 = vunpack.c.h.b16 %v981
    %v2470 = vunpack.c.l.b16 %v982
    %v2471 = vunpack.c.h.b16 %v982
    %v2472 = vunpack.c.l.b16 %v983
    %v2473 = vunpack.c.h.b16 %v983
    %v2474 = vunpack.c.l.b16 %v984
    %v2475 = vunpack.c.h.b16 %v984
    %v2476 = vunpack.c.l.b16 %v985
    %v2477 = vunpack.c.h.b16 %v985
    %v2478 = vunpack.c.l.b16 %v986
    %v2479 = vunpack.c.h.b16 %v986
    %v2480 = vunpack.c.l.b16 %v987
    %v2481 = vunpack.c.h.b16 %v987
    %v2482 = vunpack.c.l.b16 %v988
    %v2483 = vunpack.c.h.b16 %v988
    %v2484 = vunpack.c.l.b16 %v989
    %v2485 = vunpack.c.h.b16 %v989
    %v2486 = vunpack.c.l.b16 %v990
    %v2487 = vunpack.c.h.b16 %v990
    %v2488 = vunpack.c.l.b16 %v991
    %v2489 = vunpack.c.h.b16 %v991
    %v2490 = vunpack.c.l.b16 %v992
    %v2491 = vunpack.c.h.b16 %v992
    %v2492 = vunpack.c.l.b16 %v993
    %v2493 = vunpack.c.h.b16 %v993
    %v2494 = vunpack.c.l.b16 %v994
    %v2495 = vunpack.c.h.b16 %v994
    %v2496 = vunpack.c.l.b16 %v995
    %v2497 = vunpack.c.h.b16 %v995
    %v2498 = vunpack.c.l.b16 %v996
    %v2499 = vunpack.c.h.b16 %v996
    %v2500 = vunpack.c.l.b16 %v997
    %v2501 = vunpack.c.h.b16 %v997
    %v2502 = vunpack.c.l.b16 %v998
    %v2503 = vunpack.c.h.b16 %v998
    %v2504 = vunpack.c.l.b16 %v999
    %v2505 = vunpack.c.h.b16 %v999
    %v2506 = vunpack.c.l.b16 %v1000
    %v2507 = vunpack.c.h.b16 %v1000
    %v2508 = vunpack.c.l.b16 %v1001
    %v2509 = vunpack.c.h.b16 %v1001
    %v2510 = vunpack.c.l.b16 %v1002
    %v2511 = vunpack.c.h.b16 %v1002
    %v2512 = vunpack.c.l.b16 %v1003
    %v2513 = vunpack.c.h.b16 %v1003
    %v2514 = vunpack.c.l.b16 %v1004
    %v2515 = vunpack.c.h.b16 %v1004
    %v2516 = vunpack.c.l.b16 %v1005
    %v2517 = vunpack.c.h.b16 %v1005
    %v2518 = vunpack.c.l.b16 %v1006
    %v2519 = vunpack.c.h.b16 %v1006
    %v2520 = vunpack.c.l.b16 %v1007
    %v2521 = vunpack.c.h.b16 %v1007
    %v2522 = vunpack.c.l.b16 %v1008
    %v2523 = vunpack.c.h.b16 %v1008
    %v2524 = vunpack.c.l.b16 %v1009
    %v2525 = vunpack.c.h.b16 %v1009
    %v2526 = vunpack.c.l.b16 %v1010
    %v2527 = vunpack.c.h.b16 %v1010
    %v2528 = vunpack.c.l.b16 %v1011
    %v2529 = vunpack.c.h.b16 %v1011
    %v2530 = vunpack.c.l.b16 %v1012
    %v2531 = vunpack.c.h.b16 %v1012
    %v2532 = vunpack.c.l.b16 %v1013
    %v2533 = vunpack.c.h.b16 %v1013
    %v2534 = vunpack.c.l.b16 %v1014
    %v2535 = vunpack.c.h.b16 %v1014
    %v2536 = vunpack.c.l.b16 %v1015
    %v2537 = vunpack.c.h.b16 %v1015
    %v2538 = vunpack.c.l.b16 %v1016
    %v2539 = vunpack.c.h.b16 %v1016
    %v2540 = vunpack.c.l.b16 %v1017
    %v2541 = vunpack.c.h.b16 %v1017
    %v2542 = vunpack.c.l.b16 %v1018
    %v2543 = vunpack.c.h.b16 %v1018
    %v2544 = vunpack.c.l.b16 %v1019
    %v2545 = vunpack.c.h.b16 %v1019
    %v2546 = vunpack.c.l.b16 %v1020
    %v2547 = vunpack.c.h.b16 %v1020
    %v2548 = vunpack.c.l.b16 %v1021
    %v2549 = vunpack.c.h.b16 %v1021
    %v2550 = vunpack.c.l.b16 %v1022
    %v2551 = vunpack.c.h.b16 %v1022
    %v2552 = vunpack.c.l.b16 %v1023
    %v2553 = vunpack.c.h.b16 %v1023
    %v2554 = vunpack.c.l.b16 %v1024
    %v2555 = vunpack.c.h.b16 %v1024
    %v2556 = vunpack.c.l.b16 %v1025
    %v2557 = vunpack.c.h.b16 %v1025
    %v2558 = vunpack.c.l.b16 %v1026
    %v2559 = vunpack.c.h.b16 %v1026
    %v2560 = vunpack.c.l.b16 %v1027
    %v2561 = vunpack.c.h.b16 %v1027
    %v2562 = vunpack.c.l.b16 %v1028
    %v2563 = vunpack.c.h.b16 %v1028
    %v2564 = vunpack.c.l.b16 %v1029
    %v2565 = vunpack.c.h.b16 %v1029
    %v2566 = vunpack.c.l.b16 %v1030
    %v2567 = vunpack.c.h.b16 %v1030
    %v2568 = vunpack.c.l.b16 %v1031
    %v2569 = vunpack.c.h.b16 %v1031
    %v2570 = vunpack.c.l.b16 %v1032
    %v2571 = vunpack.c.h.b16 %v1032
    %v2572 = vunpack.c.l.b16 %v1033
    %v2573 = vunpack.c.h.b16 %v1033
    %v2574 = vunpack.c.l.b16 %v1034
    %v2575 = vunpack.c.h.b16 %v1034
    %v2576 = vunpack.c.l.b16 %v1035
    %v2577 = vunpack.c.h.b16 %v1035
    %v2578 = vunpack.c.l.b16 %v1036
    %v2579 = vunpack.c.h.b16 %v1036
    %v2580 = vunpack.c.l.b16 %v1037
    %v2581 = vunpack.c.h.b16 %v1037
    %v2582 = vunpack.c.l.b16 %v1038
    %v2583 = vunpack.c.h.b16 %v1038
    %v2584 = vunpack.c.l.b16 %v1039
    %v2585 = vunpack.c.h.b16 %v1039
    %v2586 = vunpack.c.l.b16 %v1040
    %v2587 = vunpack.c.h.b16 %v1040
    %v2588 = vunpack.c.l.b16 %v1041
    %v2589 = vunpack.c.h.b16 %v1041
    %v2590 = vunpack.c.l.b16 %v1042
    %v2591 = vunpack.c.h.b16 %v1042
    %v2592 = vunpack.c.l.b16 %v1043
    %v2593 = vunpack.c.h.b16 %v1043
    %v2594 = vunpack.c.l.b16 %v1044
    %v2595 = vunpack.c.h.b16 %v1044
    %v2596 = vunpack.c.l.b16 %v1045
    %v2597 = vunpack.c.h.b16 %v1045
    %v2598 = vunpack.c.l.b16 %v1046
    %v2599 = vunpack.c.h.b16 %v1046
    %v2600 = vunpack.c.l.b16 %v1047
    %v2601 = vunpack.c.h.b16 %v1047
    %v2602 = vunpack.c.l.b16 %v1048
    %v2603 = vunpack.c.h.b16 %v1048
    %v2604 = vunpack.c.l.b16 %v1049
    %v2605 = vunpack.c.h.b16 %v1049
    %v2606 = vunpack.c.l.b16 %v1050
    %v2607 = vunpack.c.h.b16 %v1050
    %v2608 = vunpack.c.l.b16 %v1051
    %v2609 = vunpack.c.h.b16 %v1051
    %v2610 = vunpack.c.l.b16 %v1052
    %v2611 = vunpack.c.h.b16 %v1052
    %v2612 = vunpack.c.l.b16 %v1053
    %v2613 = vunpack.c.h.b16 %v1053
    %v2614 = vunpack.c.l.b16 %v1054
    %v2615 = vunpack.c.h.b16 %v1054
    %v2616 = vunpack.c.l.b16 %v1055
    %v2617 = vunpack.c.h.b16 %v1055
    %v2618 = vunpack.c.l.b16 %v1056
    %v2619 = vunpack.c.h.b16 %v1056
    %v2620 = vunpack.c.l.b16 %v1057
    %v2621 = vunpack.c.h.b16 %v1057
    %v2622 = vunpack.c.l.b16 %v1058
    %v2623 = vunpack.c.h.b16 %v1058
    %v2624 = vunpack.c.l.b16 %v1059
    %v2625 = vunpack.c.h.b16 %v1059
    %v2626 = vunpack.c.l.b16 %v1060
    %v2627 = vunpack.c.h.b16 %v1060
    %v2628 = vunpack.c.l.b16 %v1061
    %v2629 = vunpack.c.h.b16 %v1061
    %v2630 = vunpack.c.l.b16 %v1062
    %v2631 = vunpack.c.h.b16 %v1062
    %v2632 = vunpack.c.l.b16 %v1063
    %v2633 = vunpack.c.h.b16 %v1063
    %v2634 = vunpack.c.l.b16 %v1064
    %v2635 = vunpack.c.h.b16 %v1064
    %v2636 = vunpack.c.l.b16 %v1065
    %v2637 = vunpack.c.h.b16 %v1065
    %v2638 = vunpack.c.l.b16 %v1066
    %v2639 = vunpack.c.h.b16 %v1066
    %v2640 = vunpack.c.l.b16 %v1067
    %v2641 = vunpack.c.h.b16 %v1067
    %v2642 = vunpack.c.l.b16 %v1068
    %v2643 = vunpack.c.h.b16 %v1068
    %v2644 = vunpack.c.l.b16 %v1069
    %v2645 = vunpack.c.h.b16 %v1069
    %v2646 = vunpack.c.l.b16 %v1070
    %v2647 = vunpack.c.h.b16 %v1070
    %v2648 = vunpack.c.l.b16 %v1071
    %v2649 = vunpack.c.h.b16 %v1071
    %v2650 = vunpack.c.l.b16 %v1072
    %v2651 = vunpack.c.h.b16 %v1072
    %v2652 = vunpack.c.l.b16 %v1073
    %v2653 = vunpack.c.h.b16 %v1073
    %v2654 = vunpack.c.l.b16 %v1074
    %v2655 = vunpack.c.h.b16 %v1074
    %v2656 = vunpack.c.l.b16 %v1075
    %v2657 = vunpack.c.h.b16 %v1075
    %v2658 = vunpack.c.l.b16 %v1076
    %v2659 = vunpack.c.h.b16 %v1076
    %v2660 = vunpack.c.l.b16 %v1077
    %v2661 = vunpack.c.h.b16 %v1077
    %v2662 = vunpack.c.l.b16 %v1078
    %v2663 = vunpack.c.h.b16 %v1078
    %v2664 = vunpack.c.l.b16 %v1079
    %v2665 = vunpack.c.h.b16 %v1079
    %v2666 = vunpack.c.l.b16 %v1080
    %v2667 = vunpack.c.h.b16 %v1080
    %v2668 = vunpack.c.l.b16 %v1081
    %v2669 = vunpack.c.h.b16 %v1081
    %v2670 = vunpack.c.l.b16 %v1082
    %v2671 = vunpack.c.h.b16 %v1082
    %v2672 = vunpack.c.l.b16 %v1083
    %v2673 = vunpack.c.h.b16 %v1083
    %v2674 = vunpack.c.l.b16 %v1084
    %v2675 = vunpack.c.h.b16 %v1084
    %v2676 = vunpack.c.l.b16 %v1085
    %v2677 = vunpack.c.h.b16 %v1085
    %v2678 = vunpack.c.l.b16 %v1086
    %v2679 = vunpack.c.h.b16 %v1086
    %v2680 = vunpack.c.l.b16 %v1087
    %v2681 = vunpack.c.h.b16 %v1087
    %v2682 = vunpack.c.l.b16 %v1088
    %v2683 = vunpack.c.h.b16 %v1088
    %v2684 = vunpack.c.l.b16 %v1089
    %v2685 = vunpack.c.h.b16 %v1089
    %v2686 = vunpack.c.l.b16 %v1090
    %v2687 = vunpack.c.h.b16 %v1090
    %v2688 = vunpack.c.l.b16 %v1091
    %v2689 = vunpack.c.h.b16 %v1091
    %v2690 = vunpack.c.l.b16 %v1092
    %v2691 = vunpack.c.h.b16 %v1092
    %v2692 = vunpack.c.l.b16 %v1093
    %v2693 = vunpack.c.h.b16 %v1093
    %v2694 = vunpack.c.l.b16 %v1094
    %v2695 = vunpack.c.h.b16 %v1094
    %v2696 = vunpack.c.l.b16 %v1095
    %v2697 = vunpack.c.h.b16 %v1095
    %v2698 = vunpack.c.l.b16 %v1096
    %v2699 = vunpack.c.h.b16 %v1096
    %v2700 = vunpack.c.l.b16 %v1097
    %v2701 = vunpack.c.h.b16 %v1097
    %v2702 = vunpack.c.l.b16 %v1098
    %v2703 = vunpack.c.h.b16 %v1098
    %v2704 = vunpack.c.l.b16 %v1099
    %v2705 = vunpack.c.h.b16 %v1099
    %v2706 = vunpack.c.l.b16 %v1100
    %v2707 = vunpack.c.h.b16 %v1100
    %v2708 = vunpack.c.l.b16 %v1101
    %v2709 = vunpack.c.h.b16 %v1101
    %v2710 = vunpack.c.l.b16 %v1102
    %v2711 = vunpack.c.h.b16 %v1102
    %v2712 = vunpack.c.l.b16 %v1103
    %v2713 = vunpack.c.h.b16 %v1103
    %v2714 = vunpack.c.l.b16 %v1104
    %v2715 = vunpack.c.h.b16 %v1104
    %v2716 = vunpack.c.l.b16 %v1105
    %v2717 = vunpack.c.h.b16 %v1105
    %v2718 = vunpack.c.l.b16 %v1106
    %v2719 = vunpack.c.h.b16 %v1106
    %v2720 = vunpack.c.l.b16 %v1107
    %v2721 = vunpack.c.h.b16 %v1107
    %v2722 = vunpack.c.l.b16 %v1108
    %v2723 = vunpack.c.h.b16 %v1108
    %v2724 = vunpack.c.l.b16 %v1109
    %v2725 = vunpack.c.h.b16 %v1109
    %v2726 = vunpack.c.l.b16 %v1110
    %v2727 = vunpack.c.h.b16 %v1110
    %v2728 = vunpack.c.l.b16 %v1111
    %v2729 = vunpack.c.h.b16 %v1111
    %v2730 = vunpack.c.l.b16 %v1112
    %v2731 = vunpack.c.h.b16 %v1112
    %v2732 = vunpack.c.l.b16 %v1113
    %v2733 = vunpack.c.h.b16 %v1113
    %v2734 = vunpack.c.l.b16 %v1114
    %v2735 = vunpack.c.h.b16 %v1114
    %v2736 = vunpack.c.l.b16 %v1115
    %v2737 = vunpack.c.h.b16 %v1115
    %v2738 = vunpack.c.l.b16 %v1116
    %v2739 = vunpack.c.h.b16 %v1116
    %v2740 = vunpack.c.l.b16 %v1117
    %v2741 = vunpack.c.h.b16 %v1117
    %v2742 = vunpack.c.l.b16 %v1118
    %v2743 = vunpack.c.h.b16 %v1118
    %v2744 = vunpack.c.l.b16 %v1119
    %v2745 = vunpack.c.h.b16 %v1119
    %v2746 = vunpack.c.l.b16 %v1120
    %v2747 = vunpack.c.h.b16 %v1120
    %v2748 = vunpack.c.l.b16 %v1121
    %v2749 = vunpack.c.h.b16 %v1121
    %v2750 = vunpack.c.l.b16 %v1122
    %v2751 = vunpack.c.h.b16 %v1122
    %v2752 = vunpack.c.l.b16 %v1123
    %v2753 = vunpack.c.h.b16 %v1123
    %v2754 = vunpack.c.l.b16 %v1124
    %v2755 = vunpack.c.h.b16 %v1124
    %v2756 = vunpack.c.l.b16 %v1125
    %v2757 = vunpack.c.h.b16 %v1125
    %v2758 = vpack.c.b16 %v1998, %v1990
    %v2759 = vpack.c.b16 %v1999, %v1991
    %v2760 = vpack.c.b16 %v2000, %v1992
    %v2761 = vpack.c.b16 %v2001, %v1993
    %v2762 = vpack.c.b16 %v2002, %v1994
    %v2763 = vpack.c.b16 %v2003, %v1995
    %v2764 = vpack.c.b16 %v2004, %v1996
    %v2765 = vpack.c.b16 %v2005, %v1997
    %v2766 = vpack.c.b16 %v2014, %v2006
    %v2767 = vpack.c.b16 %v2015, %v2007
    %v2768 = vpack.c.b16 %v2016, %v2008
    %v2769 = vpack.c.b16 %v2017, %v2009
    %v2770 = vpack.c.b16 %v2018, %v2010
    %v2771 = vpack.c.b16 %v2019, %v2011
    %v2772 = vpack.c.b16 %v2020, %v2012
    %v2773 = vpack.c.b16 %v2021, %v2013
    %v2774 = vpack.c.b16 %v2030, %v2022
    %v2775 = vpack.c.b16 %v2031, %v2023
    %v2776 = vpack.c.b16 %v2032, %v2024
    %v2777 = vpack.c.b16 %v2033, %v2025
    %v2778 = vpack.c.b16 %v2034, %v2026
    %v2779 = vpack.c.b16 %v2035, %v2027
    %v2780 = vpack.c.b16 %v2036, %v2028
    %v2781 = vpack.c.b16 %v2037, %v2029
    %v2782 = vpack.c.b16 %v2046, %v2038
    %v2783 = vpack.c.b16 %v2047, %v2039
    %v2784 = vpack.c.b16 %v2048, %v2040
    %v2785 = vpack.c.b16 %v2049, %v2041
    %v2786 = vpack.c.b16 %v2050, %v2042
    %v2787 = vpack.c.b16 %v2051, %v2043
    %v2788 = vpack.c.b16 %v2052, %v2044
    %v2789 = vpack.c.b16 %v2053, %v2045
    %v2790 = vpack.c.b16 %v2062, %v2054
    %v2791 = vpack.c.b16 %v2063, %v2055
    %v2792 = vpack.c.b16 %v2064, %v2056
    %v2793 = vpack.c.b16 %v2065, %v2057
    %v2794 = vpack.c.b16 %v2066, %v2058
    %v2795 = vpack.c.b16 %v2067, %v2059
    %v2796 = vpack.c.b16 %v2068, %v2060
    %v2797 = vpack.c.b16 %v2069, %v2061
    %v2798 = vpack.c.b16 %v2078, %v2070
    %v2799 = vpack.c.b16 %v2079, %v2071
    %v2800 = vpack.c.b16 %v2080, %v2072
    %v2801 = vpack.c.b16 %v2081, %v2073
    %v2802 = vpack.c.b16 %v2082, %v2074
    %v2803 = vpack.c.b16 %v2083, %v2075
    %v2804 = vpack.c.b16 %v2084, %v2076
    %v2805 = vpack.c.b16 %v2085, %v2077
    %v2806 = vpack.c.b16 %v2094, %v2086
    %v2807 = vpack.c.b16 %v2095, %v2087
    %v2808 = vpack.c.b16 %v2096, %v2088
    %v2809 = vpack.c.b16 %v2097, %v2089
    %v2810 = vpack.c.b16 %v2098, %v2090
    %v2811 = vpack.c.b16 %v2099, %v2091
    %v2812 = vpack.c.b16 %v2100, %v2092
    %v2813 = vpack.c.b16 %v2101, %v2093
    %v2814 = vpack.c.b16 %v2110, %v2102
    %v2815 = vpack.c.b16 %v2111, %v2103
    %v2816 = vpack.c.b16 %v2112, %v2104
    %v2817 = vpack.c.b16 %v2113, %v2105
    %v2818 = vpack.c.b16 %v2114, %v2106
    %v2819 = vpack.c.b16 %v2115, %v2107
    %v2820 = vpack.c.b16 %v2116, %v2108
    %v2821 = vpack.c.b16 %v2117, %v2109
    %v2822 = vpack.c.b16 %v2126, %v2118
    %v2823 = vpack.c.b16 %v2127, %v2119
    %v2824 = vpack.c.b16 %v2128, %v2120
    %v2825 = vpack.c.b16 %v2129, %v2121
    %v2826 = vpack.c.b16 %v2130, %v2122
    %v2827 = vpack.c.b16 %v2131, %v2123
    %v2828 = vpack.c.b16 %v2132, %v2124
    %v2829 = vpack.c.b16 %v2133, %v2125
    %v2830 = vpack.c.b16 %v2142, %v2134
    %v2831 = vpack.c.b16 %v2143, %v2135
    %v2832 = vpack.c.b16 %v2144, %v2136
    %v2833 = vpack.c.b16 %v2145, %v2137
    %v2834 = vpack.c.b16 %v2146, %v2138
    %v2835 = vpack.c.b16 %v2147, %v2139
    %v2836 = vpack.c.b16 %v2148, %v2140
    %v2837 = vpack.c.b16 %v2149, %v2141
    %v2838 = vpack.c.b16 %v2158, %v2150
    %v2839 = vpack.c.b16 %v2159, %v2151
    %v2840 = vpack.c.b16 %v2160, %v2152
    %v2841 = vpack.c.b16 %v2161, %v2153
    %v2842 = vpack.c.b16 %v2162, %v2154
    %v2843 = vpack.c.b16 %v2163, %v2155
    %v2844 = vpack.c.b16 %v2164, %v2156
    %v2845 = vpack.c.b16 %v2165, %v2157
    %v2846 = vpack.c.b16 %v2174, %v2166
    %v2847 = vpack.c.b16 %v2175, %v2167
    %v2848 = vpack.c.b16 %v2176, %v2168
    %v2849 = vpack.c.b16 %v2177, %v2169
    %v2850 = vpack.c.b16 %v2178, %v2170
    %v2851 = vpack.c.b16 %v2179, %v2171
    %v2852 = vpack.c.b16 %v2180, %v2172
    %v2853 = vpack.c.b16 %v2181, %v2173
    %v2854 = vpack.c.b16 %v2190, %v2182
    %v2855 = vpack.c.b16 %v2191, %v2183
    %v2856 = vpack.c.b16 %v2192, %v2184
    %v2857 = vpack.c.b16 %v2193, %v2185
    %v2858 = vpack.c.b16 %v2194, %v2186
    %v2859 = vpack.c.b16 %v2195, %v2187
    %v2860 = vpack.c.b16 %v2196, %v2188
    %v2861 = vpack.c.b16 %v2197, %v2189
    %v2862 = vpack.c.b16 %v2206, %v2198
    %v2863 = vpack.c.b16 %v2207, %v2199
    %v2864 = vpack.c.b16 %v2208, %v2200
    %v2865 = vpack.c.b16 %v2209, %v2201
    %v2866 = vpack.c.b16 %v2210, %v2202
    %v2867 = vpack.c.b16 %v2211, %v2203
    %v2868 = vpack.c.b16 %v2212, %v2204
    %v2869 = vpack.c.b16 %v2213, %v2205
    %v2870 = vpack.c.b16 %v2222, %v2214
    %v2871 = vpack.c.b16 %v2223, %v2215
    %v2872 = vpack.c.b16 %v2224, %v2216
    %v2873 = vpack.c.b16 %v2225, %v2217
    %v2874 = vpack.c.b16 %v2226, %v2218
    %v2875 = vpack.c.b16 %v2227, %v2219
    %v2876 = vpack.c.b16 %v2228, %v2220
    %v2877 = vpack.c.b16 %v2229, %v2221
    %v2878 = vpack.c.b16 %v2238, %v2230
    %v2879 = vpack.c.b16 %v2239, %v2231
    %v2880 = vpack.c.b16 %v2240, %v2232
    %v2881 = vpack.c.b16 %v2241, %v2233
    %v2882 = vpack.c.b16 %v2242, %v2234
    %v2883 = vpack.c.b16 %v2243, %v2235
    %v2884 = vpack.c.b16 %v2244, %v2236
    %v2885 = vpack.c.b16 %v2245, %v2237
    %v2886 = vpack.c.b16 %v2254, %v2246
    %v2887 = vpack.c.b16 %v2255, %v2247
    %v2888 = vpack.c.b16 %v2256, %v2248
    %v2889 = vpack.c.b16 %v2257, %v2249
    %v2890 = vpack.c.b16 %v2258, %v2250
    %v2891 = vpack.c.b16 %v2259, %v2251
    %v2892 = vpack.c.b16 %v2260, %v2252
    %v2893 = vpack.c.b16 %v2261, %v2253
    %v2894 = vpack.c.b16 %v2270, %v2262
    %v2895 = vpack.c.b16 %v2271, %v2263
    %v2896 = vpack.c.b16 %v2272, %v2264
    %v2897 = vpack.c.b16 %v2273, %v2265
    %v2898 = vpack.c.b16 %v2274, %v2266
    %v2899 = vpack.c.b16 %v2275, %v2267
    %v2900 = vpack.c.b16 %v2276, %v2268
    %v2901 = vpack.c.b16 %v2277, %v2269
    %v2902 = vpack.c.b16 %v2286, %v2278
    %v2903 = vpack.c.b16 %v2287, %v2279
    %v2904 = vpack.c.b16 %v2288, %v2280
    %v2905 = vpack.c.b16 %v2289, %v2281
    %v2906 = vpack.c.b16 %v2290, %v2282
    %v2907 = vpack.c.b16 %v2291, %v2283
    %v2908 = vpack.c.b16 %v2292, %v2284
    %v2909 = vpack.c.b16 %v2293, %v2285
    %v2910 = vpack.c.b16 %v2302, %v2294
    %v2911 = vpack.c.b16 %v2303, %v2295
    %v2912 = vpack.c.b16 %v2304, %v2296
    %v2913 = vpack.c.b16 %v2305, %v2297
    %v2914 = vpack.c.b16 %v2306, %v2298
    %v2915 = vpack.c.b16 %v2307, %v2299
    %v2916 = vpack.c.b16 %v2308, %v2300
    %v2917 = vpack.c.b16 %v2309, %v2301
    %v2918 = vpack.c.b16 %v2318, %v2310
    %v2919 = vpack.c.b16 %v2319, %v2311
    %v2920 = vpack.c.b16 %v2320, %v2312
    %v2921 = vpack.c.b16 %v2321, %v2313
    %v2922 = vpack.c.b16 %v2322, %v2314
    %v2923 = vpack.c.b16 %v2323, %v2315
    %v2924 = vpack.c.b16 %v2324, %v2316
    %v2925 = vpack.c.b16 %v2325, %v2317
    %v2926 = vpack.c.b16 %v2334, %v2326
    %v2927 = vpack.c.b16 %v2335, %v2327
    %v2928 = vpack.c.b16 %v2336, %v2328
    %v2929 = vpack.c.b16 %v2337, %v2329
    %v2930 = vpack.c.b16 %v2338, %v2330
    %v2931 = vpack.c.b16 %v2339, %v2331
    %v2932 = vpack.c.b16 %v2340, %v2332
    %v2933 = vpack.c.b16 %v2341, %v2333
    %v2934 = vpack.c.b16 %v2350, %v2342
    %v2935 = vpack.c.b16 %v2351, %v2343
    %v2936 = vpack.c.b16 %v2352, %v2344
    %v2937 = vpack.c.b16 %v2353, %v2345
    %v2938 = vpack.c.b16 %v2354, %v2346
    %v2939 = vpack.c.b16 %v2355, %v2347
    %v2940 = vpack.c.b16 %v2356, %v2348
    %v2941 = vpack.c.b16 %v2357, %v2349
    %v2942 = vpack.c.b16 %v2366, %v2358
    %v2943 = vpack.c.b16 %v2367, %v2359
    %v2944 = vpack.c.b16 %v2368, %v2360
    %v2945 = vpack.c.b16 %v2369, %v2361
    %v2946 = vpack.c.b16 %v2370, %v2362
    %v2947 = vpack.c.b16 %v2371, %v2363
    %v2948 = vpack.c.b16 %v2372, %v2364
    %v2949 = vpack.c.b16 %v2373, %v2365
    %v2950 = vpack.c.b16 %v2382, %v2374
    %v2951 = vpack.c.b16 %v2383, %v2375
    %v2952 = vpack.c.b16 %v2384, %v2376
    %v2953 = vpack.c.b16 %v2385, %v2377
    %v2954 = vpack.c.b16 %v2386, %v2378
    %v2955 = vpack.c.b16 %v2387, %v2379
    %v2956 = vpack.c.b16 %v2388, %v2380
    %v2957 = vpack.c.b16 %v2389, %v2381
    %v2958 = vpack.c.b16 %v2398, %v2390
    %v2959 = vpack.c.b16 %v2399, %v2391
    %v2960 = vpack.c.b16 %v2400, %v2392
    %v2961 = vpack.c.b16 %v2401, %v2393
    %v2962 = vpack.c.b16 %v2402, %v2394
    %v2963 = vpack.c.b16 %v2403, %v2395
    %v2964 = vpack.c.b16 %v2404, %v2396
    %v2965 = vpack.c.b16 %v2405, %v2397
    %v2966 = vpack.c.b16 %v2414, %v2406
    %v2967 = vpack.c.b16 %v2415, %v2407
    %v2968 = vpack.c.b16 %v2416, %v2408
    %v2969 = vpack.c.b16 %v2417, %v2409
    %v2970 = vpack.c.b16 %v2418, %v2410
    %v2971 = vpack.c.b16 %v2419, %v2411
    %v2972 = vpack.c.b16 %v2420, %v2412
    %v2973 = vpack.c.b16 %v2421, %v2413
    %v2974 = vpack.c.b16 %v2430, %v2422
    %v2975 = vpack.c.b16 %v2431, %v2423
    %v2976 = vpack.c.b16 %v2432, %v2424
    %v2977 = vpack.c.b16 %v2433, %v2425
    %v2978 = vpack.c.b16 %v2434, %v2426
    %v2979 = vpack.c.b16 %v2435, %v2427
    %v2980 = vpack.c.b16 %v2436, %v2428
    %v2981 = vpack.c.b16 %v2437, %v2429
    %v2982 = vpack.c.b16 %v2446, %v2438
    %v2983 = vpack.c.b16 %v2447, %v2439
    %v2984 = vpack.c.b16 %v2448, %v2440
    %v2985 = vpack.c.b16 %v2449, %v2441
    %v2986 = vpack.c.b16 %v2450, %v2442
    %v2987 = vpack.c.b16 %v2451, %v2443
    %v2988 = vpack.c.b16 %v2452, %v2444
    %v2989 = vpack.c.b16 %v2453, %v2445
    %v2990 = vpack.c.b16 %v2462, %v2454
    %v2991 = vpack.c.b16 %v2463, %v2455
    %v2992 = vpack.c.b16 %v2464, %v2456
    %v2993 = vpack.c.b16 %v2465, %v2457
    %v2994 = vpack.c.b16 %v2466, %v2458
    %v2995 = vpack.c.b16 %v2467, %v2459
    %v2996 = vpack.c.b16 %v2468, %v2460
    %v2997 = vpack.c.b16 %v2469, %v2461
    %v2998 = vpack.c.b16 %v2478, %v2470
    %v2999 = vpack.c.b16 %v2479, %v2471
    %v3000 = vpack.c.b16 %v2480, %v2472
    %v3001 = vpack.c.b16 %v2481, %v2473
    %v3002 = vpack.c.b16 %v2482, %v2474
    %v3003 = vpack.c.b16 %v2483, %v2475
    %v3004 = vpack.c.b16 %v2484, %v2476
    %v3005 = vpack.c.b16 %v2485, %v2477
    %v3006 = vpack.c.b16 %v2494, %v2486
    %v3007 = vpack.c.b16 %v2495, %v2487
    %v3008 = vpack.c.b16 %v2496, %v2488
    %v3009 = vpack.c.b16 %v2497, %v2489
    %v3010 = vpack.c.b16 %v2498, %v2490
    %v3011 = vpack.c.b16 %v2499, %v2491
    %v3012 = vpack.c.b16 %v2500, %v2492
    %v3013 = vpack.c.b16 %v2501, %v2493
    %v3014 = vpack.c.b16 %v2510, %v2502
    %v3015 = vpack.c.b16 %v2511, %v2503
    %v3016 = vpack.c.b16 %v2512, %v2504
    %v3017 = vpack.c.b16 %v2513, %v2505
    %v3018 = vpack.c.b16 %v2514, %v2506
    %v3019 = vpack.c.b16 %v2515, %v2507
    %v3020 = vpack.c.b16 %v2516, %v2508
    %v3021 = vpack.c.b16 %v2517, %v2509
    %v3022 = vpack.c.b16 %v2526, %v2518
    %v3023 = vpack.c.b16 %v2527, %v2519
    %v3024 = vpack.c.b16 %v2528, %v2520
    %v3025 = vpack.c.b16 %v2529, %v2521
    %v3026 = vpack.c.b16 %v2530, %v2522
    %v3027 = vpack.c.b16 %v2531, %v2523
    %v3028 = vpack.c.b16 %v2532, %v2524
    %v3029 = vpack.c.b16 %v2533, %v2525
    %v3030 = vpack.c.b16 %v2542, %v2534
    %v3031 = vpack.c.b16 %v2543, %v2535
    %v3032 = vpack.c.b16 %v2544, %v2536
    %v3033 = vpack.c.b16 %v2545, %v2537
    %v3034 = vpack.c.b16 %v2546, %v2538
    %v3035 = vpack.c.b16 %v2547, %v2539
    %v3036 = vpack.c.b16 %v2548, %v2540
    %v3037 = vpack.c.b16 %v2549, %v2541
    %v3038 = vpack.c.b16 %v2558, %v2550
    %v3039 = vpack.c.b16 %v2559, %v2551
    %v3040 = vpack.c.b16 %v2560, %v2552
    %v3041 = vpack.c.b16 %v2561, %v2553
    %v3042 = vpack.c.b16 %v2562, %v2554
    %v3043 = vpack.c.b16 %v2563, %v2555
    %v3044 = vpack.c.b16 %v2564, %v2556
    %v3045 = vpack.c.b16 %v2565, %v2557
    %v3046 = vpack.c.b16 %v2574, %v2566
    %v3047 = vpack.c.b16 %v2575, %v2567
    %v3048 = vpack.c.b16 %v2576, %v2568
    %v3049 = vpack.c.b16 %v2577, %v2569
    %v3050 = vpack.c.b16 %v2578, %v2570
    %v3051 = vpack.c.b16 %v2579, %v2571
    %v3052 = vpack.c.b16 %v2580, %v2572
    %v3053 = vpack.c.b16 %v2581, %v2573
    %v3054 = vpack.c.b16 %v2590, %v2582
    %v3055 = vpack.c.b16 %v2591, %v2583
    %v3056 = vpack.c.b16 %v2592, %v2584
    %v3057 = vpack.c.b16 %v2593, %v2585
    %v3058 = vpack.c.b16 %v2594, %v2586
    %v3059 = vpack.c.b16 %v2595, %v2587
    %v3060 = vpack.c.b16 %v2596, %v2588
    %v3061 = vpack.c.b16 %v2597, %v2589
    %v3062 = vpack.c.b16 %v2606, %v2598
    %v3063 = vpack.c.b16 %v2607, %v2599
    %v3064 = vpack.c.b16 %v2608, %v2600
    %v3065 = vpack.c.b16 %v2609, %v2601
    %v3066 = vpack.c.b16 %v2610, %v2602
    %v3067 = vpack.c.b16 %v2611, %v2603
    %v3068 = vpack.c.b16 %v2612, %v2604
    %v3069 = vpack.c.b16 %v2613, %v2605
    %v3070 = vpack.c.b16 %v2622, %v2614
    %v3071 = vpack.c.b16 %v2623, %v2615
    %v3072 = vpack.c.b16 %v2624, %v2616
    %v3073 = vpack.c.b16 %v2625, %v2617
    %v3074 = vpack.c.b16 %v2626, %v2618
    %v3075 = vpack.c.b16 %v2627, %v2619
    %v3076 = vpack.c.b16 %v2628, %v2620
    %v3077 = vpack.c.b16 %v2629, %v2621
    %v3078 = vpack.c.b16 %v2638, %v2630
    %v3079 = vpack.c.b16 %v2639, %v2631
    %v3080 = vpack.c.b16 %v2640, %v2632
    %v3081 = vpack.c.b16 %v2641, %v2633
    %v3082 = vpack.c.b16 %v2642, %v2634
    %v3083 = vpack.c.b16 %v2643, %v2635
    %v3084 = vpack.c.b16 %v2644, %v2636
    %v3085 = vpack.c.b16 %v2645, %v2637
    %v3086 = vpack.c.b16 %v2654, %v2646
    %v3087 = vpack.c.b16 %v2655, %v2647
    %v3088 = vpack.c.b16 %v2656, %v2648
    %v3089 = vpack.c.b16 %v2657, %v2649
    %v3090 = vpack.c.b16 %v2658, %v2650
    %v3091 = vpack.c.b16 %v2659, %v2651
    %v3092 = vpack.c.b16 %v2660, %v2652
    %v3093 = vpack.c.b16 %v2661, %v2653
    %v3094 = vpack.c.b16 %v2670, %v2662
    %v3095 = vpack.c.b16 %v2671, %v2663
    %v3096 = vpack.c.b16 %v2672, %v2664
    %v3097 = vpack.c.b16 %v2673, %v2665
    %v3098 = vpack.c.b16 %v2674, %v2666
    %v3099 = vpack.c.b16 %v2675, %v2667
    %v3100 = vpack.c.b16 %v2676, %v2668
    %v3101 = vpack.c.b16 %v2677, %v2669
    %v3102 = vpack.c.b16 %v2686, %v2678
    %v3103 = vpack.c.b16 %v2687, %v2679
    %v3104 = vpack.c.b16 %v2688, %v2680
    %v3105 = vpack.c.b16 %v2689, %v2681
    %v3106 = vpack.c.b16 %v2690, %v2682
    %v3107 = vpack.c.b16 %v2691, %v2683
    %v3108 = vpack.c.b16 %v2692, %v2684
    %v3109 = vpack.c.b16 %v2693, %v2685
    %v3110 = vpack.c.b16 %v2702, %v2694
    %v3111 = vpack.c.b16 %v2703, %v2695
    %v3112 = vpack.c.b16 %v2704, %v2696
    %v3113 = vpack.c.b16 %v2705, %v2697
    %v3114 = vpack.c.b16 %v2706, %v2698
    %v3115 = vpack.c.b16 %v2707, %v2699
    %v3116 = vpack.c.b16 %v2708, %v2700
    %v3117 = vpack.c.b16 %v2709, %v2701
    %v3118 = vpack.c.b16 %v2718, %v2710
    %v3119 = vpack.c.b16 %v2719, %v2711
    %v3120 = vpack.c.b16 %v2720, %v2712
    %v3121 = vpack.c.b16 %v2721, %v2713
    %v3122 = vpack.c.b16 %v2722, %v2714
    %v3123 = vpack.c.b16 %v2723, %v2715
    %v3124 = vpack.c.b16 %v2724, %v2716
    %v3125 = vpack.c.b16 %v2725, %v2717
    %v3126 = vpack.c.b16 %v2734, %v2726
    %v3127 = vpack.c.b16 %v2735, %v2727
    %v3128 = vpack.c.b16 %v2736, %v2728
    %v3129 = vpack.c.b16 %v2737, %v2729
    %v3130 = vpack.c.b16 %v2738, %v2730
    %v3131 = vpack.c.b16 %v2739, %v2731
    %v3132 = vpack.c.b16 %v2740, %v2732
    %v3133 = vpack.c.b16 %v2741, %v2733
    %v3134 = vpack.c.b16 %v2750, %v2742
    %v3135 = vpack.c.b16 %v2751, %v2743
    %v3136 = vpack.c.b16 %v2752, %v2744
    %v3137 = vpack.c.b16 %v2753, %v2745
    %v3138 = vpack.c.b16 %v2754, %v2746
    %v3139 = vpack.c.b16 %v2755, %v2747
    %v3140 = vpack.c.b16 %v2756, %v2748
    %v3141 = vpack.c.b16 %v2757, %v2749
    %3526 = vmatpush.bf16.msra.mxu0 %v2814
    %3527 = vmatpush.bf16.msra.mxu0 %v2806
    %3528 = vmatpush.bf16.msra.mxu0 %v2798
    %3529 = vmatpush.bf16.msra.mxu0 %v2790
    %3530 = vmatpush.bf16.msra.mxu0 %v2782
    %3531 = vmatpush.bf16.msra.mxu0 %v2774
    %3532 = vmatpush.bf16.msra.mxu0 %v2766
    %3533 = vmatpush.bf16.msra.mxu0 %v2758
    %3534 = vmatmul.bf16.gmra.mxu0 %v1414
    %v3535 = vpop.f32.mrf.mxu0
    %v3536 = vadd.f32 0.0, %v3535
    %v3537 = vpop.f32.mrf.mxu0
    %v3538 = vadd.f32 0.0, %v3537
    %3539 = vmatmul.bf16.gmra.mxu0 %v1420
    %v3540 = vpop.f32.mrf.mxu0
    %v3541 = vadd.f32 0.0, %v3540
    %v3542 = vpop.f32.mrf.mxu0
    %v3543 = vadd.f32 0.0, %v3542
    %3544 = vmatmul.bf16.gmra.mxu0 %v1426
    %v3545 = vpop.f32.mrf.mxu0
    %v3546 = vadd.f32 0.0, %v3545
    %v3547 = vpop.f32.mrf.mxu0
    %v3548 = vadd.f32 0.0, %v3547
    %3549 = vmatmul.bf16.gmra.mxu0 %v1432
    %v3550 = vpop.f32.mrf.mxu0
    %v3551 = vadd.f32 0.0, %v3550
    %v3552 = vpop.f32.mrf.mxu0
    %v3553 = vadd.f32 0.0, %v3552
    %3554 = vmatmul.bf16.gmra.mxu0 %v1438
    %v3555 = vpop.f32.mrf.mxu0
    %v3556 = vadd.f32 0.0, %v3555
    %v3557 = vpop.f32.mrf.mxu0
    %v3558 = vadd.f32 0.0, %v3557
    %3559 = vmatmul.bf16.gmra.mxu0 %v1444
    %v3560 = vpop.f32.mrf.mxu0
    %v3561 = vadd.f32 0.0, %v3560
    %v3562 = vpop.f32.mrf.mxu0
    %v3563 = vadd.f32 0.0, %v3562
    %3564 = vmatmul.bf16.gmra.mxu0 %v1450
    %v3565 = vpop.f32.mrf.mxu0
    %v3566 = vadd.f32 0.0, %v3565
    %v3567 = vpop.f32.mrf.mxu0
    %v3568 = vadd.f32 0.0, %v3567
    %3569 = vmatmul.bf16.gmra.mxu0 %v1456
    %v3570 = vpop.f32.mrf.mxu0
    %v3571 = vadd.f32 0.0, %v3570
    %v3572 = vpop.f32.mrf.mxu0
    %v3573 = vadd.f32 0.0, %v3572
    %3574 = vmatmul.bf16.gmra.mxu0 %v1462
    %v3575 = vpop.f32.mrf.mxu0
    %v3576 = vadd.f32 0.0, %v3575
    %v3577 = vpop.f32.mrf.mxu0
    %v3578 = vadd.f32 0.0, %v3577
    %3579 = vmatmul.bf16.gmra.mxu0 %v1468
    %v3580 = vpop.f32.mrf.mxu0
    %v3581 = vadd.f32 0.0, %v3580
    %v3582 = vpop.f32.mrf.mxu0
    %v3583 = vadd.f32 0.0, %v3582
    %3584 = vmatmul.bf16.gmra.mxu0 %v1474
    %v3585 = vpop.f32.mrf.mxu0
    %v3586 = vadd.f32 0.0, %v3585
    %v3587 = vpop.f32.mrf.mxu0
    %v3588 = vadd.f32 0.0, %v3587
    %3589 = vmatmul.bf16.gmra.mxu0 %v1480
    %v3590 = vpop.f32.mrf.mxu0
    %v3591 = vadd.f32 0.0, %v3590
    %v3592 = vpop.f32.mrf.mxu0
    %v3593 = vadd.f32 0.0, %v3592
    %3594 = vmatmul.bf16.gmra.mxu0 %v1486
    %v3595 = vpop.f32.mrf.mxu0
    %v3596 = vadd.f32 0.0, %v3595
    %v3597 = vpop.f32.mrf.mxu0
    %v3598 = vadd.f32 0.0, %v3597
    %3599 = vmatmul.bf16.gmra.mxu0 %v1492
    %v3600 = vpop.f32.mrf.mxu0
    %v3601 = vadd.f32 0.0, %v3600
    %v3602 = vpop.f32.mrf.mxu0
    %v3603 = vadd.f32 0.0, %v3602
    %3604 = vmatmul.bf16.gmra.mxu0 %v1498
    %v3605 = vpop.f32.mrf.mxu0
    %v3606 = vadd.f32 0.0, %v3605
    %v3607 = vpop.f32.mrf.mxu0
    %v3608 = vadd.f32 0.0, %v3607
    %3609 = vmatmul.bf16.gmra.mxu0 %v1504
    %v3610 = vpop.f32.mrf.mxu0
    %v3611 = vadd.f32 0.0, %v3610
    %v3612 = vpop.f32.mrf.mxu0
    %v3613 = vadd.f32 0.0, %v3612
    %3614 = vdwg.mxu0
    %3615 = vmatpush.bf16.msra.mxu0 %v2878
    %3616 = vmatpush.bf16.msra.mxu0 %v2870
    %3617 = vmatpush.bf16.msra.mxu0 %v2862
    %3618 = vmatpush.bf16.msra.mxu0 %v2854
    %3619 = vmatpush.bf16.msra.mxu0 %v2846
    %3620 = vmatpush.bf16.msra.mxu0 %v2838
    %3621 = vmatpush.bf16.msra.mxu0 %v2830
    %3622 = vmatpush.bf16.msra.mxu0 %v2822
    %3623 = vmatmul.bf16.gmra.mxu0 %v1415
    %v3624 = vpop.f32.mrf.mxu0
    %v3625 = vadd.f32 %v3536, %v3624
    %v3626 = vpop.f32.mrf.mxu0
    %v3627 = vadd.f32 %v3538, %v3626
    %3628 = vmatmul.bf16.gmra.mxu0 %v1421
    %v3629 = vpop.f32.mrf.mxu0
    %v3630 = vadd.f32 %v3541, %v3629
    %v3631 = vpop.f32.mrf.mxu0
    %v3632 = vadd.f32 %v3543, %v3631
    %3633 = vmatmul.bf16.gmra.mxu0 %v1427
    %v3634 = vpop.f32.mrf.mxu0
    %v3635 = vadd.f32 %v3546, %v3634
    %v3636 = vpop.f32.mrf.mxu0
    %v3637 = vadd.f32 %v3548, %v3636
    %3638 = vmatmul.bf16.gmra.mxu0 %v1433
    %v3639 = vpop.f32.mrf.mxu0
    %v3640 = vadd.f32 %v3551, %v3639
    %v3641 = vpop.f32.mrf.mxu0
    %v3642 = vadd.f32 %v3553, %v3641
    %3643 = vmatmul.bf16.gmra.mxu0 %v1439
    %v3644 = vpop.f32.mrf.mxu0
    %v3645 = vadd.f32 %v3556, %v3644
    %v3646 = vpop.f32.mrf.mxu0
    %v3647 = vadd.f32 %v3558, %v3646
    %3648 = vmatmul.bf16.gmra.mxu0 %v1445
    %v3649 = vpop.f32.mrf.mxu0
    %v3650 = vadd.f32 %v3561, %v3649
    %v3651 = vpop.f32.mrf.mxu0
    %v3652 = vadd.f32 %v3563, %v3651
    %3653 = vmatmul.bf16.gmra.mxu0 %v1451
    %v3654 = vpop.f32.mrf.mxu0
    %v3655 = vadd.f32 %v3566, %v3654
    %v3656 = vpop.f32.mrf.mxu0
    %v3657 = vadd.f32 %v3568, %v3656
    %3658 = vmatmul.bf16.gmra.mxu0 %v1457
    %v3659 = vpop.f32.mrf.mxu0
    %v3660 = vadd.f32 %v3571, %v3659
    %v3661 = vpop.f32.mrf.mxu0
    %v3662 = vadd.f32 %v3573, %v3661
    %3663 = vmatmul.bf16.gmra.mxu0 %v1463
    %v3664 = vpop.f32.mrf.mxu0
    %v3665 = vadd.f32 %v3576, %v3664
    %v3666 = vpop.f32.mrf.mxu0
    %v3667 = vadd.f32 %v3578, %v3666
    %3668 = vmatmul.bf16.gmra.mxu0 %v1469
    %v3669 = vpop.f32.mrf.mxu0
    %v3670 = vadd.f32 %v3581, %v3669
    %v3671 = vpop.f32.mrf.mxu0
    %v3672 = vadd.f32 %v3583, %v3671
    %3673 = vmatmul.bf16.gmra.mxu0 %v1475
    %v3674 = vpop.f32.mrf.mxu0
    %v3675 = vadd.f32 %v3586, %v3674
    %v3676 = vpop.f32.mrf.mxu0
    %v3677 = vadd.f32 %v3588, %v3676
    %3678 = vmatmul.bf16.gmra.mxu0 %v1481
    %v3679 = vpop.f32.mrf.mxu0
    %v3680 = vadd.f32 %v3591, %v3679
    %v3681 = vpop.f32.mrf.mxu0
    %v3682 = vadd.f32 %v3593, %v3681
    %3683 = vmatmul.bf16.gmra.mxu0 %v1487
    %v3684 = vpop.f32.mrf.mxu0
    %v3685 = vadd.f32 %v3596, %v3684
    %v3686 = vpop.f32.mrf.mxu0
    %v3687 = vadd.f32 %v3598, %v3686
    %3688 = vmatmul.bf16.gmra.mxu0 %v1493
    %v3689 = vpop.f32.mrf.mxu0
    %v3690 = vadd.f32 %v3601, %v3689
    %v3691 = vpop.f32.mrf.mxu0
    %v3692 = vadd.f32 %v3603, %v3691
    %3693 = vmatmul.bf16.gmra.mxu0 %v1499
    %v3694 = vpop.f32.mrf.mxu0
    %v3695 = vadd.f32 %v3606, %v3694
    %v3696 = vpop.f32.mrf.mxu0
    %v3697 = vadd.f32 %v3608, %v3696
    %3698 = vmatmul.bf16.gmra.mxu0 %v1505
    %v3699 = vpop.f32.mrf.mxu0
    %v3700 = vadd.f32 %v3611, %v3699
    %v3701 = vpop.f32.mrf.mxu0
    %v3702 = vadd.f32 %v3613, %v3701
    %3703 = vdwg.mxu0
    %3704 = vmatpush.bf16.msra.mxu0 %v2942
    %3705 = vmatpush.bf16.msra.mxu0 %v2934
    %3706 = vmatpush.bf16.msra.mxu0 %v2926
    %3707 = vmatpush.bf16.msra.mxu0 %v2918
    %3708 = vmatpush.bf16.msra.mxu0 %v2910
    %3709 = vmatpush.bf16.msra.mxu0 %v2902
    %3710 = vmatpush.bf16.msra.mxu0 %v2894
    %3711 = vmatpush.bf16.msra.mxu0 %v2886
    %3712 = vmatmul.bf16.gmra.mxu0 %v1416
    %v3713 = vpop.f32.mrf.mxu0
    %v3714 = vadd.f32 %v3625, %v3713
    %v3715 = vpop.f32.mrf.mxu0
    %v3716 = vadd.f32 %v3627, %v3715
    %3717 = vmatmul.bf16.gmra.mxu0 %v1422
    %v3718 = vpop.f32.mrf.mxu0
    %v3719 = vadd.f32 %v3630, %v3718
    %v3720 = vpop.f32.mrf.mxu0
    %v3721 = vadd.f32 %v3632, %v3720
    %3722 = vmatmul.bf16.gmra.mxu0 %v1428
    %v3723 = vpop.f32.mrf.mxu0
    %v3724 = vadd.f32 %v3635, %v3723
    %v3725 = vpop.f32.mrf.mxu0
    %v3726 = vadd.f32 %v3637, %v3725
    %3727 = vmatmul.bf16.gmra.mxu0 %v1434
    %v3728 = vpop.f32.mrf.mxu0
    %v3729 = vadd.f32 %v3640, %v3728
    %v3730 = vpop.f32.mrf.mxu0
    %v3731 = vadd.f32 %v3642, %v3730
    %3732 = vmatmul.bf16.gmra.mxu0 %v1440
    %v3733 = vpop.f32.mrf.mxu0
    %v3734 = vadd.f32 %v3645, %v3733
    %v3735 = vpop.f32.mrf.mxu0
    %v3736 = vadd.f32 %v3647, %v3735
    %3737 = vmatmul.bf16.gmra.mxu0 %v1446
    %v3738 = vpop.f32.mrf.mxu0
    %v3739 = vadd.f32 %v3650, %v3738
    %v3740 = vpop.f32.mrf.mxu0
    %v3741 = vadd.f32 %v3652, %v3740
    %3742 = vmatmul.bf16.gmra.mxu0 %v1452
    %v3743 = vpop.f32.mrf.mxu0
    %v3744 = vadd.f32 %v3655, %v3743
    %v3745 = vpop.f32.mrf.mxu0
    %v3746 = vadd.f32 %v3657, %v3745
    %3747 = vmatmul.bf16.gmra.mxu0 %v1458
    %v3748 = vpop.f32.mrf.mxu0
    %v3749 = vadd.f32 %v3660, %v3748
    %v3750 = vpop.f32.mrf.mxu0
    %v3751 = vadd.f32 %v3662, %v3750
    %3752 = vmatmul.bf16.gmra.mxu0 %v1464
    %v3753 = vpop.f32.mrf.mxu0
    %v3754 = vadd.f32 %v3665, %v3753
    %v3755 = vpop.f32.mrf.mxu0
    %v3756 = vadd.f32 %v3667, %v3755
    %3757 = vmatmul.bf16.gmra.mxu0 %v1470
    %v3758 = vpop.f32.mrf.mxu0
    %v3759 = vadd.f32 %v3670, %v3758
    %v3760 = vpop.f32.mrf.mxu0
    %v3761 = vadd.f32 %v3672, %v3760
    %3762 = vmatmul.bf16.gmra.mxu0 %v1476
    %v3763 = vpop.f32.mrf.mxu0
    %v3764 = vadd.f32 %v3675, %v3763
    %v3765 = vpop.f32.mrf.mxu0
    %v3766 = vadd.f32 %v3677, %v3765
    %3767 = vmatmul.bf16.gmra.mxu0 %v1482
    %v3768 = vpop.f32.mrf.mxu0
    %v3769 = vadd.f32 %v3680, %v3768
    %v3770 = vpop.f32.mrf.mxu0
    %v3771 = vadd.f32 %v3682, %v3770
    %3772 = vmatmul.bf16.gmra.mxu0 %v1488
    %v3773 = vpop.f32.mrf.mxu0
    %v3774 = vadd.f32 %v3685, %v3773
    %v3775 = vpop.f32.mrf.mxu0
    %v3776 = vadd.f32 %v3687, %v3775
    %3777 = vmatmul.bf16.gmra.mxu0 %v1494
    %v3778 = vpop.f32.mrf.mxu0
    %v3779 = vadd.f32 %v3690, %v3778
    %v3780 = vpop.f32.mrf.mxu0
    %v3781 = vadd.f32 %v3692, %v3780
    %3782 = vmatmul.bf16.gmra.mxu0 %v1500
    %v3783 = vpop.f32.mrf.mxu0
    %v3784 = vadd.f32 %v3695, %v3783
    %v3785 = vpop.f32.mrf.mxu0
    %v3786 = vadd.f32 %v3697, %v3785
    %3787 = vmatmul.bf16.gmra.mxu0 %v1506
    %v3788 = vpop.f32.mrf.mxu0
    %v3789 = vadd.f32 %v3700, %v3788
    %v3790 = vpop.f32.mrf.mxu0
    %v3791 = vadd.f32 %v3702, %v3790
    %3792 = vdwg.mxu0
    %3793 = vmatpush.bf16.msra.mxu0 %v3006
    %3794 = vmatpush.bf16.msra.mxu0 %v2998
    %3795 = vmatpush.bf16.msra.mxu0 %v2990
    %3796 = vmatpush.bf16.msra.mxu0 %v2982
    %3797 = vmatpush.bf16.msra.mxu0 %v2974
    %3798 = vmatpush.bf16.msra.mxu0 %v2966
    %3799 = vmatpush.bf16.msra.mxu0 %v2958
    %3800 = vmatpush.bf16.msra.mxu0 %v2950
    %3801 = vmatmul.bf16.gmra.mxu0 %v1417
    %v3802 = vpop.f32.mrf.mxu0
    %v3803 = vadd.f32 %v3714, %v3802
    %v3804 = vpop.f32.mrf.mxu0
    %v3805 = vadd.f32 %v3716, %v3804
    %3806 = vmatmul.bf16.gmra.mxu0 %v1423
    %v3807 = vpop.f32.mrf.mxu0
    %v3808 = vadd.f32 %v3719, %v3807
    %v3809 = vpop.f32.mrf.mxu0
    %v3810 = vadd.f32 %v3721, %v3809
    %3811 = vmatmul.bf16.gmra.mxu0 %v1429
    %v3812 = vpop.f32.mrf.mxu0
    %v3813 = vadd.f32 %v3724, %v3812
    %v3814 = vpop.f32.mrf.mxu0
    %v3815 = vadd.f32 %v3726, %v3814
    %3816 = vmatmul.bf16.gmra.mxu0 %v1435
    %v3817 = vpop.f32.mrf.mxu0
    %v3818 = vadd.f32 %v3729, %v3817
    %v3819 = vpop.f32.mrf.mxu0
    %v3820 = vadd.f32 %v3731, %v3819
    %3821 = vmatmul.bf16.gmra.mxu0 %v1441
    %v3822 = vpop.f32.mrf.mxu0
    %v3823 = vadd.f32 %v3734, %v3822
    %v3824 = vpop.f32.mrf.mxu0
    %v3825 = vadd.f32 %v3736, %v3824
    %3826 = vmatmul.bf16.gmra.mxu0 %v1447
    %v3827 = vpop.f32.mrf.mxu0
    %v3828 = vadd.f32 %v3739, %v3827
    %v3829 = vpop.f32.mrf.mxu0
    %v3830 = vadd.f32 %v3741, %v3829
    %3831 = vmatmul.bf16.gmra.mxu0 %v1453
    %v3832 = vpop.f32.mrf.mxu0
    %v3833 = vadd.f32 %v3744, %v3832
    %v3834 = vpop.f32.mrf.mxu0
    %v3835 = vadd.f32 %v3746, %v3834
    %3836 = vmatmul.bf16.gmra.mxu0 %v1459
    %v3837 = vpop.f32.mrf.mxu0
    %v3838 = vadd.f32 %v3749, %v3837
    %v3839 = vpop.f32.mrf.mxu0
    %v3840 = vadd.f32 %v3751, %v3839
    %3841 = vmatmul.bf16.gmra.mxu0 %v1465
    %v3842 = vpop.f32.mrf.mxu0
    %v3843 = vadd.f32 %v3754, %v3842
    %v3844 = vpop.f32.mrf.mxu0
    %v3845 = vadd.f32 %v3756, %v3844
    %3846 = vmatmul.bf16.gmra.mxu0 %v1471
    %v3847 = vpop.f32.mrf.mxu0
    %v3848 = vadd.f32 %v3759, %v3847
    %v3849 = vpop.f32.mrf.mxu0
    %v3850 = vadd.f32 %v3761, %v3849
    %3851 = vmatmul.bf16.gmra.mxu0 %v1477
    %v3852 = vpop.f32.mrf.mxu0
    %v3853 = vadd.f32 %v3764, %v3852
    %v3854 = vpop.f32.mrf.mxu0
    %v3855 = vadd.f32 %v3766, %v3854
    %3856 = vmatmul.bf16.gmra.mxu0 %v1483
    %v3857 = vpop.f32.mrf.mxu0
    %v3858 = vadd.f32 %v3769, %v3857
    %v3859 = vpop.f32.mrf.mxu0
    %v3860 = vadd.f32 %v3771, %v3859
    %3861 = vmatmul.bf16.gmra.mxu0 %v1489
    %v3862 = vpop.f32.mrf.mxu0
    %v3863 = vadd.f32 %v3774, %v3862
    %v3864 = vpop.f32.mrf.mxu0
    %v3865 = vadd.f32 %v3776, %v3864
    %3866 = vmatmul.bf16.gmra.mxu0 %v1495
    %v3867 = vpop.f32.mrf.mxu0
    %v3868 = vadd.f32 %v3779, %v3867
    %v3869 = vpop.f32.mrf.mxu0
    %v3870 = vadd.f32 %v3781, %v3869
    %3871 = vmatmul.bf16.gmra.mxu0 %v1501
    %v3872 = vpop.f32.mrf.mxu0
    %v3873 = vadd.f32 %v3784, %v3872
    %v3874 = vpop.f32.mrf.mxu0
    %v3875 = vadd.f32 %v3786, %v3874
    %3876 = vmatmul.bf16.gmra.mxu0 %v1507
    %v3877 = vpop.f32.mrf.mxu0
    %v3878 = vadd.f32 %v3789, %v3877
    %v3879 = vpop.f32.mrf.mxu0
    %v3880 = vadd.f32 %v3791, %v3879
    %3881 = vdwg.mxu0
    %3882 = vmatpush.bf16.msra.mxu0 %v3070
    %3883 = vmatpush.bf16.msra.mxu0 %v3062
    %3884 = vmatpush.bf16.msra.mxu0 %v3054
    %3885 = vmatpush.bf16.msra.mxu0 %v3046
    %3886 = vmatpush.bf16.msra.mxu0 %v3038
    %3887 = vmatpush.bf16.msra.mxu0 %v3030
    %3888 = vmatpush.bf16.msra.mxu0 %v3022
    %3889 = vmatpush.bf16.msra.mxu0 %v3014
    %3890 = vmatmul.bf16.gmra.mxu0 %v1418
    %v3891 = vpop.f32.mrf.mxu0
    %v3892 = vadd.f32 %v3803, %v3891
    %v3893 = vpop.f32.mrf.mxu0
    %v3894 = vadd.f32 %v3805, %v3893
    %3895 = vmatmul.bf16.gmra.mxu0 %v1424
    %v3896 = vpop.f32.mrf.mxu0
    %v3897 = vadd.f32 %v3808, %v3896
    %v3898 = vpop.f32.mrf.mxu0
    %v3899 = vadd.f32 %v3810, %v3898
    %3900 = vmatmul.bf16.gmra.mxu0 %v1430
    %v3901 = vpop.f32.mrf.mxu0
    %v3902 = vadd.f32 %v3813, %v3901
    %v3903 = vpop.f32.mrf.mxu0
    %v3904 = vadd.f32 %v3815, %v3903
    %3905 = vmatmul.bf16.gmra.mxu0 %v1436
    %v3906 = vpop.f32.mrf.mxu0
    %v3907 = vadd.f32 %v3818, %v3906
    %v3908 = vpop.f32.mrf.mxu0
    %v3909 = vadd.f32 %v3820, %v3908
    %3910 = vmatmul.bf16.gmra.mxu0 %v1442
    %v3911 = vpop.f32.mrf.mxu0
    %v3912 = vadd.f32 %v3823, %v3911
    %v3913 = vpop.f32.mrf.mxu0
    %v3914 = vadd.f32 %v3825, %v3913
    %3915 = vmatmul.bf16.gmra.mxu0 %v1448
    %v3916 = vpop.f32.mrf.mxu0
    %v3917 = vadd.f32 %v3828, %v3916
    %v3918 = vpop.f32.mrf.mxu0
    %v3919 = vadd.f32 %v3830, %v3918
    %3920 = vmatmul.bf16.gmra.mxu0 %v1454
    %v3921 = vpop.f32.mrf.mxu0
    %v3922 = vadd.f32 %v3833, %v3921
    %v3923 = vpop.f32.mrf.mxu0
    %v3924 = vadd.f32 %v3835, %v3923
    %3925 = vmatmul.bf16.gmra.mxu0 %v1460
    %v3926 = vpop.f32.mrf.mxu0
    %v3927 = vadd.f32 %v3838, %v3926
    %v3928 = vpop.f32.mrf.mxu0
    %v3929 = vadd.f32 %v3840, %v3928
    %3930 = vmatmul.bf16.gmra.mxu0 %v1466
    %v3931 = vpop.f32.mrf.mxu0
    %v3932 = vadd.f32 %v3843, %v3931
    %v3933 = vpop.f32.mrf.mxu0
    %v3934 = vadd.f32 %v3845, %v3933
    %3935 = vmatmul.bf16.gmra.mxu0 %v1472
    %v3936 = vpop.f32.mrf.mxu0
    %v3937 = vadd.f32 %v3848, %v3936
    %v3938 = vpop.f32.mrf.mxu0
    %v3939 = vadd.f32 %v3850, %v3938
    %3940 = vmatmul.bf16.gmra.mxu0 %v1478
    %v3941 = vpop.f32.mrf.mxu0
    %v3942 = vadd.f32 %v3853, %v3941
    %v3943 = vpop.f32.mrf.mxu0
    %v3944 = vadd.f32 %v3855, %v3943
    %3945 = vmatmul.bf16.gmra.mxu0 %v1484
    %v3946 = vpop.f32.mrf.mxu0
    %v3947 = vadd.f32 %v3858, %v3946
    %v3948 = vpop.f32.mrf.mxu0
    %v3949 = vadd.f32 %v3860, %v3948
    %3950 = vmatmul.bf16.gmra.mxu0 %v1490
    %v3951 = vpop.f32.mrf.mxu0
    %v3952 = vadd.f32 %v3863, %v3951
    %v3953 = vpop.f32.mrf.mxu0
    %v3954 = vadd.f32 %v3865, %v3953
    %3955 = vmatmul.bf16.gmra.mxu0 %v1496
    %v3956 = vpop.f32.mrf.mxu0
    %v3957 = vadd.f32 %v3868, %v3956
    %v3958 = vpop.f32.mrf.mxu0
    %v3959 = vadd.f32 %v3870, %v3958
    %3960 = vmatmul.bf16.gmra.mxu0 %v1502
    %v3961 = vpop.f32.mrf.mxu0
    %v3962 = vadd.f32 %v3873, %v3961
    %v3963 = vpop.f32.mrf.mxu0
    %v3964 = vadd.f32 %v3875, %v3963
    %3965 = vmatmul.bf16.gmra.mxu0 %v1508
    %v3966 = vpop.f32.mrf.mxu0
    %v3967 = vadd.f32 %v3878, %v3966
    %v3968 = vpop.f32.mrf.mxu0
    %v3969 = vadd.f32 %v3880, %v3968
    %3970 = vdwg.mxu0
    %3971 = vmatpush.bf16.msra.mxu0 %v3134
    %3972 = vmatpush.bf16.msra.mxu0 %v3126
    %3973 = vmatpush.bf16.msra.mxu0 %v3118
    %3974 = vmatpush.bf16.msra.mxu0 %v3110
    %3975 = vmatpush.bf16.msra.mxu0 %v3102
    %3976 = vmatpush.bf16.msra.mxu0 %v3094
    %3977 = vmatpush.bf16.msra.mxu0 %v3086
    %3978 = vmatpush.bf16.msra.mxu0 %v3078
    %3979 = vmatmul.bf16.gmra.mxu0 %v1419
    %v3980 = vpop.f32.mrf.mxu0
    %v3981 = vadd.f32 %v3892, %v3980
    %v3982 = vpop.f32.mrf.mxu0
    %v3983 = vadd.f32 %v3894, %v3982
    %3984 = vmatmul.bf16.gmra.mxu0 %v1425
    %v3985 = vpop.f32.mrf.mxu0
    %v3986 = vadd.f32 %v3897, %v3985
    %v3987 = vpop.f32.mrf.mxu0
    %v3988 = vadd.f32 %v3899, %v3987
    %3989 = vmatmul.bf16.gmra.mxu0 %v1431
    %v3990 = vpop.f32.mrf.mxu0
    %v3991 = vadd.f32 %v3902, %v3990
    %v3992 = vpop.f32.mrf.mxu0
    %v3993 = vadd.f32 %v3904, %v3992
    %3994 = vmatmul.bf16.gmra.mxu0 %v1437
    %v3995 = vpop.f32.mrf.mxu0
    %v3996 = vadd.f32 %v3907, %v3995
    %v3997 = vpop.f32.mrf.mxu0
    %v3998 = vadd.f32 %v3909, %v3997
    %3999 = vmatmul.bf16.gmra.mxu0 %v1443
    %v4000 = vpop.f32.mrf.mxu0
    %v4001 = vadd.f32 %v3912, %v4000
    %v4002 = vpop.f32.mrf.mxu0
    %v4003 = vadd.f32 %v3914, %v4002
    %4004 = vmatmul.bf16.gmra.mxu0 %v1449
    %v4005 = vpop.f32.mrf.mxu0
    %v4006 = vadd.f32 %v3917, %v4005
    %v4007 = vpop.f32.mrf.mxu0
    %v4008 = vadd.f32 %v3919, %v4007
    %4009 = vmatmul.bf16.gmra.mxu0 %v1455
    %v4010 = vpop.f32.mrf.mxu0
    %v4011 = vadd.f32 %v3922, %v4010
    %v4012 = vpop.f32.mrf.mxu0
    %v4013 = vadd.f32 %v3924, %v4012
    %4014 = vmatmul.bf16.gmra.mxu0 %v1461
    %v4015 = vpop.f32.mrf.mxu0
    %v4016 = vadd.f32 %v3927, %v4015
    %v4017 = vpop.f32.mrf.mxu0
    %v4018 = vadd.f32 %v3929, %v4017
    %4019 = vmatmul.bf16.gmra.mxu0 %v1467
    %v4020 = vpop.f32.mrf.mxu0
    %v4021 = vadd.f32 %v3932, %v4020
    %v4022 = vpop.f32.mrf.mxu0
    %v4023 = vadd.f32 %v3934, %v4022
    %4024 = vmatmul.bf16.gmra.mxu0 %v1473
    %v4025 = vpop.f32.mrf.mxu0
    %v4026 = vadd.f32 %v3937, %v4025
    %v4027 = vpop.f32.mrf.mxu0
    %v4028 = vadd.f32 %v3939, %v4027
    %4029 = vmatmul.bf16.gmra.mxu0 %v1479
    %v4030 = vpop.f32.mrf.mxu0
    %v4031 = vadd.f32 %v3942, %v4030
    %v4032 = vpop.f32.mrf.mxu0
    %v4033 = vadd.f32 %v3944, %v4032
    %4034 = vmatmul.bf16.gmra.mxu0 %v1485
    %v4035 = vpop.f32.mrf.mxu0
    %v4036 = vadd.f32 %v3947, %v4035
    %v4037 = vpop.f32.mrf.mxu0
    %v4038 = vadd.f32 %v3949, %v4037
    %4039 = vmatmul.bf16.gmra.mxu0 %v1491
    %v4040 = vpop.f32.mrf.mxu0
    %v4041 = vadd.f32 %v3952, %v4040
    %v4042 = vpop.f32.mrf.mxu0
    %v4043 = vadd.f32 %v3954, %v4042
    %4044 = vmatmul.bf16.gmra.mxu0 %v1497
    %v4045 = vpop.f32.mrf.mxu0
    %v4046 = vadd.f32 %v3957, %v4045
    %v4047 = vpop.f32.mrf.mxu0
    %v4048 = vadd.f32 %v3959, %v4047
    %4049 = vmatmul.bf16.gmra.mxu0 %v1503
    %v4050 = vpop.f32.mrf.mxu0
    %v4051 = vadd.f32 %v3962, %v4050
    %v4052 = vpop.f32.mrf.mxu0
    %v4053 = vadd.f32 %v3964, %v4052
    %4054 = vmatmul.bf16.gmra.mxu0 %v1509
    %v4055 = vpop.f32.mrf.mxu0
    %v4056 = vadd.f32 %v3967, %v4055
    %v4057 = vpop.f32.mrf.mxu0
    %v4058 = vadd.f32 %v3969, %v4057
    %4059 = vdwg.mxu0
    %4060 = vmatpush.bf16.msra.mxu0 %v2815
    %4061 = vmatpush.bf16.msra.mxu0 %v2807
    %4062 = vmatpush.bf16.msra.mxu0 %v2799
    %4063 = vmatpush.bf16.msra.mxu0 %v2791
    %4064 = vmatpush.bf16.msra.mxu0 %v2783
    %4065 = vmatpush.bf16.msra.mxu0 %v2775
    %4066 = vmatpush.bf16.msra.mxu0 %v2767
    %4067 = vmatpush.bf16.msra.mxu0 %v2759
    %4068 = vmatmul.bf16.gmra.mxu0 %v1414
    %v4069 = vpop.f32.mrf.mxu0
    %v4070 = vadd.f32 0.0, %v4069
    %v4071 = vpop.f32.mrf.mxu0
    %v4072 = vadd.f32 0.0, %v4071
    %4073 = vmatmul.bf16.gmra.mxu0 %v1420
    %v4074 = vpop.f32.mrf.mxu0
    %v4075 = vadd.f32 0.0, %v4074
    %v4076 = vpop.f32.mrf.mxu0
    %v4077 = vadd.f32 0.0, %v4076
    %4078 = vmatmul.bf16.gmra.mxu0 %v1426
    %v4079 = vpop.f32.mrf.mxu0
    %v4080 = vadd.f32 0.0, %v4079
    %v4081 = vpop.f32.mrf.mxu0
    %v4082 = vadd.f32 0.0, %v4081
    %4083 = vmatmul.bf16.gmra.mxu0 %v1432
    %v4084 = vpop.f32.mrf.mxu0
    %v4085 = vadd.f32 0.0, %v4084
    %v4086 = vpop.f32.mrf.mxu0
    %v4087 = vadd.f32 0.0, %v4086
    %4088 = vmatmul.bf16.gmra.mxu0 %v1438
    %v4089 = vpop.f32.mrf.mxu0
    %v4090 = vadd.f32 0.0, %v4089
    %v4091 = vpop.f32.mrf.mxu0
    %v4092 = vadd.f32 0.0, %v4091
    %4093 = vmatmul.bf16.gmra.mxu0 %v1444
    %v4094 = vpop.f32.mrf.mxu0
    %v4095 = vadd.f32 0.0, %v4094
    %v4096 = vpop.f32.mrf.mxu0
    %v4097 = vadd.f32 0.0, %v4096
    %4098 = vmatmul.bf16.gmra.mxu0 %v1450
    %v4099 = vpop.f32.mrf.mxu0
    %v4100 = vadd.f32 0.0, %v4099
    %v4101 = vpop.f32.mrf.mxu0
    %v4102 = vadd.f32 0.0, %v4101
    %4103 = vmatmul.bf16.gmra.mxu0 %v1456
    %v4104 = vpop.f32.mrf.mxu0
    %v4105 = vadd.f32 0.0, %v4104
    %v4106 = vpop.f32.mrf.mxu0
    %v4107 = vadd.f32 0.0, %v4106
    %4108 = vmatmul.bf16.gmra.mxu0 %v1462
    %v4109 = vpop.f32.mrf.mxu0
    %v4110 = vadd.f32 0.0, %v4109
    %v4111 = vpop.f32.mrf.mxu0
    %v4112 = vadd.f32 0.0, %v4111
    %4113 = vmatmul.bf16.gmra.mxu0 %v1468
    %v4114 = vpop.f32.mrf.mxu0
    %v4115 = vadd.f32 0.0, %v4114
    %v4116 = vpop.f32.mrf.mxu0
    %v4117 = vadd.f32 0.0, %v4116
    %4118 = vmatmul.bf16.gmra.mxu0 %v1474
    %v4119 = vpop.f32.mrf.mxu0
    %v4120 = vadd.f32 0.0, %v4119
    %v4121 = vpop.f32.mrf.mxu0
    %v4122 = vadd.f32 0.0, %v4121
    %4123 = vmatmul.bf16.gmra.mxu0 %v1480
    %v4124 = vpop.f32.mrf.mxu0
    %v4125 = vadd.f32 0.0, %v4124
    %v4126 = vpop.f32.mrf.mxu0
    %v4127 = vadd.f32 0.0, %v4126
    %4128 = vmatmul.bf16.gmra.mxu0 %v1486
    %v4129 = vpop.f32.mrf.mxu0
    %v4130 = vadd.f32 0.0, %v4129
    %v4131 = vpop.f32.mrf.mxu0
    %v4132 = vadd.f32 0.0, %v4131
    %4133 = vmatmul.bf16.gmra.mxu0 %v1492
    %v4134 = vpop.f32.mrf.mxu0
    %v4135 = vadd.f32 0.0, %v4134
    %v4136 = vpop.f32.mrf.mxu0
    %v4137 = vadd.f32 0.0, %v4136
    %4138 = vmatmul.bf16.gmra.mxu0 %v1498
    %v4139 = vpop.f32.mrf.mxu0
    %v4140 = vadd.f32 0.0, %v4139
    %v4141 = vpop.f32.mrf.mxu0
    %v4142 = vadd.f32 0.0, %v4141
    %4143 = vmatmul.bf16.gmra.mxu0 %v1504
    %v4144 = vpop.f32.mrf.mxu0
    %v4145 = vadd.f32 0.0, %v4144
    %v4146 = vpop.f32.mrf.mxu0
    %v4147 = vadd.f32 0.0, %v4146
    %4148 = vdwg.mxu0
    %4149 = vmatpush.bf16.msra.mxu0 %v2879
    %4150 = vmatpush.bf16.msra.mxu0 %v2871
    %4151 = vmatpush.bf16.msra.mxu0 %v2863
    %4152 = vmatpush.bf16.msra.mxu0 %v2855
    %4153 = vmatpush.bf16.msra.mxu0 %v2847
    %4154 = vmatpush.bf16.msra.mxu0 %v2839
    %4155 = vmatpush.bf16.msra.mxu0 %v2831
    %4156 = vmatpush.bf16.msra.mxu0 %v2823
    %4157 = vmatmul.bf16.gmra.mxu0 %v1415
    %v4158 = vpop.f32.mrf.mxu0
    %v4159 = vadd.f32 %v4070, %v4158
    %v4160 = vpop.f32.mrf.mxu0
    %v4161 = vadd.f32 %v4072, %v4160
    %4162 = vmatmul.bf16.gmra.mxu0 %v1421
    %v4163 = vpop.f32.mrf.mxu0
    %v4164 = vadd.f32 %v4075, %v4163
    %v4165 = vpop.f32.mrf.mxu0
    %v4166 = vadd.f32 %v4077, %v4165
    %4167 = vmatmul.bf16.gmra.mxu0 %v1427
    %v4168 = vpop.f32.mrf.mxu0
    %v4169 = vadd.f32 %v4080, %v4168
    %v4170 = vpop.f32.mrf.mxu0
    %v4171 = vadd.f32 %v4082, %v4170
    %4172 = vmatmul.bf16.gmra.mxu0 %v1433
    %v4173 = vpop.f32.mrf.mxu0
    %v4174 = vadd.f32 %v4085, %v4173
    %v4175 = vpop.f32.mrf.mxu0
    %v4176 = vadd.f32 %v4087, %v4175
    %4177 = vmatmul.bf16.gmra.mxu0 %v1439
    %v4178 = vpop.f32.mrf.mxu0
    %v4179 = vadd.f32 %v4090, %v4178
    %v4180 = vpop.f32.mrf.mxu0
    %v4181 = vadd.f32 %v4092, %v4180
    %4182 = vmatmul.bf16.gmra.mxu0 %v1445
    %v4183 = vpop.f32.mrf.mxu0
    %v4184 = vadd.f32 %v4095, %v4183
    %v4185 = vpop.f32.mrf.mxu0
    %v4186 = vadd.f32 %v4097, %v4185
    %4187 = vmatmul.bf16.gmra.mxu0 %v1451
    %v4188 = vpop.f32.mrf.mxu0
    %v4189 = vadd.f32 %v4100, %v4188
    %v4190 = vpop.f32.mrf.mxu0
    %v4191 = vadd.f32 %v4102, %v4190
    %4192 = vmatmul.bf16.gmra.mxu0 %v1457
    %v4193 = vpop.f32.mrf.mxu0
    %v4194 = vadd.f32 %v4105, %v4193
    %v4195 = vpop.f32.mrf.mxu0
    %v4196 = vadd.f32 %v4107, %v4195
    %4197 = vmatmul.bf16.gmra.mxu0 %v1463
    %v4198 = vpop.f32.mrf.mxu0
    %v4199 = vadd.f32 %v4110, %v4198
    %v4200 = vpop.f32.mrf.mxu0
    %v4201 = vadd.f32 %v4112, %v4200
    %4202 = vmatmul.bf16.gmra.mxu0 %v1469
    %v4203 = vpop.f32.mrf.mxu0
    %v4204 = vadd.f32 %v4115, %v4203
    %v4205 = vpop.f32.mrf.mxu0
    %v4206 = vadd.f32 %v4117, %v4205
    %4207 = vmatmul.bf16.gmra.mxu0 %v1475
    %v4208 = vpop.f32.mrf.mxu0
    %v4209 = vadd.f32 %v4120, %v4208
    %v4210 = vpop.f32.mrf.mxu0
    %v4211 = vadd.f32 %v4122, %v4210
    %4212 = vmatmul.bf16.gmra.mxu0 %v1481
    %v4213 = vpop.f32.mrf.mxu0
    %v4214 = vadd.f32 %v4125, %v4213
    %v4215 = vpop.f32.mrf.mxu0
    %v4216 = vadd.f32 %v4127, %v4215
    %4217 = vmatmul.bf16.gmra.mxu0 %v1487
    %v4218 = vpop.f32.mrf.mxu0
    %v4219 = vadd.f32 %v4130, %v4218
    %v4220 = vpop.f32.mrf.mxu0
    %v4221 = vadd.f32 %v4132, %v4220
    %4222 = vmatmul.bf16.gmra.mxu0 %v1493
    %v4223 = vpop.f32.mrf.mxu0
    %v4224 = vadd.f32 %v4135, %v4223
    %v4225 = vpop.f32.mrf.mxu0
    %v4226 = vadd.f32 %v4137, %v4225
    %4227 = vmatmul.bf16.gmra.mxu0 %v1499
    %v4228 = vpop.f32.mrf.mxu0
    %v4229 = vadd.f32 %v4140, %v4228
    %v4230 = vpop.f32.mrf.mxu0
    %v4231 = vadd.f32 %v4142, %v4230
    %4232 = vmatmul.bf16.gmra.mxu0 %v1505
    %v4233 = vpop.f32.mrf.mxu0
    %v4234 = vadd.f32 %v4145, %v4233
    %v4235 = vpop.f32.mrf.mxu0
    %v4236 = vadd.f32 %v4147, %v4235
    %4237 = vdwg.mxu0
    %4238 = vmatpush.bf16.msra.mxu0 %v2943
    %4239 = vmatpush.bf16.msra.mxu0 %v2935
    %4240 = vmatpush.bf16.msra.mxu0 %v2927
    %4241 = vmatpush.bf16.msra.mxu0 %v2919
    %4242 = vmatpush.bf16.msra.mxu0 %v2911
    %4243 = vmatpush.bf16.msra.mxu0 %v2903
    %4244 = vmatpush.bf16.msra.mxu0 %v2895
    %4245 = vmatpush.bf16.msra.mxu0 %v2887
    %4246 = vmatmul.bf16.gmra.mxu0 %v1416
    %v4247 = vpop.f32.mrf.mxu0
    %v4248 = vadd.f32 %v4159, %v4247
    %v4249 = vpop.f32.mrf.mxu0
    %v4250 = vadd.f32 %v4161, %v4249
    %4251 = vmatmul.bf16.gmra.mxu0 %v1422
    %v4252 = vpop.f32.mrf.mxu0
    %v4253 = vadd.f32 %v4164, %v4252
    %v4254 = vpop.f32.mrf.mxu0
    %v4255 = vadd.f32 %v4166, %v4254
    %4256 = vmatmul.bf16.gmra.mxu0 %v1428
    %v4257 = vpop.f32.mrf.mxu0
    %v4258 = vadd.f32 %v4169, %v4257
    %v4259 = vpop.f32.mrf.mxu0
    %v4260 = vadd.f32 %v4171, %v4259
    %4261 = vmatmul.bf16.gmra.mxu0 %v1434
    %v4262 = vpop.f32.mrf.mxu0
    %v4263 = vadd.f32 %v4174, %v4262
    %v4264 = vpop.f32.mrf.mxu0
    %v4265 = vadd.f32 %v4176, %v4264
    %4266 = vmatmul.bf16.gmra.mxu0 %v1440
    %v4267 = vpop.f32.mrf.mxu0
    %v4268 = vadd.f32 %v4179, %v4267
    %v4269 = vpop.f32.mrf.mxu0
    %v4270 = vadd.f32 %v4181, %v4269
    %4271 = vmatmul.bf16.gmra.mxu0 %v1446
    %v4272 = vpop.f32.mrf.mxu0
    %v4273 = vadd.f32 %v4184, %v4272
    %v4274 = vpop.f32.mrf.mxu0
    %v4275 = vadd.f32 %v4186, %v4274
    %4276 = vmatmul.bf16.gmra.mxu0 %v1452
    %v4277 = vpop.f32.mrf.mxu0
    %v4278 = vadd.f32 %v4189, %v4277
    %v4279 = vpop.f32.mrf.mxu0
    %v4280 = vadd.f32 %v4191, %v4279
    %4281 = vmatmul.bf16.gmra.mxu0 %v1458
    %v4282 = vpop.f32.mrf.mxu0
    %v4283 = vadd.f32 %v4194, %v4282
    %v4284 = vpop.f32.mrf.mxu0
    %v4285 = vadd.f32 %v4196, %v4284
    %4286 = vmatmul.bf16.gmra.mxu0 %v1464
    %v4287 = vpop.f32.mrf.mxu0
    %v4288 = vadd.f32 %v4199, %v4287
    %v4289 = vpop.f32.mrf.mxu0
    %v4290 = vadd.f32 %v4201, %v4289
    %4291 = vmatmul.bf16.gmra.mxu0 %v1470
    %v4292 = vpop.f32.mrf.mxu0
    %v4293 = vadd.f32 %v4204, %v4292
    %v4294 = vpop.f32.mrf.mxu0
    %v4295 = vadd.f32 %v4206, %v4294
    %4296 = vmatmul.bf16.gmra.mxu0 %v1476
    %v4297 = vpop.f32.mrf.mxu0
    %v4298 = vadd.f32 %v4209, %v4297
    %v4299 = vpop.f32.mrf.mxu0
    %v4300 = vadd.f32 %v4211, %v4299
    %4301 = vmatmul.bf16.gmra.mxu0 %v1482
    %v4302 = vpop.f32.mrf.mxu0
    %v4303 = vadd.f32 %v4214, %v4302
    %v4304 = vpop.f32.mrf.mxu0
    %v4305 = vadd.f32 %v4216, %v4304
    %4306 = vmatmul.bf16.gmra.mxu0 %v1488
    %v4307 = vpop.f32.mrf.mxu0
    %v4308 = vadd.f32 %v4219, %v4307
    %v4309 = vpop.f32.mrf.mxu0
    %v4310 = vadd.f32 %v4221, %v4309
    %4311 = vmatmul.bf16.gmra.mxu0 %v1494
    %v4312 = vpop.f32.mrf.mxu0
    %v4313 = vadd.f32 %v4224, %v4312
    %v4314 = vpop.f32.mrf.mxu0
    %v4315 = vadd.f32 %v4226, %v4314
    %4316 = vmatmul.bf16.gmra.mxu0 %v1500
    %v4317 = vpop.f32.mrf.mxu0
    %v4318 = vadd.f32 %v4229, %v4317
    %v4319 = vpop.f32.mrf.mxu0
    %v4320 = vadd.f32 %v4231, %v4319
    %4321 = vmatmul.bf16.gmra.mxu0 %v1506
    %v4322 = vpop.f32.mrf.mxu0
    %v4323 = vadd.f32 %v4234, %v4322
    %v4324 = vpop.f32.mrf.mxu0
    %v4325 = vadd.f32 %v4236, %v4324
    %4326 = vdwg.mxu0
    %4327 = vmatpush.bf16.msra.mxu0 %v3007
    %4328 = vmatpush.bf16.msra.mxu0 %v2999
    %4329 = vmatpush.bf16.msra.mxu0 %v2991
    %4330 = vmatpush.bf16.msra.mxu0 %v2983
    %4331 = vmatpush.bf16.msra.mxu0 %v2975
    %4332 = vmatpush.bf16.msra.mxu0 %v2967
    %4333 = vmatpush.bf16.msra.mxu0 %v2959
    %4334 = vmatpush.bf16.msra.mxu0 %v2951
    %4335 = vmatmul.bf16.gmra.mxu0 %v1417
    %v4336 = vpop.f32.mrf.mxu0
    %v4337 = vadd.f32 %v4248, %v4336
    %v4338 = vpop.f32.mrf.mxu0
    %v4339 = vadd.f32 %v4250, %v4338
    %4340 = vmatmul.bf16.gmra.mxu0 %v1423
    %v4341 = vpop.f32.mrf.mxu0
    %v4342 = vadd.f32 %v4253, %v4341
    %v4343 = vpop.f32.mrf.mxu0
    %v4344 = vadd.f32 %v4255, %v4343
    %4345 = vmatmul.bf16.gmra.mxu0 %v1429
    %v4346 = vpop.f32.mrf.mxu0
    %v4347 = vadd.f32 %v4258, %v4346
    %v4348 = vpop.f32.mrf.mxu0
    %v4349 = vadd.f32 %v4260, %v4348
    %4350 = vmatmul.bf16.gmra.mxu0 %v1435
    %v4351 = vpop.f32.mrf.mxu0
    %v4352 = vadd.f32 %v4263, %v4351
    %v4353 = vpop.f32.mrf.mxu0
    %v4354 = vadd.f32 %v4265, %v4353
    %4355 = vmatmul.bf16.gmra.mxu0 %v1441
    %v4356 = vpop.f32.mrf.mxu0
    %v4357 = vadd.f32 %v4268, %v4356
    %v4358 = vpop.f32.mrf.mxu0
    %v4359 = vadd.f32 %v4270, %v4358
    %4360 = vmatmul.bf16.gmra.mxu0 %v1447
    %v4361 = vpop.f32.mrf.mxu0
    %v4362 = vadd.f32 %v4273, %v4361
    %v4363 = vpop.f32.mrf.mxu0
    %v4364 = vadd.f32 %v4275, %v4363
    %4365 = vmatmul.bf16.gmra.mxu0 %v1453
    %v4366 = vpop.f32.mrf.mxu0
    %v4367 = vadd.f32 %v4278, %v4366
    %v4368 = vpop.f32.mrf.mxu0
    %v4369 = vadd.f32 %v4280, %v4368
    %4370 = vmatmul.bf16.gmra.mxu0 %v1459
    %v4371 = vpop.f32.mrf.mxu0
    %v4372 = vadd.f32 %v4283, %v4371
    %v4373 = vpop.f32.mrf.mxu0
    %v4374 = vadd.f32 %v4285, %v4373
    %4375 = vmatmul.bf16.gmra.mxu0 %v1465
    %v4376 = vpop.f32.mrf.mxu0
    %v4377 = vadd.f32 %v4288, %v4376
    %v4378 = vpop.f32.mrf.mxu0
    %v4379 = vadd.f32 %v4290, %v4378
    %4380 = vmatmul.bf16.gmra.mxu0 %v1471
    %v4381 = vpop.f32.mrf.mxu0
    %v4382 = vadd.f32 %v4293, %v4381
    %v4383 = vpop.f32.mrf.mxu0
    %v4384 = vadd.f32 %v4295, %v4383
    %4385 = vmatmul.bf16.gmra.mxu0 %v1477
    %v4386 = vpop.f32.mrf.mxu0
    %v4387 = vadd.f32 %v4298, %v4386
    %v4388 = vpop.f32.mrf.mxu0
    %v4389 = vadd.f32 %v4300, %v4388
    %4390 = vmatmul.bf16.gmra.mxu0 %v1483
    %v4391 = vpop.f32.mrf.mxu0
    %v4392 = vadd.f32 %v4303, %v4391
    %v4393 = vpop.f32.mrf.mxu0
    %v4394 = vadd.f32 %v4305, %v4393
    %4395 = vmatmul.bf16.gmra.mxu0 %v1489
    %v4396 = vpop.f32.mrf.mxu0
    %v4397 = vadd.f32 %v4308, %v4396
    %v4398 = vpop.f32.mrf.mxu0
    %v4399 = vadd.f32 %v4310, %v4398
    %4400 = vmatmul.bf16.gmra.mxu0 %v1495
    %v4401 = vpop.f32.mrf.mxu0
    %v4402 = vadd.f32 %v4313, %v4401
    %v4403 = vpop.f32.mrf.mxu0
    %v4404 = vadd.f32 %v4315, %v4403
    %4405 = vmatmul.bf16.gmra.mxu0 %v1501
    %v4406 = vpop.f32.mrf.mxu0
    %v4407 = vadd.f32 %v4318, %v4406
    %v4408 = vpop.f32.mrf.mxu0
    %v4409 = vadd.f32 %v4320, %v4408
    %4410 = vmatmul.bf16.gmra.mxu0 %v1507
    %v4411 = vpop.f32.mrf.mxu0
    %v4412 = vadd.f32 %v4323, %v4411
    %v4413 = vpop.f32.mrf.mxu0
    %v4414 = vadd.f32 %v4325, %v4413
    %4415 = vdwg.mxu0
    %4416 = vmatpush.bf16.msra.mxu0 %v3071
    %4417 = vmatpush.bf16.msra.mxu0 %v3063
    %4418 = vmatpush.bf16.msra.mxu0 %v3055
    %4419 = vmatpush.bf16.msra.mxu0 %v3047
    %4420 = vmatpush.bf16.msra.mxu0 %v3039
    %4421 = vmatpush.bf16.msra.mxu0 %v3031
    %4422 = vmatpush.bf16.msra.mxu0 %v3023
    %4423 = vmatpush.bf16.msra.mxu0 %v3015
    %4424 = vmatmul.bf16.gmra.mxu0 %v1418
    %v4425 = vpop.f32.mrf.mxu0
    %v4426 = vadd.f32 %v4337, %v4425
    %v4427 = vpop.f32.mrf.mxu0
    %v4428 = vadd.f32 %v4339, %v4427
    %4429 = vmatmul.bf16.gmra.mxu0 %v1424
    %v4430 = vpop.f32.mrf.mxu0
    %v4431 = vadd.f32 %v4342, %v4430
    %v4432 = vpop.f32.mrf.mxu0
    %v4433 = vadd.f32 %v4344, %v4432
    %4434 = vmatmul.bf16.gmra.mxu0 %v1430
    %v4435 = vpop.f32.mrf.mxu0
    %v4436 = vadd.f32 %v4347, %v4435
    %v4437 = vpop.f32.mrf.mxu0
    %v4438 = vadd.f32 %v4349, %v4437
    %4439 = vmatmul.bf16.gmra.mxu0 %v1436
    %v4440 = vpop.f32.mrf.mxu0
    %v4441 = vadd.f32 %v4352, %v4440
    %v4442 = vpop.f32.mrf.mxu0
    %v4443 = vadd.f32 %v4354, %v4442
    %4444 = vmatmul.bf16.gmra.mxu0 %v1442
    %v4445 = vpop.f32.mrf.mxu0
    %v4446 = vadd.f32 %v4357, %v4445
    %v4447 = vpop.f32.mrf.mxu0
    %v4448 = vadd.f32 %v4359, %v4447
    %4449 = vmatmul.bf16.gmra.mxu0 %v1448
    %v4450 = vpop.f32.mrf.mxu0
    %v4451 = vadd.f32 %v4362, %v4450
    %v4452 = vpop.f32.mrf.mxu0
    %v4453 = vadd.f32 %v4364, %v4452
    %4454 = vmatmul.bf16.gmra.mxu0 %v1454
    %v4455 = vpop.f32.mrf.mxu0
    %v4456 = vadd.f32 %v4367, %v4455
    %v4457 = vpop.f32.mrf.mxu0
    %v4458 = vadd.f32 %v4369, %v4457
    %4459 = vmatmul.bf16.gmra.mxu0 %v1460
    %v4460 = vpop.f32.mrf.mxu0
    %v4461 = vadd.f32 %v4372, %v4460
    %v4462 = vpop.f32.mrf.mxu0
    %v4463 = vadd.f32 %v4374, %v4462
    %4464 = vmatmul.bf16.gmra.mxu0 %v1466
    %v4465 = vpop.f32.mrf.mxu0
    %v4466 = vadd.f32 %v4377, %v4465
    %v4467 = vpop.f32.mrf.mxu0
    %v4468 = vadd.f32 %v4379, %v4467
    %4469 = vmatmul.bf16.gmra.mxu0 %v1472
    %v4470 = vpop.f32.mrf.mxu0
    %v4471 = vadd.f32 %v4382, %v4470
    %v4472 = vpop.f32.mrf.mxu0
    %v4473 = vadd.f32 %v4384, %v4472
    %4474 = vmatmul.bf16.gmra.mxu0 %v1478
    %v4475 = vpop.f32.mrf.mxu0
    %v4476 = vadd.f32 %v4387, %v4475
    %v4477 = vpop.f32.mrf.mxu0
    %v4478 = vadd.f32 %v4389, %v4477
    %4479 = vmatmul.bf16.gmra.mxu0 %v1484
    %v4480 = vpop.f32.mrf.mxu0
    %v4481 = vadd.f32 %v4392, %v4480
    %v4482 = vpop.f32.mrf.mxu0
    %v4483 = vadd.f32 %v4394, %v4482
    %4484 = vmatmul.bf16.gmra.mxu0 %v1490
    %v4485 = vpop.f32.mrf.mxu0
    %v4486 = vadd.f32 %v4397, %v4485
    %v4487 = vpop.f32.mrf.mxu0
    %v4488 = vadd.f32 %v4399, %v4487
    %4489 = vmatmul.bf16.gmra.mxu0 %v1496
    %v4490 = vpop.f32.mrf.mxu0
    %v4491 = vadd.f32 %v4402, %v4490
    %v4492 = vpop.f32.mrf.mxu0
    %v4493 = vadd.f32 %v4404, %v4492
    %4494 = vmatmul.bf16.gmra.mxu0 %v1502
    %v4495 = vpop.f32.mrf.mxu0
    %v4496 = vadd.f32 %v4407, %v4495
    %v4497 = vpop.f32.mrf.mxu0
    %v4498 = vadd.f32 %v4409, %v4497
    %4499 = vmatmul.bf16.gmra.mxu0 %v1508
    %v4500 = vpop.f32.mrf.mxu0
    %v4501 = vadd.f32 %v4412, %v4500
    %v4502 = vpop.f32.mrf.mxu0
    %v4503 = vadd.f32 %v4414, %v4502
    %4504 = vdwg.mxu0
    %4505 = vmatpush.bf16.msra.mxu0 %v3135
    %4506 = vmatpush.bf16.msra.mxu0 %v3127
    %4507 = vmatpush.bf16.msra.mxu0 %v3119
    %4508 = vmatpush.bf16.msra.mxu0 %v3111
    %4509 = vmatpush.bf16.msra.mxu0 %v3103
    %4510 = vmatpush.bf16.msra.mxu0 %v3095
    %4511 = vmatpush.bf16.msra.mxu0 %v3087
    %4512 = vmatpush.bf16.msra.mxu0 %v3079
    %4513 = vmatmul.bf16.gmra.mxu0 %v1419
    %v4514 = vpop.f32.mrf.mxu0
    %v4515 = vadd.f32 %v4426, %v4514
    %v4516 = vpop.f32.mrf.mxu0
    %v4517 = vadd.f32 %v4428, %v4516
    %4518 = vmatmul.bf16.gmra.mxu0 %v1425
    %v4519 = vpop.f32.mrf.mxu0
    %v4520 = vadd.f32 %v4431, %v4519
    %v4521 = vpop.f32.mrf.mxu0
    %v4522 = vadd.f32 %v4433, %v4521
    %4523 = vmatmul.bf16.gmra.mxu0 %v1431
    %v4524 = vpop.f32.mrf.mxu0
    %v4525 = vadd.f32 %v4436, %v4524
    %v4526 = vpop.f32.mrf.mxu0
    %v4527 = vadd.f32 %v4438, %v4526
    %4528 = vmatmul.bf16.gmra.mxu0 %v1437
    %v4529 = vpop.f32.mrf.mxu0
    %v4530 = vadd.f32 %v4441, %v4529
    %v4531 = vpop.f32.mrf.mxu0
    %v4532 = vadd.f32 %v4443, %v4531
    %4533 = vmatmul.bf16.gmra.mxu0 %v1443
    %v4534 = vpop.f32.mrf.mxu0
    %v4535 = vadd.f32 %v4446, %v4534
    %v4536 = vpop.f32.mrf.mxu0
    %v4537 = vadd.f32 %v4448, %v4536
    %4538 = vmatmul.bf16.gmra.mxu0 %v1449
    %v4539 = vpop.f32.mrf.mxu0
    %v4540 = vadd.f32 %v4451, %v4539
    %v4541 = vpop.f32.mrf.mxu0
    %v4542 = vadd.f32 %v4453, %v4541
    %4543 = vmatmul.bf16.gmra.mxu0 %v1455
    %v4544 = vpop.f32.mrf.mxu0
    %v4545 = vadd.f32 %v4456, %v4544
    %v4546 = vpop.f32.mrf.mxu0
    %v4547 = vadd.f32 %v4458, %v4546
    %4548 = vmatmul.bf16.gmra.mxu0 %v1461
    %v4549 = vpop.f32.mrf.mxu0
    %v4550 = vadd.f32 %v4461, %v4549
    %v4551 = vpop.f32.mrf.mxu0
    %v4552 = vadd.f32 %v4463, %v4551
    %4553 = vmatmul.bf16.gmra.mxu0 %v1467
    %v4554 = vpop.f32.mrf.mxu0
    %v4555 = vadd.f32 %v4466, %v4554
    %v4556 = vpop.f32.mrf.mxu0
    %v4557 = vadd.f32 %v4468, %v4556
    %4558 = vmatmul.bf16.gmra.mxu0 %v1473
    %v4559 = vpop.f32.mrf.mxu0
    %v4560 = vadd.f32 %v4471, %v4559
    %v4561 = vpop.f32.mrf.mxu0
    %v4562 = vadd.f32 %v4473, %v4561
    %4563 = vmatmul.bf16.gmra.mxu0 %v1479
    %v4564 = vpop.f32.mrf.mxu0
    %v4565 = vadd.f32 %v4476, %v4564
    %v4566 = vpop.f32.mrf.mxu0
    %v4567 = vadd.f32 %v4478, %v4566
    %4568 = vmatmul.bf16.gmra.mxu0 %v1485
    %v4569 = vpop.f32.mrf.mxu0
    %v4570 = vadd.f32 %v4481, %v4569
    %v4571 = vpop.f32.mrf.mxu0
    %v4572 = vadd.f32 %v4483, %v4571
    %4573 = vmatmul.bf16.gmra.mxu0 %v1491
    %v4574 = vpop.f32.mrf.mxu0
    %v4575 = vadd.f32 %v4486, %v4574
    %v4576 = vpop.f32.mrf.mxu0
    %v4577 = vadd.f32 %v4488, %v4576
    %4578 = vmatmul.bf16.gmra.mxu0 %v1497
    %v4579 = vpop.f32.mrf.mxu0
    %v4580 = vadd.f32 %v4491, %v4579
    %v4581 = vpop.f32.mrf.mxu0
    %v4582 = vadd.f32 %v4493, %v4581
    %4583 = vmatmul.bf16.gmra.mxu0 %v1503
    %v4584 = vpop.f32.mrf.mxu0
    %v4585 = vadd.f32 %v4496, %v4584
    %v4586 = vpop.f32.mrf.mxu0
    %v4587 = vadd.f32 %v4498, %v4586
    %4588 = vmatmul.bf16.gmra.mxu0 %v1509
    %v4589 = vpop.f32.mrf.mxu0
    %v4590 = vadd.f32 %v4501, %v4589
    %v4591 = vpop.f32.mrf.mxu0
    %v4592 = vadd.f32 %v4503, %v4591
    %4593 = vdwg.mxu0
    %4594 = vmatpush.bf16.msra.mxu0 %v2816
    %4595 = vmatpush.bf16.msra.mxu0 %v2808
    %4596 = vmatpush.bf16.msra.mxu0 %v2800
    %4597 = vmatpush.bf16.msra.mxu0 %v2792
    %4598 = vmatpush.bf16.msra.mxu0 %v2784
    %4599 = vmatpush.bf16.msra.mxu0 %v2776
    %4600 = vmatpush.bf16.msra.mxu0 %v2768
    %4601 = vmatpush.bf16.msra.mxu0 %v2760
    %4602 = vmatmul.bf16.gmra.mxu0 %v1414
    %v4603 = vpop.f32.mrf.mxu0
    %v4604 = vadd.f32 0.0, %v4603
    %v4605 = vpop.f32.mrf.mxu0
    %v4606 = vadd.f32 0.0, %v4605
    %4607 = vmatmul.bf16.gmra.mxu0 %v1420
    %v4608 = vpop.f32.mrf.mxu0
    %v4609 = vadd.f32 0.0, %v4608
    %v4610 = vpop.f32.mrf.mxu0
    %v4611 = vadd.f32 0.0, %v4610
    %4612 = vmatmul.bf16.gmra.mxu0 %v1426
    %v4613 = vpop.f32.mrf.mxu0
    %v4614 = vadd.f32 0.0, %v4613
    %v4615 = vpop.f32.mrf.mxu0
    %v4616 = vadd.f32 0.0, %v4615
    %4617 = vmatmul.bf16.gmra.mxu0 %v1432
    %v4618 = vpop.f32.mrf.mxu0
    %v4619 = vadd.f32 0.0, %v4618
    %v4620 = vpop.f32.mrf.mxu0
    %v4621 = vadd.f32 0.0, %v4620
    %4622 = vmatmul.bf16.gmra.mxu0 %v1438
    %v4623 = vpop.f32.mrf.mxu0
    %v4624 = vadd.f32 0.0, %v4623
    %v4625 = vpop.f32.mrf.mxu0
    %v4626 = vadd.f32 0.0, %v4625
    %4627 = vmatmul.bf16.gmra.mxu0 %v1444
    %v4628 = vpop.f32.mrf.mxu0
    %v4629 = vadd.f32 0.0, %v4628
    %v4630 = vpop.f32.mrf.mxu0
    %v4631 = vadd.f32 0.0, %v4630
    %4632 = vmatmul.bf16.gmra.mxu0 %v1450
    %v4633 = vpop.f32.mrf.mxu0
    %v4634 = vadd.f32 0.0, %v4633
    %v4635 = vpop.f32.mrf.mxu0
    %v4636 = vadd.f32 0.0, %v4635
    %4637 = vmatmul.bf16.gmra.mxu0 %v1456
    %v4638 = vpop.f32.mrf.mxu0
    %v4639 = vadd.f32 0.0, %v4638
    %v4640 = vpop.f32.mrf.mxu0
    %v4641 = vadd.f32 0.0, %v4640
    %4642 = vmatmul.bf16.gmra.mxu0 %v1462
    %v4643 = vpop.f32.mrf.mxu0
    %v4644 = vadd.f32 0.0, %v4643
    %v4645 = vpop.f32.mrf.mxu0
    %v4646 = vadd.f32 0.0, %v4645
    %4647 = vmatmul.bf16.gmra.mxu0 %v1468
    %v4648 = vpop.f32.mrf.mxu0
    %v4649 = vadd.f32 0.0, %v4648
    %v4650 = vpop.f32.mrf.mxu0
    %v4651 = vadd.f32 0.0, %v4650
    %4652 = vmatmul.bf16.gmra.mxu0 %v1474
    %v4653 = vpop.f32.mrf.mxu0
    %v4654 = vadd.f32 0.0, %v4653
    %v4655 = vpop.f32.mrf.mxu0
    %v4656 = vadd.f32 0.0, %v4655
    %4657 = vmatmul.bf16.gmra.mxu0 %v1480
    %v4658 = vpop.f32.mrf.mxu0
    %v4659 = vadd.f32 0.0, %v4658
    %v4660 = vpop.f32.mrf.mxu0
    %v4661 = vadd.f32 0.0, %v4660
    %4662 = vmatmul.bf16.gmra.mxu0 %v1486
    %v4663 = vpop.f32.mrf.mxu0
    %v4664 = vadd.f32 0.0, %v4663
    %v4665 = vpop.f32.mrf.mxu0
    %v4666 = vadd.f32 0.0, %v4665
    %4667 = vmatmul.bf16.gmra.mxu0 %v1492
    %v4668 = vpop.f32.mrf.mxu0
    %v4669 = vadd.f32 0.0, %v4668
    %v4670 = vpop.f32.mrf.mxu0
    %v4671 = vadd.f32 0.0, %v4670
    %4672 = vmatmul.bf16.gmra.mxu0 %v1498
    %v4673 = vpop.f32.mrf.mxu0
    %v4674 = vadd.f32 0.0, %v4673
    %v4675 = vpop.f32.mrf.mxu0
    %v4676 = vadd.f32 0.0, %v4675
    %4677 = vmatmul.bf16.gmra.mxu0 %v1504
    %v4678 = vpop.f32.mrf.mxu0
    %v4679 = vadd.f32 0.0, %v4678
    %v4680 = vpop.f32.mrf.mxu0
    %v4681 = vadd.f32 0.0, %v4680
    %4682 = vdwg.mxu0
    %4683 = vmatpush.bf16.msra.mxu0 %v2880
    %4684 = vmatpush.bf16.msra.mxu0 %v2872
    %4685 = vmatpush.bf16.msra.mxu0 %v2864
    %4686 = vmatpush.bf16.msra.mxu0 %v2856
    %4687 = vmatpush.bf16.msra.mxu0 %v2848
    %4688 = vmatpush.bf16.msra.mxu0 %v2840
    %4689 = vmatpush.bf16.msra.mxu0 %v2832
    %4690 = vmatpush.bf16.msra.mxu0 %v2824
    %4691 = vmatmul.bf16.gmra.mxu0 %v1415
    %v4692 = vpop.f32.mrf.mxu0
    %v4693 = vadd.f32 %v4604, %v4692
    %v4694 = vpop.f32.mrf.mxu0
    %v4695 = vadd.f32 %v4606, %v4694
    %4696 = vmatmul.bf16.gmra.mxu0 %v1421
    %v4697 = vpop.f32.mrf.mxu0
    %v4698 = vadd.f32 %v4609, %v4697
    %v4699 = vpop.f32.mrf.mxu0
    %v4700 = vadd.f32 %v4611, %v4699
    %4701 = vmatmul.bf16.gmra.mxu0 %v1427
    %v4702 = vpop.f32.mrf.mxu0
    %v4703 = vadd.f32 %v4614, %v4702
    %v4704 = vpop.f32.mrf.mxu0
    %v4705 = vadd.f32 %v4616, %v4704
    %4706 = vmatmul.bf16.gmra.mxu0 %v1433
    %v4707 = vpop.f32.mrf.mxu0
    %v4708 = vadd.f32 %v4619, %v4707
    %v4709 = vpop.f32.mrf.mxu0
    %v4710 = vadd.f32 %v4621, %v4709
    %4711 = vmatmul.bf16.gmra.mxu0 %v1439
    %v4712 = vpop.f32.mrf.mxu0
    %v4713 = vadd.f32 %v4624, %v4712
    %v4714 = vpop.f32.mrf.mxu0
    %v4715 = vadd.f32 %v4626, %v4714
    %4716 = vmatmul.bf16.gmra.mxu0 %v1445
    %v4717 = vpop.f32.mrf.mxu0
    %v4718 = vadd.f32 %v4629, %v4717
    %v4719 = vpop.f32.mrf.mxu0
    %v4720 = vadd.f32 %v4631, %v4719
    %4721 = vmatmul.bf16.gmra.mxu0 %v1451
    %v4722 = vpop.f32.mrf.mxu0
    %v4723 = vadd.f32 %v4634, %v4722
    %v4724 = vpop.f32.mrf.mxu0
    %v4725 = vadd.f32 %v4636, %v4724
    %4726 = vmatmul.bf16.gmra.mxu0 %v1457
    %v4727 = vpop.f32.mrf.mxu0
    %v4728 = vadd.f32 %v4639, %v4727
    %v4729 = vpop.f32.mrf.mxu0
    %v4730 = vadd.f32 %v4641, %v4729
    %4731 = vmatmul.bf16.gmra.mxu0 %v1463
    %v4732 = vpop.f32.mrf.mxu0
    %v4733 = vadd.f32 %v4644, %v4732
    %v4734 = vpop.f32.mrf.mxu0
    %v4735 = vadd.f32 %v4646, %v4734
    %4736 = vmatmul.bf16.gmra.mxu0 %v1469
    %v4737 = vpop.f32.mrf.mxu0
    %v4738 = vadd.f32 %v4649, %v4737
    %v4739 = vpop.f32.mrf.mxu0
    %v4740 = vadd.f32 %v4651, %v4739
    %4741 = vmatmul.bf16.gmra.mxu0 %v1475
    %v4742 = vpop.f32.mrf.mxu0
    %v4743 = vadd.f32 %v4654, %v4742
    %v4744 = vpop.f32.mrf.mxu0
    %v4745 = vadd.f32 %v4656, %v4744
    %4746 = vmatmul.bf16.gmra.mxu0 %v1481
    %v4747 = vpop.f32.mrf.mxu0
    %v4748 = vadd.f32 %v4659, %v4747
    %v4749 = vpop.f32.mrf.mxu0
    %v4750 = vadd.f32 %v4661, %v4749
    %4751 = vmatmul.bf16.gmra.mxu0 %v1487
    %v4752 = vpop.f32.mrf.mxu0
    %v4753 = vadd.f32 %v4664, %v4752
    %v4754 = vpop.f32.mrf.mxu0
    %v4755 = vadd.f32 %v4666, %v4754
    %4756 = vmatmul.bf16.gmra.mxu0 %v1493
    %v4757 = vpop.f32.mrf.mxu0
    %v4758 = vadd.f32 %v4669, %v4757
    %v4759 = vpop.f32.mrf.mxu0
    %v4760 = vadd.f32 %v4671, %v4759
    %4761 = vmatmul.bf16.gmra.mxu0 %v1499
    %v4762 = vpop.f32.mrf.mxu0
    %v4763 = vadd.f32 %v4674, %v4762
    %v4764 = vpop.f32.mrf.mxu0
    %v4765 = vadd.f32 %v4676, %v4764
    %4766 = vmatmul.bf16.gmra.mxu0 %v1505
    %v4767 = vpop.f32.mrf.mxu0
    %v4768 = vadd.f32 %v4679, %v4767
    %v4769 = vpop.f32.mrf.mxu0
    %v4770 = vadd.f32 %v4681, %v4769
    %4771 = vdwg.mxu0
    %4772 = vmatpush.bf16.msra.mxu0 %v2944
    %4773 = vmatpush.bf16.msra.mxu0 %v2936
    %4774 = vmatpush.bf16.msra.mxu0 %v2928
    %4775 = vmatpush.bf16.msra.mxu0 %v2920
    %4776 = vmatpush.bf16.msra.mxu0 %v2912
    %4777 = vmatpush.bf16.msra.mxu0 %v2904
    %4778 = vmatpush.bf16.msra.mxu0 %v2896
    %4779 = vmatpush.bf16.msra.mxu0 %v2888
    %4780 = vmatmul.bf16.gmra.mxu0 %v1416
    %v4781 = vpop.f32.mrf.mxu0
    %v4782 = vadd.f32 %v4693, %v4781
    %v4783 = vpop.f32.mrf.mxu0
    %v4784 = vadd.f32 %v4695, %v4783
    %4785 = vmatmul.bf16.gmra.mxu0 %v1422
    %v4786 = vpop.f32.mrf.mxu0
    %v4787 = vadd.f32 %v4698, %v4786
    %v4788 = vpop.f32.mrf.mxu0
    %v4789 = vadd.f32 %v4700, %v4788
    %4790 = vmatmul.bf16.gmra.mxu0 %v1428
    %v4791 = vpop.f32.mrf.mxu0
    %v4792 = vadd.f32 %v4703, %v4791
    %v4793 = vpop.f32.mrf.mxu0
    %v4794 = vadd.f32 %v4705, %v4793
    %4795 = vmatmul.bf16.gmra.mxu0 %v1434
    %v4796 = vpop.f32.mrf.mxu0
    %v4797 = vadd.f32 %v4708, %v4796
    %v4798 = vpop.f32.mrf.mxu0
    %v4799 = vadd.f32 %v4710, %v4798
    %4800 = vmatmul.bf16.gmra.mxu0 %v1440
    %v4801 = vpop.f32.mrf.mxu0
    %v4802 = vadd.f32 %v4713, %v4801
    %v4803 = vpop.f32.mrf.mxu0
    %v4804 = vadd.f32 %v4715, %v4803
    %4805 = vmatmul.bf16.gmra.mxu0 %v1446
    %v4806 = vpop.f32.mrf.mxu0
    %v4807 = vadd.f32 %v4718, %v4806
    %v4808 = vpop.f32.mrf.mxu0
    %v4809 = vadd.f32 %v4720, %v4808
    %4810 = vmatmul.bf16.gmra.mxu0 %v1452
    %v4811 = vpop.f32.mrf.mxu0
    %v4812 = vadd.f32 %v4723, %v4811
    %v4813 = vpop.f32.mrf.mxu0
    %v4814 = vadd.f32 %v4725, %v4813
    %4815 = vmatmul.bf16.gmra.mxu0 %v1458
    %v4816 = vpop.f32.mrf.mxu0
    %v4817 = vadd.f32 %v4728, %v4816
    %v4818 = vpop.f32.mrf.mxu0
    %v4819 = vadd.f32 %v4730, %v4818
    %4820 = vmatmul.bf16.gmra.mxu0 %v1464
    %v4821 = vpop.f32.mrf.mxu0
    %v4822 = vadd.f32 %v4733, %v4821
    %v4823 = vpop.f32.mrf.mxu0
    %v4824 = vadd.f32 %v4735, %v4823
    %4825 = vmatmul.bf16.gmra.mxu0 %v1470
    %v4826 = vpop.f32.mrf.mxu0
    %v4827 = vadd.f32 %v4738, %v4826
    %v4828 = vpop.f32.mrf.mxu0
    %v4829 = vadd.f32 %v4740, %v4828
    %4830 = vmatmul.bf16.gmra.mxu0 %v1476
    %v4831 = vpop.f32.mrf.mxu0
    %v4832 = vadd.f32 %v4743, %v4831
    %v4833 = vpop.f32.mrf.mxu0
    %v4834 = vadd.f32 %v4745, %v4833
    %4835 = vmatmul.bf16.gmra.mxu0 %v1482
    %v4836 = vpop.f32.mrf.mxu0
    %v4837 = vadd.f32 %v4748, %v4836
    %v4838 = vpop.f32.mrf.mxu0
    %v4839 = vadd.f32 %v4750, %v4838
    %4840 = vmatmul.bf16.gmra.mxu0 %v1488
    %v4841 = vpop.f32.mrf.mxu0
    %v4842 = vadd.f32 %v4753, %v4841
    %v4843 = vpop.f32.mrf.mxu0
    %v4844 = vadd.f32 %v4755, %v4843
    %4845 = vmatmul.bf16.gmra.mxu0 %v1494
    %v4846 = vpop.f32.mrf.mxu0
    %v4847 = vadd.f32 %v4758, %v4846
    %v4848 = vpop.f32.mrf.mxu0
    %v4849 = vadd.f32 %v4760, %v4848
    %4850 = vmatmul.bf16.gmra.mxu0 %v1500
    %v4851 = vpop.f32.mrf.mxu0
    %v4852 = vadd.f32 %v4763, %v4851
    %v4853 = vpop.f32.mrf.mxu0
    %v4854 = vadd.f32 %v4765, %v4853
    %4855 = vmatmul.bf16.gmra.mxu0 %v1506
    %v4856 = vpop.f32.mrf.mxu0
    %v4857 = vadd.f32 %v4768, %v4856
    %v4858 = vpop.f32.mrf.mxu0
    %v4859 = vadd.f32 %v4770, %v4858
    %4860 = vdwg.mxu0
    %4861 = vmatpush.bf16.msra.mxu0 %v3008
    %4862 = vmatpush.bf16.msra.mxu0 %v3000
    %4863 = vmatpush.bf16.msra.mxu0 %v2992
    %4864 = vmatpush.bf16.msra.mxu0 %v2984
    %4865 = vmatpush.bf16.msra.mxu0 %v2976
    %4866 = vmatpush.bf16.msra.mxu0 %v2968
    %4867 = vmatpush.bf16.msra.mxu0 %v2960
    %4868 = vmatpush.bf16.msra.mxu0 %v2952
    %4869 = vmatmul.bf16.gmra.mxu0 %v1417
    %v4870 = vpop.f32.mrf.mxu0
    %v4871 = vadd.f32 %v4782, %v4870
    %v4872 = vpop.f32.mrf.mxu0
    %v4873 = vadd.f32 %v4784, %v4872
    %4874 = vmatmul.bf16.gmra.mxu0 %v1423
    %v4875 = vpop.f32.mrf.mxu0
    %v4876 = vadd.f32 %v4787, %v4875
    %v4877 = vpop.f32.mrf.mxu0
    %v4878 = vadd.f32 %v4789, %v4877
    %4879 = vmatmul.bf16.gmra.mxu0 %v1429
    %v4880 = vpop.f32.mrf.mxu0
    %v4881 = vadd.f32 %v4792, %v4880
    %v4882 = vpop.f32.mrf.mxu0
    %v4883 = vadd.f32 %v4794, %v4882
    %4884 = vmatmul.bf16.gmra.mxu0 %v1435
    %v4885 = vpop.f32.mrf.mxu0
    %v4886 = vadd.f32 %v4797, %v4885
    %v4887 = vpop.f32.mrf.mxu0
    %v4888 = vadd.f32 %v4799, %v4887
    %4889 = vmatmul.bf16.gmra.mxu0 %v1441
    %v4890 = vpop.f32.mrf.mxu0
    %v4891 = vadd.f32 %v4802, %v4890
    %v4892 = vpop.f32.mrf.mxu0
    %v4893 = vadd.f32 %v4804, %v4892
    %4894 = vmatmul.bf16.gmra.mxu0 %v1447
    %v4895 = vpop.f32.mrf.mxu0
    %v4896 = vadd.f32 %v4807, %v4895
    %v4897 = vpop.f32.mrf.mxu0
    %v4898 = vadd.f32 %v4809, %v4897
    %4899 = vmatmul.bf16.gmra.mxu0 %v1453
    %v4900 = vpop.f32.mrf.mxu0
    %v4901 = vadd.f32 %v4812, %v4900
    %v4902 = vpop.f32.mrf.mxu0
    %v4903 = vadd.f32 %v4814, %v4902
    %4904 = vmatmul.bf16.gmra.mxu0 %v1459
    %v4905 = vpop.f32.mrf.mxu0
    %v4906 = vadd.f32 %v4817, %v4905
    %v4907 = vpop.f32.mrf.mxu0
    %v4908 = vadd.f32 %v4819, %v4907
    %4909 = vmatmul.bf16.gmra.mxu0 %v1465
    %v4910 = vpop.f32.mrf.mxu0
    %v4911 = vadd.f32 %v4822, %v4910
    %v4912 = vpop.f32.mrf.mxu0
    %v4913 = vadd.f32 %v4824, %v4912
    %4914 = vmatmul.bf16.gmra.mxu0 %v1471
    %v4915 = vpop.f32.mrf.mxu0
    %v4916 = vadd.f32 %v4827, %v4915
    %v4917 = vpop.f32.mrf.mxu0
    %v4918 = vadd.f32 %v4829, %v4917
    %4919 = vmatmul.bf16.gmra.mxu0 %v1477
    %v4920 = vpop.f32.mrf.mxu0
    %v4921 = vadd.f32 %v4832, %v4920
    %v4922 = vpop.f32.mrf.mxu0
    %v4923 = vadd.f32 %v4834, %v4922
    %4924 = vmatmul.bf16.gmra.mxu0 %v1483
    %v4925 = vpop.f32.mrf.mxu0
    %v4926 = vadd.f32 %v4837, %v4925
    %v4927 = vpop.f32.mrf.mxu0
    %v4928 = vadd.f32 %v4839, %v4927
    %4929 = vmatmul.bf16.gmra.mxu0 %v1489
    %v4930 = vpop.f32.mrf.mxu0
    %v4931 = vadd.f32 %v4842, %v4930
    %v4932 = vpop.f32.mrf.mxu0
    %v4933 = vadd.f32 %v4844, %v4932
    %4934 = vmatmul.bf16.gmra.mxu0 %v1495
    %v4935 = vpop.f32.mrf.mxu0
    %v4936 = vadd.f32 %v4847, %v4935
    %v4937 = vpop.f32.mrf.mxu0
    %v4938 = vadd.f32 %v4849, %v4937
    %4939 = vmatmul.bf16.gmra.mxu0 %v1501
    %v4940 = vpop.f32.mrf.mxu0
    %v4941 = vadd.f32 %v4852, %v4940
    %v4942 = vpop.f32.mrf.mxu0
    %v4943 = vadd.f32 %v4854, %v4942
    %4944 = vmatmul.bf16.gmra.mxu0 %v1507
    %v4945 = vpop.f32.mrf.mxu0
    %v4946 = vadd.f32 %v4857, %v4945
    %v4947 = vpop.f32.mrf.mxu0
    %v4948 = vadd.f32 %v4859, %v4947
    %4949 = vdwg.mxu0
    %4950 = vmatpush.bf16.msra.mxu0 %v3072
    %4951 = vmatpush.bf16.msra.mxu0 %v3064
    %4952 = vmatpush.bf16.msra.mxu0 %v3056
    %4953 = vmatpush.bf16.msra.mxu0 %v3048
    %4954 = vmatpush.bf16.msra.mxu0 %v3040
    %4955 = vmatpush.bf16.msra.mxu0 %v3032
    %4956 = vmatpush.bf16.msra.mxu0 %v3024
    %4957 = vmatpush.bf16.msra.mxu0 %v3016
    %4958 = vmatmul.bf16.gmra.mxu0 %v1418
    %v4959 = vpop.f32.mrf.mxu0
    %v4960 = vadd.f32 %v4871, %v4959
    %v4961 = vpop.f32.mrf.mxu0
    %v4962 = vadd.f32 %v4873, %v4961
    %4963 = vmatmul.bf16.gmra.mxu0 %v1424
    %v4964 = vpop.f32.mrf.mxu0
    %v4965 = vadd.f32 %v4876, %v4964
    %v4966 = vpop.f32.mrf.mxu0
    %v4967 = vadd.f32 %v4878, %v4966
    %4968 = vmatmul.bf16.gmra.mxu0 %v1430
    %v4969 = vpop.f32.mrf.mxu0
    %v4970 = vadd.f32 %v4881, %v4969
    %v4971 = vpop.f32.mrf.mxu0
    %v4972 = vadd.f32 %v4883, %v4971
    %4973 = vmatmul.bf16.gmra.mxu0 %v1436
    %v4974 = vpop.f32.mrf.mxu0
    %v4975 = vadd.f32 %v4886, %v4974
    %v4976 = vpop.f32.mrf.mxu0
    %v4977 = vadd.f32 %v4888, %v4976
    %4978 = vmatmul.bf16.gmra.mxu0 %v1442
    %v4979 = vpop.f32.mrf.mxu0
    %v4980 = vadd.f32 %v4891, %v4979
    %v4981 = vpop.f32.mrf.mxu0
    %v4982 = vadd.f32 %v4893, %v4981
    %4983 = vmatmul.bf16.gmra.mxu0 %v1448
    %v4984 = vpop.f32.mrf.mxu0
    %v4985 = vadd.f32 %v4896, %v4984
    %v4986 = vpop.f32.mrf.mxu0
    %v4987 = vadd.f32 %v4898, %v4986
    %4988 = vmatmul.bf16.gmra.mxu0 %v1454
    %v4989 = vpop.f32.mrf.mxu0
    %v4990 = vadd.f32 %v4901, %v4989
    %v4991 = vpop.f32.mrf.mxu0
    %v4992 = vadd.f32 %v4903, %v4991
    %4993 = vmatmul.bf16.gmra.mxu0 %v1460
    %v4994 = vpop.f32.mrf.mxu0
    %v4995 = vadd.f32 %v4906, %v4994
    %v4996 = vpop.f32.mrf.mxu0
    %v4997 = vadd.f32 %v4908, %v4996
    %4998 = vmatmul.bf16.gmra.mxu0 %v1466
    %v4999 = vpop.f32.mrf.mxu0
    %v5000 = vadd.f32 %v4911, %v4999
    %v5001 = vpop.f32.mrf.mxu0
    %v5002 = vadd.f32 %v4913, %v5001
    %5003 = vmatmul.bf16.gmra.mxu0 %v1472
    %v5004 = vpop.f32.mrf.mxu0
    %v5005 = vadd.f32 %v4916, %v5004
    %v5006 = vpop.f32.mrf.mxu0
    %v5007 = vadd.f32 %v4918, %v5006
    %5008 = vmatmul.bf16.gmra.mxu0 %v1478
    %v5009 = vpop.f32.mrf.mxu0
    %v5010 = vadd.f32 %v4921, %v5009
    %v5011 = vpop.f32.mrf.mxu0
    %v5012 = vadd.f32 %v4923, %v5011
    %5013 = vmatmul.bf16.gmra.mxu0 %v1484
    %v5014 = vpop.f32.mrf.mxu0
    %v5015 = vadd.f32 %v4926, %v5014
    %v5016 = vpop.f32.mrf.mxu0
    %v5017 = vadd.f32 %v4928, %v5016
    %5018 = vmatmul.bf16.gmra.mxu0 %v1490
    %v5019 = vpop.f32.mrf.mxu0
    %v5020 = vadd.f32 %v4931, %v5019
    %v5021 = vpop.f32.mrf.mxu0
    %v5022 = vadd.f32 %v4933, %v5021
    %5023 = vmatmul.bf16.gmra.mxu0 %v1496
    %v5024 = vpop.f32.mrf.mxu0
    %v5025 = vadd.f32 %v4936, %v5024
    %v5026 = vpop.f32.mrf.mxu0
    %v5027 = vadd.f32 %v4938, %v5026
    %5028 = vmatmul.bf16.gmra.mxu0 %v1502
    %v5029 = vpop.f32.mrf.mxu0
    %v5030 = vadd.f32 %v4941, %v5029
    %v5031 = vpop.f32.mrf.mxu0
    %v5032 = vadd.f32 %v4943, %v5031
    %5033 = vmatmul.bf16.gmra.mxu0 %v1508
    %v5034 = vpop.f32.mrf.mxu0
    %v5035 = vadd.f32 %v4946, %v5034
    %v5036 = vpop.f32.mrf.mxu0
    %v5037 = vadd.f32 %v4948, %v5036
    %5038 = vdwg.mxu0
    %5039 = vmatpush.bf16.msra.mxu0 %v3136
    %5040 = vmatpush.bf16.msra.mxu0 %v3128
    %5041 = vmatpush.bf16.msra.mxu0 %v3120
    %5042 = vmatpush.bf16.msra.mxu0 %v3112
    %5043 = vmatpush.bf16.msra.mxu0 %v3104
    %5044 = vmatpush.bf16.msra.mxu0 %v3096
    %5045 = vmatpush.bf16.msra.mxu0 %v3088
    %5046 = vmatpush.bf16.msra.mxu0 %v3080
    %5047 = vmatmul.bf16.gmra.mxu0 %v1419
    %v5048 = vpop.f32.mrf.mxu0
    %v5049 = vadd.f32 %v4960, %v5048
    %v5050 = vpop.f32.mrf.mxu0
    %v5051 = vadd.f32 %v4962, %v5050
    %5052 = vmatmul.bf16.gmra.mxu0 %v1425
    %v5053 = vpop.f32.mrf.mxu0
    %v5054 = vadd.f32 %v4965, %v5053
    %v5055 = vpop.f32.mrf.mxu0
    %v5056 = vadd.f32 %v4967, %v5055
    %5057 = vmatmul.bf16.gmra.mxu0 %v1431
    %v5058 = vpop.f32.mrf.mxu0
    %v5059 = vadd.f32 %v4970, %v5058
    %v5060 = vpop.f32.mrf.mxu0
    %v5061 = vadd.f32 %v4972, %v5060
    %5062 = vmatmul.bf16.gmra.mxu0 %v1437
    %v5063 = vpop.f32.mrf.mxu0
    %v5064 = vadd.f32 %v4975, %v5063
    %v5065 = vpop.f32.mrf.mxu0
    %v5066 = vadd.f32 %v4977, %v5065
    %5067 = vmatmul.bf16.gmra.mxu0 %v1443
    %v5068 = vpop.f32.mrf.mxu0
    %v5069 = vadd.f32 %v4980, %v5068
    %v5070 = vpop.f32.mrf.mxu0
    %v5071 = vadd.f32 %v4982, %v5070
    %5072 = vmatmul.bf16.gmra.mxu0 %v1449
    %v5073 = vpop.f32.mrf.mxu0
    %v5074 = vadd.f32 %v4985, %v5073
    %v5075 = vpop.f32.mrf.mxu0
    %v5076 = vadd.f32 %v4987, %v5075
    %5077 = vmatmul.bf16.gmra.mxu0 %v1455
    %v5078 = vpop.f32.mrf.mxu0
    %v5079 = vadd.f32 %v4990, %v5078
    %v5080 = vpop.f32.mrf.mxu0
    %v5081 = vadd.f32 %v4992, %v5080
    %5082 = vmatmul.bf16.gmra.mxu0 %v1461
    %v5083 = vpop.f32.mrf.mxu0
    %v5084 = vadd.f32 %v4995, %v5083
    %v5085 = vpop.f32.mrf.mxu0
    %v5086 = vadd.f32 %v4997, %v5085
    %5087 = vmatmul.bf16.gmra.mxu0 %v1467
    %v5088 = vpop.f32.mrf.mxu0
    %v5089 = vadd.f32 %v5000, %v5088
    %v5090 = vpop.f32.mrf.mxu0
    %v5091 = vadd.f32 %v5002, %v5090
    %5092 = vmatmul.bf16.gmra.mxu0 %v1473
    %v5093 = vpop.f32.mrf.mxu0
    %v5094 = vadd.f32 %v5005, %v5093
    %v5095 = vpop.f32.mrf.mxu0
    %v5096 = vadd.f32 %v5007, %v5095
    %5097 = vmatmul.bf16.gmra.mxu0 %v1479
    %v5098 = vpop.f32.mrf.mxu0
    %v5099 = vadd.f32 %v5010, %v5098
    %v5100 = vpop.f32.mrf.mxu0
    %v5101 = vadd.f32 %v5012, %v5100
    %5102 = vmatmul.bf16.gmra.mxu0 %v1485
    %v5103 = vpop.f32.mrf.mxu0
    %v5104 = vadd.f32 %v5015, %v5103
    %v5105 = vpop.f32.mrf.mxu0
    %v5106 = vadd.f32 %v5017, %v5105
    %5107 = vmatmul.bf16.gmra.mxu0 %v1491
    %v5108 = vpop.f32.mrf.mxu0
    %v5109 = vadd.f32 %v5020, %v5108
    %v5110 = vpop.f32.mrf.mxu0
    %v5111 = vadd.f32 %v5022, %v5110
    %5112 = vmatmul.bf16.gmra.mxu0 %v1497
    %v5113 = vpop.f32.mrf.mxu0
    %v5114 = vadd.f32 %v5025, %v5113
    %v5115 = vpop.f32.mrf.mxu0
    %v5116 = vadd.f32 %v5027, %v5115
    %5117 = vmatmul.bf16.gmra.mxu0 %v1503
    %v5118 = vpop.f32.mrf.mxu0
    %v5119 = vadd.f32 %v5030, %v5118
    %v5120 = vpop.f32.mrf.mxu0
    %v5121 = vadd.f32 %v5032, %v5120
    %5122 = vmatmul.bf16.gmra.mxu0 %v1509
    %v5123 = vpop.f32.mrf.mxu0
    %v5124 = vadd.f32 %v5035, %v5123
    %v5125 = vpop.f32.mrf.mxu0
    %v5126 = vadd.f32 %v5037, %v5125
    %5127 = vdwg.mxu0
    %5128 = vmatpush.bf16.msra.mxu0 %v2817
    %5129 = vmatpush.bf16.msra.mxu0 %v2809
    %5130 = vmatpush.bf16.msra.mxu0 %v2801
    %5131 = vmatpush.bf16.msra.mxu0 %v2793
    %5132 = vmatpush.bf16.msra.mxu0 %v2785
    %5133 = vmatpush.bf16.msra.mxu0 %v2777
    %5134 = vmatpush.bf16.msra.mxu0 %v2769
    %5135 = vmatpush.bf16.msra.mxu0 %v2761
    %5136 = vmatmul.bf16.gmra.mxu0 %v1414
    %v5137 = vpop.f32.mrf.mxu0
    %v5138 = vadd.f32 0.0, %v5137
    %v5139 = vpop.f32.mrf.mxu0
    %v5140 = vadd.f32 0.0, %v5139
    %5141 = vmatmul.bf16.gmra.mxu0 %v1420
    %v5142 = vpop.f32.mrf.mxu0
    %v5143 = vadd.f32 0.0, %v5142
    %v5144 = vpop.f32.mrf.mxu0
    %v5145 = vadd.f32 0.0, %v5144
    %5146 = vmatmul.bf16.gmra.mxu0 %v1426
    %v5147 = vpop.f32.mrf.mxu0
    %v5148 = vadd.f32 0.0, %v5147
    %v5149 = vpop.f32.mrf.mxu0
    %v5150 = vadd.f32 0.0, %v5149
    %5151 = vmatmul.bf16.gmra.mxu0 %v1432
    %v5152 = vpop.f32.mrf.mxu0
    %v5153 = vadd.f32 0.0, %v5152
    %v5154 = vpop.f32.mrf.mxu0
    %v5155 = vadd.f32 0.0, %v5154
    %5156 = vmatmul.bf16.gmra.mxu0 %v1438
    %v5157 = vpop.f32.mrf.mxu0
    %v5158 = vadd.f32 0.0, %v5157
    %v5159 = vpop.f32.mrf.mxu0
    %v5160 = vadd.f32 0.0, %v5159
    %5161 = vmatmul.bf16.gmra.mxu0 %v1444
    %v5162 = vpop.f32.mrf.mxu0
    %v5163 = vadd.f32 0.0, %v5162
    %v5164 = vpop.f32.mrf.mxu0
    %v5165 = vadd.f32 0.0, %v5164
    %5166 = vmatmul.bf16.gmra.mxu0 %v1450
    %v5167 = vpop.f32.mrf.mxu0
    %v5168 = vadd.f32 0.0, %v5167
    %v5169 = vpop.f32.mrf.mxu0
    %v5170 = vadd.f32 0.0, %v5169
    %5171 = vmatmul.bf16.gmra.mxu0 %v1456
    %v5172 = vpop.f32.mrf.mxu0
    %v5173 = vadd.f32 0.0, %v5172
    %v5174 = vpop.f32.mrf.mxu0
    %v5175 = vadd.f32 0.0, %v5174
    %5176 = vmatmul.bf16.gmra.mxu0 %v1462
    %v5177 = vpop.f32.mrf.mxu0
    %v5178 = vadd.f32 0.0, %v5177
    %v5179 = vpop.f32.mrf.mxu0
    %v5180 = vadd.f32 0.0, %v5179
    %5181 = vmatmul.bf16.gmra.mxu0 %v1468
    %v5182 = vpop.f32.mrf.mxu0
    %v5183 = vadd.f32 0.0, %v5182
    %v5184 = vpop.f32.mrf.mxu0
    %v5185 = vadd.f32 0.0, %v5184
    %5186 = vmatmul.bf16.gmra.mxu0 %v1474
    %v5187 = vpop.f32.mrf.mxu0
    %v5188 = vadd.f32 0.0, %v5187
    %v5189 = vpop.f32.mrf.mxu0
    %v5190 = vadd.f32 0.0, %v5189
    %5191 = vmatmul.bf16.gmra.mxu0 %v1480
    %v5192 = vpop.f32.mrf.mxu0
    %v5193 = vadd.f32 0.0, %v5192
    %v5194 = vpop.f32.mrf.mxu0
    %v5195 = vadd.f32 0.0, %v5194
    %5196 = vmatmul.bf16.gmra.mxu0 %v1486
    %v5197 = vpop.f32.mrf.mxu0
    %v5198 = vadd.f32 0.0, %v5197
    %v5199 = vpop.f32.mrf.mxu0
    %v5200 = vadd.f32 0.0, %v5199
    %5201 = vmatmul.bf16.gmra.mxu0 %v1492
    %v5202 = vpop.f32.mrf.mxu0
    %v5203 = vadd.f32 0.0, %v5202
    %v5204 = vpop.f32.mrf.mxu0
    %v5205 = vadd.f32 0.0, %v5204
    %5206 = vmatmul.bf16.gmra.mxu0 %v1498
    %v5207 = vpop.f32.mrf.mxu0
    %v5208 = vadd.f32 0.0, %v5207
    %v5209 = vpop.f32.mrf.mxu0
    %v5210 = vadd.f32 0.0, %v5209
    %5211 = vmatmul.bf16.gmra.mxu0 %v1504
    %v5212 = vpop.f32.mrf.mxu0
    %v5213 = vadd.f32 0.0, %v5212
    %v5214 = vpop.f32.mrf.mxu0
    %v5215 = vadd.f32 0.0, %v5214
    %5216 = vdwg.mxu0
    %5217 = vmatpush.bf16.msra.mxu0 %v2881
    %5218 = vmatpush.bf16.msra.mxu0 %v2873
    %5219 = vmatpush.bf16.msra.mxu0 %v2865
    %5220 = vmatpush.bf16.msra.mxu0 %v2857
    %5221 = vmatpush.bf16.msra.mxu0 %v2849
    %5222 = vmatpush.bf16.msra.mxu0 %v2841
    %5223 = vmatpush.bf16.msra.mxu0 %v2833
    %5224 = vmatpush.bf16.msra.mxu0 %v2825
    %5225 = vmatmul.bf16.gmra.mxu0 %v1415
    %v5226 = vpop.f32.mrf.mxu0
    %v5227 = vadd.f32 %v5138, %v5226
    %v5228 = vpop.f32.mrf.mxu0
    %v5229 = vadd.f32 %v5140, %v5228
    %5230 = vmatmul.bf16.gmra.mxu0 %v1421
    %v5231 = vpop.f32.mrf.mxu0
    %v5232 = vadd.f32 %v5143, %v5231
    %v5233 = vpop.f32.mrf.mxu0
    %v5234 = vadd.f32 %v5145, %v5233
    %5235 = vmatmul.bf16.gmra.mxu0 %v1427
    %v5236 = vpop.f32.mrf.mxu0
    %v5237 = vadd.f32 %v5148, %v5236
    %v5238 = vpop.f32.mrf.mxu0
    %v5239 = vadd.f32 %v5150, %v5238
    %5240 = vmatmul.bf16.gmra.mxu0 %v1433
    %v5241 = vpop.f32.mrf.mxu0
    %v5242 = vadd.f32 %v5153, %v5241
    %v5243 = vpop.f32.mrf.mxu0
    %v5244 = vadd.f32 %v5155, %v5243
    %5245 = vmatmul.bf16.gmra.mxu0 %v1439
    %v5246 = vpop.f32.mrf.mxu0
    %v5247 = vadd.f32 %v5158, %v5246
    %v5248 = vpop.f32.mrf.mxu0
    %v5249 = vadd.f32 %v5160, %v5248
    %5250 = vmatmul.bf16.gmra.mxu0 %v1445
    %v5251 = vpop.f32.mrf.mxu0
    %v5252 = vadd.f32 %v5163, %v5251
    %v5253 = vpop.f32.mrf.mxu0
    %v5254 = vadd.f32 %v5165, %v5253
    %5255 = vmatmul.bf16.gmra.mxu0 %v1451
    %v5256 = vpop.f32.mrf.mxu0
    %v5257 = vadd.f32 %v5168, %v5256
    %v5258 = vpop.f32.mrf.mxu0
    %v5259 = vadd.f32 %v5170, %v5258
    %5260 = vmatmul.bf16.gmra.mxu0 %v1457
    %v5261 = vpop.f32.mrf.mxu0
    %v5262 = vadd.f32 %v5173, %v5261
    %v5263 = vpop.f32.mrf.mxu0
    %v5264 = vadd.f32 %v5175, %v5263
    %5265 = vmatmul.bf16.gmra.mxu0 %v1463
    %v5266 = vpop.f32.mrf.mxu0
    %v5267 = vadd.f32 %v5178, %v5266
    %v5268 = vpop.f32.mrf.mxu0
    %v5269 = vadd.f32 %v5180, %v5268
    %5270 = vmatmul.bf16.gmra.mxu0 %v1469
    %v5271 = vpop.f32.mrf.mxu0
    %v5272 = vadd.f32 %v5183, %v5271
    %v5273 = vpop.f32.mrf.mxu0
    %v5274 = vadd.f32 %v5185, %v5273
    %5275 = vmatmul.bf16.gmra.mxu0 %v1475
    %v5276 = vpop.f32.mrf.mxu0
    %v5277 = vadd.f32 %v5188, %v5276
    %v5278 = vpop.f32.mrf.mxu0
    %v5279 = vadd.f32 %v5190, %v5278
    %5280 = vmatmul.bf16.gmra.mxu0 %v1481
    %v5281 = vpop.f32.mrf.mxu0
    %v5282 = vadd.f32 %v5193, %v5281
    %v5283 = vpop.f32.mrf.mxu0
    %v5284 = vadd.f32 %v5195, %v5283
    %5285 = vmatmul.bf16.gmra.mxu0 %v1487
    %v5286 = vpop.f32.mrf.mxu0
    %v5287 = vadd.f32 %v5198, %v5286
    %v5288 = vpop.f32.mrf.mxu0
    %v5289 = vadd.f32 %v5200, %v5288
    %5290 = vmatmul.bf16.gmra.mxu0 %v1493
    %v5291 = vpop.f32.mrf.mxu0
    %v5292 = vadd.f32 %v5203, %v5291
    %v5293 = vpop.f32.mrf.mxu0
    %v5294 = vadd.f32 %v5205, %v5293
    %5295 = vmatmul.bf16.gmra.mxu0 %v1499
    %v5296 = vpop.f32.mrf.mxu0
    %v5297 = vadd.f32 %v5208, %v5296
    %v5298 = vpop.f32.mrf.mxu0
    %v5299 = vadd.f32 %v5210, %v5298
    %5300 = vmatmul.bf16.gmra.mxu0 %v1505
    %v5301 = vpop.f32.mrf.mxu0
    %v5302 = vadd.f32 %v5213, %v5301
    %v5303 = vpop.f32.mrf.mxu0
    %v5304 = vadd.f32 %v5215, %v5303
    %5305 = vdwg.mxu0
    %5306 = vmatpush.bf16.msra.mxu0 %v2945
    %5307 = vmatpush.bf16.msra.mxu0 %v2937
    %5308 = vmatpush.bf16.msra.mxu0 %v2929
    %5309 = vmatpush.bf16.msra.mxu0 %v2921
    %5310 = vmatpush.bf16.msra.mxu0 %v2913
    %5311 = vmatpush.bf16.msra.mxu0 %v2905
    %5312 = vmatpush.bf16.msra.mxu0 %v2897
    %5313 = vmatpush.bf16.msra.mxu0 %v2889
    %5314 = vmatmul.bf16.gmra.mxu0 %v1416
    %v5315 = vpop.f32.mrf.mxu0
    %v5316 = vadd.f32 %v5227, %v5315
    %v5317 = vpop.f32.mrf.mxu0
    %v5318 = vadd.f32 %v5229, %v5317
    %5319 = vmatmul.bf16.gmra.mxu0 %v1422
    %v5320 = vpop.f32.mrf.mxu0
    %v5321 = vadd.f32 %v5232, %v5320
    %v5322 = vpop.f32.mrf.mxu0
    %v5323 = vadd.f32 %v5234, %v5322
    %5324 = vmatmul.bf16.gmra.mxu0 %v1428
    %v5325 = vpop.f32.mrf.mxu0
    %v5326 = vadd.f32 %v5237, %v5325
    %v5327 = vpop.f32.mrf.mxu0
    %v5328 = vadd.f32 %v5239, %v5327
    %5329 = vmatmul.bf16.gmra.mxu0 %v1434
    %v5330 = vpop.f32.mrf.mxu0
    %v5331 = vadd.f32 %v5242, %v5330
    %v5332 = vpop.f32.mrf.mxu0
    %v5333 = vadd.f32 %v5244, %v5332
    %5334 = vmatmul.bf16.gmra.mxu0 %v1440
    %v5335 = vpop.f32.mrf.mxu0
    %v5336 = vadd.f32 %v5247, %v5335
    %v5337 = vpop.f32.mrf.mxu0
    %v5338 = vadd.f32 %v5249, %v5337
    %5339 = vmatmul.bf16.gmra.mxu0 %v1446
    %v5340 = vpop.f32.mrf.mxu0
    %v5341 = vadd.f32 %v5252, %v5340
    %v5342 = vpop.f32.mrf.mxu0
    %v5343 = vadd.f32 %v5254, %v5342
    %5344 = vmatmul.bf16.gmra.mxu0 %v1452
    %v5345 = vpop.f32.mrf.mxu0
    %v5346 = vadd.f32 %v5257, %v5345
    %v5347 = vpop.f32.mrf.mxu0
    %v5348 = vadd.f32 %v5259, %v5347
    %5349 = vmatmul.bf16.gmra.mxu0 %v1458
    %v5350 = vpop.f32.mrf.mxu0
    %v5351 = vadd.f32 %v5262, %v5350
    %v5352 = vpop.f32.mrf.mxu0
    %v5353 = vadd.f32 %v5264, %v5352
    %5354 = vmatmul.bf16.gmra.mxu0 %v1464
    %v5355 = vpop.f32.mrf.mxu0
    %v5356 = vadd.f32 %v5267, %v5355
    %v5357 = vpop.f32.mrf.mxu0
    %v5358 = vadd.f32 %v5269, %v5357
    %5359 = vmatmul.bf16.gmra.mxu0 %v1470
    %v5360 = vpop.f32.mrf.mxu0
    %v5361 = vadd.f32 %v5272, %v5360
    %v5362 = vpop.f32.mrf.mxu0
    %v5363 = vadd.f32 %v5274, %v5362
    %5364 = vmatmul.bf16.gmra.mxu0 %v1476
    %v5365 = vpop.f32.mrf.mxu0
    %v5366 = vadd.f32 %v5277, %v5365
    %v5367 = vpop.f32.mrf.mxu0
    %v5368 = vadd.f32 %v5279, %v5367
    %5369 = vmatmul.bf16.gmra.mxu0 %v1482
    %v5370 = vpop.f32.mrf.mxu0
    %v5371 = vadd.f32 %v5282, %v5370
    %v5372 = vpop.f32.mrf.mxu0
    %v5373 = vadd.f32 %v5284, %v5372
    %5374 = vmatmul.bf16.gmra.mxu0 %v1488
    %v5375 = vpop.f32.mrf.mxu0
    %v5376 = vadd.f32 %v5287, %v5375
    %v5377 = vpop.f32.mrf.mxu0
    %v5378 = vadd.f32 %v5289, %v5377
    %5379 = vmatmul.bf16.gmra.mxu0 %v1494
    %v5380 = vpop.f32.mrf.mxu0
    %v5381 = vadd.f32 %v5292, %v5380
    %v5382 = vpop.f32.mrf.mxu0
    %v5383 = vadd.f32 %v5294, %v5382
    %5384 = vmatmul.bf16.gmra.mxu0 %v1500
    %v5385 = vpop.f32.mrf.mxu0
    %v5386 = vadd.f32 %v5297, %v5385
    %v5387 = vpop.f32.mrf.mxu0
    %v5388 = vadd.f32 %v5299, %v5387
    %5389 = vmatmul.bf16.gmra.mxu0 %v1506
    %v5390 = vpop.f32.mrf.mxu0
    %v5391 = vadd.f32 %v5302, %v5390
    %v5392 = vpop.f32.mrf.mxu0
    %v5393 = vadd.f32 %v5304, %v5392
    %5394 = vdwg.mxu0
    %5395 = vmatpush.bf16.msra.mxu0 %v3009
    %5396 = vmatpush.bf16.msra.mxu0 %v3001
    %5397 = vmatpush.bf16.msra.mxu0 %v2993
    %5398 = vmatpush.bf16.msra.mxu0 %v2985
    %5399 = vmatpush.bf16.msra.mxu0 %v2977
    %5400 = vmatpush.bf16.msra.mxu0 %v2969
    %5401 = vmatpush.bf16.msra.mxu0 %v2961
    %5402 = vmatpush.bf16.msra.mxu0 %v2953
    %5403 = vmatmul.bf16.gmra.mxu0 %v1417
    %v5404 = vpop.f32.mrf.mxu0
    %v5405 = vadd.f32 %v5316, %v5404
    %v5406 = vpop.f32.mrf.mxu0
    %v5407 = vadd.f32 %v5318, %v5406
    %5408 = vmatmul.bf16.gmra.mxu0 %v1423
    %v5409 = vpop.f32.mrf.mxu0
    %v5410 = vadd.f32 %v5321, %v5409
    %v5411 = vpop.f32.mrf.mxu0
    %v5412 = vadd.f32 %v5323, %v5411
    %5413 = vmatmul.bf16.gmra.mxu0 %v1429
    %v5414 = vpop.f32.mrf.mxu0
    %v5415 = vadd.f32 %v5326, %v5414
    %v5416 = vpop.f32.mrf.mxu0
    %v5417 = vadd.f32 %v5328, %v5416
    %5418 = vmatmul.bf16.gmra.mxu0 %v1435
    %v5419 = vpop.f32.mrf.mxu0
    %v5420 = vadd.f32 %v5331, %v5419
    %v5421 = vpop.f32.mrf.mxu0
    %v5422 = vadd.f32 %v5333, %v5421
    %5423 = vmatmul.bf16.gmra.mxu0 %v1441
    %v5424 = vpop.f32.mrf.mxu0
    %v5425 = vadd.f32 %v5336, %v5424
    %v5426 = vpop.f32.mrf.mxu0
    %v5427 = vadd.f32 %v5338, %v5426
    %5428 = vmatmul.bf16.gmra.mxu0 %v1447
    %v5429 = vpop.f32.mrf.mxu0
    %v5430 = vadd.f32 %v5341, %v5429
    %v5431 = vpop.f32.mrf.mxu0
    %v5432 = vadd.f32 %v5343, %v5431
    %5433 = vmatmul.bf16.gmra.mxu0 %v1453
    %v5434 = vpop.f32.mrf.mxu0
    %v5435 = vadd.f32 %v5346, %v5434
    %v5436 = vpop.f32.mrf.mxu0
    %v5437 = vadd.f32 %v5348, %v5436
    %5438 = vmatmul.bf16.gmra.mxu0 %v1459
    %v5439 = vpop.f32.mrf.mxu0
    %v5440 = vadd.f32 %v5351, %v5439
    %v5441 = vpop.f32.mrf.mxu0
    %v5442 = vadd.f32 %v5353, %v5441
    %5443 = vmatmul.bf16.gmra.mxu0 %v1465
    %v5444 = vpop.f32.mrf.mxu0
    %v5445 = vadd.f32 %v5356, %v5444
    %v5446 = vpop.f32.mrf.mxu0
    %v5447 = vadd.f32 %v5358, %v5446
    %5448 = vmatmul.bf16.gmra.mxu0 %v1471
    %v5449 = vpop.f32.mrf.mxu0
    %v5450 = vadd.f32 %v5361, %v5449
    %v5451 = vpop.f32.mrf.mxu0
    %v5452 = vadd.f32 %v5363, %v5451
    %5453 = vmatmul.bf16.gmra.mxu0 %v1477
    %v5454 = vpop.f32.mrf.mxu0
    %v5455 = vadd.f32 %v5366, %v5454
    %v5456 = vpop.f32.mrf.mxu0
    %v5457 = vadd.f32 %v5368, %v5456
    %5458 = vmatmul.bf16.gmra.mxu0 %v1483
    %v5459 = vpop.f32.mrf.mxu0
    %v5460 = vadd.f32 %v5371, %v5459
    %v5461 = vpop.f32.mrf.mxu0
    %v5462 = vadd.f32 %v5373, %v5461
    %5463 = vmatmul.bf16.gmra.mxu0 %v1489
    %v5464 = vpop.f32.mrf.mxu0
    %v5465 = vadd.f32 %v5376, %v5464
    %v5466 = vpop.f32.mrf.mxu0
    %v5467 = vadd.f32 %v5378, %v5466
    %5468 = vmatmul.bf16.gmra.mxu0 %v1495
    %v5469 = vpop.f32.mrf.mxu0
    %v5470 = vadd.f32 %v5381, %v5469
    %v5471 = vpop.f32.mrf.mxu0
    %v5472 = vadd.f32 %v5383, %v5471
    %5473 = vmatmul.bf16.gmra.mxu0 %v1501
    %v5474 = vpop.f32.mrf.mxu0
    %v5475 = vadd.f32 %v5386, %v5474
    %v5476 = vpop.f32.mrf.mxu0
    %v5477 = vadd.f32 %v5388, %v5476
    %5478 = vmatmul.bf16.gmra.mxu0 %v1507
    %v5479 = vpop.f32.mrf.mxu0
    %v5480 = vadd.f32 %v5391, %v5479
    %v5481 = vpop.f32.mrf.mxu0
    %v5482 = vadd.f32 %v5393, %v5481
    %5483 = vdwg.mxu0
    %5484 = vmatpush.bf16.msra.mxu0 %v3073
    %5485 = vmatpush.bf16.msra.mxu0 %v3065
    %5486 = vmatpush.bf16.msra.mxu0 %v3057
    %5487 = vmatpush.bf16.msra.mxu0 %v3049
    %5488 = vmatpush.bf16.msra.mxu0 %v3041
    %5489 = vmatpush.bf16.msra.mxu0 %v3033
    %5490 = vmatpush.bf16.msra.mxu0 %v3025
    %5491 = vmatpush.bf16.msra.mxu0 %v3017
    %5492 = vmatmul.bf16.gmra.mxu0 %v1418
    %v5493 = vpop.f32.mrf.mxu0
    %v5494 = vadd.f32 %v5405, %v5493
    %v5495 = vpop.f32.mrf.mxu0
    %v5496 = vadd.f32 %v5407, %v5495
    %5497 = vmatmul.bf16.gmra.mxu0 %v1424
    %v5498 = vpop.f32.mrf.mxu0
    %v5499 = vadd.f32 %v5410, %v5498
    %v5500 = vpop.f32.mrf.mxu0
    %v5501 = vadd.f32 %v5412, %v5500
    %5502 = vmatmul.bf16.gmra.mxu0 %v1430
    %v5503 = vpop.f32.mrf.mxu0
    %v5504 = vadd.f32 %v5415, %v5503
    %v5505 = vpop.f32.mrf.mxu0
    %v5506 = vadd.f32 %v5417, %v5505
    %5507 = vmatmul.bf16.gmra.mxu0 %v1436
    %v5508 = vpop.f32.mrf.mxu0
    %v5509 = vadd.f32 %v5420, %v5508
    %v5510 = vpop.f32.mrf.mxu0
    %v5511 = vadd.f32 %v5422, %v5510
    %5512 = vmatmul.bf16.gmra.mxu0 %v1442
    %v5513 = vpop.f32.mrf.mxu0
    %v5514 = vadd.f32 %v5425, %v5513
    %v5515 = vpop.f32.mrf.mxu0
    %v5516 = vadd.f32 %v5427, %v5515
    %5517 = vmatmul.bf16.gmra.mxu0 %v1448
    %v5518 = vpop.f32.mrf.mxu0
    %v5519 = vadd.f32 %v5430, %v5518
    %v5520 = vpop.f32.mrf.mxu0
    %v5521 = vadd.f32 %v5432, %v5520
    %5522 = vmatmul.bf16.gmra.mxu0 %v1454
    %v5523 = vpop.f32.mrf.mxu0
    %v5524 = vadd.f32 %v5435, %v5523
    %v5525 = vpop.f32.mrf.mxu0
    %v5526 = vadd.f32 %v5437, %v5525
    %5527 = vmatmul.bf16.gmra.mxu0 %v1460
    %v5528 = vpop.f32.mrf.mxu0
    %v5529 = vadd.f32 %v5440, %v5528
    %v5530 = vpop.f32.mrf.mxu0
    %v5531 = vadd.f32 %v5442, %v5530
    %5532 = vmatmul.bf16.gmra.mxu0 %v1466
    %v5533 = vpop.f32.mrf.mxu0
    %v5534 = vadd.f32 %v5445, %v5533
    %v5535 = vpop.f32.mrf.mxu0
    %v5536 = vadd.f32 %v5447, %v5535
    %5537 = vmatmul.bf16.gmra.mxu0 %v1472
    %v5538 = vpop.f32.mrf.mxu0
    %v5539 = vadd.f32 %v5450, %v5538
    %v5540 = vpop.f32.mrf.mxu0
    %v5541 = vadd.f32 %v5452, %v5540
    %5542 = vmatmul.bf16.gmra.mxu0 %v1478
    %v5543 = vpop.f32.mrf.mxu0
    %v5544 = vadd.f32 %v5455, %v5543
    %v5545 = vpop.f32.mrf.mxu0
    %v5546 = vadd.f32 %v5457, %v5545
    %5547 = vmatmul.bf16.gmra.mxu0 %v1484
    %v5548 = vpop.f32.mrf.mxu0
    %v5549 = vadd.f32 %v5460, %v5548
    %v5550 = vpop.f32.mrf.mxu0
    %v5551 = vadd.f32 %v5462, %v5550
    %5552 = vmatmul.bf16.gmra.mxu0 %v1490
    %v5553 = vpop.f32.mrf.mxu0
    %v5554 = vadd.f32 %v5465, %v5553
    %v5555 = vpop.f32.mrf.mxu0
    %v5556 = vadd.f32 %v5467, %v5555
    %5557 = vmatmul.bf16.gmra.mxu0 %v1496
    %v5558 = vpop.f32.mrf.mxu0
    %v5559 = vadd.f32 %v5470, %v5558
    %v5560 = vpop.f32.mrf.mxu0
    %v5561 = vadd.f32 %v5472, %v5560
    %5562 = vmatmul.bf16.gmra.mxu0 %v1502
    %v5563 = vpop.f32.mrf.mxu0
    %v5564 = vadd.f32 %v5475, %v5563
    %v5565 = vpop.f32.mrf.mxu0
    %v5566 = vadd.f32 %v5477, %v5565
    %5567 = vmatmul.bf16.gmra.mxu0 %v1508
    %v5568 = vpop.f32.mrf.mxu0
    %v5569 = vadd.f32 %v5480, %v5568
    %v5570 = vpop.f32.mrf.mxu0
    %v5571 = vadd.f32 %v5482, %v5570
    %5572 = vdwg.mxu0
    %5573 = vmatpush.bf16.msra.mxu0 %v3137
    %5574 = vmatpush.bf16.msra.mxu0 %v3129
    %5575 = vmatpush.bf16.msra.mxu0 %v3121
    %5576 = vmatpush.bf16.msra.mxu0 %v3113
    %5577 = vmatpush.bf16.msra.mxu0 %v3105
    %5578 = vmatpush.bf16.msra.mxu0 %v3097
    %5579 = vmatpush.bf16.msra.mxu0 %v3089
    %5580 = vmatpush.bf16.msra.mxu0 %v3081
    %5581 = vmatmul.bf16.gmra.mxu0 %v1419
    %v5582 = vpop.f32.mrf.mxu0
    %v5583 = vadd.f32 %v5494, %v5582
    %v5584 = vpop.f32.mrf.mxu0
    %v5585 = vadd.f32 %v5496, %v5584
    %5586 = vmatmul.bf16.gmra.mxu0 %v1425
    %v5587 = vpop.f32.mrf.mxu0
    %v5588 = vadd.f32 %v5499, %v5587
    %v5589 = vpop.f32.mrf.mxu0
    %v5590 = vadd.f32 %v5501, %v5589
    %5591 = vmatmul.bf16.gmra.mxu0 %v1431
    %v5592 = vpop.f32.mrf.mxu0
    %v5593 = vadd.f32 %v5504, %v5592
    %v5594 = vpop.f32.mrf.mxu0
    %v5595 = vadd.f32 %v5506, %v5594
    %5596 = vmatmul.bf16.gmra.mxu0 %v1437
    %v5597 = vpop.f32.mrf.mxu0
    %v5598 = vadd.f32 %v5509, %v5597
    %v5599 = vpop.f32.mrf.mxu0
    %v5600 = vadd.f32 %v5511, %v5599
    %5601 = vmatmul.bf16.gmra.mxu0 %v1443
    %v5602 = vpop.f32.mrf.mxu0
    %v5603 = vadd.f32 %v5514, %v5602
    %v5604 = vpop.f32.mrf.mxu0
    %v5605 = vadd.f32 %v5516, %v5604
    %5606 = vmatmul.bf16.gmra.mxu0 %v1449
    %v5607 = vpop.f32.mrf.mxu0
    %v5608 = vadd.f32 %v5519, %v5607
    %v5609 = vpop.f32.mrf.mxu0
    %v5610 = vadd.f32 %v5521, %v5609
    %5611 = vmatmul.bf16.gmra.mxu0 %v1455
    %v5612 = vpop.f32.mrf.mxu0
    %v5613 = vadd.f32 %v5524, %v5612
    %v5614 = vpop.f32.mrf.mxu0
    %v5615 = vadd.f32 %v5526, %v5614
    %5616 = vmatmul.bf16.gmra.mxu0 %v1461
    %v5617 = vpop.f32.mrf.mxu0
    %v5618 = vadd.f32 %v5529, %v5617
    %v5619 = vpop.f32.mrf.mxu0
    %v5620 = vadd.f32 %v5531, %v5619
    %5621 = vmatmul.bf16.gmra.mxu0 %v1467
    %v5622 = vpop.f32.mrf.mxu0
    %v5623 = vadd.f32 %v5534, %v5622
    %v5624 = vpop.f32.mrf.mxu0
    %v5625 = vadd.f32 %v5536, %v5624
    %5626 = vmatmul.bf16.gmra.mxu0 %v1473
    %v5627 = vpop.f32.mrf.mxu0
    %v5628 = vadd.f32 %v5539, %v5627
    %v5629 = vpop.f32.mrf.mxu0
    %v5630 = vadd.f32 %v5541, %v5629
    %5631 = vmatmul.bf16.gmra.mxu0 %v1479
    %v5632 = vpop.f32.mrf.mxu0
    %v5633 = vadd.f32 %v5544, %v5632
    %v5634 = vpop.f32.mrf.mxu0
    %v5635 = vadd.f32 %v5546, %v5634
    %5636 = vmatmul.bf16.gmra.mxu0 %v1485
    %v5637 = vpop.f32.mrf.mxu0
    %v5638 = vadd.f32 %v5549, %v5637
    %v5639 = vpop.f32.mrf.mxu0
    %v5640 = vadd.f32 %v5551, %v5639
    %5641 = vmatmul.bf16.gmra.mxu0 %v1491
    %v5642 = vpop.f32.mrf.mxu0
    %v5643 = vadd.f32 %v5554, %v5642
    %v5644 = vpop.f32.mrf.mxu0
    %v5645 = vadd.f32 %v5556, %v5644
    %5646 = vmatmul.bf16.gmra.mxu0 %v1497
    %v5647 = vpop.f32.mrf.mxu0
    %v5648 = vadd.f32 %v5559, %v5647
    %v5649 = vpop.f32.mrf.mxu0
    %v5650 = vadd.f32 %v5561, %v5649
    %5651 = vmatmul.bf16.gmra.mxu0 %v1503
    %v5652 = vpop.f32.mrf.mxu0
    %v5653 = vadd.f32 %v5564, %v5652
    %v5654 = vpop.f32.mrf.mxu0
    %v5655 = vadd.f32 %v5566, %v5654
    %5656 = vmatmul.bf16.gmra.mxu0 %v1509
    %v5657 = vpop.f32.mrf.mxu0
    %v5658 = vadd.f32 %v5569, %v5657
    %v5659 = vpop.f32.mrf.mxu0
    %v5660 = vadd.f32 %v5571, %v5659
    %5661 = vdwg.mxu0
    %5662 = vmatpush.bf16.msra.mxu0 %v2818
    %5663 = vmatpush.bf16.msra.mxu0 %v2810
    %5664 = vmatpush.bf16.msra.mxu0 %v2802
    %5665 = vmatpush.bf16.msra.mxu0 %v2794
    %5666 = vmatpush.bf16.msra.mxu0 %v2786
    %5667 = vmatpush.bf16.msra.mxu0 %v2778
    %5668 = vmatpush.bf16.msra.mxu0 %v2770
    %5669 = vmatpush.bf16.msra.mxu0 %v2762
    %5670 = vmatmul.bf16.gmra.mxu0 %v1414
    %v5671 = vpop.f32.mrf.mxu0
    %v5672 = vadd.f32 0.0, %v5671
    %v5673 = vpop.f32.mrf.mxu0
    %v5674 = vadd.f32 0.0, %v5673
    %5675 = vmatmul.bf16.gmra.mxu0 %v1420
    %v5676 = vpop.f32.mrf.mxu0
    %v5677 = vadd.f32 0.0, %v5676
    %v5678 = vpop.f32.mrf.mxu0
    %v5679 = vadd.f32 0.0, %v5678
    %5680 = vmatmul.bf16.gmra.mxu0 %v1426
    %v5681 = vpop.f32.mrf.mxu0
    %v5682 = vadd.f32 0.0, %v5681
    %v5683 = vpop.f32.mrf.mxu0
    %v5684 = vadd.f32 0.0, %v5683
    %5685 = vmatmul.bf16.gmra.mxu0 %v1432
    %v5686 = vpop.f32.mrf.mxu0
    %v5687 = vadd.f32 0.0, %v5686
    %v5688 = vpop.f32.mrf.mxu0
    %v5689 = vadd.f32 0.0, %v5688
    %5690 = vmatmul.bf16.gmra.mxu0 %v1438
    %v5691 = vpop.f32.mrf.mxu0
    %v5692 = vadd.f32 0.0, %v5691
    %v5693 = vpop.f32.mrf.mxu0
    %v5694 = vadd.f32 0.0, %v5693
    %5695 = vmatmul.bf16.gmra.mxu0 %v1444
    %v5696 = vpop.f32.mrf.mxu0
    %v5697 = vadd.f32 0.0, %v5696
    %v5698 = vpop.f32.mrf.mxu0
    %v5699 = vadd.f32 0.0, %v5698
    %5700 = vmatmul.bf16.gmra.mxu0 %v1450
    %v5701 = vpop.f32.mrf.mxu0
    %v5702 = vadd.f32 0.0, %v5701
    %v5703 = vpop.f32.mrf.mxu0
    %v5704 = vadd.f32 0.0, %v5703
    %5705 = vmatmul.bf16.gmra.mxu0 %v1456
    %v5706 = vpop.f32.mrf.mxu0
    %v5707 = vadd.f32 0.0, %v5706
    %v5708 = vpop.f32.mrf.mxu0
    %v5709 = vadd.f32 0.0, %v5708
    %5710 = vmatmul.bf16.gmra.mxu0 %v1462
    %v5711 = vpop.f32.mrf.mxu0
    %v5712 = vadd.f32 0.0, %v5711
    %v5713 = vpop.f32.mrf.mxu0
    %v5714 = vadd.f32 0.0, %v5713
    %5715 = vmatmul.bf16.gmra.mxu0 %v1468
    %v5716 = vpop.f32.mrf.mxu0
    %v5717 = vadd.f32 0.0, %v5716
    %v5718 = vpop.f32.mrf.mxu0
    %v5719 = vadd.f32 0.0, %v5718
    %5720 = vmatmul.bf16.gmra.mxu0 %v1474
    %v5721 = vpop.f32.mrf.mxu0
    %v5722 = vadd.f32 0.0, %v5721
    %v5723 = vpop.f32.mrf.mxu0
    %v5724 = vadd.f32 0.0, %v5723
    %5725 = vmatmul.bf16.gmra.mxu0 %v1480
    %v5726 = vpop.f32.mrf.mxu0
    %v5727 = vadd.f32 0.0, %v5726
    %v5728 = vpop.f32.mrf.mxu0
    %v5729 = vadd.f32 0.0, %v5728
    %5730 = vmatmul.bf16.gmra.mxu0 %v1486
    %v5731 = vpop.f32.mrf.mxu0
    %v5732 = vadd.f32 0.0, %v5731
    %v5733 = vpop.f32.mrf.mxu0
    %v5734 = vadd.f32 0.0, %v5733
    %5735 = vmatmul.bf16.gmra.mxu0 %v1492
    %v5736 = vpop.f32.mrf.mxu0
    %v5737 = vadd.f32 0.0, %v5736
    %v5738 = vpop.f32.mrf.mxu0
    %v5739 = vadd.f32 0.0, %v5738
    %5740 = vmatmul.bf16.gmra.mxu0 %v1498
    %v5741 = vpop.f32.mrf.mxu0
    %v5742 = vadd.f32 0.0, %v5741
    %v5743 = vpop.f32.mrf.mxu0
    %v5744 = vadd.f32 0.0, %v5743
    %5745 = vmatmul.bf16.gmra.mxu0 %v1504
    %v5746 = vpop.f32.mrf.mxu0
    %v5747 = vadd.f32 0.0, %v5746
    %v5748 = vpop.f32.mrf.mxu0
    %v5749 = vadd.f32 0.0, %v5748
    %5750 = vdwg.mxu0
    %5751 = vmatpush.bf16.msra.mxu0 %v2882
    %5752 = vmatpush.bf16.msra.mxu0 %v2874
    %5753 = vmatpush.bf16.msra.mxu0 %v2866
    %5754 = vmatpush.bf16.msra.mxu0 %v2858
    %5755 = vmatpush.bf16.msra.mxu0 %v2850
    %5756 = vmatpush.bf16.msra.mxu0 %v2842
    %5757 = vmatpush.bf16.msra.mxu0 %v2834
    %5758 = vmatpush.bf16.msra.mxu0 %v2826
    %5759 = vmatmul.bf16.gmra.mxu0 %v1415
    %v5760 = vpop.f32.mrf.mxu0
    %v5761 = vadd.f32 %v5672, %v5760
    %v5762 = vpop.f32.mrf.mxu0
    %v5763 = vadd.f32 %v5674, %v5762
    %5764 = vmatmul.bf16.gmra.mxu0 %v1421
    %v5765 = vpop.f32.mrf.mxu0
    %v5766 = vadd.f32 %v5677, %v5765
    %v5767 = vpop.f32.mrf.mxu0
    %v5768 = vadd.f32 %v5679, %v5767
    %5769 = vmatmul.bf16.gmra.mxu0 %v1427
    %v5770 = vpop.f32.mrf.mxu0
    %v5771 = vadd.f32 %v5682, %v5770
    %v5772 = vpop.f32.mrf.mxu0
    %v5773 = vadd.f32 %v5684, %v5772
    %5774 = vmatmul.bf16.gmra.mxu0 %v1433
    %v5775 = vpop.f32.mrf.mxu0
    %v5776 = vadd.f32 %v5687, %v5775
    %v5777 = vpop.f32.mrf.mxu0
    %v5778 = vadd.f32 %v5689, %v5777
    %5779 = vmatmul.bf16.gmra.mxu0 %v1439
    %v5780 = vpop.f32.mrf.mxu0
    %v5781 = vadd.f32 %v5692, %v5780
    %v5782 = vpop.f32.mrf.mxu0
    %v5783 = vadd.f32 %v5694, %v5782
    %5784 = vmatmul.bf16.gmra.mxu0 %v1445
    %v5785 = vpop.f32.mrf.mxu0
    %v5786 = vadd.f32 %v5697, %v5785
    %v5787 = vpop.f32.mrf.mxu0
    %v5788 = vadd.f32 %v5699, %v5787
    %5789 = vmatmul.bf16.gmra.mxu0 %v1451
    %v5790 = vpop.f32.mrf.mxu0
    %v5791 = vadd.f32 %v5702, %v5790
    %v5792 = vpop.f32.mrf.mxu0
    %v5793 = vadd.f32 %v5704, %v5792
    %5794 = vmatmul.bf16.gmra.mxu0 %v1457
    %v5795 = vpop.f32.mrf.mxu0
    %v5796 = vadd.f32 %v5707, %v5795
    %v5797 = vpop.f32.mrf.mxu0
    %v5798 = vadd.f32 %v5709, %v5797
    %5799 = vmatmul.bf16.gmra.mxu0 %v1463
    %v5800 = vpop.f32.mrf.mxu0
    %v5801 = vadd.f32 %v5712, %v5800
    %v5802 = vpop.f32.mrf.mxu0
    %v5803 = vadd.f32 %v5714, %v5802
    %5804 = vmatmul.bf16.gmra.mxu0 %v1469
    %v5805 = vpop.f32.mrf.mxu0
    %v5806 = vadd.f32 %v5717, %v5805
    %v5807 = vpop.f32.mrf.mxu0
    %v5808 = vadd.f32 %v5719, %v5807
    %5809 = vmatmul.bf16.gmra.mxu0 %v1475
    %v5810 = vpop.f32.mrf.mxu0
    %v5811 = vadd.f32 %v5722, %v5810
    %v5812 = vpop.f32.mrf.mxu0
    %v5813 = vadd.f32 %v5724, %v5812
    %5814 = vmatmul.bf16.gmra.mxu0 %v1481
    %v5815 = vpop.f32.mrf.mxu0
    %v5816 = vadd.f32 %v5727, %v5815
    %v5817 = vpop.f32.mrf.mxu0
    %v5818 = vadd.f32 %v5729, %v5817
    %5819 = vmatmul.bf16.gmra.mxu0 %v1487
    %v5820 = vpop.f32.mrf.mxu0
    %v5821 = vadd.f32 %v5732, %v5820
    %v5822 = vpop.f32.mrf.mxu0
    %v5823 = vadd.f32 %v5734, %v5822
    %5824 = vmatmul.bf16.gmra.mxu0 %v1493
    %v5825 = vpop.f32.mrf.mxu0
    %v5826 = vadd.f32 %v5737, %v5825
    %v5827 = vpop.f32.mrf.mxu0
    %v5828 = vadd.f32 %v5739, %v5827
    %5829 = vmatmul.bf16.gmra.mxu0 %v1499
    %v5830 = vpop.f32.mrf.mxu0
    %v5831 = vadd.f32 %v5742, %v5830
    %v5832 = vpop.f32.mrf.mxu0
    %v5833 = vadd.f32 %v5744, %v5832
    %5834 = vmatmul.bf16.gmra.mxu0 %v1505
    %v5835 = vpop.f32.mrf.mxu0
    %v5836 = vadd.f32 %v5747, %v5835
    %v5837 = vpop.f32.mrf.mxu0
    %v5838 = vadd.f32 %v5749, %v5837
    %5839 = vdwg.mxu0
    %5840 = vmatpush.bf16.msra.mxu0 %v2946
    %5841 = vmatpush.bf16.msra.mxu0 %v2938
    %5842 = vmatpush.bf16.msra.mxu0 %v2930
    %5843 = vmatpush.bf16.msra.mxu0 %v2922
    %5844 = vmatpush.bf16.msra.mxu0 %v2914
    %5845 = vmatpush.bf16.msra.mxu0 %v2906
    %5846 = vmatpush.bf16.msra.mxu0 %v2898
    %5847 = vmatpush.bf16.msra.mxu0 %v2890
    %5848 = vmatmul.bf16.gmra.mxu0 %v1416
    %v5849 = vpop.f32.mrf.mxu0
    %v5850 = vadd.f32 %v5761, %v5849
    %v5851 = vpop.f32.mrf.mxu0
    %v5852 = vadd.f32 %v5763, %v5851
    %5853 = vmatmul.bf16.gmra.mxu0 %v1422
    %v5854 = vpop.f32.mrf.mxu0
    %v5855 = vadd.f32 %v5766, %v5854
    %v5856 = vpop.f32.mrf.mxu0
    %v5857 = vadd.f32 %v5768, %v5856
    %5858 = vmatmul.bf16.gmra.mxu0 %v1428
    %v5859 = vpop.f32.mrf.mxu0
    %v5860 = vadd.f32 %v5771, %v5859
    %v5861 = vpop.f32.mrf.mxu0
    %v5862 = vadd.f32 %v5773, %v5861
    %5863 = vmatmul.bf16.gmra.mxu0 %v1434
    %v5864 = vpop.f32.mrf.mxu0
    %v5865 = vadd.f32 %v5776, %v5864
    %v5866 = vpop.f32.mrf.mxu0
    %v5867 = vadd.f32 %v5778, %v5866
    %5868 = vmatmul.bf16.gmra.mxu0 %v1440
    %v5869 = vpop.f32.mrf.mxu0
    %v5870 = vadd.f32 %v5781, %v5869
    %v5871 = vpop.f32.mrf.mxu0
    %v5872 = vadd.f32 %v5783, %v5871
    %5873 = vmatmul.bf16.gmra.mxu0 %v1446
    %v5874 = vpop.f32.mrf.mxu0
    %v5875 = vadd.f32 %v5786, %v5874
    %v5876 = vpop.f32.mrf.mxu0
    %v5877 = vadd.f32 %v5788, %v5876
    %5878 = vmatmul.bf16.gmra.mxu0 %v1452
    %v5879 = vpop.f32.mrf.mxu0
    %v5880 = vadd.f32 %v5791, %v5879
    %v5881 = vpop.f32.mrf.mxu0
    %v5882 = vadd.f32 %v5793, %v5881
    %5883 = vmatmul.bf16.gmra.mxu0 %v1458
    %v5884 = vpop.f32.mrf.mxu0
    %v5885 = vadd.f32 %v5796, %v5884
    %v5886 = vpop.f32.mrf.mxu0
    %v5887 = vadd.f32 %v5798, %v5886
    %5888 = vmatmul.bf16.gmra.mxu0 %v1464
    %v5889 = vpop.f32.mrf.mxu0
    %v5890 = vadd.f32 %v5801, %v5889
    %v5891 = vpop.f32.mrf.mxu0
    %v5892 = vadd.f32 %v5803, %v5891
    %5893 = vmatmul.bf16.gmra.mxu0 %v1470
    %v5894 = vpop.f32.mrf.mxu0
    %v5895 = vadd.f32 %v5806, %v5894
    %v5896 = vpop.f32.mrf.mxu0
    %v5897 = vadd.f32 %v5808, %v5896
    %5898 = vmatmul.bf16.gmra.mxu0 %v1476
    %v5899 = vpop.f32.mrf.mxu0
    %v5900 = vadd.f32 %v5811, %v5899
    %v5901 = vpop.f32.mrf.mxu0
    %v5902 = vadd.f32 %v5813, %v5901
    %5903 = vmatmul.bf16.gmra.mxu0 %v1482
    %v5904 = vpop.f32.mrf.mxu0
    %v5905 = vadd.f32 %v5816, %v5904
    %v5906 = vpop.f32.mrf.mxu0
    %v5907 = vadd.f32 %v5818, %v5906
    %5908 = vmatmul.bf16.gmra.mxu0 %v1488
    %v5909 = vpop.f32.mrf.mxu0
    %v5910 = vadd.f32 %v5821, %v5909
    %v5911 = vpop.f32.mrf.mxu0
    %v5912 = vadd.f32 %v5823, %v5911
    %5913 = vmatmul.bf16.gmra.mxu0 %v1494
    %v5914 = vpop.f32.mrf.mxu0
    %v5915 = vadd.f32 %v5826, %v5914
    %v5916 = vpop.f32.mrf.mxu0
    %v5917 = vadd.f32 %v5828, %v5916
    %5918 = vmatmul.bf16.gmra.mxu0 %v1500
    %v5919 = vpop.f32.mrf.mxu0
    %v5920 = vadd.f32 %v5831, %v5919
    %v5921 = vpop.f32.mrf.mxu0
    %v5922 = vadd.f32 %v5833, %v5921
    %5923 = vmatmul.bf16.gmra.mxu0 %v1506
    %v5924 = vpop.f32.mrf.mxu0
    %v5925 = vadd.f32 %v5836, %v5924
    %v5926 = vpop.f32.mrf.mxu0
    %v5927 = vadd.f32 %v5838, %v5926
    %5928 = vdwg.mxu0
    %5929 = vmatpush.bf16.msra.mxu0 %v3010
    %5930 = vmatpush.bf16.msra.mxu0 %v3002
    %5931 = vmatpush.bf16.msra.mxu0 %v2994
    %5932 = vmatpush.bf16.msra.mxu0 %v2986
    %5933 = vmatpush.bf16.msra.mxu0 %v2978
    %5934 = vmatpush.bf16.msra.mxu0 %v2970
    %5935 = vmatpush.bf16.msra.mxu0 %v2962
    %5936 = vmatpush.bf16.msra.mxu0 %v2954
    %5937 = vmatmul.bf16.gmra.mxu0 %v1417
    %v5938 = vpop.f32.mrf.mxu0
    %v5939 = vadd.f32 %v5850, %v5938
    %v5940 = vpop.f32.mrf.mxu0
    %v5941 = vadd.f32 %v5852, %v5940
    %5942 = vmatmul.bf16.gmra.mxu0 %v1423
    %v5943 = vpop.f32.mrf.mxu0
    %v5944 = vadd.f32 %v5855, %v5943
    %v5945 = vpop.f32.mrf.mxu0
    %v5946 = vadd.f32 %v5857, %v5945
    %5947 = vmatmul.bf16.gmra.mxu0 %v1429
    %v5948 = vpop.f32.mrf.mxu0
    %v5949 = vadd.f32 %v5860, %v5948
    %v5950 = vpop.f32.mrf.mxu0
    %v5951 = vadd.f32 %v5862, %v5950
    %5952 = vmatmul.bf16.gmra.mxu0 %v1435
    %v5953 = vpop.f32.mrf.mxu0
    %v5954 = vadd.f32 %v5865, %v5953
    %v5955 = vpop.f32.mrf.mxu0
    %v5956 = vadd.f32 %v5867, %v5955
    %5957 = vmatmul.bf16.gmra.mxu0 %v1441
    %v5958 = vpop.f32.mrf.mxu0
    %v5959 = vadd.f32 %v5870, %v5958
    %v5960 = vpop.f32.mrf.mxu0
    %v5961 = vadd.f32 %v5872, %v5960
    %5962 = vmatmul.bf16.gmra.mxu0 %v1447
    %v5963 = vpop.f32.mrf.mxu0
    %v5964 = vadd.f32 %v5875, %v5963
    %v5965 = vpop.f32.mrf.mxu0
    %v5966 = vadd.f32 %v5877, %v5965
    %5967 = vmatmul.bf16.gmra.mxu0 %v1453
    %v5968 = vpop.f32.mrf.mxu0
    %v5969 = vadd.f32 %v5880, %v5968
    %v5970 = vpop.f32.mrf.mxu0
    %v5971 = vadd.f32 %v5882, %v5970
    %5972 = vmatmul.bf16.gmra.mxu0 %v1459
    %v5973 = vpop.f32.mrf.mxu0
    %v5974 = vadd.f32 %v5885, %v5973
    %v5975 = vpop.f32.mrf.mxu0
    %v5976 = vadd.f32 %v5887, %v5975
    %5977 = vmatmul.bf16.gmra.mxu0 %v1465
    %v5978 = vpop.f32.mrf.mxu0
    %v5979 = vadd.f32 %v5890, %v5978
    %v5980 = vpop.f32.mrf.mxu0
    %v5981 = vadd.f32 %v5892, %v5980
    %5982 = vmatmul.bf16.gmra.mxu0 %v1471
    %v5983 = vpop.f32.mrf.mxu0
    %v5984 = vadd.f32 %v5895, %v5983
    %v5985 = vpop.f32.mrf.mxu0
    %v5986 = vadd.f32 %v5897, %v5985
    %5987 = vmatmul.bf16.gmra.mxu0 %v1477
    %v5988 = vpop.f32.mrf.mxu0
    %v5989 = vadd.f32 %v5900, %v5988
    %v5990 = vpop.f32.mrf.mxu0
    %v5991 = vadd.f32 %v5902, %v5990
    %5992 = vmatmul.bf16.gmra.mxu0 %v1483
    %v5993 = vpop.f32.mrf.mxu0
    %v5994 = vadd.f32 %v5905, %v5993
    %v5995 = vpop.f32.mrf.mxu0
    %v5996 = vadd.f32 %v5907, %v5995
    %5997 = vmatmul.bf16.gmra.mxu0 %v1489
    %v5998 = vpop.f32.mrf.mxu0
    %v5999 = vadd.f32 %v5910, %v5998
    %v6000 = vpop.f32.mrf.mxu0
    %v6001 = vadd.f32 %v5912, %v6000
    %6002 = vmatmul.bf16.gmra.mxu0 %v1495
    %v6003 = vpop.f32.mrf.mxu0
    %v6004 = vadd.f32 %v5915, %v6003
    %v6005 = vpop.f32.mrf.mxu0
    %v6006 = vadd.f32 %v5917, %v6005
    %6007 = vmatmul.bf16.gmra.mxu0 %v1501
    %v6008 = vpop.f32.mrf.mxu0
    %v6009 = vadd.f32 %v5920, %v6008
    %v6010 = vpop.f32.mrf.mxu0
    %v6011 = vadd.f32 %v5922, %v6010
    %6012 = vmatmul.bf16.gmra.mxu0 %v1507
    %v6013 = vpop.f32.mrf.mxu0
    %v6014 = vadd.f32 %v5925, %v6013
    %v6015 = vpop.f32.mrf.mxu0
    %v6016 = vadd.f32 %v5927, %v6015
    %6017 = vdwg.mxu0
    %6018 = vmatpush.bf16.msra.mxu0 %v3074
    %6019 = vmatpush.bf16.msra.mxu0 %v3066
    %6020 = vmatpush.bf16.msra.mxu0 %v3058
    %6021 = vmatpush.bf16.msra.mxu0 %v3050
    %6022 = vmatpush.bf16.msra.mxu0 %v3042
    %6023 = vmatpush.bf16.msra.mxu0 %v3034
    %6024 = vmatpush.bf16.msra.mxu0 %v3026
    %6025 = vmatpush.bf16.msra.mxu0 %v3018
    %6026 = vmatmul.bf16.gmra.mxu0 %v1418
    %v6027 = vpop.f32.mrf.mxu0
    %v6028 = vadd.f32 %v5939, %v6027
    %v6029 = vpop.f32.mrf.mxu0
    %v6030 = vadd.f32 %v5941, %v6029
    %6031 = vmatmul.bf16.gmra.mxu0 %v1424
    %v6032 = vpop.f32.mrf.mxu0
    %v6033 = vadd.f32 %v5944, %v6032
    %v6034 = vpop.f32.mrf.mxu0
    %v6035 = vadd.f32 %v5946, %v6034
    %6036 = vmatmul.bf16.gmra.mxu0 %v1430
    %v6037 = vpop.f32.mrf.mxu0
    %v6038 = vadd.f32 %v5949, %v6037
    %v6039 = vpop.f32.mrf.mxu0
    %v6040 = vadd.f32 %v5951, %v6039
    %6041 = vmatmul.bf16.gmra.mxu0 %v1436
    %v6042 = vpop.f32.mrf.mxu0
    %v6043 = vadd.f32 %v5954, %v6042
    %v6044 = vpop.f32.mrf.mxu0
    %v6045 = vadd.f32 %v5956, %v6044
    %6046 = vmatmul.bf16.gmra.mxu0 %v1442
    %v6047 = vpop.f32.mrf.mxu0
    %v6048 = vadd.f32 %v5959, %v6047
    %v6049 = vpop.f32.mrf.mxu0
    %v6050 = vadd.f32 %v5961, %v6049
    %6051 = vmatmul.bf16.gmra.mxu0 %v1448
    %v6052 = vpop.f32.mrf.mxu0
    %v6053 = vadd.f32 %v5964, %v6052
    %v6054 = vpop.f32.mrf.mxu0
    %v6055 = vadd.f32 %v5966, %v6054
    %6056 = vmatmul.bf16.gmra.mxu0 %v1454
    %v6057 = vpop.f32.mrf.mxu0
    %v6058 = vadd.f32 %v5969, %v6057
    %v6059 = vpop.f32.mrf.mxu0
    %v6060 = vadd.f32 %v5971, %v6059
    %6061 = vmatmul.bf16.gmra.mxu0 %v1460
    %v6062 = vpop.f32.mrf.mxu0
    %v6063 = vadd.f32 %v5974, %v6062
    %v6064 = vpop.f32.mrf.mxu0
    %v6065 = vadd.f32 %v5976, %v6064
    %6066 = vmatmul.bf16.gmra.mxu0 %v1466
    %v6067 = vpop.f32.mrf.mxu0
    %v6068 = vadd.f32 %v5979, %v6067
    %v6069 = vpop.f32.mrf.mxu0
    %v6070 = vadd.f32 %v5981, %v6069
    %6071 = vmatmul.bf16.gmra.mxu0 %v1472
    %v6072 = vpop.f32.mrf.mxu0
    %v6073 = vadd.f32 %v5984, %v6072
    %v6074 = vpop.f32.mrf.mxu0
    %v6075 = vadd.f32 %v5986, %v6074
    %6076 = vmatmul.bf16.gmra.mxu0 %v1478
    %v6077 = vpop.f32.mrf.mxu0
    %v6078 = vadd.f32 %v5989, %v6077
    %v6079 = vpop.f32.mrf.mxu0
    %v6080 = vadd.f32 %v5991, %v6079
    %6081 = vmatmul.bf16.gmra.mxu0 %v1484
    %v6082 = vpop.f32.mrf.mxu0
    %v6083 = vadd.f32 %v5994, %v6082
    %v6084 = vpop.f32.mrf.mxu0
    %v6085 = vadd.f32 %v5996, %v6084
    %6086 = vmatmul.bf16.gmra.mxu0 %v1490
    %v6087 = vpop.f32.mrf.mxu0
    %v6088 = vadd.f32 %v5999, %v6087
    %v6089 = vpop.f32.mrf.mxu0
    %v6090 = vadd.f32 %v6001, %v6089
    %6091 = vmatmul.bf16.gmra.mxu0 %v1496
    %v6092 = vpop.f32.mrf.mxu0
    %v6093 = vadd.f32 %v6004, %v6092
    %v6094 = vpop.f32.mrf.mxu0
    %v6095 = vadd.f32 %v6006, %v6094
    %6096 = vmatmul.bf16.gmra.mxu0 %v1502
    %v6097 = vpop.f32.mrf.mxu0
    %v6098 = vadd.f32 %v6009, %v6097
    %v6099 = vpop.f32.mrf.mxu0
    %v6100 = vadd.f32 %v6011, %v6099
    %6101 = vmatmul.bf16.gmra.mxu0 %v1508
    %v6102 = vpop.f32.mrf.mxu0
    %v6103 = vadd.f32 %v6014, %v6102
    %v6104 = vpop.f32.mrf.mxu0
    %v6105 = vadd.f32 %v6016, %v6104
    %6106 = vdwg.mxu0
    %6107 = vmatpush.bf16.msra.mxu0 %v3138
    %6108 = vmatpush.bf16.msra.mxu0 %v3130
    %6109 = vmatpush.bf16.msra.mxu0 %v3122
    %6110 = vmatpush.bf16.msra.mxu0 %v3114
    %6111 = vmatpush.bf16.msra.mxu0 %v3106
    %6112 = vmatpush.bf16.msra.mxu0 %v3098
    %6113 = vmatpush.bf16.msra.mxu0 %v3090
    %6114 = vmatpush.bf16.msra.mxu0 %v3082
    %6115 = vmatmul.bf16.gmra.mxu0 %v1419
    %v6116 = vpop.f32.mrf.mxu0
    %v6117 = vadd.f32 %v6028, %v6116
    %v6118 = vpop.f32.mrf.mxu0
    %v6119 = vadd.f32 %v6030, %v6118
    %6120 = vmatmul.bf16.gmra.mxu0 %v1425
    %v6121 = vpop.f32.mrf.mxu0
    %v6122 = vadd.f32 %v6033, %v6121
    %v6123 = vpop.f32.mrf.mxu0
    %v6124 = vadd.f32 %v6035, %v6123
    %6125 = vmatmul.bf16.gmra.mxu0 %v1431
    %v6126 = vpop.f32.mrf.mxu0
    %v6127 = vadd.f32 %v6038, %v6126
    %v6128 = vpop.f32.mrf.mxu0
    %v6129 = vadd.f32 %v6040, %v6128
    %6130 = vmatmul.bf16.gmra.mxu0 %v1437
    %v6131 = vpop.f32.mrf.mxu0
    %v6132 = vadd.f32 %v6043, %v6131
    %v6133 = vpop.f32.mrf.mxu0
    %v6134 = vadd.f32 %v6045, %v6133
    %6135 = vmatmul.bf16.gmra.mxu0 %v1443
    %v6136 = vpop.f32.mrf.mxu0
    %v6137 = vadd.f32 %v6048, %v6136
    %v6138 = vpop.f32.mrf.mxu0
    %v6139 = vadd.f32 %v6050, %v6138
    %6140 = vmatmul.bf16.gmra.mxu0 %v1449
    %v6141 = vpop.f32.mrf.mxu0
    %v6142 = vadd.f32 %v6053, %v6141
    %v6143 = vpop.f32.mrf.mxu0
    %v6144 = vadd.f32 %v6055, %v6143
    %6145 = vmatmul.bf16.gmra.mxu0 %v1455
    %v6146 = vpop.f32.mrf.mxu0
    %v6147 = vadd.f32 %v6058, %v6146
    %v6148 = vpop.f32.mrf.mxu0
    %v6149 = vadd.f32 %v6060, %v6148
    %6150 = vmatmul.bf16.gmra.mxu0 %v1461
    %v6151 = vpop.f32.mrf.mxu0
    %v6152 = vadd.f32 %v6063, %v6151
    %v6153 = vpop.f32.mrf.mxu0
    %v6154 = vadd.f32 %v6065, %v6153
    %6155 = vmatmul.bf16.gmra.mxu0 %v1467
    %v6156 = vpop.f32.mrf.mxu0
    %v6157 = vadd.f32 %v6068, %v6156
    %v6158 = vpop.f32.mrf.mxu0
    %v6159 = vadd.f32 %v6070, %v6158
    %6160 = vmatmul.bf16.gmra.mxu0 %v1473
    %v6161 = vpop.f32.mrf.mxu0
    %v6162 = vadd.f32 %v6073, %v6161
    %v6163 = vpop.f32.mrf.mxu0
    %v6164 = vadd.f32 %v6075, %v6163
    %6165 = vmatmul.bf16.gmra.mxu0 %v1479
    %v6166 = vpop.f32.mrf.mxu0
    %v6167 = vadd.f32 %v6078, %v6166
    %v6168 = vpop.f32.mrf.mxu0
    %v6169 = vadd.f32 %v6080, %v6168
    %6170 = vmatmul.bf16.gmra.mxu0 %v1485
    %v6171 = vpop.f32.mrf.mxu0
    %v6172 = vadd.f32 %v6083, %v6171
    %v6173 = vpop.f32.mrf.mxu0
    %v6174 = vadd.f32 %v6085, %v6173
    %6175 = vmatmul.bf16.gmra.mxu0 %v1491
    %v6176 = vpop.f32.mrf.mxu0
    %v6177 = vadd.f32 %v6088, %v6176
    %v6178 = vpop.f32.mrf.mxu0
    %v6179 = vadd.f32 %v6090, %v6178
    %6180 = vmatmul.bf16.gmra.mxu0 %v1497
    %v6181 = vpop.f32.mrf.mxu0
    %v6182 = vadd.f32 %v6093, %v6181
    %v6183 = vpop.f32.mrf.mxu0
    %v6184 = vadd.f32 %v6095, %v6183
    %6185 = vmatmul.bf16.gmra.mxu0 %v1503
    %v6186 = vpop.f32.mrf.mxu0
    %v6187 = vadd.f32 %v6098, %v6186
    %v6188 = vpop.f32.mrf.mxu0
    %v6189 = vadd.f32 %v6100, %v6188
    %6190 = vmatmul.bf16.gmra.mxu0 %v1509
    %v6191 = vpop.f32.mrf.mxu0
    %v6192 = vadd.f32 %v6103, %v6191
    %v6193 = vpop.f32.mrf.mxu0
    %v6194 = vadd.f32 %v6105, %v6193
    %6195 = vdwg.mxu0
    %6196 = vmatpush.bf16.msra.mxu0 %v2819
    %6197 = vmatpush.bf16.msra.mxu0 %v2811
    %6198 = vmatpush.bf16.msra.mxu0 %v2803
    %6199 = vmatpush.bf16.msra.mxu0 %v2795
    %6200 = vmatpush.bf16.msra.mxu0 %v2787
    %6201 = vmatpush.bf16.msra.mxu0 %v2779
    %6202 = vmatpush.bf16.msra.mxu0 %v2771
    %6203 = vmatpush.bf16.msra.mxu0 %v2763
    %6204 = vmatmul.bf16.gmra.mxu0 %v1414
    %v6205 = vpop.f32.mrf.mxu0
    %v6206 = vadd.f32 0.0, %v6205
    %v6207 = vpop.f32.mrf.mxu0
    %v6208 = vadd.f32 0.0, %v6207
    %6209 = vmatmul.bf16.gmra.mxu0 %v1420
    %v6210 = vpop.f32.mrf.mxu0
    %v6211 = vadd.f32 0.0, %v6210
    %v6212 = vpop.f32.mrf.mxu0
    %v6213 = vadd.f32 0.0, %v6212
    %6214 = vmatmul.bf16.gmra.mxu0 %v1426
    %v6215 = vpop.f32.mrf.mxu0
    %v6216 = vadd.f32 0.0, %v6215
    %v6217 = vpop.f32.mrf.mxu0
    %v6218 = vadd.f32 0.0, %v6217
    %6219 = vmatmul.bf16.gmra.mxu0 %v1432
    %v6220 = vpop.f32.mrf.mxu0
    %v6221 = vadd.f32 0.0, %v6220
    %v6222 = vpop.f32.mrf.mxu0
    %v6223 = vadd.f32 0.0, %v6222
    %6224 = vmatmul.bf16.gmra.mxu0 %v1438
    %v6225 = vpop.f32.mrf.mxu0
    %v6226 = vadd.f32 0.0, %v6225
    %v6227 = vpop.f32.mrf.mxu0
    %v6228 = vadd.f32 0.0, %v6227
    %6229 = vmatmul.bf16.gmra.mxu0 %v1444
    %v6230 = vpop.f32.mrf.mxu0
    %v6231 = vadd.f32 0.0, %v6230
    %v6232 = vpop.f32.mrf.mxu0
    %v6233 = vadd.f32 0.0, %v6232
    %6234 = vmatmul.bf16.gmra.mxu0 %v1450
    %v6235 = vpop.f32.mrf.mxu0
    %v6236 = vadd.f32 0.0, %v6235
    %v6237 = vpop.f32.mrf.mxu0
    %v6238 = vadd.f32 0.0, %v6237
    %6239 = vmatmul.bf16.gmra.mxu0 %v1456
    %v6240 = vpop.f32.mrf.mxu0
    %v6241 = vadd.f32 0.0, %v6240
    %v6242 = vpop.f32.mrf.mxu0
    %v6243 = vadd.f32 0.0, %v6242
    %6244 = vmatmul.bf16.gmra.mxu0 %v1462
    %v6245 = vpop.f32.mrf.mxu0
    %v6246 = vadd.f32 0.0, %v6245
    %v6247 = vpop.f32.mrf.mxu0
    %v6248 = vadd.f32 0.0, %v6247
    %6249 = vmatmul.bf16.gmra.mxu0 %v1468
    %v6250 = vpop.f32.mrf.mxu0
    %v6251 = vadd.f32 0.0, %v6250
    %v6252 = vpop.f32.mrf.mxu0
    %v6253 = vadd.f32 0.0, %v6252
    %6254 = vmatmul.bf16.gmra.mxu0 %v1474
    %v6255 = vpop.f32.mrf.mxu0
    %v6256 = vadd.f32 0.0, %v6255
    %v6257 = vpop.f32.mrf.mxu0
    %v6258 = vadd.f32 0.0, %v6257
    %6259 = vmatmul.bf16.gmra.mxu0 %v1480
    %v6260 = vpop.f32.mrf.mxu0
    %v6261 = vadd.f32 0.0, %v6260
    %v6262 = vpop.f32.mrf.mxu0
    %v6263 = vadd.f32 0.0, %v6262
    %6264 = vmatmul.bf16.gmra.mxu0 %v1486
    %v6265 = vpop.f32.mrf.mxu0
    %v6266 = vadd.f32 0.0, %v6265
    %v6267 = vpop.f32.mrf.mxu0
    %v6268 = vadd.f32 0.0, %v6267
    %6269 = vmatmul.bf16.gmra.mxu0 %v1492
    %v6270 = vpop.f32.mrf.mxu0
    %v6271 = vadd.f32 0.0, %v6270
    %v6272 = vpop.f32.mrf.mxu0
    %v6273 = vadd.f32 0.0, %v6272
    %6274 = vmatmul.bf16.gmra.mxu0 %v1498
    %v6275 = vpop.f32.mrf.mxu0
    %v6276 = vadd.f32 0.0, %v6275
    %v6277 = vpop.f32.mrf.mxu0
    %v6278 = vadd.f32 0.0, %v6277
    %6279 = vmatmul.bf16.gmra.mxu0 %v1504
    %v6280 = vpop.f32.mrf.mxu0
    %v6281 = vadd.f32 0.0, %v6280
    %v6282 = vpop.f32.mrf.mxu0
    %v6283 = vadd.f32 0.0, %v6282
    %6284 = vdwg.mxu0
    %6285 = vmatpush.bf16.msra.mxu0 %v2883
    %6286 = vmatpush.bf16.msra.mxu0 %v2875
    %6287 = vmatpush.bf16.msra.mxu0 %v2867
    %6288 = vmatpush.bf16.msra.mxu0 %v2859
    %6289 = vmatpush.bf16.msra.mxu0 %v2851
    %6290 = vmatpush.bf16.msra.mxu0 %v2843
    %6291 = vmatpush.bf16.msra.mxu0 %v2835
    %6292 = vmatpush.bf16.msra.mxu0 %v2827
    %6293 = vmatmul.bf16.gmra.mxu0 %v1415
    %v6294 = vpop.f32.mrf.mxu0
    %v6295 = vadd.f32 %v6206, %v6294
    %v6296 = vpop.f32.mrf.mxu0
    %v6297 = vadd.f32 %v6208, %v6296
    %6298 = vmatmul.bf16.gmra.mxu0 %v1421
    %v6299 = vpop.f32.mrf.mxu0
    %v6300 = vadd.f32 %v6211, %v6299
    %v6301 = vpop.f32.mrf.mxu0
    %v6302 = vadd.f32 %v6213, %v6301
    %6303 = vmatmul.bf16.gmra.mxu0 %v1427
    %v6304 = vpop.f32.mrf.mxu0
    %v6305 = vadd.f32 %v6216, %v6304
    %v6306 = vpop.f32.mrf.mxu0
    %v6307 = vadd.f32 %v6218, %v6306
    %6308 = vmatmul.bf16.gmra.mxu0 %v1433
    %v6309 = vpop.f32.mrf.mxu0
    %v6310 = vadd.f32 %v6221, %v6309
    %v6311 = vpop.f32.mrf.mxu0
    %v6312 = vadd.f32 %v6223, %v6311
    %6313 = vmatmul.bf16.gmra.mxu0 %v1439
    %v6314 = vpop.f32.mrf.mxu0
    %v6315 = vadd.f32 %v6226, %v6314
    %v6316 = vpop.f32.mrf.mxu0
    %v6317 = vadd.f32 %v6228, %v6316
    %6318 = vmatmul.bf16.gmra.mxu0 %v1445
    %v6319 = vpop.f32.mrf.mxu0
    %v6320 = vadd.f32 %v6231, %v6319
    %v6321 = vpop.f32.mrf.mxu0
    %v6322 = vadd.f32 %v6233, %v6321
    %6323 = vmatmul.bf16.gmra.mxu0 %v1451
    %v6324 = vpop.f32.mrf.mxu0
    %v6325 = vadd.f32 %v6236, %v6324
    %v6326 = vpop.f32.mrf.mxu0
    %v6327 = vadd.f32 %v6238, %v6326
    %6328 = vmatmul.bf16.gmra.mxu0 %v1457
    %v6329 = vpop.f32.mrf.mxu0
    %v6330 = vadd.f32 %v6241, %v6329
    %v6331 = vpop.f32.mrf.mxu0
    %v6332 = vadd.f32 %v6243, %v6331
    %6333 = vmatmul.bf16.gmra.mxu0 %v1463
    %v6334 = vpop.f32.mrf.mxu0
    %v6335 = vadd.f32 %v6246, %v6334
    %v6336 = vpop.f32.mrf.mxu0
    %v6337 = vadd.f32 %v6248, %v6336
    %6338 = vmatmul.bf16.gmra.mxu0 %v1469
    %v6339 = vpop.f32.mrf.mxu0
    %v6340 = vadd.f32 %v6251, %v6339
    %v6341 = vpop.f32.mrf.mxu0
    %v6342 = vadd.f32 %v6253, %v6341
    %6343 = vmatmul.bf16.gmra.mxu0 %v1475
    %v6344 = vpop.f32.mrf.mxu0
    %v6345 = vadd.f32 %v6256, %v6344
    %v6346 = vpop.f32.mrf.mxu0
    %v6347 = vadd.f32 %v6258, %v6346
    %6348 = vmatmul.bf16.gmra.mxu0 %v1481
    %v6349 = vpop.f32.mrf.mxu0
    %v6350 = vadd.f32 %v6261, %v6349
    %v6351 = vpop.f32.mrf.mxu0
    %v6352 = vadd.f32 %v6263, %v6351
    %6353 = vmatmul.bf16.gmra.mxu0 %v1487
    %v6354 = vpop.f32.mrf.mxu0
    %v6355 = vadd.f32 %v6266, %v6354
    %v6356 = vpop.f32.mrf.mxu0
    %v6357 = vadd.f32 %v6268, %v6356
    %6358 = vmatmul.bf16.gmra.mxu0 %v1493
    %v6359 = vpop.f32.mrf.mxu0
    %v6360 = vadd.f32 %v6271, %v6359
    %v6361 = vpop.f32.mrf.mxu0
    %v6362 = vadd.f32 %v6273, %v6361
    %6363 = vmatmul.bf16.gmra.mxu0 %v1499
    %v6364 = vpop.f32.mrf.mxu0
    %v6365 = vadd.f32 %v6276, %v6364
    %v6366 = vpop.f32.mrf.mxu0
    %v6367 = vadd.f32 %v6278, %v6366
    %6368 = vmatmul.bf16.gmra.mxu0 %v1505
    %v6369 = vpop.f32.mrf.mxu0
    %v6370 = vadd.f32 %v6281, %v6369
    %v6371 = vpop.f32.mrf.mxu0
    %v6372 = vadd.f32 %v6283, %v6371
    %6373 = vdwg.mxu0
    %6374 = vmatpush.bf16.msra.mxu0 %v2947
    %6375 = vmatpush.bf16.msra.mxu0 %v2939
    %6376 = vmatpush.bf16.msra.mxu0 %v2931
    %6377 = vmatpush.bf16.msra.mxu0 %v2923
    %6378 = vmatpush.bf16.msra.mxu0 %v2915
    %6379 = vmatpush.bf16.msra.mxu0 %v2907
    %6380 = vmatpush.bf16.msra.mxu0 %v2899
    %6381 = vmatpush.bf16.msra.mxu0 %v2891
    %6382 = vmatmul.bf16.gmra.mxu0 %v1416
    %v6383 = vpop.f32.mrf.mxu0
    %v6384 = vadd.f32 %v6295, %v6383
    %v6385 = vpop.f32.mrf.mxu0
    %v6386 = vadd.f32 %v6297, %v6385
    %6387 = vmatmul.bf16.gmra.mxu0 %v1422
    %v6388 = vpop.f32.mrf.mxu0
    %v6389 = vadd.f32 %v6300, %v6388
    %v6390 = vpop.f32.mrf.mxu0
    %v6391 = vadd.f32 %v6302, %v6390
    %6392 = vmatmul.bf16.gmra.mxu0 %v1428
    %v6393 = vpop.f32.mrf.mxu0
    %v6394 = vadd.f32 %v6305, %v6393
    %v6395 = vpop.f32.mrf.mxu0
    %v6396 = vadd.f32 %v6307, %v6395
    %6397 = vmatmul.bf16.gmra.mxu0 %v1434
    %v6398 = vpop.f32.mrf.mxu0
    %v6399 = vadd.f32 %v6310, %v6398
    %v6400 = vpop.f32.mrf.mxu0
    %v6401 = vadd.f32 %v6312, %v6400
    %6402 = vmatmul.bf16.gmra.mxu0 %v1440
    %v6403 = vpop.f32.mrf.mxu0
    %v6404 = vadd.f32 %v6315, %v6403
    %v6405 = vpop.f32.mrf.mxu0
    %v6406 = vadd.f32 %v6317, %v6405
    %6407 = vmatmul.bf16.gmra.mxu0 %v1446
    %v6408 = vpop.f32.mrf.mxu0
    %v6409 = vadd.f32 %v6320, %v6408
    %v6410 = vpop.f32.mrf.mxu0
    %v6411 = vadd.f32 %v6322, %v6410
    %6412 = vmatmul.bf16.gmra.mxu0 %v1452
    %v6413 = vpop.f32.mrf.mxu0
    %v6414 = vadd.f32 %v6325, %v6413
    %v6415 = vpop.f32.mrf.mxu0
    %v6416 = vadd.f32 %v6327, %v6415
    %6417 = vmatmul.bf16.gmra.mxu0 %v1458
    %v6418 = vpop.f32.mrf.mxu0
    %v6419 = vadd.f32 %v6330, %v6418
    %v6420 = vpop.f32.mrf.mxu0
    %v6421 = vadd.f32 %v6332, %v6420
    %6422 = vmatmul.bf16.gmra.mxu0 %v1464
    %v6423 = vpop.f32.mrf.mxu0
    %v6424 = vadd.f32 %v6335, %v6423
    %v6425 = vpop.f32.mrf.mxu0
    %v6426 = vadd.f32 %v6337, %v6425
    %6427 = vmatmul.bf16.gmra.mxu0 %v1470
    %v6428 = vpop.f32.mrf.mxu0
    %v6429 = vadd.f32 %v6340, %v6428
    %v6430 = vpop.f32.mrf.mxu0
    %v6431 = vadd.f32 %v6342, %v6430
    %6432 = vmatmul.bf16.gmra.mxu0 %v1476
    %v6433 = vpop.f32.mrf.mxu0
    %v6434 = vadd.f32 %v6345, %v6433
    %v6435 = vpop.f32.mrf.mxu0
    %v6436 = vadd.f32 %v6347, %v6435
    %6437 = vmatmul.bf16.gmra.mxu0 %v1482
    %v6438 = vpop.f32.mrf.mxu0
    %v6439 = vadd.f32 %v6350, %v6438
    %v6440 = vpop.f32.mrf.mxu0
    %v6441 = vadd.f32 %v6352, %v6440
    %6442 = vmatmul.bf16.gmra.mxu0 %v1488
    %v6443 = vpop.f32.mrf.mxu0
    %v6444 = vadd.f32 %v6355, %v6443
    %v6445 = vpop.f32.mrf.mxu0
    %v6446 = vadd.f32 %v6357, %v6445
    %6447 = vmatmul.bf16.gmra.mxu0 %v1494
    %v6448 = vpop.f32.mrf.mxu0
    %v6449 = vadd.f32 %v6360, %v6448
    %v6450 = vpop.f32.mrf.mxu0
    %v6451 = vadd.f32 %v6362, %v6450
    %6452 = vmatmul.bf16.gmra.mxu0 %v1500
    %v6453 = vpop.f32.mrf.mxu0
    %v6454 = vadd.f32 %v6365, %v6453
    %v6455 = vpop.f32.mrf.mxu0
    %v6456 = vadd.f32 %v6367, %v6455
    %6457 = vmatmul.bf16.gmra.mxu0 %v1506
    %v6458 = vpop.f32.mrf.mxu0
    %v6459 = vadd.f32 %v6370, %v6458
    %v6460 = vpop.f32.mrf.mxu0
    %v6461 = vadd.f32 %v6372, %v6460
    %6462 = vdwg.mxu0
    %6463 = vmatpush.bf16.msra.mxu0 %v3011
    %6464 = vmatpush.bf16.msra.mxu0 %v3003
    %6465 = vmatpush.bf16.msra.mxu0 %v2995
    %6466 = vmatpush.bf16.msra.mxu0 %v2987
    %6467 = vmatpush.bf16.msra.mxu0 %v2979
    %6468 = vmatpush.bf16.msra.mxu0 %v2971
    %6469 = vmatpush.bf16.msra.mxu0 %v2963
    %6470 = vmatpush.bf16.msra.mxu0 %v2955
    %6471 = vmatmul.bf16.gmra.mxu0 %v1417
    %v6472 = vpop.f32.mrf.mxu0
    %v6473 = vadd.f32 %v6384, %v6472
    %v6474 = vpop.f32.mrf.mxu0
    %v6475 = vadd.f32 %v6386, %v6474
    %6476 = vmatmul.bf16.gmra.mxu0 %v1423
    %v6477 = vpop.f32.mrf.mxu0
    %v6478 = vadd.f32 %v6389, %v6477
    %v6479 = vpop.f32.mrf.mxu0
    %v6480 = vadd.f32 %v6391, %v6479
    %6481 = vmatmul.bf16.gmra.mxu0 %v1429
    %v6482 = vpop.f32.mrf.mxu0
    %v6483 = vadd.f32 %v6394, %v6482
    %v6484 = vpop.f32.mrf.mxu0
    %v6485 = vadd.f32 %v6396, %v6484
    %6486 = vmatmul.bf16.gmra.mxu0 %v1435
    %v6487 = vpop.f32.mrf.mxu0
    %v6488 = vadd.f32 %v6399, %v6487
    %v6489 = vpop.f32.mrf.mxu0
    %v6490 = vadd.f32 %v6401, %v6489
    %6491 = vmatmul.bf16.gmra.mxu0 %v1441
    %v6492 = vpop.f32.mrf.mxu0
    %v6493 = vadd.f32 %v6404, %v6492
    %v6494 = vpop.f32.mrf.mxu0
    %v6495 = vadd.f32 %v6406, %v6494
    %6496 = vmatmul.bf16.gmra.mxu0 %v1447
    %v6497 = vpop.f32.mrf.mxu0
    %v6498 = vadd.f32 %v6409, %v6497
    %v6499 = vpop.f32.mrf.mxu0
    %v6500 = vadd.f32 %v6411, %v6499
    %6501 = vmatmul.bf16.gmra.mxu0 %v1453
    %v6502 = vpop.f32.mrf.mxu0
    %v6503 = vadd.f32 %v6414, %v6502
    %v6504 = vpop.f32.mrf.mxu0
    %v6505 = vadd.f32 %v6416, %v6504
    %6506 = vmatmul.bf16.gmra.mxu0 %v1459
    %v6507 = vpop.f32.mrf.mxu0
    %v6508 = vadd.f32 %v6419, %v6507
    %v6509 = vpop.f32.mrf.mxu0
    %v6510 = vadd.f32 %v6421, %v6509
    %6511 = vmatmul.bf16.gmra.mxu0 %v1465
    %v6512 = vpop.f32.mrf.mxu0
    %v6513 = vadd.f32 %v6424, %v6512
    %v6514 = vpop.f32.mrf.mxu0
    %v6515 = vadd.f32 %v6426, %v6514
    %6516 = vmatmul.bf16.gmra.mxu0 %v1471
    %v6517 = vpop.f32.mrf.mxu0
    %v6518 = vadd.f32 %v6429, %v6517
    %v6519 = vpop.f32.mrf.mxu0
    %v6520 = vadd.f32 %v6431, %v6519
    %6521 = vmatmul.bf16.gmra.mxu0 %v1477
    %v6522 = vpop.f32.mrf.mxu0
    %v6523 = vadd.f32 %v6434, %v6522
    %v6524 = vpop.f32.mrf.mxu0
    %v6525 = vadd.f32 %v6436, %v6524
    %6526 = vmatmul.bf16.gmra.mxu0 %v1483
    %v6527 = vpop.f32.mrf.mxu0
    %v6528 = vadd.f32 %v6439, %v6527
    %v6529 = vpop.f32.mrf.mxu0
    %v6530 = vadd.f32 %v6441, %v6529
    %6531 = vmatmul.bf16.gmra.mxu0 %v1489
    %v6532 = vpop.f32.mrf.mxu0
    %v6533 = vadd.f32 %v6444, %v6532
    %v6534 = vpop.f32.mrf.mxu0
    %v6535 = vadd.f32 %v6446, %v6534
    %6536 = vmatmul.bf16.gmra.mxu0 %v1495
    %v6537 = vpop.f32.mrf.mxu0
    %v6538 = vadd.f32 %v6449, %v6537
    %v6539 = vpop.f32.mrf.mxu0
    %v6540 = vadd.f32 %v6451, %v6539
    %6541 = vmatmul.bf16.gmra.mxu0 %v1501
    %v6542 = vpop.f32.mrf.mxu0
    %v6543 = vadd.f32 %v6454, %v6542
    %v6544 = vpop.f32.mrf.mxu0
    %v6545 = vadd.f32 %v6456, %v6544
    %6546 = vmatmul.bf16.gmra.mxu0 %v1507
    %v6547 = vpop.f32.mrf.mxu0
    %v6548 = vadd.f32 %v6459, %v6547
    %v6549 = vpop.f32.mrf.mxu0
    %v6550 = vadd.f32 %v6461, %v6549
    %6551 = vdwg.mxu0
    %6552 = vmatpush.bf16.msra.mxu0 %v3075
    %6553 = vmatpush.bf16.msra.mxu0 %v3067
    %6554 = vmatpush.bf16.msra.mxu0 %v3059
    %6555 = vmatpush.bf16.msra.mxu0 %v3051
    %6556 = vmatpush.bf16.msra.mxu0 %v3043
    %6557 = vmatpush.bf16.msra.mxu0 %v3035
    %6558 = vmatpush.bf16.msra.mxu0 %v3027
    %6559 = vmatpush.bf16.msra.mxu0 %v3019
    %6560 = vmatmul.bf16.gmra.mxu0 %v1418
    %v6561 = vpop.f32.mrf.mxu0
    %v6562 = vadd.f32 %v6473, %v6561
    %v6563 = vpop.f32.mrf.mxu0
    %v6564 = vadd.f32 %v6475, %v6563
    %6565 = vmatmul.bf16.gmra.mxu0 %v1424
    %v6566 = vpop.f32.mrf.mxu0
    %v6567 = vadd.f32 %v6478, %v6566
    %v6568 = vpop.f32.mrf.mxu0
    %v6569 = vadd.f32 %v6480, %v6568
    %6570 = vmatmul.bf16.gmra.mxu0 %v1430
    %v6571 = vpop.f32.mrf.mxu0
    %v6572 = vadd.f32 %v6483, %v6571
    %v6573 = vpop.f32.mrf.mxu0
    %v6574 = vadd.f32 %v6485, %v6573
    %6575 = vmatmul.bf16.gmra.mxu0 %v1436
    %v6576 = vpop.f32.mrf.mxu0
    %v6577 = vadd.f32 %v6488, %v6576
    %v6578 = vpop.f32.mrf.mxu0
    %v6579 = vadd.f32 %v6490, %v6578
    %6580 = vmatmul.bf16.gmra.mxu0 %v1442
    %v6581 = vpop.f32.mrf.mxu0
    %v6582 = vadd.f32 %v6493, %v6581
    %v6583 = vpop.f32.mrf.mxu0
    %v6584 = vadd.f32 %v6495, %v6583
    %6585 = vmatmul.bf16.gmra.mxu0 %v1448
    %v6586 = vpop.f32.mrf.mxu0
    %v6587 = vadd.f32 %v6498, %v6586
    %v6588 = vpop.f32.mrf.mxu0
    %v6589 = vadd.f32 %v6500, %v6588
    %6590 = vmatmul.bf16.gmra.mxu0 %v1454
    %v6591 = vpop.f32.mrf.mxu0
    %v6592 = vadd.f32 %v6503, %v6591
    %v6593 = vpop.f32.mrf.mxu0
    %v6594 = vadd.f32 %v6505, %v6593
    %6595 = vmatmul.bf16.gmra.mxu0 %v1460
    %v6596 = vpop.f32.mrf.mxu0
    %v6597 = vadd.f32 %v6508, %v6596
    %v6598 = vpop.f32.mrf.mxu0
    %v6599 = vadd.f32 %v6510, %v6598
    %6600 = vmatmul.bf16.gmra.mxu0 %v1466
    %v6601 = vpop.f32.mrf.mxu0
    %v6602 = vadd.f32 %v6513, %v6601
    %v6603 = vpop.f32.mrf.mxu0
    %v6604 = vadd.f32 %v6515, %v6603
    %6605 = vmatmul.bf16.gmra.mxu0 %v1472
    %v6606 = vpop.f32.mrf.mxu0
    %v6607 = vadd.f32 %v6518, %v6606
    %v6608 = vpop.f32.mrf.mxu0
    %v6609 = vadd.f32 %v6520, %v6608
    %6610 = vmatmul.bf16.gmra.mxu0 %v1478
    %v6611 = vpop.f32.mrf.mxu0
    %v6612 = vadd.f32 %v6523, %v6611
    %v6613 = vpop.f32.mrf.mxu0
    %v6614 = vadd.f32 %v6525, %v6613
    %6615 = vmatmul.bf16.gmra.mxu0 %v1484
    %v6616 = vpop.f32.mrf.mxu0
    %v6617 = vadd.f32 %v6528, %v6616
    %v6618 = vpop.f32.mrf.mxu0
    %v6619 = vadd.f32 %v6530, %v6618
    %6620 = vmatmul.bf16.gmra.mxu0 %v1490
    %v6621 = vpop.f32.mrf.mxu0
    %v6622 = vadd.f32 %v6533, %v6621
    %v6623 = vpop.f32.mrf.mxu0
    %v6624 = vadd.f32 %v6535, %v6623
    %6625 = vmatmul.bf16.gmra.mxu0 %v1496
    %v6626 = vpop.f32.mrf.mxu0
    %v6627 = vadd.f32 %v6538, %v6626
    %v6628 = vpop.f32.mrf.mxu0
    %v6629 = vadd.f32 %v6540, %v6628
    %6630 = vmatmul.bf16.gmra.mxu0 %v1502
    %v6631 = vpop.f32.mrf.mxu0
    %v6632 = vadd.f32 %v6543, %v6631
    %v6633 = vpop.f32.mrf.mxu0
    %v6634 = vadd.f32 %v6545, %v6633
    %6635 = vmatmul.bf16.gmra.mxu0 %v1508
    %v6636 = vpop.f32.mrf.mxu0
    %v6637 = vadd.f32 %v6548, %v6636
    %v6638 = vpop.f32.mrf.mxu0
    %v6639 = vadd.f32 %v6550, %v6638
    %6640 = vdwg.mxu0
    %6641 = vmatpush.bf16.msra.mxu0 %v3139
    %6642 = vmatpush.bf16.msra.mxu0 %v3131
    %6643 = vmatpush.bf16.msra.mxu0 %v3123
    %6644 = vmatpush.bf16.msra.mxu0 %v3115
    %6645 = vmatpush.bf16.msra.mxu0 %v3107
    %6646 = vmatpush.bf16.msra.mxu0 %v3099
    %6647 = vmatpush.bf16.msra.mxu0 %v3091
    %6648 = vmatpush.bf16.msra.mxu0 %v3083
    %6649 = vmatmul.bf16.gmra.mxu0 %v1419
    %v6650 = vpop.f32.mrf.mxu0
    %v6651 = vadd.f32 %v6562, %v6650
    %v6652 = vpop.f32.mrf.mxu0
    %v6653 = vadd.f32 %v6564, %v6652
    %6654 = vmatmul.bf16.gmra.mxu0 %v1425
    %v6655 = vpop.f32.mrf.mxu0
    %v6656 = vadd.f32 %v6567, %v6655
    %v6657 = vpop.f32.mrf.mxu0
    %v6658 = vadd.f32 %v6569, %v6657
    %6659 = vmatmul.bf16.gmra.mxu0 %v1431
    %v6660 = vpop.f32.mrf.mxu0
    %v6661 = vadd.f32 %v6572, %v6660
    %v6662 = vpop.f32.mrf.mxu0
    %v6663 = vadd.f32 %v6574, %v6662
    %6664 = vmatmul.bf16.gmra.mxu0 %v1437
    %v6665 = vpop.f32.mrf.mxu0
    %v6666 = vadd.f32 %v6577, %v6665
    %v6667 = vpop.f32.mrf.mxu0
    %v6668 = vadd.f32 %v6579, %v6667
    %6669 = vmatmul.bf16.gmra.mxu0 %v1443
    %v6670 = vpop.f32.mrf.mxu0
    %v6671 = vadd.f32 %v6582, %v6670
    %v6672 = vpop.f32.mrf.mxu0
    %v6673 = vadd.f32 %v6584, %v6672
    %6674 = vmatmul.bf16.gmra.mxu0 %v1449
    %v6675 = vpop.f32.mrf.mxu0
    %v6676 = vadd.f32 %v6587, %v6675
    %v6677 = vpop.f32.mrf.mxu0
    %v6678 = vadd.f32 %v6589, %v6677
    %6679 = vmatmul.bf16.gmra.mxu0 %v1455
    %v6680 = vpop.f32.mrf.mxu0
    %v6681 = vadd.f32 %v6592, %v6680
    %v6682 = vpop.f32.mrf.mxu0
    %v6683 = vadd.f32 %v6594, %v6682
    %6684 = vmatmul.bf16.gmra.mxu0 %v1461
    %v6685 = vpop.f32.mrf.mxu0
    %v6686 = vadd.f32 %v6597, %v6685
    %v6687 = vpop.f32.mrf.mxu0
    %v6688 = vadd.f32 %v6599, %v6687
    %6689 = vmatmul.bf16.gmra.mxu0 %v1467
    %v6690 = vpop.f32.mrf.mxu0
    %v6691 = vadd.f32 %v6602, %v6690
    %v6692 = vpop.f32.mrf.mxu0
    %v6693 = vadd.f32 %v6604, %v6692
    %6694 = vmatmul.bf16.gmra.mxu0 %v1473
    %v6695 = vpop.f32.mrf.mxu0
    %v6696 = vadd.f32 %v6607, %v6695
    %v6697 = vpop.f32.mrf.mxu0
    %v6698 = vadd.f32 %v6609, %v6697
    %6699 = vmatmul.bf16.gmra.mxu0 %v1479
    %v6700 = vpop.f32.mrf.mxu0
    %v6701 = vadd.f32 %v6612, %v6700
    %v6702 = vpop.f32.mrf.mxu0
    %v6703 = vadd.f32 %v6614, %v6702
    %6704 = vmatmul.bf16.gmra.mxu0 %v1485
    %v6705 = vpop.f32.mrf.mxu0
    %v6706 = vadd.f32 %v6617, %v6705
    %v6707 = vpop.f32.mrf.mxu0
    %v6708 = vadd.f32 %v6619, %v6707
    %6709 = vmatmul.bf16.gmra.mxu0 %v1491
    %v6710 = vpop.f32.mrf.mxu0
    %v6711 = vadd.f32 %v6622, %v6710
    %v6712 = vpop.f32.mrf.mxu0
    %v6713 = vadd.f32 %v6624, %v6712
    %6714 = vmatmul.bf16.gmra.mxu0 %v1497
    %v6715 = vpop.f32.mrf.mxu0
    %v6716 = vadd.f32 %v6627, %v6715
    %v6717 = vpop.f32.mrf.mxu0
    %v6718 = vadd.f32 %v6629, %v6717
    %6719 = vmatmul.bf16.gmra.mxu0 %v1503
    %v6720 = vpop.f32.mrf.mxu0
    %v6721 = vadd.f32 %v6632, %v6720
    %v6722 = vpop.f32.mrf.mxu0
    %v6723 = vadd.f32 %v6634, %v6722
    %6724 = vmatmul.bf16.gmra.mxu0 %v1509
    %v6725 = vpop.f32.mrf.mxu0
    %v6726 = vadd.f32 %v6637, %v6725
    %v6727 = vpop.f32.mrf.mxu0
    %v6728 = vadd.f32 %v6639, %v6727
    %6729 = vdwg.mxu0
    %6730 = vmatpush.bf16.msra.mxu0 %v2820
    %6731 = vmatpush.bf16.msra.mxu0 %v2812
    %6732 = vmatpush.bf16.msra.mxu0 %v2804
    %6733 = vmatpush.bf16.msra.mxu0 %v2796
    %6734 = vmatpush.bf16.msra.mxu0 %v2788
    %6735 = vmatpush.bf16.msra.mxu0 %v2780
    %6736 = vmatpush.bf16.msra.mxu0 %v2772
    %6737 = vmatpush.bf16.msra.mxu0 %v2764
    %6738 = vmatmul.bf16.gmra.mxu0 %v1414
    %v6739 = vpop.f32.mrf.mxu0
    %v6740 = vadd.f32 0.0, %v6739
    %v6741 = vpop.f32.mrf.mxu0
    %v6742 = vadd.f32 0.0, %v6741
    %6743 = vmatmul.bf16.gmra.mxu0 %v1420
    %v6744 = vpop.f32.mrf.mxu0
    %v6745 = vadd.f32 0.0, %v6744
    %v6746 = vpop.f32.mrf.mxu0
    %v6747 = vadd.f32 0.0, %v6746
    %6748 = vmatmul.bf16.gmra.mxu0 %v1426
    %v6749 = vpop.f32.mrf.mxu0
    %v6750 = vadd.f32 0.0, %v6749
    %v6751 = vpop.f32.mrf.mxu0
    %v6752 = vadd.f32 0.0, %v6751
    %6753 = vmatmul.bf16.gmra.mxu0 %v1432
    %v6754 = vpop.f32.mrf.mxu0
    %v6755 = vadd.f32 0.0, %v6754
    %v6756 = vpop.f32.mrf.mxu0
    %v6757 = vadd.f32 0.0, %v6756
    %6758 = vmatmul.bf16.gmra.mxu0 %v1438
    %v6759 = vpop.f32.mrf.mxu0
    %v6760 = vadd.f32 0.0, %v6759
    %v6761 = vpop.f32.mrf.mxu0
    %v6762 = vadd.f32 0.0, %v6761
    %6763 = vmatmul.bf16.gmra.mxu0 %v1444
    %v6764 = vpop.f32.mrf.mxu0
    %v6765 = vadd.f32 0.0, %v6764
    %v6766 = vpop.f32.mrf.mxu0
    %v6767 = vadd.f32 0.0, %v6766
    %6768 = vmatmul.bf16.gmra.mxu0 %v1450
    %v6769 = vpop.f32.mrf.mxu0
    %v6770 = vadd.f32 0.0, %v6769
    %v6771 = vpop.f32.mrf.mxu0
    %v6772 = vadd.f32 0.0, %v6771
    %6773 = vmatmul.bf16.gmra.mxu0 %v1456
    %v6774 = vpop.f32.mrf.mxu0
    %v6775 = vadd.f32 0.0, %v6774
    %v6776 = vpop.f32.mrf.mxu0
    %v6777 = vadd.f32 0.0, %v6776
    %6778 = vmatmul.bf16.gmra.mxu0 %v1462
    %v6779 = vpop.f32.mrf.mxu0
    %v6780 = vadd.f32 0.0, %v6779
    %v6781 = vpop.f32.mrf.mxu0
    %v6782 = vadd.f32 0.0, %v6781
    %6783 = vmatmul.bf16.gmra.mxu0 %v1468
    %v6784 = vpop.f32.mrf.mxu0
    %v6785 = vadd.f32 0.0, %v6784
    %v6786 = vpop.f32.mrf.mxu0
    %v6787 = vadd.f32 0.0, %v6786
    %6788 = vmatmul.bf16.gmra.mxu0 %v1474
    %v6789 = vpop.f32.mrf.mxu0
    %v6790 = vadd.f32 0.0, %v6789
    %v6791 = vpop.f32.mrf.mxu0
    %v6792 = vadd.f32 0.0, %v6791
    %6793 = vmatmul.bf16.gmra.mxu0 %v1480
    %v6794 = vpop.f32.mrf.mxu0
    %v6795 = vadd.f32 0.0, %v6794
    %v6796 = vpop.f32.mrf.mxu0
    %v6797 = vadd.f32 0.0, %v6796
    %6798 = vmatmul.bf16.gmra.mxu0 %v1486
    %v6799 = vpop.f32.mrf.mxu0
    %v6800 = vadd.f32 0.0, %v6799
    %v6801 = vpop.f32.mrf.mxu0
    %v6802 = vadd.f32 0.0, %v6801
    %6803 = vmatmul.bf16.gmra.mxu0 %v1492
    %v6804 = vpop.f32.mrf.mxu0
    %v6805 = vadd.f32 0.0, %v6804
    %v6806 = vpop.f32.mrf.mxu0
    %v6807 = vadd.f32 0.0, %v6806
    %6808 = vmatmul.bf16.gmra.mxu0 %v1498
    %v6809 = vpop.f32.mrf.mxu0
    %v6810 = vadd.f32 0.0, %v6809
    %v6811 = vpop.f32.mrf.mxu0
    %v6812 = vadd.f32 0.0, %v6811
    %6813 = vmatmul.bf16.gmra.mxu0 %v1504
    %v6814 = vpop.f32.mrf.mxu0
    %v6815 = vadd.f32 0.0, %v6814
    %v6816 = vpop.f32.mrf.mxu0
    %v6817 = vadd.f32 0.0, %v6816
    %6818 = vdwg.mxu0
    %6819 = vmatpush.bf16.msra.mxu0 %v2884
    %6820 = vmatpush.bf16.msra.mxu0 %v2876
    %6821 = vmatpush.bf16.msra.mxu0 %v2868
    %6822 = vmatpush.bf16.msra.mxu0 %v2860
    %6823 = vmatpush.bf16.msra.mxu0 %v2852
    %6824 = vmatpush.bf16.msra.mxu0 %v2844
    %6825 = vmatpush.bf16.msra.mxu0 %v2836
    %6826 = vmatpush.bf16.msra.mxu0 %v2828
    %6827 = vmatmul.bf16.gmra.mxu0 %v1415
    %v6828 = vpop.f32.mrf.mxu0
    %v6829 = vadd.f32 %v6740, %v6828
    %v6830 = vpop.f32.mrf.mxu0
    %v6831 = vadd.f32 %v6742, %v6830
    %6832 = vmatmul.bf16.gmra.mxu0 %v1421
    %v6833 = vpop.f32.mrf.mxu0
    %v6834 = vadd.f32 %v6745, %v6833
    %v6835 = vpop.f32.mrf.mxu0
    %v6836 = vadd.f32 %v6747, %v6835
    %6837 = vmatmul.bf16.gmra.mxu0 %v1427
    %v6838 = vpop.f32.mrf.mxu0
    %v6839 = vadd.f32 %v6750, %v6838
    %v6840 = vpop.f32.mrf.mxu0
    %v6841 = vadd.f32 %v6752, %v6840
    %6842 = vmatmul.bf16.gmra.mxu0 %v1433
    %v6843 = vpop.f32.mrf.mxu0
    %v6844 = vadd.f32 %v6755, %v6843
    %v6845 = vpop.f32.mrf.mxu0
    %v6846 = vadd.f32 %v6757, %v6845
    %6847 = vmatmul.bf16.gmra.mxu0 %v1439
    %v6848 = vpop.f32.mrf.mxu0
    %v6849 = vadd.f32 %v6760, %v6848
    %v6850 = vpop.f32.mrf.mxu0
    %v6851 = vadd.f32 %v6762, %v6850
    %6852 = vmatmul.bf16.gmra.mxu0 %v1445
    %v6853 = vpop.f32.mrf.mxu0
    %v6854 = vadd.f32 %v6765, %v6853
    %v6855 = vpop.f32.mrf.mxu0
    %v6856 = vadd.f32 %v6767, %v6855
    %6857 = vmatmul.bf16.gmra.mxu0 %v1451
    %v6858 = vpop.f32.mrf.mxu0
    %v6859 = vadd.f32 %v6770, %v6858
    %v6860 = vpop.f32.mrf.mxu0
    %v6861 = vadd.f32 %v6772, %v6860
    %6862 = vmatmul.bf16.gmra.mxu0 %v1457
    %v6863 = vpop.f32.mrf.mxu0
    %v6864 = vadd.f32 %v6775, %v6863
    %v6865 = vpop.f32.mrf.mxu0
    %v6866 = vadd.f32 %v6777, %v6865
    %6867 = vmatmul.bf16.gmra.mxu0 %v1463
    %v6868 = vpop.f32.mrf.mxu0
    %v6869 = vadd.f32 %v6780, %v6868
    %v6870 = vpop.f32.mrf.mxu0
    %v6871 = vadd.f32 %v6782, %v6870
    %6872 = vmatmul.bf16.gmra.mxu0 %v1469
    %v6873 = vpop.f32.mrf.mxu0
    %v6874 = vadd.f32 %v6785, %v6873
    %v6875 = vpop.f32.mrf.mxu0
    %v6876 = vadd.f32 %v6787, %v6875
    %6877 = vmatmul.bf16.gmra.mxu0 %v1475
    %v6878 = vpop.f32.mrf.mxu0
    %v6879 = vadd.f32 %v6790, %v6878
    %v6880 = vpop.f32.mrf.mxu0
    %v6881 = vadd.f32 %v6792, %v6880
    %6882 = vmatmul.bf16.gmra.mxu0 %v1481
    %v6883 = vpop.f32.mrf.mxu0
    %v6884 = vadd.f32 %v6795, %v6883
    %v6885 = vpop.f32.mrf.mxu0
    %v6886 = vadd.f32 %v6797, %v6885
    %6887 = vmatmul.bf16.gmra.mxu0 %v1487
    %v6888 = vpop.f32.mrf.mxu0
    %v6889 = vadd.f32 %v6800, %v6888
    %v6890 = vpop.f32.mrf.mxu0
    %v6891 = vadd.f32 %v6802, %v6890
    %6892 = vmatmul.bf16.gmra.mxu0 %v1493
    %v6893 = vpop.f32.mrf.mxu0
    %v6894 = vadd.f32 %v6805, %v6893
    %v6895 = vpop.f32.mrf.mxu0
    %v6896 = vadd.f32 %v6807, %v6895
    %6897 = vmatmul.bf16.gmra.mxu0 %v1499
    %v6898 = vpop.f32.mrf.mxu0
    %v6899 = vadd.f32 %v6810, %v6898
    %v6900 = vpop.f32.mrf.mxu0
    %v6901 = vadd.f32 %v6812, %v6900
    %6902 = vmatmul.bf16.gmra.mxu0 %v1505
    %v6903 = vpop.f32.mrf.mxu0
    %v6904 = vadd.f32 %v6815, %v6903
    %v6905 = vpop.f32.mrf.mxu0
    %v6906 = vadd.f32 %v6817, %v6905
    %6907 = vdwg.mxu0
    %6908 = vmatpush.bf16.msra.mxu0 %v2948
    %6909 = vmatpush.bf16.msra.mxu0 %v2940
    %6910 = vmatpush.bf16.msra.mxu0 %v2932
    %6911 = vmatpush.bf16.msra.mxu0 %v2924
    %6912 = vmatpush.bf16.msra.mxu0 %v2916
    %6913 = vmatpush.bf16.msra.mxu0 %v2908
    %6914 = vmatpush.bf16.msra.mxu0 %v2900
    %6915 = vmatpush.bf16.msra.mxu0 %v2892
    %6916 = vmatmul.bf16.gmra.mxu0 %v1416
    %v6917 = vpop.f32.mrf.mxu0
    %v6918 = vadd.f32 %v6829, %v6917
    %v6919 = vpop.f32.mrf.mxu0
    %v6920 = vadd.f32 %v6831, %v6919
    %6921 = vmatmul.bf16.gmra.mxu0 %v1422
    %v6922 = vpop.f32.mrf.mxu0
    %v6923 = vadd.f32 %v6834, %v6922
    %v6924 = vpop.f32.mrf.mxu0
    %v6925 = vadd.f32 %v6836, %v6924
    %6926 = vmatmul.bf16.gmra.mxu0 %v1428
    %v6927 = vpop.f32.mrf.mxu0
    %v6928 = vadd.f32 %v6839, %v6927
    %v6929 = vpop.f32.mrf.mxu0
    %v6930 = vadd.f32 %v6841, %v6929
    %6931 = vmatmul.bf16.gmra.mxu0 %v1434
    %v6932 = vpop.f32.mrf.mxu0
    %v6933 = vadd.f32 %v6844, %v6932
    %v6934 = vpop.f32.mrf.mxu0
    %v6935 = vadd.f32 %v6846, %v6934
    %6936 = vmatmul.bf16.gmra.mxu0 %v1440
    %v6937 = vpop.f32.mrf.mxu0
    %v6938 = vadd.f32 %v6849, %v6937
    %v6939 = vpop.f32.mrf.mxu0
    %v6940 = vadd.f32 %v6851, %v6939
    %6941 = vmatmul.bf16.gmra.mxu0 %v1446
    %v6942 = vpop.f32.mrf.mxu0
    %v6943 = vadd.f32 %v6854, %v6942
    %v6944 = vpop.f32.mrf.mxu0
    %v6945 = vadd.f32 %v6856, %v6944
    %6946 = vmatmul.bf16.gmra.mxu0 %v1452
    %v6947 = vpop.f32.mrf.mxu0
    %v6948 = vadd.f32 %v6859, %v6947
    %v6949 = vpop.f32.mrf.mxu0
    %v6950 = vadd.f32 %v6861, %v6949
    %6951 = vmatmul.bf16.gmra.mxu0 %v1458
    %v6952 = vpop.f32.mrf.mxu0
    %v6953 = vadd.f32 %v6864, %v6952
    %v6954 = vpop.f32.mrf.mxu0
    %v6955 = vadd.f32 %v6866, %v6954
    %6956 = vmatmul.bf16.gmra.mxu0 %v1464
    %v6957 = vpop.f32.mrf.mxu0
    %v6958 = vadd.f32 %v6869, %v6957
    %v6959 = vpop.f32.mrf.mxu0
    %v6960 = vadd.f32 %v6871, %v6959
    %6961 = vmatmul.bf16.gmra.mxu0 %v1470
    %v6962 = vpop.f32.mrf.mxu0
    %v6963 = vadd.f32 %v6874, %v6962
    %v6964 = vpop.f32.mrf.mxu0
    %v6965 = vadd.f32 %v6876, %v6964
    %6966 = vmatmul.bf16.gmra.mxu0 %v1476
    %v6967 = vpop.f32.mrf.mxu0
    %v6968 = vadd.f32 %v6879, %v6967
    %v6969 = vpop.f32.mrf.mxu0
    %v6970 = vadd.f32 %v6881, %v6969
    %6971 = vmatmul.bf16.gmra.mxu0 %v1482
    %v6972 = vpop.f32.mrf.mxu0
    %v6973 = vadd.f32 %v6884, %v6972
    %v6974 = vpop.f32.mrf.mxu0
    %v6975 = vadd.f32 %v6886, %v6974
    %6976 = vmatmul.bf16.gmra.mxu0 %v1488
    %v6977 = vpop.f32.mrf.mxu0
    %v6978 = vadd.f32 %v6889, %v6977
    %v6979 = vpop.f32.mrf.mxu0
    %v6980 = vadd.f32 %v6891, %v6979
    %6981 = vmatmul.bf16.gmra.mxu0 %v1494
    %v6982 = vpop.f32.mrf.mxu0
    %v6983 = vadd.f32 %v6894, %v6982
    %v6984 = vpop.f32.mrf.mxu0
    %v6985 = vadd.f32 %v6896, %v6984
    %6986 = vmatmul.bf16.gmra.mxu0 %v1500
    %v6987 = vpop.f32.mrf.mxu0
    %v6988 = vadd.f32 %v6899, %v6987
    %v6989 = vpop.f32.mrf.mxu0
    %v6990 = vadd.f32 %v6901, %v6989
    %6991 = vmatmul.bf16.gmra.mxu0 %v1506
    %v6992 = vpop.f32.mrf.mxu0
    %v6993 = vadd.f32 %v6904, %v6992
    %v6994 = vpop.f32.mrf.mxu0
    %v6995 = vadd.f32 %v6906, %v6994
    %6996 = vdwg.mxu0
    %6997 = vmatpush.bf16.msra.mxu0 %v3012
    %6998 = vmatpush.bf16.msra.mxu0 %v3004
    %6999 = vmatpush.bf16.msra.mxu0 %v2996
    %7000 = vmatpush.bf16.msra.mxu0 %v2988
    %7001 = vmatpush.bf16.msra.mxu0 %v2980
    %7002 = vmatpush.bf16.msra.mxu0 %v2972
    %7003 = vmatpush.bf16.msra.mxu0 %v2964
    %7004 = vmatpush.bf16.msra.mxu0 %v2956
    %7005 = vmatmul.bf16.gmra.mxu0 %v1417
    %v7006 = vpop.f32.mrf.mxu0
    %v7007 = vadd.f32 %v6918, %v7006
    %v7008 = vpop.f32.mrf.mxu0
    %v7009 = vadd.f32 %v6920, %v7008
    %7010 = vmatmul.bf16.gmra.mxu0 %v1423
    %v7011 = vpop.f32.mrf.mxu0
    %v7012 = vadd.f32 %v6923, %v7011
    %v7013 = vpop.f32.mrf.mxu0
    %v7014 = vadd.f32 %v6925, %v7013
    %7015 = vmatmul.bf16.gmra.mxu0 %v1429
    %v7016 = vpop.f32.mrf.mxu0
    %v7017 = vadd.f32 %v6928, %v7016
    %v7018 = vpop.f32.mrf.mxu0
    %v7019 = vadd.f32 %v6930, %v7018
    %7020 = vmatmul.bf16.gmra.mxu0 %v1435
    %v7021 = vpop.f32.mrf.mxu0
    %v7022 = vadd.f32 %v6933, %v7021
    %v7023 = vpop.f32.mrf.mxu0
    %v7024 = vadd.f32 %v6935, %v7023
    %7025 = vmatmul.bf16.gmra.mxu0 %v1441
    %v7026 = vpop.f32.mrf.mxu0
    %v7027 = vadd.f32 %v6938, %v7026
    %v7028 = vpop.f32.mrf.mxu0
    %v7029 = vadd.f32 %v6940, %v7028
    %7030 = vmatmul.bf16.gmra.mxu0 %v1447
    %v7031 = vpop.f32.mrf.mxu0
    %v7032 = vadd.f32 %v6943, %v7031
    %v7033 = vpop.f32.mrf.mxu0
    %v7034 = vadd.f32 %v6945, %v7033
    %7035 = vmatmul.bf16.gmra.mxu0 %v1453
    %v7036 = vpop.f32.mrf.mxu0
    %v7037 = vadd.f32 %v6948, %v7036
    %v7038 = vpop.f32.mrf.mxu0
    %v7039 = vadd.f32 %v6950, %v7038
    %7040 = vmatmul.bf16.gmra.mxu0 %v1459
    %v7041 = vpop.f32.mrf.mxu0
    %v7042 = vadd.f32 %v6953, %v7041
    %v7043 = vpop.f32.mrf.mxu0
    %v7044 = vadd.f32 %v6955, %v7043
    %7045 = vmatmul.bf16.gmra.mxu0 %v1465
    %v7046 = vpop.f32.mrf.mxu0
    %v7047 = vadd.f32 %v6958, %v7046
    %v7048 = vpop.f32.mrf.mxu0
    %v7049 = vadd.f32 %v6960, %v7048
    %7050 = vmatmul.bf16.gmra.mxu0 %v1471
    %v7051 = vpop.f32.mrf.mxu0
    %v7052 = vadd.f32 %v6963, %v7051
    %v7053 = vpop.f32.mrf.mxu0
    %v7054 = vadd.f32 %v6965, %v7053
    %7055 = vmatmul.bf16.gmra.mxu0 %v1477
    %v7056 = vpop.f32.mrf.mxu0
    %v7057 = vadd.f32 %v6968, %v7056
    %v7058 = vpop.f32.mrf.mxu0
    %v7059 = vadd.f32 %v6970, %v7058
    %7060 = vmatmul.bf16.gmra.mxu0 %v1483
    %v7061 = vpop.f32.mrf.mxu0
    %v7062 = vadd.f32 %v6973, %v7061
    %v7063 = vpop.f32.mrf.mxu0
    %v7064 = vadd.f32 %v6975, %v7063
    %7065 = vmatmul.bf16.gmra.mxu0 %v1489
    %v7066 = vpop.f32.mrf.mxu0
    %v7067 = vadd.f32 %v6978, %v7066
    %v7068 = vpop.f32.mrf.mxu0
    %v7069 = vadd.f32 %v6980, %v7068
    %7070 = vmatmul.bf16.gmra.mxu0 %v1495
    %v7071 = vpop.f32.mrf.mxu0
    %v7072 = vadd.f32 %v6983, %v7071
    %v7073 = vpop.f32.mrf.mxu0
    %v7074 = vadd.f32 %v6985, %v7073
    %7075 = vmatmul.bf16.gmra.mxu0 %v1501
    %v7076 = vpop.f32.mrf.mxu0
    %v7077 = vadd.f32 %v6988, %v7076
    %v7078 = vpop.f32.mrf.mxu0
    %v7079 = vadd.f32 %v6990, %v7078
    %7080 = vmatmul.bf16.gmra.mxu0 %v1507
    %v7081 = vpop.f32.mrf.mxu0
    %v7082 = vadd.f32 %v6993, %v7081
    %v7083 = vpop.f32.mrf.mxu0
    %v7084 = vadd.f32 %v6995, %v7083
    %7085 = vdwg.mxu0
    %7086 = vmatpush.bf16.msra.mxu0 %v3076
    %7087 = vmatpush.bf16.msra.mxu0 %v3068
    %7088 = vmatpush.bf16.msra.mxu0 %v3060
    %7089 = vmatpush.bf16.msra.mxu0 %v3052
    %7090 = vmatpush.bf16.msra.mxu0 %v3044
    %7091 = vmatpush.bf16.msra.mxu0 %v3036
    %7092 = vmatpush.bf16.msra.mxu0 %v3028
    %7093 = vmatpush.bf16.msra.mxu0 %v3020
    %7094 = vmatmul.bf16.gmra.mxu0 %v1418
    %v7095 = vpop.f32.mrf.mxu0
    %v7096 = vadd.f32 %v7007, %v7095
    %v7097 = vpop.f32.mrf.mxu0
    %v7098 = vadd.f32 %v7009, %v7097
    %7099 = vmatmul.bf16.gmra.mxu0 %v1424
    %v7100 = vpop.f32.mrf.mxu0
    %v7101 = vadd.f32 %v7012, %v7100
    %v7102 = vpop.f32.mrf.mxu0
    %v7103 = vadd.f32 %v7014, %v7102
    %7104 = vmatmul.bf16.gmra.mxu0 %v1430
    %v7105 = vpop.f32.mrf.mxu0
    %v7106 = vadd.f32 %v7017, %v7105
    %v7107 = vpop.f32.mrf.mxu0
    %v7108 = vadd.f32 %v7019, %v7107
    %7109 = vmatmul.bf16.gmra.mxu0 %v1436
    %v7110 = vpop.f32.mrf.mxu0
    %v7111 = vadd.f32 %v7022, %v7110
    %v7112 = vpop.f32.mrf.mxu0
    %v7113 = vadd.f32 %v7024, %v7112
    %7114 = vmatmul.bf16.gmra.mxu0 %v1442
    %v7115 = vpop.f32.mrf.mxu0
    %v7116 = vadd.f32 %v7027, %v7115
    %v7117 = vpop.f32.mrf.mxu0
    %v7118 = vadd.f32 %v7029, %v7117
    %7119 = vmatmul.bf16.gmra.mxu0 %v1448
    %v7120 = vpop.f32.mrf.mxu0
    %v7121 = vadd.f32 %v7032, %v7120
    %v7122 = vpop.f32.mrf.mxu0
    %v7123 = vadd.f32 %v7034, %v7122
    %7124 = vmatmul.bf16.gmra.mxu0 %v1454
    %v7125 = vpop.f32.mrf.mxu0
    %v7126 = vadd.f32 %v7037, %v7125
    %v7127 = vpop.f32.mrf.mxu0
    %v7128 = vadd.f32 %v7039, %v7127
    %7129 = vmatmul.bf16.gmra.mxu0 %v1460
    %v7130 = vpop.f32.mrf.mxu0
    %v7131 = vadd.f32 %v7042, %v7130
    %v7132 = vpop.f32.mrf.mxu0
    %v7133 = vadd.f32 %v7044, %v7132
    %7134 = vmatmul.bf16.gmra.mxu0 %v1466
    %v7135 = vpop.f32.mrf.mxu0
    %v7136 = vadd.f32 %v7047, %v7135
    %v7137 = vpop.f32.mrf.mxu0
    %v7138 = vadd.f32 %v7049, %v7137
    %7139 = vmatmul.bf16.gmra.mxu0 %v1472
    %v7140 = vpop.f32.mrf.mxu0
    %v7141 = vadd.f32 %v7052, %v7140
    %v7142 = vpop.f32.mrf.mxu0
    %v7143 = vadd.f32 %v7054, %v7142
    %7144 = vmatmul.bf16.gmra.mxu0 %v1478
    %v7145 = vpop.f32.mrf.mxu0
    %v7146 = vadd.f32 %v7057, %v7145
    %v7147 = vpop.f32.mrf.mxu0
    %v7148 = vadd.f32 %v7059, %v7147
    %7149 = vmatmul.bf16.gmra.mxu0 %v1484
    %v7150 = vpop.f32.mrf.mxu0
    %v7151 = vadd.f32 %v7062, %v7150
    %v7152 = vpop.f32.mrf.mxu0
    %v7153 = vadd.f32 %v7064, %v7152
    %7154 = vmatmul.bf16.gmra.mxu0 %v1490
    %v7155 = vpop.f32.mrf.mxu0
    %v7156 = vadd.f32 %v7067, %v7155
    %v7157 = vpop.f32.mrf.mxu0
    %v7158 = vadd.f32 %v7069, %v7157
    %7159 = vmatmul.bf16.gmra.mxu0 %v1496
    %v7160 = vpop.f32.mrf.mxu0
    %v7161 = vadd.f32 %v7072, %v7160
    %v7162 = vpop.f32.mrf.mxu0
    %v7163 = vadd.f32 %v7074, %v7162
    %7164 = vmatmul.bf16.gmra.mxu0 %v1502
    %v7165 = vpop.f32.mrf.mxu0
    %v7166 = vadd.f32 %v7077, %v7165
    %v7167 = vpop.f32.mrf.mxu0
    %v7168 = vadd.f32 %v7079, %v7167
    %7169 = vmatmul.bf16.gmra.mxu0 %v1508
    %v7170 = vpop.f32.mrf.mxu0
    %v7171 = vadd.f32 %v7082, %v7170
    %v7172 = vpop.f32.mrf.mxu0
    %v7173 = vadd.f32 %v7084, %v7172
    %7174 = vdwg.mxu0
    %7175 = vmatpush.bf16.msra.mxu0 %v3140
    %7176 = vmatpush.bf16.msra.mxu0 %v3132
    %7177 = vmatpush.bf16.msra.mxu0 %v3124
    %7178 = vmatpush.bf16.msra.mxu0 %v3116
    %7179 = vmatpush.bf16.msra.mxu0 %v3108
    %7180 = vmatpush.bf16.msra.mxu0 %v3100
    %7181 = vmatpush.bf16.msra.mxu0 %v3092
    %7182 = vmatpush.bf16.msra.mxu0 %v3084
    %7183 = vmatmul.bf16.gmra.mxu0 %v1419
    %v7184 = vpop.f32.mrf.mxu0
    %v7185 = vadd.f32 %v7096, %v7184
    %v7186 = vpop.f32.mrf.mxu0
    %v7187 = vadd.f32 %v7098, %v7186
    %7188 = vmatmul.bf16.gmra.mxu0 %v1425
    %v7189 = vpop.f32.mrf.mxu0
    %v7190 = vadd.f32 %v7101, %v7189
    %v7191 = vpop.f32.mrf.mxu0
    %v7192 = vadd.f32 %v7103, %v7191
    %7193 = vmatmul.bf16.gmra.mxu0 %v1431
    %v7194 = vpop.f32.mrf.mxu0
    %v7195 = vadd.f32 %v7106, %v7194
    %v7196 = vpop.f32.mrf.mxu0
    %v7197 = vadd.f32 %v7108, %v7196
    %7198 = vmatmul.bf16.gmra.mxu0 %v1437
    %v7199 = vpop.f32.mrf.mxu0
    %v7200 = vadd.f32 %v7111, %v7199
    %v7201 = vpop.f32.mrf.mxu0
    %v7202 = vadd.f32 %v7113, %v7201
    %7203 = vmatmul.bf16.gmra.mxu0 %v1443
    %v7204 = vpop.f32.mrf.mxu0
    %v7205 = vadd.f32 %v7116, %v7204
    %v7206 = vpop.f32.mrf.mxu0
    %v7207 = vadd.f32 %v7118, %v7206
    %7208 = vmatmul.bf16.gmra.mxu0 %v1449
    %v7209 = vpop.f32.mrf.mxu0
    %v7210 = vadd.f32 %v7121, %v7209
    %v7211 = vpop.f32.mrf.mxu0
    %v7212 = vadd.f32 %v7123, %v7211
    %7213 = vmatmul.bf16.gmra.mxu0 %v1455
    %v7214 = vpop.f32.mrf.mxu0
    %v7215 = vadd.f32 %v7126, %v7214
    %v7216 = vpop.f32.mrf.mxu0
    %v7217 = vadd.f32 %v7128, %v7216
    %7218 = vmatmul.bf16.gmra.mxu0 %v1461
    %v7219 = vpop.f32.mrf.mxu0
    %v7220 = vadd.f32 %v7131, %v7219
    %v7221 = vpop.f32.mrf.mxu0
    %v7222 = vadd.f32 %v7133, %v7221
    %7223 = vmatmul.bf16.gmra.mxu0 %v1467
    %v7224 = vpop.f32.mrf.mxu0
    %v7225 = vadd.f32 %v7136, %v7224
    %v7226 = vpop.f32.mrf.mxu0
    %v7227 = vadd.f32 %v7138, %v7226
    %7228 = vmatmul.bf16.gmra.mxu0 %v1473
    %v7229 = vpop.f32.mrf.mxu0
    %v7230 = vadd.f32 %v7141, %v7229
    %v7231 = vpop.f32.mrf.mxu0
    %v7232 = vadd.f32 %v7143, %v7231
    %7233 = vmatmul.bf16.gmra.mxu0 %v1479
    %v7234 = vpop.f32.mrf.mxu0
    %v7235 = vadd.f32 %v7146, %v7234
    %v7236 = vpop.f32.mrf.mxu0
    %v7237 = vadd.f32 %v7148, %v7236
    %7238 = vmatmul.bf16.gmra.mxu0 %v1485
    %v7239 = vpop.f32.mrf.mxu0
    %v7240 = vadd.f32 %v7151, %v7239
    %v7241 = vpop.f32.mrf.mxu0
    %v7242 = vadd.f32 %v7153, %v7241
    %7243 = vmatmul.bf16.gmra.mxu0 %v1491
    %v7244 = vpop.f32.mrf.mxu0
    %v7245 = vadd.f32 %v7156, %v7244
    %v7246 = vpop.f32.mrf.mxu0
    %v7247 = vadd.f32 %v7158, %v7246
    %7248 = vmatmul.bf16.gmra.mxu0 %v1497
    %v7249 = vpop.f32.mrf.mxu0
    %v7250 = vadd.f32 %v7161, %v7249
    %v7251 = vpop.f32.mrf.mxu0
    %v7252 = vadd.f32 %v7163, %v7251
    %7253 = vmatmul.bf16.gmra.mxu0 %v1503
    %v7254 = vpop.f32.mrf.mxu0
    %v7255 = vadd.f32 %v7166, %v7254
    %v7256 = vpop.f32.mrf.mxu0
    %v7257 = vadd.f32 %v7168, %v7256
    %7258 = vmatmul.bf16.gmra.mxu0 %v1509
    %v7259 = vpop.f32.mrf.mxu0
    %v7260 = vadd.f32 %v7171, %v7259
    %v7261 = vpop.f32.mrf.mxu0
    %v7262 = vadd.f32 %v7173, %v7261
    %7263 = vdwg.mxu0
    %7264 = vmatpush.bf16.msra.mxu0 %v2821
    %7265 = vmatpush.bf16.msra.mxu0 %v2813
    %7266 = vmatpush.bf16.msra.mxu0 %v2805
    %7267 = vmatpush.bf16.msra.mxu0 %v2797
    %7268 = vmatpush.bf16.msra.mxu0 %v2789
    %7269 = vmatpush.bf16.msra.mxu0 %v2781
    %7270 = vmatpush.bf16.msra.mxu0 %v2773
    %7271 = vmatpush.bf16.msra.mxu0 %v2765
    %7272 = vmatmul.bf16.gmra.mxu0 %v1414
    %v7273 = vpop.f32.mrf.mxu0
    %v7274 = vadd.f32 0.0, %v7273
    %v7275 = vpop.f32.mrf.mxu0
    %v7276 = vadd.f32 0.0, %v7275
    %7277 = vmatmul.bf16.gmra.mxu0 %v1420
    %v7278 = vpop.f32.mrf.mxu0
    %v7279 = vadd.f32 0.0, %v7278
    %v7280 = vpop.f32.mrf.mxu0
    %v7281 = vadd.f32 0.0, %v7280
    %7282 = vmatmul.bf16.gmra.mxu0 %v1426
    %v7283 = vpop.f32.mrf.mxu0
    %v7284 = vadd.f32 0.0, %v7283
    %v7285 = vpop.f32.mrf.mxu0
    %v7286 = vadd.f32 0.0, %v7285
    %7287 = vmatmul.bf16.gmra.mxu0 %v1432
    %v7288 = vpop.f32.mrf.mxu0
    %v7289 = vadd.f32 0.0, %v7288
    %v7290 = vpop.f32.mrf.mxu0
    %v7291 = vadd.f32 0.0, %v7290
    %7292 = vmatmul.bf16.gmra.mxu0 %v1438
    %v7293 = vpop.f32.mrf.mxu0
    %v7294 = vadd.f32 0.0, %v7293
    %v7295 = vpop.f32.mrf.mxu0
    %v7296 = vadd.f32 0.0, %v7295
    %7297 = vmatmul.bf16.gmra.mxu0 %v1444
    %v7298 = vpop.f32.mrf.mxu0
    %v7299 = vadd.f32 0.0, %v7298
    %v7300 = vpop.f32.mrf.mxu0
    %v7301 = vadd.f32 0.0, %v7300
    %7302 = vmatmul.bf16.gmra.mxu0 %v1450
    %v7303 = vpop.f32.mrf.mxu0
    %v7304 = vadd.f32 0.0, %v7303
    %v7305 = vpop.f32.mrf.mxu0
    %v7306 = vadd.f32 0.0, %v7305
    %7307 = vmatmul.bf16.gmra.mxu0 %v1456
    %v7308 = vpop.f32.mrf.mxu0
    %v7309 = vadd.f32 0.0, %v7308
    %v7310 = vpop.f32.mrf.mxu0
    %v7311 = vadd.f32 0.0, %v7310
    %7312 = vmatmul.bf16.gmra.mxu0 %v1462
    %v7313 = vpop.f32.mrf.mxu0
    %v7314 = vadd.f32 0.0, %v7313
    %v7315 = vpop.f32.mrf.mxu0
    %v7316 = vadd.f32 0.0, %v7315
    %7317 = vmatmul.bf16.gmra.mxu0 %v1468
    %v7318 = vpop.f32.mrf.mxu0
    %v7319 = vadd.f32 0.0, %v7318
    %v7320 = vpop.f32.mrf.mxu0
    %v7321 = vadd.f32 0.0, %v7320
    %7322 = vmatmul.bf16.gmra.mxu0 %v1474
    %v7323 = vpop.f32.mrf.mxu0
    %v7324 = vadd.f32 0.0, %v7323
    %v7325 = vpop.f32.mrf.mxu0
    %v7326 = vadd.f32 0.0, %v7325
    %7327 = vmatmul.bf16.gmra.mxu0 %v1480
    %v7328 = vpop.f32.mrf.mxu0
    %v7329 = vadd.f32 0.0, %v7328
    %v7330 = vpop.f32.mrf.mxu0
    %v7331 = vadd.f32 0.0, %v7330
    %7332 = vmatmul.bf16.gmra.mxu0 %v1486
    %v7333 = vpop.f32.mrf.mxu0
    %v7334 = vadd.f32 0.0, %v7333
    %v7335 = vpop.f32.mrf.mxu0
    %v7336 = vadd.f32 0.0, %v7335
    %7337 = vmatmul.bf16.gmra.mxu0 %v1492
    %v7338 = vpop.f32.mrf.mxu0
    %v7339 = vadd.f32 0.0, %v7338
    %v7340 = vpop.f32.mrf.mxu0
    %v7341 = vadd.f32 0.0, %v7340
    %7342 = vmatmul.bf16.gmra.mxu0 %v1498
    %v7343 = vpop.f32.mrf.mxu0
    %v7344 = vadd.f32 0.0, %v7343
    %v7345 = vpop.f32.mrf.mxu0
    %v7346 = vadd.f32 0.0, %v7345
    %7347 = vmatmul.bf16.gmra.mxu0 %v1504
    %v7348 = vpop.f32.mrf.mxu0
    %v7349 = vadd.f32 0.0, %v7348
    %v7350 = vpop.f32.mrf.mxu0
    %v7351 = vadd.f32 0.0, %v7350
    %7352 = vdwg.mxu0
    %7353 = vmatpush.bf16.msra.mxu0 %v2885
    %7354 = vmatpush.bf16.msra.mxu0 %v2877
    %7355 = vmatpush.bf16.msra.mxu0 %v2869
    %7356 = vmatpush.bf16.msra.mxu0 %v2861
    %7357 = vmatpush.bf16.msra.mxu0 %v2853
    %7358 = vmatpush.bf16.msra.mxu0 %v2845
    %7359 = vmatpush.bf16.msra.mxu0 %v2837
    %7360 = vmatpush.bf16.msra.mxu0 %v2829
    %7361 = vmatmul.bf16.gmra.mxu0 %v1415
    %v7362 = vpop.f32.mrf.mxu0
    %v7363 = vadd.f32 %v7274, %v7362
    %v7364 = vpop.f32.mrf.mxu0
    %v7365 = vadd.f32 %v7276, %v7364
    %7366 = vmatmul.bf16.gmra.mxu0 %v1421
    %v7367 = vpop.f32.mrf.mxu0
    %v7368 = vadd.f32 %v7279, %v7367
    %v7369 = vpop.f32.mrf.mxu0
    %v7370 = vadd.f32 %v7281, %v7369
    %7371 = vmatmul.bf16.gmra.mxu0 %v1427
    %v7372 = vpop.f32.mrf.mxu0
    %v7373 = vadd.f32 %v7284, %v7372
    %v7374 = vpop.f32.mrf.mxu0
    %v7375 = vadd.f32 %v7286, %v7374
    %7376 = vmatmul.bf16.gmra.mxu0 %v1433
    %v7377 = vpop.f32.mrf.mxu0
    %v7378 = vadd.f32 %v7289, %v7377
    %v7379 = vpop.f32.mrf.mxu0
    %v7380 = vadd.f32 %v7291, %v7379
    %7381 = vmatmul.bf16.gmra.mxu0 %v1439
    %v7382 = vpop.f32.mrf.mxu0
    %v7383 = vadd.f32 %v7294, %v7382
    %v7384 = vpop.f32.mrf.mxu0
    %v7385 = vadd.f32 %v7296, %v7384
    %7386 = vmatmul.bf16.gmra.mxu0 %v1445
    %v7387 = vpop.f32.mrf.mxu0
    %v7388 = vadd.f32 %v7299, %v7387
    %v7389 = vpop.f32.mrf.mxu0
    %v7390 = vadd.f32 %v7301, %v7389
    %7391 = vmatmul.bf16.gmra.mxu0 %v1451
    %v7392 = vpop.f32.mrf.mxu0
    %v7393 = vadd.f32 %v7304, %v7392
    %v7394 = vpop.f32.mrf.mxu0
    %v7395 = vadd.f32 %v7306, %v7394
    %7396 = vmatmul.bf16.gmra.mxu0 %v1457
    %v7397 = vpop.f32.mrf.mxu0
    %v7398 = vadd.f32 %v7309, %v7397
    %v7399 = vpop.f32.mrf.mxu0
    %v7400 = vadd.f32 %v7311, %v7399
    %7401 = vmatmul.bf16.gmra.mxu0 %v1463
    %v7402 = vpop.f32.mrf.mxu0
    %v7403 = vadd.f32 %v7314, %v7402
    %v7404 = vpop.f32.mrf.mxu0
    %v7405 = vadd.f32 %v7316, %v7404
    %7406 = vmatmul.bf16.gmra.mxu0 %v1469
    %v7407 = vpop.f32.mrf.mxu0
    %v7408 = vadd.f32 %v7319, %v7407
    %v7409 = vpop.f32.mrf.mxu0
    %v7410 = vadd.f32 %v7321, %v7409
    %7411 = vmatmul.bf16.gmra.mxu0 %v1475
    %v7412 = vpop.f32.mrf.mxu0
    %v7413 = vadd.f32 %v7324, %v7412
    %v7414 = vpop.f32.mrf.mxu0
    %v7415 = vadd.f32 %v7326, %v7414
    %7416 = vmatmul.bf16.gmra.mxu0 %v1481
    %v7417 = vpop.f32.mrf.mxu0
    %v7418 = vadd.f32 %v7329, %v7417
    %v7419 = vpop.f32.mrf.mxu0
    %v7420 = vadd.f32 %v7331, %v7419
    %7421 = vmatmul.bf16.gmra.mxu0 %v1487
    %v7422 = vpop.f32.mrf.mxu0
    %v7423 = vadd.f32 %v7334, %v7422
    %v7424 = vpop.f32.mrf.mxu0
    %v7425 = vadd.f32 %v7336, %v7424
    %7426 = vmatmul.bf16.gmra.mxu0 %v1493
    %v7427 = vpop.f32.mrf.mxu0
    %v7428 = vadd.f32 %v7339, %v7427
    %v7429 = vpop.f32.mrf.mxu0
    %v7430 = vadd.f32 %v7341, %v7429
    %7431 = vmatmul.bf16.gmra.mxu0 %v1499
    %v7432 = vpop.f32.mrf.mxu0
    %v7433 = vadd.f32 %v7344, %v7432
    %v7434 = vpop.f32.mrf.mxu0
    %v7435 = vadd.f32 %v7346, %v7434
    %7436 = vmatmul.bf16.gmra.mxu0 %v1505
    %v7437 = vpop.f32.mrf.mxu0
    %v7438 = vadd.f32 %v7349, %v7437
    %v7439 = vpop.f32.mrf.mxu0
    %v7440 = vadd.f32 %v7351, %v7439
    %7441 = vdwg.mxu0
    %7442 = vmatpush.bf16.msra.mxu0 %v2949
    %7443 = vmatpush.bf16.msra.mxu0 %v2941
    %7444 = vmatpush.bf16.msra.mxu0 %v2933
    %7445 = vmatpush.bf16.msra.mxu0 %v2925
    %7446 = vmatpush.bf16.msra.mxu0 %v2917
    %7447 = vmatpush.bf16.msra.mxu0 %v2909
    %7448 = vmatpush.bf16.msra.mxu0 %v2901
    %7449 = vmatpush.bf16.msra.mxu0 %v2893
    %7450 = vmatmul.bf16.gmra.mxu0 %v1416
    %v7451 = vpop.f32.mrf.mxu0
    %v7452 = vadd.f32 %v7363, %v7451
    %v7453 = vpop.f32.mrf.mxu0
    %v7454 = vadd.f32 %v7365, %v7453
    %7455 = vmatmul.bf16.gmra.mxu0 %v1422
    %v7456 = vpop.f32.mrf.mxu0
    %v7457 = vadd.f32 %v7368, %v7456
    %v7458 = vpop.f32.mrf.mxu0
    %v7459 = vadd.f32 %v7370, %v7458
    %7460 = vmatmul.bf16.gmra.mxu0 %v1428
    %v7461 = vpop.f32.mrf.mxu0
    %v7462 = vadd.f32 %v7373, %v7461
    %v7463 = vpop.f32.mrf.mxu0
    %v7464 = vadd.f32 %v7375, %v7463
    %7465 = vmatmul.bf16.gmra.mxu0 %v1434
    %v7466 = vpop.f32.mrf.mxu0
    %v7467 = vadd.f32 %v7378, %v7466
    %v7468 = vpop.f32.mrf.mxu0
    %v7469 = vadd.f32 %v7380, %v7468
    %7470 = vmatmul.bf16.gmra.mxu0 %v1440
    %v7471 = vpop.f32.mrf.mxu0
    %v7472 = vadd.f32 %v7383, %v7471
    %v7473 = vpop.f32.mrf.mxu0
    %v7474 = vadd.f32 %v7385, %v7473
    %7475 = vmatmul.bf16.gmra.mxu0 %v1446
    %v7476 = vpop.f32.mrf.mxu0
    %v7477 = vadd.f32 %v7388, %v7476
    %v7478 = vpop.f32.mrf.mxu0
    %v7479 = vadd.f32 %v7390, %v7478
    %7480 = vmatmul.bf16.gmra.mxu0 %v1452
    %v7481 = vpop.f32.mrf.mxu0
    %v7482 = vadd.f32 %v7393, %v7481
    %v7483 = vpop.f32.mrf.mxu0
    %v7484 = vadd.f32 %v7395, %v7483
    %7485 = vmatmul.bf16.gmra.mxu0 %v1458
    %v7486 = vpop.f32.mrf.mxu0
    %v7487 = vadd.f32 %v7398, %v7486
    %v7488 = vpop.f32.mrf.mxu0
    %v7489 = vadd.f32 %v7400, %v7488
    %7490 = vmatmul.bf16.gmra.mxu0 %v1464
    %v7491 = vpop.f32.mrf.mxu0
    %v7492 = vadd.f32 %v7403, %v7491
    %v7493 = vpop.f32.mrf.mxu0
    %v7494 = vadd.f32 %v7405, %v7493
    %7495 = vmatmul.bf16.gmra.mxu0 %v1470
    %v7496 = vpop.f32.mrf.mxu0
    %v7497 = vadd.f32 %v7408, %v7496
    %v7498 = vpop.f32.mrf.mxu0
    %v7499 = vadd.f32 %v7410, %v7498
    %7500 = vmatmul.bf16.gmra.mxu0 %v1476
    %v7501 = vpop.f32.mrf.mxu0
    %v7502 = vadd.f32 %v7413, %v7501
    %v7503 = vpop.f32.mrf.mxu0
    %v7504 = vadd.f32 %v7415, %v7503
    %7505 = vmatmul.bf16.gmra.mxu0 %v1482
    %v7506 = vpop.f32.mrf.mxu0
    %v7507 = vadd.f32 %v7418, %v7506
    %v7508 = vpop.f32.mrf.mxu0
    %v7509 = vadd.f32 %v7420, %v7508
    %7510 = vmatmul.bf16.gmra.mxu0 %v1488
    %v7511 = vpop.f32.mrf.mxu0
    %v7512 = vadd.f32 %v7423, %v7511
    %v7513 = vpop.f32.mrf.mxu0
    %v7514 = vadd.f32 %v7425, %v7513
    %7515 = vmatmul.bf16.gmra.mxu0 %v1494
    %v7516 = vpop.f32.mrf.mxu0
    %v7517 = vadd.f32 %v7428, %v7516
    %v7518 = vpop.f32.mrf.mxu0
    %v7519 = vadd.f32 %v7430, %v7518
    %7520 = vmatmul.bf16.gmra.mxu0 %v1500
    %v7521 = vpop.f32.mrf.mxu0
    %v7522 = vadd.f32 %v7433, %v7521
    %v7523 = vpop.f32.mrf.mxu0
    %v7524 = vadd.f32 %v7435, %v7523
    %7525 = vmatmul.bf16.gmra.mxu0 %v1506
    %v7526 = vpop.f32.mrf.mxu0
    %v7527 = vadd.f32 %v7438, %v7526
    %v7528 = vpop.f32.mrf.mxu0
    %v7529 = vadd.f32 %v7440, %v7528
    %7530 = vdwg.mxu0
    %7531 = vmatpush.bf16.msra.mxu0 %v3013
    %7532 = vmatpush.bf16.msra.mxu0 %v3005
    %7533 = vmatpush.bf16.msra.mxu0 %v2997
    %7534 = vmatpush.bf16.msra.mxu0 %v2989
    %7535 = vmatpush.bf16.msra.mxu0 %v2981
    %7536 = vmatpush.bf16.msra.mxu0 %v2973
    %7537 = vmatpush.bf16.msra.mxu0 %v2965
    %7538 = vmatpush.bf16.msra.mxu0 %v2957
    %7539 = vmatmul.bf16.gmra.mxu0 %v1417
    %v7540 = vpop.f32.mrf.mxu0
    %v7541 = vadd.f32 %v7452, %v7540
    %v7542 = vpop.f32.mrf.mxu0
    %v7543 = vadd.f32 %v7454, %v7542
    %7544 = vmatmul.bf16.gmra.mxu0 %v1423
    %v7545 = vpop.f32.mrf.mxu0
    %v7546 = vadd.f32 %v7457, %v7545
    %v7547 = vpop.f32.mrf.mxu0
    %v7548 = vadd.f32 %v7459, %v7547
    %7549 = vmatmul.bf16.gmra.mxu0 %v1429
    %v7550 = vpop.f32.mrf.mxu0
    %v7551 = vadd.f32 %v7462, %v7550
    %v7552 = vpop.f32.mrf.mxu0
    %v7553 = vadd.f32 %v7464, %v7552
    %7554 = vmatmul.bf16.gmra.mxu0 %v1435
    %v7555 = vpop.f32.mrf.mxu0
    %v7556 = vadd.f32 %v7467, %v7555
    %v7557 = vpop.f32.mrf.mxu0
    %v7558 = vadd.f32 %v7469, %v7557
    %7559 = vmatmul.bf16.gmra.mxu0 %v1441
    %v7560 = vpop.f32.mrf.mxu0
    %v7561 = vadd.f32 %v7472, %v7560
    %v7562 = vpop.f32.mrf.mxu0
    %v7563 = vadd.f32 %v7474, %v7562
    %7564 = vmatmul.bf16.gmra.mxu0 %v1447
    %v7565 = vpop.f32.mrf.mxu0
    %v7566 = vadd.f32 %v7477, %v7565
    %v7567 = vpop.f32.mrf.mxu0
    %v7568 = vadd.f32 %v7479, %v7567
    %7569 = vmatmul.bf16.gmra.mxu0 %v1453
    %v7570 = vpop.f32.mrf.mxu0
    %v7571 = vadd.f32 %v7482, %v7570
    %v7572 = vpop.f32.mrf.mxu0
    %v7573 = vadd.f32 %v7484, %v7572
    %7574 = vmatmul.bf16.gmra.mxu0 %v1459
    %v7575 = vpop.f32.mrf.mxu0
    %v7576 = vadd.f32 %v7487, %v7575
    %v7577 = vpop.f32.mrf.mxu0
    %v7578 = vadd.f32 %v7489, %v7577
    %7579 = vmatmul.bf16.gmra.mxu0 %v1465
    %v7580 = vpop.f32.mrf.mxu0
    %v7581 = vadd.f32 %v7492, %v7580
    %v7582 = vpop.f32.mrf.mxu0
    %v7583 = vadd.f32 %v7494, %v7582
    %7584 = vmatmul.bf16.gmra.mxu0 %v1471
    %v7585 = vpop.f32.mrf.mxu0
    %v7586 = vadd.f32 %v7497, %v7585
    %v7587 = vpop.f32.mrf.mxu0
    %v7588 = vadd.f32 %v7499, %v7587
    %7589 = vmatmul.bf16.gmra.mxu0 %v1477
    %v7590 = vpop.f32.mrf.mxu0
    %v7591 = vadd.f32 %v7502, %v7590
    %v7592 = vpop.f32.mrf.mxu0
    %v7593 = vadd.f32 %v7504, %v7592
    %7594 = vmatmul.bf16.gmra.mxu0 %v1483
    %v7595 = vpop.f32.mrf.mxu0
    %v7596 = vadd.f32 %v7507, %v7595
    %v7597 = vpop.f32.mrf.mxu0
    %v7598 = vadd.f32 %v7509, %v7597
    %7599 = vmatmul.bf16.gmra.mxu0 %v1489
    %v7600 = vpop.f32.mrf.mxu0
    %v7601 = vadd.f32 %v7512, %v7600
    %v7602 = vpop.f32.mrf.mxu0
    %v7603 = vadd.f32 %v7514, %v7602
    %7604 = vmatmul.bf16.gmra.mxu0 %v1495
    %v7605 = vpop.f32.mrf.mxu0
    %v7606 = vadd.f32 %v7517, %v7605
    %v7607 = vpop.f32.mrf.mxu0
    %v7608 = vadd.f32 %v7519, %v7607
    %7609 = vmatmul.bf16.gmra.mxu0 %v1501
    %v7610 = vpop.f32.mrf.mxu0
    %v7611 = vadd.f32 %v7522, %v7610
    %v7612 = vpop.f32.mrf.mxu0
    %v7613 = vadd.f32 %v7524, %v7612
    %7614 = vmatmul.bf16.gmra.mxu0 %v1507
    %v7615 = vpop.f32.mrf.mxu0
    %v7616 = vadd.f32 %v7527, %v7615
    %v7617 = vpop.f32.mrf.mxu0
    %v7618 = vadd.f32 %v7529, %v7617
    %7619 = vdwg.mxu0
    %7620 = vmatpush.bf16.msra.mxu0 %v3077
    %7621 = vmatpush.bf16.msra.mxu0 %v3069
    %7622 = vmatpush.bf16.msra.mxu0 %v3061
    %7623 = vmatpush.bf16.msra.mxu0 %v3053
    %7624 = vmatpush.bf16.msra.mxu0 %v3045
    %7625 = vmatpush.bf16.msra.mxu0 %v3037
    %7626 = vmatpush.bf16.msra.mxu0 %v3029
    %7627 = vmatpush.bf16.msra.mxu0 %v3021
    %7628 = vmatmul.bf16.gmra.mxu0 %v1418
    %v7629 = vpop.f32.mrf.mxu0
    %v7630 = vadd.f32 %v7541, %v7629
    %v7631 = vpop.f32.mrf.mxu0
    %v7632 = vadd.f32 %v7543, %v7631
    %7633 = vmatmul.bf16.gmra.mxu0 %v1424
    %v7634 = vpop.f32.mrf.mxu0
    %v7635 = vadd.f32 %v7546, %v7634
    %v7636 = vpop.f32.mrf.mxu0
    %v7637 = vadd.f32 %v7548, %v7636
    %7638 = vmatmul.bf16.gmra.mxu0 %v1430
    %v7639 = vpop.f32.mrf.mxu0
    %v7640 = vadd.f32 %v7551, %v7639
    %v7641 = vpop.f32.mrf.mxu0
    %v7642 = vadd.f32 %v7553, %v7641
    %7643 = vmatmul.bf16.gmra.mxu0 %v1436
    %v7644 = vpop.f32.mrf.mxu0
    %v7645 = vadd.f32 %v7556, %v7644
    %v7646 = vpop.f32.mrf.mxu0
    %v7647 = vadd.f32 %v7558, %v7646
    %7648 = vmatmul.bf16.gmra.mxu0 %v1442
    %v7649 = vpop.f32.mrf.mxu0
    %v7650 = vadd.f32 %v7561, %v7649
    %v7651 = vpop.f32.mrf.mxu0
    %v7652 = vadd.f32 %v7563, %v7651
    %7653 = vmatmul.bf16.gmra.mxu0 %v1448
    %v7654 = vpop.f32.mrf.mxu0
    %v7655 = vadd.f32 %v7566, %v7654
    %v7656 = vpop.f32.mrf.mxu0
    %v7657 = vadd.f32 %v7568, %v7656
    %7658 = vmatmul.bf16.gmra.mxu0 %v1454
    %v7659 = vpop.f32.mrf.mxu0
    %v7660 = vadd.f32 %v7571, %v7659
    %v7661 = vpop.f32.mrf.mxu0
    %v7662 = vadd.f32 %v7573, %v7661
    %7663 = vmatmul.bf16.gmra.mxu0 %v1460
    %v7664 = vpop.f32.mrf.mxu0
    %v7665 = vadd.f32 %v7576, %v7664
    %v7666 = vpop.f32.mrf.mxu0
    %v7667 = vadd.f32 %v7578, %v7666
    %7668 = vmatmul.bf16.gmra.mxu0 %v1466
    %v7669 = vpop.f32.mrf.mxu0
    %v7670 = vadd.f32 %v7581, %v7669
    %v7671 = vpop.f32.mrf.mxu0
    %v7672 = vadd.f32 %v7583, %v7671
    %7673 = vmatmul.bf16.gmra.mxu0 %v1472
    %v7674 = vpop.f32.mrf.mxu0
    %v7675 = vadd.f32 %v7586, %v7674
    %v7676 = vpop.f32.mrf.mxu0
    %v7677 = vadd.f32 %v7588, %v7676
    %7678 = vmatmul.bf16.gmra.mxu0 %v1478
    %v7679 = vpop.f32.mrf.mxu0
    %v7680 = vadd.f32 %v7591, %v7679
    %v7681 = vpop.f32.mrf.mxu0
    %v7682 = vadd.f32 %v7593, %v7681
    %7683 = vmatmul.bf16.gmra.mxu0 %v1484
    %v7684 = vpop.f32.mrf.mxu0
    %v7685 = vadd.f32 %v7596, %v7684
    %v7686 = vpop.f32.mrf.mxu0
    %v7687 = vadd.f32 %v7598, %v7686
    %7688 = vmatmul.bf16.gmra.mxu0 %v1490
    %v7689 = vpop.f32.mrf.mxu0
    %v7690 = vadd.f32 %v7601, %v7689
    %v7691 = vpop.f32.mrf.mxu0
    %v7692 = vadd.f32 %v7603, %v7691
    %7693 = vmatmul.bf16.gmra.mxu0 %v1496
    %v7694 = vpop.f32.mrf.mxu0
    %v7695 = vadd.f32 %v7606, %v7694
    %v7696 = vpop.f32.mrf.mxu0
    %v7697 = vadd.f32 %v7608, %v7696
    %7698 = vmatmul.bf16.gmra.mxu0 %v1502
    %v7699 = vpop.f32.mrf.mxu0
    %v7700 = vadd.f32 %v7611, %v7699
    %v7701 = vpop.f32.mrf.mxu0
    %v7702 = vadd.f32 %v7613, %v7701
    %7703 = vmatmul.bf16.gmra.mxu0 %v1508
    %v7704 = vpop.f32.mrf.mxu0
    %v7705 = vadd.f32 %v7616, %v7704
    %v7706 = vpop.f32.mrf.mxu0
    %v7707 = vadd.f32 %v7618, %v7706
    %7708 = vdwg.mxu0
    %7709 = vmatpush.bf16.msra.mxu0 %v3141
    %7710 = vmatpush.bf16.msra.mxu0 %v3133
    %7711 = vmatpush.bf16.msra.mxu0 %v3125
    %7712 = vmatpush.bf16.msra.mxu0 %v3117
    %7713 = vmatpush.bf16.msra.mxu0 %v3109
    %7714 = vmatpush.bf16.msra.mxu0 %v3101
    %7715 = vmatpush.bf16.msra.mxu0 %v3093
    %7716 = vmatpush.bf16.msra.mxu0 %v3085
    %7717 = vmatmul.bf16.gmra.mxu0 %v1419
    %v7718 = vpop.f32.mrf.mxu0
    %v7719 = vadd.f32 %v7630, %v7718
    %v7720 = vpop.f32.mrf.mxu0
    %v7721 = vadd.f32 %v7632, %v7720
    %7722 = vmatmul.bf16.gmra.mxu0 %v1425
    %v7723 = vpop.f32.mrf.mxu0
    %v7724 = vadd.f32 %v7635, %v7723
    %v7725 = vpop.f32.mrf.mxu0
    %v7726 = vadd.f32 %v7637, %v7725
    %7727 = vmatmul.bf16.gmra.mxu0 %v1431
    %v7728 = vpop.f32.mrf.mxu0
    %v7729 = vadd.f32 %v7640, %v7728
    %v7730 = vpop.f32.mrf.mxu0
    %v7731 = vadd.f32 %v7642, %v7730
    %7732 = vmatmul.bf16.gmra.mxu0 %v1437
    %v7733 = vpop.f32.mrf.mxu0
    %v7734 = vadd.f32 %v7645, %v7733
    %v7735 = vpop.f32.mrf.mxu0
    %v7736 = vadd.f32 %v7647, %v7735
    %7737 = vmatmul.bf16.gmra.mxu0 %v1443
    %v7738 = vpop.f32.mrf.mxu0
    %v7739 = vadd.f32 %v7650, %v7738
    %v7740 = vpop.f32.mrf.mxu0
    %v7741 = vadd.f32 %v7652, %v7740
    %7742 = vmatmul.bf16.gmra.mxu0 %v1449
    %v7743 = vpop.f32.mrf.mxu0
    %v7744 = vadd.f32 %v7655, %v7743
    %v7745 = vpop.f32.mrf.mxu0
    %v7746 = vadd.f32 %v7657, %v7745
    %7747 = vmatmul.bf16.gmra.mxu0 %v1455
    %v7748 = vpop.f32.mrf.mxu0
    %v7749 = vadd.f32 %v7660, %v7748
    %v7750 = vpop.f32.mrf.mxu0
    %v7751 = vadd.f32 %v7662, %v7750
    %7752 = vmatmul.bf16.gmra.mxu0 %v1461
    %v7753 = vpop.f32.mrf.mxu0
    %v7754 = vadd.f32 %v7665, %v7753
    %v7755 = vpop.f32.mrf.mxu0
    %v7756 = vadd.f32 %v7667, %v7755
    %7757 = vmatmul.bf16.gmra.mxu0 %v1467
    %v7758 = vpop.f32.mrf.mxu0
    %v7759 = vadd.f32 %v7670, %v7758
    %v7760 = vpop.f32.mrf.mxu0
    %v7761 = vadd.f32 %v7672, %v7760
    %7762 = vmatmul.bf16.gmra.mxu0 %v1473
    %v7763 = vpop.f32.mrf.mxu0
    %v7764 = vadd.f32 %v7675, %v7763
    %v7765 = vpop.f32.mrf.mxu0
    %v7766 = vadd.f32 %v7677, %v7765
    %7767 = vmatmul.bf16.gmra.mxu0 %v1479
    %v7768 = vpop.f32.mrf.mxu0
    %v7769 = vadd.f32 %v7680, %v7768
    %v7770 = vpop.f32.mrf.mxu0
    %v7771 = vadd.f32 %v7682, %v7770
    %7772 = vmatmul.bf16.gmra.mxu0 %v1485
    %v7773 = vpop.f32.mrf.mxu0
    %v7774 = vadd.f32 %v7685, %v7773
    %v7775 = vpop.f32.mrf.mxu0
    %v7776 = vadd.f32 %v7687, %v7775
    %7777 = vmatmul.bf16.gmra.mxu0 %v1491
    %v7778 = vpop.f32.mrf.mxu0
    %v7779 = vadd.f32 %v7690, %v7778
    %v7780 = vpop.f32.mrf.mxu0
    %v7781 = vadd.f32 %v7692, %v7780
    %7782 = vmatmul.bf16.gmra.mxu0 %v1497
    %v7783 = vpop.f32.mrf.mxu0
    %v7784 = vadd.f32 %v7695, %v7783
    %v7785 = vpop.f32.mrf.mxu0
    %v7786 = vadd.f32 %v7697, %v7785
    %7787 = vmatmul.bf16.gmra.mxu0 %v1503
    %v7788 = vpop.f32.mrf.mxu0
    %v7789 = vadd.f32 %v7700, %v7788
    %v7790 = vpop.f32.mrf.mxu0
    %v7791 = vadd.f32 %v7702, %v7790
    %7792 = vmatmul.bf16.gmra.mxu0 %v1509
    %v7793 = vpop.f32.mrf.mxu0
    %v7794 = vadd.f32 %v7705, %v7793
    %v7795 = vpop.f32.mrf.mxu0
    %v7796 = vadd.f32 %v7707, %v7795
    %7797 = vdwg.mxu0
    %v7798 = vadd.f32 %v390, %v3981
    %v7799 = vadd.f32 %v391, %v4515
    %v7800 = vadd.f32 %v392, %v5049
    %v7801 = vadd.f32 %v393, %v5583
    %v7802 = vadd.f32 %v394, %v6117
    %v7803 = vadd.f32 %v395, %v6651
    %v7804 = vadd.f32 %v396, %v7185
    %v7805 = vadd.f32 %v397, %v7719
    %v7806 = vadd.f32 %v398, %v3983
    %v7807 = vadd.f32 %v399, %v4517
    %v7808 = vadd.f32 %v400, %v5051
    %v7809 = vadd.f32 %v401, %v5585
    %v7810 = vadd.f32 %v402, %v6119
    %v7811 = vadd.f32 %v403, %v6653
    %v7812 = vadd.f32 %v404, %v7187
    %v7813 = vadd.f32 %v405, %v7721
    %v7814 = vadd.f32 %v406, %v3986
    %v7815 = vadd.f32 %v407, %v4520
    %v7816 = vadd.f32 %v408, %v5054
    %v7817 = vadd.f32 %v409, %v5588
    %v7818 = vadd.f32 %v410, %v6122
    %v7819 = vadd.f32 %v411, %v6656
    %v7820 = vadd.f32 %v412, %v7190
    %v7821 = vadd.f32 %v413, %v7724
    %v7822 = vadd.f32 %v414, %v3988
    %v7823 = vadd.f32 %v415, %v4522
    %v7824 = vadd.f32 %v416, %v5056
    %v7825 = vadd.f32 %v417, %v5590
    %v7826 = vadd.f32 %v418, %v6124
    %v7827 = vadd.f32 %v419, %v6658
    %v7828 = vadd.f32 %v420, %v7192
    %v7829 = vadd.f32 %v421, %v7726
    %v7830 = vadd.f32 %v422, %v3991
    %v7831 = vadd.f32 %v423, %v4525
    %v7832 = vadd.f32 %v424, %v5059
    %v7833 = vadd.f32 %v425, %v5593
    %v7834 = vadd.f32 %v426, %v6127
    %v7835 = vadd.f32 %v427, %v6661
    %v7836 = vadd.f32 %v428, %v7195
    %v7837 = vadd.f32 %v429, %v7729
    %v7838 = vadd.f32 %v430, %v3993
    %v7839 = vadd.f32 %v431, %v4527
    %v7840 = vadd.f32 %v432, %v5061
    %v7841 = vadd.f32 %v433, %v5595
    %v7842 = vadd.f32 %v434, %v6129
    %v7843 = vadd.f32 %v435, %v6663
    %v7844 = vadd.f32 %v436, %v7197
    %v7845 = vadd.f32 %v437, %v7731
    %v7846 = vadd.f32 %v438, %v3996
    %v7847 = vadd.f32 %v439, %v4530
    %v7848 = vadd.f32 %v440, %v5064
    %v7849 = vadd.f32 %v441, %v5598
    %v7850 = vadd.f32 %v442, %v6132
    %v7851 = vadd.f32 %v443, %v6666
    %v7852 = vadd.f32 %v444, %v7200
    %v7853 = vadd.f32 %v445, %v7734
    %v7854 = vadd.f32 %v446, %v3998
    %v7855 = vadd.f32 %v447, %v4532
    %v7856 = vadd.f32 %v448, %v5066
    %v7857 = vadd.f32 %v449, %v5600
    %v7858 = vadd.f32 %v450, %v6134
    %v7859 = vadd.f32 %v451, %v6668
    %v7860 = vadd.f32 %v452, %v7202
    %v7861 = vadd.f32 %v453, %v7736
    %v7862 = vadd.f32 %v454, %v4001
    %v7863 = vadd.f32 %v455, %v4535
    %v7864 = vadd.f32 %v456, %v5069
    %v7865 = vadd.f32 %v457, %v5603
    %v7866 = vadd.f32 %v458, %v6137
    %v7867 = vadd.f32 %v459, %v6671
    %v7868 = vadd.f32 %v460, %v7205
    %v7869 = vadd.f32 %v461, %v7739
    %v7870 = vadd.f32 %v462, %v4003
    %v7871 = vadd.f32 %v463, %v4537
    %v7872 = vadd.f32 %v464, %v5071
    %v7873 = vadd.f32 %v465, %v5605
    %v7874 = vadd.f32 %v466, %v6139
    %v7875 = vadd.f32 %v467, %v6673
    %v7876 = vadd.f32 %v468, %v7207
    %v7877 = vadd.f32 %v469, %v7741
    %v7878 = vadd.f32 %v470, %v4006
    %v7879 = vadd.f32 %v471, %v4540
    %v7880 = vadd.f32 %v472, %v5074
    %v7881 = vadd.f32 %v473, %v5608
    %v7882 = vadd.f32 %v474, %v6142
    %v7883 = vadd.f32 %v475, %v6676
    %v7884 = vadd.f32 %v476, %v7210
    %v7885 = vadd.f32 %v477, %v7744
    %v7886 = vadd.f32 %v478, %v4008
    %v7887 = vadd.f32 %v479, %v4542
    %v7888 = vadd.f32 %v480, %v5076
    %v7889 = vadd.f32 %v481, %v5610
    %v7890 = vadd.f32 %v482, %v6144
    %v7891 = vadd.f32 %v483, %v6678
    %v7892 = vadd.f32 %v484, %v7212
    %v7893 = vadd.f32 %v485, %v7746
    %v7894 = vadd.f32 %v486, %v4011
    %v7895 = vadd.f32 %v487, %v4545
    %v7896 = vadd.f32 %v488, %v5079
    %v7897 = vadd.f32 %v489, %v5613
    %v7898 = vadd.f32 %v490, %v6147
    %v7899 = vadd.f32 %v491, %v6681
    %v7900 = vadd.f32 %v492, %v7215
    %v7901 = vadd.f32 %v493, %v7749
    %v7902 = vadd.f32 %v494, %v4013
    %v7903 = vadd.f32 %v495, %v4547
    %v7904 = vadd.f32 %v496, %v5081
    %v7905 = vadd.f32 %v497, %v5615
    %v7906 = vadd.f32 %v498, %v6149
    %v7907 = vadd.f32 %v499, %v6683
    %v7908 = vadd.f32 %v500, %v7217
    %v7909 = vadd.f32 %v501, %v7751
    %v7910 = vadd.f32 %v502, %v4016
    %v7911 = vadd.f32 %v503, %v4550
    %v7912 = vadd.f32 %v504, %v5084
    %v7913 = vadd.f32 %v505, %v5618
    %v7914 = vadd.f32 %v506, %v6152
    %v7915 = vadd.f32 %v507, %v6686
    %v7916 = vadd.f32 %v508, %v7220
    %v7917 = vadd.f32 %v509, %v7754
    %v7918 = vadd.f32 %v510, %v4018
    %v7919 = vadd.f32 %v511, %v4552
    %v7920 = vadd.f32 %v512, %v5086
    %v7921 = vadd.f32 %v513, %v5620
    %v7922 = vadd.f32 %v514, %v6154
    %v7923 = vadd.f32 %v515, %v6688
    %v7924 = vadd.f32 %v516, %v7222
    %v7925 = vadd.f32 %v517, %v7756
    %v7926 = vadd.f32 %v518, %v4021
    %v7927 = vadd.f32 %v519, %v4555
    %v7928 = vadd.f32 %v520, %v5089
    %v7929 = vadd.f32 %v521, %v5623
    %v7930 = vadd.f32 %v522, %v6157
    %v7931 = vadd.f32 %v523, %v6691
    %v7932 = vadd.f32 %v524, %v7225
    %v7933 = vadd.f32 %v525, %v7759
    %v7934 = vadd.f32 %v526, %v4023
    %v7935 = vadd.f32 %v527, %v4557
    %v7936 = vadd.f32 %v528, %v5091
    %v7937 = vadd.f32 %v529, %v5625
    %v7938 = vadd.f32 %v530, %v6159
    %v7939 = vadd.f32 %v531, %v6693
    %v7940 = vadd.f32 %v532, %v7227
    %v7941 = vadd.f32 %v533, %v7761
    %v7942 = vadd.f32 %v534, %v4026
    %v7943 = vadd.f32 %v535, %v4560
    %v7944 = vadd.f32 %v536, %v5094
    %v7945 = vadd.f32 %v537, %v5628
    %v7946 = vadd.f32 %v538, %v6162
    %v7947 = vadd.f32 %v539, %v6696
    %v7948 = vadd.f32 %v540, %v7230
    %v7949 = vadd.f32 %v541, %v7764
    %v7950 = vadd.f32 %v542, %v4028
    %v7951 = vadd.f32 %v543, %v4562
    %v7952 = vadd.f32 %v544, %v5096
    %v7953 = vadd.f32 %v545, %v5630
    %v7954 = vadd.f32 %v546, %v6164
    %v7955 = vadd.f32 %v547, %v6698
    %v7956 = vadd.f32 %v548, %v7232
    %v7957 = vadd.f32 %v549, %v7766
    %v7958 = vadd.f32 %v550, %v4031
    %v7959 = vadd.f32 %v551, %v4565
    %v7960 = vadd.f32 %v552, %v5099
    %v7961 = vadd.f32 %v553, %v5633
    %v7962 = vadd.f32 %v554, %v6167
    %v7963 = vadd.f32 %v555, %v6701
    %v7964 = vadd.f32 %v556, %v7235
    %v7965 = vadd.f32 %v557, %v7769
    %v7966 = vadd.f32 %v558, %v4033
    %v7967 = vadd.f32 %v559, %v4567
    %v7968 = vadd.f32 %v560, %v5101
    %v7969 = vadd.f32 %v561, %v5635
    %v7970 = vadd.f32 %v562, %v6169
    %v7971 = vadd.f32 %v563, %v6703
    %v7972 = vadd.f32 %v564, %v7237
    %v7973 = vadd.f32 %v565, %v7771
    %v7974 = vadd.f32 %v566, %v4036
    %v7975 = vadd.f32 %v567, %v4570
    %v7976 = vadd.f32 %v568, %v5104
    %v7977 = vadd.f32 %v569, %v5638
    %v7978 = vadd.f32 %v570, %v6172
    %v7979 = vadd.f32 %v571, %v6706
    %v7980 = vadd.f32 %v572, %v7240
    %v7981 = vadd.f32 %v573, %v7774
    %v7982 = vadd.f32 %v574, %v4038
    %v7983 = vadd.f32 %v575, %v4572
    %v7984 = vadd.f32 %v576, %v5106
    %v7985 = vadd.f32 %v577, %v5640
    %v7986 = vadd.f32 %v578, %v6174
    %v7987 = vadd.f32 %v579, %v6708
    %v7988 = vadd.f32 %v580, %v7242
    %v7989 = vadd.f32 %v581, %v7776
    %v7990 = vadd.f32 %v582, %v4041
    %v7991 = vadd.f32 %v583, %v4575
    %v7992 = vadd.f32 %v584, %v5109
    %v7993 = vadd.f32 %v585, %v5643
    %v7994 = vadd.f32 %v586, %v6177
    %v7995 = vadd.f32 %v587, %v6711
    %v7996 = vadd.f32 %v588, %v7245
    %v7997 = vadd.f32 %v589, %v7779
    %v7998 = vadd.f32 %v590, %v4043
    %v7999 = vadd.f32 %v591, %v4577
    %v8000 = vadd.f32 %v592, %v5111
    %v8001 = vadd.f32 %v593, %v5645
    %v8002 = vadd.f32 %v594, %v6179
    %v8003 = vadd.f32 %v595, %v6713
    %v8004 = vadd.f32 %v596, %v7247
    %v8005 = vadd.f32 %v597, %v7781
    %v8006 = vadd.f32 %v598, %v4046
    %v8007 = vadd.f32 %v599, %v4580
    %v8008 = vadd.f32 %v600, %v5114
    %v8009 = vadd.f32 %v601, %v5648
    %v8010 = vadd.f32 %v602, %v6182
    %v8011 = vadd.f32 %v603, %v6716
    %v8012 = vadd.f32 %v604, %v7250
    %v8013 = vadd.f32 %v605, %v7784
    %v8014 = vadd.f32 %v606, %v4048
    %v8015 = vadd.f32 %v607, %v4582
    %v8016 = vadd.f32 %v608, %v5116
    %v8017 = vadd.f32 %v609, %v5650
    %v8018 = vadd.f32 %v610, %v6184
    %v8019 = vadd.f32 %v611, %v6718
    %v8020 = vadd.f32 %v612, %v7252
    %v8021 = vadd.f32 %v613, %v7786
    %v8022 = vadd.f32 %v614, %v4051
    %v8023 = vadd.f32 %v615, %v4585
    %v8024 = vadd.f32 %v616, %v5119
    %v8025 = vadd.f32 %v617, %v5653
    %v8026 = vadd.f32 %v618, %v6187
    %v8027 = vadd.f32 %v619, %v6721
    %v8028 = vadd.f32 %v620, %v7255
    %v8029 = vadd.f32 %v621, %v7789
    %v8030 = vadd.f32 %v622, %v4053
    %v8031 = vadd.f32 %v623, %v4587
    %v8032 = vadd.f32 %v624, %v5121
    %v8033 = vadd.f32 %v625, %v5655
    %v8034 = vadd.f32 %v626, %v6189
    %v8035 = vadd.f32 %v627, %v6723
    %v8036 = vadd.f32 %v628, %v7257
    %v8037 = vadd.f32 %v629, %v7791
    %v8038 = vadd.f32 %v630, %v4056
    %v8039 = vadd.f32 %v631, %v4590
    %v8040 = vadd.f32 %v632, %v5124
    %v8041 = vadd.f32 %v633, %v5658
    %v8042 = vadd.f32 %v634, %v6192
    %v8043 = vadd.f32 %v635, %v6726
    %v8044 = vadd.f32 %v636, %v7260
    %v8045 = vadd.f32 %v637, %v7794
    %v8046 = vadd.f32 %v638, %v4058
    %v8047 = vadd.f32 %v639, %v4592
    %v8048 = vadd.f32 %v640, %v5126
    %v8049 = vadd.f32 %v641, %v5660
    %v8050 = vadd.f32 %v642, %v6194
    %v8051 = vadd.f32 %v643, %v6728
    %v8052 = vadd.f32 %v644, %v7262
    %v8053 = vadd.f32 %v645, %v7796
    %8054 = vst [vmem:[#allocation2] sm:$0xff] %v7798
    %8055 = vst [vmem:[#allocation2 + $0x8] sm:$0xff] %v7799
    %8056 = vst [vmem:[#allocation2 + $0x10] sm:$0xff] %v7800
    %8057 = vst [vmem:[#allocation2 + $0x18] sm:$0xff] %v7801
    %8058 = vst [vmem:[#allocation2 + $0x20] sm:$0xff] %v7802
    %8059 = vst [vmem:[#allocation2 + $0x28] sm:$0xff] %v7803
    %8060 = vst [vmem:[#allocation2 + $0x30] sm:$0xff] %v7804
    %8061 = vst [vmem:[#allocation2 + $0x38] sm:$0xff] %v7805
    %8062 = vst [vmem:[#allocation2 + $0x40] sm:$0xff] %v7806
    %8063 = vst [vmem:[#allocation2 + $0x48] sm:$0xff] %v7807
    %8064 = vst [vmem:[#allocation2 + $0x50] sm:$0xff] %v7808
    %8065 = vst [vmem:[#allocation2 + $0x58] sm:$0xff] %v7809
    %8066 = vst [vmem:[#allocation2 + $0x60] sm:$0xff] %v7810
    %8067 = vst [vmem:[#allocation2 + $0x68] sm:$0xff] %v7811
    %8068 = vst [vmem:[#allocation2 + $0x70] sm:$0xff] %v7812
    %8069 = vst [vmem:[#allocation2 + $0x78] sm:$0xff] %v7813
    %8070 = vst [vmem:[#allocation2 + $0x80] sm:$0xff] %v7814
    %8071 = vst [vmem:[#allocation2 + $0x88] sm:$0xff] %v7815
    %8072 = vst [vmem:[#allocation2 + $0x90] sm:$0xff] %v7816
    %8073 = vst [vmem:[#allocation2 + $0x98] sm:$0xff] %v7817
    %8074 = vst [vmem:[#allocation2 + $0xa0] sm:$0xff] %v7818
    %8075 = vst [vmem:[#allocation2 + $0xa8] sm:$0xff] %v7819
    %8076 = vst [vmem:[#allocation2 + $0xb0] sm:$0xff] %v7820
    %8077 = vst [vmem:[#allocation2 + $0xb8] sm:$0xff] %v7821
    %8078 = vst [vmem:[#allocation2 + $0xc0] sm:$0xff] %v7822
    %8079 = vst [vmem:[#allocation2 + $0xc8] sm:$0xff] %v7823
    %8080 = vst [vmem:[#allocation2 + $0xd0] sm:$0xff] %v7824
    %8081 = vst [vmem:[#allocation2 + $0xd8] sm:$0xff] %v7825
    %8082 = vst [vmem:[#allocation2 + $0xe0] sm:$0xff] %v7826
    %8083 = vst [vmem:[#allocation2 + $0xe8] sm:$0xff] %v7827
    %8084 = vst [vmem:[#allocation2 + $0xf0] sm:$0xff] %v7828
    %8085 = vst [vmem:[#allocation2 + $0xf8] sm:$0xff] %v7829
    %8086 = vst [vmem:[#allocation2 + $0x100] sm:$0xff] %v7830
    %8087 = vst [vmem:[#allocation2 + $0x108] sm:$0xff] %v7831
    %8088 = vst [vmem:[#allocation2 + $0x110] sm:$0xff] %v7832
    %8089 = vst [vmem:[#allocation2 + $0x118] sm:$0xff] %v7833
    %8090 = vst [vmem:[#allocation2 + $0x120] sm:$0xff] %v7834
    %8091 = vst [vmem:[#allocation2 + $0x128] sm:$0xff] %v7835
    %8092 = vst [vmem:[#allocation2 + $0x130] sm:$0xff] %v7836
    %8093 = vst [vmem:[#allocation2 + $0x138] sm:$0xff] %v7837
    %8094 = vst [vmem:[#allocation2 + $0x140] sm:$0xff] %v7838
    %8095 = vst [vmem:[#allocation2 + $0x148] sm:$0xff] %v7839
    %8096 = vst [vmem:[#allocation2 + $0x150] sm:$0xff] %v7840
    %8097 = vst [vmem:[#allocation2 + $0x158] sm:$0xff] %v7841
    %8098 = vst [vmem:[#allocation2 + $0x160] sm:$0xff] %v7842
    %8099 = vst [vmem:[#allocation2 + $0x168] sm:$0xff] %v7843
    %8100 = vst [vmem:[#allocation2 + $0x170] sm:$0xff] %v7844
    %8101 = vst [vmem:[#allocation2 + $0x178] sm:$0xff] %v7845
    %8102 = vst [vmem:[#allocation2 + $0x180] sm:$0xff] %v7846
    %8103 = vst [vmem:[#allocation2 + $0x188] sm:$0xff] %v7847
    %8104 = vst [vmem:[#allocation2 + $0x190] sm:$0xff] %v7848
    %8105 = vst [vmem:[#allocation2 + $0x198] sm:$0xff] %v7849
    %8106 = vst [vmem:[#allocation2 + $0x1a0] sm:$0xff] %v7850
    %8107 = vst [vmem:[#allocation2 + $0x1a8] sm:$0xff] %v7851
    %8108 = vst [vmem:[#allocation2 + $0x1b0] sm:$0xff] %v7852
    %8109 = vst [vmem:[#allocation2 + $0x1b8] sm:$0xff] %v7853
    %8110 = vst [vmem:[#allocation2 + $0x1c0] sm:$0xff] %v7854
    %8111 = vst [vmem:[#allocation2 + $0x1c8] sm:$0xff] %v7855
    %8112 = vst [vmem:[#allocation2 + $0x1d0] sm:$0xff] %v7856
    %8113 = vst [vmem:[#allocation2 + $0x1d8] sm:$0xff] %v7857
    %8114 = vst [vmem:[#allocation2 + $0x1e0] sm:$0xff] %v7858
    %8115 = vst [vmem:[#allocation2 + $0x1e8] sm:$0xff] %v7859
    %8116 = vst [vmem:[#allocation2 + $0x1f0] sm:$0xff] %v7860
    %8117 = vst [vmem:[#allocation2 + $0x1f8] sm:$0xff] %v7861
    %8118 = vst [vmem:[#allocation2 + $0x200] sm:$0xff] %v7862
    %8119 = vst [vmem:[#allocation2 + $0x208] sm:$0xff] %v7863
    %8120 = vst [vmem:[#allocation2 + $0x210] sm:$0xff] %v7864
    %8121 = vst [vmem:[#allocation2 + $0x218] sm:$0xff] %v7865
    %8122 = vst [vmem:[#allocation2 + $0x220] sm:$0xff] %v7866
    %8123 = vst [vmem:[#allocation2 + $0x228] sm:$0xff] %v7867
    %8124 = vst [vmem:[#allocation2 + $0x230] sm:$0xff] %v7868
    %8125 = vst [vmem:[#allocation2 + $0x238] sm:$0xff] %v7869
    %8126 = vst [vmem:[#allocation2 + $0x240] sm:$0xff] %v7870
    %8127 = vst [vmem:[#allocation2 + $0x248] sm:$0xff] %v7871
    %8128 = vst [vmem:[#allocation2 + $0x250] sm:$0xff] %v7872
    %8129 = vst [vmem:[#allocation2 + $0x258] sm:$0xff] %v7873
    %8130 = vst [vmem:[#allocation2 + $0x260] sm:$0xff] %v7874
    %8131 = vst [vmem:[#allocation2 + $0x268] sm:$0xff] %v7875
    %8132 = vst [vmem:[#allocation2 + $0x270] sm:$0xff] %v7876
    %8133 = vst [vmem:[#allocation2 + $0x278] sm:$0xff] %v7877
    %8134 = vst [vmem:[#allocation2 + $0x280] sm:$0xff] %v7878
    %8135 = vst [vmem:[#allocation2 + $0x288] sm:$0xff] %v7879
    %8136 = vst [vmem:[#allocation2 + $0x290] sm:$0xff] %v7880
    %8137 = vst [vmem:[#allocation2 + $0x298] sm:$0xff] %v7881
    %8138 = vst [vmem:[#allocation2 + $0x2a0] sm:$0xff] %v7882
    %8139 = vst [vmem:[#allocation2 + $0x2a8] sm:$0xff] %v7883
    %8140 = vst [vmem:[#allocation2 + $0x2b0] sm:$0xff] %v7884
    %8141 = vst [vmem:[#allocation2 + $0x2b8] sm:$0xff] %v7885
    %8142 = vst [vmem:[#allocation2 + $0x2c0] sm:$0xff] %v7886
    %8143 = vst [vmem:[#allocation2 + $0x2c8] sm:$0xff] %v7887
    %8144 = vst [vmem:[#allocation2 + $0x2d0] sm:$0xff] %v7888
    %8145 = vst [vmem:[#allocation2 + $0x2d8] sm:$0xff] %v7889
    %8146 = vst [vmem:[#allocation2 + $0x2e0] sm:$0xff] %v7890
    %8147 = vst [vmem:[#allocation2 + $0x2e8] sm:$0xff] %v7891
    %8148 = vst [vmem:[#allocation2 + $0x2f0] sm:$0xff] %v7892
    %8149 = vst [vmem:[#allocation2 + $0x2f8] sm:$0xff] %v7893
    %8150 = vst [vmem:[#allocation2 + $0x300] sm:$0xff] %v7894
    %8151 = vst [vmem:[#allocation2 + $0x308] sm:$0xff] %v7895
    %8152 = vst [vmem:[#allocation2 + $0x310] sm:$0xff] %v7896
    %8153 = vst [vmem:[#allocation2 + $0x318] sm:$0xff] %v7897
    %8154 = vst [vmem:[#allocation2 + $0x320] sm:$0xff] %v7898
    %8155 = vst [vmem:[#allocation2 + $0x328] sm:$0xff] %v7899
    %8156 = vst [vmem:[#allocation2 + $0x330] sm:$0xff] %v7900
    %8157 = vst [vmem:[#allocation2 + $0x338] sm:$0xff] %v7901
    %8158 = vst [vmem:[#allocation2 + $0x340] sm:$0xff] %v7902
    %8159 = vst [vmem:[#allocation2 + $0x348] sm:$0xff] %v7903
    %8160 = vst [vmem:[#allocation2 + $0x350] sm:$0xff] %v7904
    %8161 = vst [vmem:[#allocation2 + $0x358] sm:$0xff] %v7905
    %8162 = vst [vmem:[#allocation2 + $0x360] sm:$0xff] %v7906
    %8163 = vst [vmem:[#allocation2 + $0x368] sm:$0xff] %v7907
    %8164 = vst [vmem:[#allocation2 + $0x370] sm:$0xff] %v7908
    %8165 = vst [vmem:[#allocation2 + $0x378] sm:$0xff] %v7909
    %8166 = vst [vmem:[#allocation2 + $0x380] sm:$0xff] %v7910
    %8167 = vst [vmem:[#allocation2 + $0x388] sm:$0xff] %v7911
    %8168 = vst [vmem:[#allocation2 + $0x390] sm:$0xff] %v7912
    %8169 = vst [vmem:[#allocation2 + $0x398] sm:$0xff] %v7913
    %8170 = vst [vmem:[#allocation2 + $0x3a0] sm:$0xff] %v7914
    %8171 = vst [vmem:[#allocation2 + $0x3a8] sm:$0xff] %v7915
    %8172 = vst [vmem:[#allocation2 + $0x3b0] sm:$0xff] %v7916
    %8173 = vst [vmem:[#allocation2 + $0x3b8] sm:$0xff] %v7917
    %8174 = vst [vmem:[#allocation2 + $0x3c0] sm:$0xff] %v7918
    %8175 = vst [vmem:[#allocation2 + $0x3c8] sm:$0xff] %v7919
    %8176 = vst [vmem:[#allocation2 + $0x3d0] sm:$0xff] %v7920
    %8177 = vst [vmem:[#allocation2 + $0x3d8] sm:$0xff] %v7921
    %8178 = vst [vmem:[#allocation2 + $0x3e0] sm:$0xff] %v7922
    %8179 = vst [vmem:[#allocation2 + $0x3e8] sm:$0xff] %v7923
    %8180 = vst [vmem:[#allocation2 + $0x3f0] sm:$0xff] %v7924
    %8181 = vst [vmem:[#allocation2 + $0x3f8] sm:$0xff] %v7925
    %8182 = vst [vmem:[#allocation2 + $0x400] sm:$0xff] %v7926
    %8183 = vst [vmem:[#allocation2 + $0x408] sm:$0xff] %v7927
    %8184 = vst [vmem:[#allocation2 + $0x410] sm:$0xff] %v7928
    %8185 = vst [vmem:[#allocation2 + $0x418] sm:$0xff] %v7929
    %8186 = vst [vmem:[#allocation2 + $0x420] sm:$0xff] %v7930
    %8187 = vst [vmem:[#allocation2 + $0x428] sm:$0xff] %v7931
    %8188 = vst [vmem:[#allocation2 + $0x430] sm:$0xff] %v7932
    %8189 = vst [vmem:[#allocation2 + $0x438] sm:$0xff] %v7933
    %8190 = vst [vmem:[#allocation2 + $0x440] sm:$0xff] %v7934
    %8191 = vst [vmem:[#allocation2 + $0x448] sm:$0xff] %v7935
    %8192 = vst [vmem:[#allocation2 + $0x450] sm:$0xff] %v7936
    %8193 = vst [vmem:[#allocation2 + $0x458] sm:$0xff] %v7937
    %8194 = vst [vmem:[#allocation2 + $0x460] sm:$0xff] %v7938
    %8195 = vst [vmem:[#allocation2 + $0x468] sm:$0xff] %v7939
    %8196 = vst [vmem:[#allocation2 + $0x470] sm:$0xff] %v7940
    %8197 = vst [vmem:[#allocation2 + $0x478] sm:$0xff] %v7941
    %8198 = vst [vmem:[#allocation2 + $0x480] sm:$0xff] %v7942
    %8199 = vst [vmem:[#allocation2 + $0x488] sm:$0xff] %v7943
    %8200 = vst [vmem:[#allocation2 + $0x490] sm:$0xff] %v7944
    %8201 = vst [vmem:[#allocation2 + $0x498] sm:$0xff] %v7945
    %8202 = vst [vmem:[#allocation2 + $0x4a0] sm:$0xff] %v7946
    %8203 = vst [vmem:[#allocation2 + $0x4a8] sm:$0xff] %v7947
    %8204 = vst [vmem:[#allocation2 + $0x4b0] sm:$0xff] %v7948
    %8205 = vst [vmem:[#allocation2 + $0x4b8] sm:$0xff] %v7949
    %8206 = vst [vmem:[#allocation2 + $0x4c0] sm:$0xff] %v7950
    %8207 = vst [vmem:[#allocation2 + $0x4c8] sm:$0xff] %v7951
    %8208 = vst [vmem:[#allocation2 + $0x4d0] sm:$0xff] %v7952
    %8209 = vst [vmem:[#allocation2 + $0x4d8] sm:$0xff] %v7953
    %8210 = vst [vmem:[#allocation2 + $0x4e0] sm:$0xff] %v7954
    %8211 = vst [vmem:[#allocation2 + $0x4e8] sm:$0xff] %v7955
    %8212 = vst [vmem:[#allocation2 + $0x4f0] sm:$0xff] %v7956
    %8213 = vst [vmem:[#allocation2 + $0x4f8] sm:$0xff] %v7957
    %8214 = vst [vmem:[#allocation2 + $0x500] sm:$0xff] %v7958
    %8215 = vst [vmem:[#allocation2 + $0x508] sm:$0xff] %v7959
    %8216 = vst [vmem:[#allocation2 + $0x510] sm:$0xff] %v7960
    %8217 = vst [vmem:[#allocation2 + $0x518] sm:$0xff] %v7961
    %8218 = vst [vmem:[#allocation2 + $0x520] sm:$0xff] %v7962
    %8219 = vst [vmem:[#allocation2 + $0x528] sm:$0xff] %v7963
    %8220 = vst [vmem:[#allocation2 + $0x530] sm:$0xff] %v7964
    %8221 = vst [vmem:[#allocation2 + $0x538] sm:$0xff] %v7965
    %8222 = vst [vmem:[#allocation2 + $0x540] sm:$0xff] %v7966
    %8223 = vst [vmem:[#allocation2 + $0x548] sm:$0xff] %v7967
    %8224 = vst [vmem:[#allocation2 + $0x550] sm:$0xff] %v7968
    %8225 = vst [vmem:[#allocation2 + $0x558] sm:$0xff] %v7969
    %8226 = vst [vmem:[#allocation2 + $0x560] sm:$0xff] %v7970
    %8227 = vst [vmem:[#allocation2 + $0x568] sm:$0xff] %v7971
    %8228 = vst [vmem:[#allocation2 + $0x570] sm:$0xff] %v7972
    %8229 = vst [vmem:[#allocation2 + $0x578] sm:$0xff] %v7973
    %8230 = vst [vmem:[#allocation2 + $0x580] sm:$0xff] %v7974
    %8231 = vst [vmem:[#allocation2 + $0x588] sm:$0xff] %v7975
    %8232 = vst [vmem:[#allocation2 + $0x590] sm:$0xff] %v7976
    %8233 = vst [vmem:[#allocation2 + $0x598] sm:$0xff] %v7977
    %8234 = vst [vmem:[#allocation2 + $0x5a0] sm:$0xff] %v7978
    %8235 = vst [vmem:[#allocation2 + $0x5a8] sm:$0xff] %v7979
    %8236 = vst [vmem:[#allocation2 + $0x5b0] sm:$0xff] %v7980
    %8237 = vst [vmem:[#allocation2 + $0x5b8] sm:$0xff] %v7981
    %8238 = vst [vmem:[#allocation2 + $0x5c0] sm:$0xff] %v7982
    %8239 = vst [vmem:[#allocation2 + $0x5c8] sm:$0xff] %v7983
    %8240 = vst [vmem:[#allocation2 + $0x5d0] sm:$0xff] %v7984
    %8241 = vst [vmem:[#allocation2 + $0x5d8] sm:$0xff] %v7985
    %8242 = vst [vmem:[#allocation2 + $0x5e0] sm:$0xff] %v7986
    %8243 = vst [vmem:[#allocation2 + $0x5e8] sm:$0xff] %v7987
    %8244 = vst [vmem:[#allocation2 + $0x5f0] sm:$0xff] %v7988
    %8245 = vst [vmem:[#allocation2 + $0x5f8] sm:$0xff] %v7989
    %8246 = vst [vmem:[#allocation2 + $0x600] sm:$0xff] %v7990
    %8247 = vst [vmem:[#allocation2 + $0x608] sm:$0xff] %v7991
    %8248 = vst [vmem:[#allocation2 + $0x610] sm:$0xff] %v7992
    %8249 = vst [vmem:[#allocation2 + $0x618] sm:$0xff] %v7993
    %8250 = vst [vmem:[#allocation2 + $0x620] sm:$0xff] %v7994
    %8251 = vst [vmem:[#allocation2 + $0x628] sm:$0xff] %v7995
    %8252 = vst [vmem:[#allocation2 + $0x630] sm:$0xff] %v7996
    %8253 = vst [vmem:[#allocation2 + $0x638] sm:$0xff] %v7997
    %8254 = vst [vmem:[#allocation2 + $0x640] sm:$0xff] %v7998
    %8255 = vst [vmem:[#allocation2 + $0x648] sm:$0xff] %v7999
    %8256 = vst [vmem:[#allocation2 + $0x650] sm:$0xff] %v8000
    %8257 = vst [vmem:[#allocation2 + $0x658] sm:$0xff] %v8001
    %8258 = vst [vmem:[#allocation2 + $0x660] sm:$0xff] %v8002
    %8259 = vst [vmem:[#allocation2 + $0x668] sm:$0xff] %v8003
    %8260 = vst [vmem:[#allocation2 + $0x670] sm:$0xff] %v8004
    %8261 = vst [vmem:[#allocation2 + $0x678] sm:$0xff] %v8005
    %8262 = vst [vmem:[#allocation2 + $0x680] sm:$0xff] %v8006
    %8263 = vst [vmem:[#allocation2 + $0x688] sm:$0xff] %v8007
    %8264 = vst [vmem:[#allocation2 + $0x690] sm:$0xff] %v8008
    %8265 = vst [vmem:[#allocation2 + $0x698] sm:$0xff] %v8009
    %8266 = vst [vmem:[#allocation2 + $0x6a0] sm:$0xff] %v8010
    %8267 = vst [vmem:[#allocation2 + $0x6a8] sm:$0xff] %v8011
    %8268 = vst [vmem:[#allocation2 + $0x6b0] sm:$0xff] %v8012
    %8269 = vst [vmem:[#allocation2 + $0x6b8] sm:$0xff] %v8013
    %8270 = vst [vmem:[#allocation2 + $0x6c0] sm:$0xff] %v8014
    %8271 = vst [vmem:[#allocation2 + $0x6c8] sm:$0xff] %v8015
    %8272 = vst [vmem:[#allocation2 + $0x6d0] sm:$0xff] %v8016
    %8273 = vst [vmem:[#allocation2 + $0x6d8] sm:$0xff] %v8017
    %8274 = vst [vmem:[#allocation2 + $0x6e0] sm:$0xff] %v8018
    %8275 = vst [vmem:[#allocation2 + $0x6e8] sm:$0xff] %v8019
    %8276 = vst [vmem:[#allocation2 + $0x6f0] sm:$0xff] %v8020
    %8277 = vst [vmem:[#allocation2 + $0x6f8] sm:$0xff] %v8021
    %8278 = vst [vmem:[#allocation2 + $0x700] sm:$0xff] %v8022
    %8279 = vst [vmem:[#allocation2 + $0x708] sm:$0xff] %v8023
    %8280 = vst [vmem:[#allocation2 + $0x710] sm:$0xff] %v8024
    %8281 = vst [vmem:[#allocation2 + $0x718] sm:$0xff] %v8025
    %8282 = vst [vmem:[#allocation2 + $0x720] sm:$0xff] %v8026
    %8283 = vst [vmem:[#allocation2 + $0x728] sm:$0xff] %v8027
    %8284 = vst [vmem:[#allocation2 + $0x730] sm:$0xff] %v8028
    %8285 = vst [vmem:[#allocation2 + $0x738] sm:$0xff] %v8029
    %8286 = vst [vmem:[#allocation2 + $0x740] sm:$0xff] %v8030
    %8287 = vst [vmem:[#allocation2 + $0x748] sm:$0xff] %v8031
    %8288 = vst [vmem:[#allocation2 + $0x750] sm:$0xff] %v8032
    %8289 = vst [vmem:[#allocation2 + $0x758] sm:$0xff] %v8033
    %8290 = vst [vmem:[#allocation2 + $0x760] sm:$0xff] %v8034
    %8291 = vst [vmem:[#allocation2 + $0x768] sm:$0xff] %v8035
    %8292 = vst [vmem:[#allocation2 + $0x770] sm:$0xff] %v8036
    %8293 = vst [vmem:[#allocation2 + $0x778] sm:$0xff] %v8037
    %8294 = vst [vmem:[#allocation2 + $0x780] sm:$0xff] %v8038
    %8295 = vst [vmem:[#allocation2 + $0x788] sm:$0xff] %v8039
    %8296 = vst [vmem:[#allocation2 + $0x790] sm:$0xff] %v8040
    %8297 = vst [vmem:[#allocation2 + $0x798] sm:$0xff] %v8041
    %8298 = vst [vmem:[#allocation2 + $0x7a0] sm:$0xff] %v8042
    %8299 = vst [vmem:[#allocation2 + $0x7a8] sm:$0xff] %v8043
    %8300 = vst [vmem:[#allocation2 + $0x7b0] sm:$0xff] %v8044
    %8301 = vst [vmem:[#allocation2 + $0x7b8] sm:$0xff] %v8045
    %8302 = vst [vmem:[#allocation2 + $0x7c0] sm:$0xff] %v8046
    %8303 = vst [vmem:[#allocation2 + $0x7c8] sm:$0xff] %v8047
    %8304 = vst [vmem:[#allocation2 + $0x7d0] sm:$0xff] %v8048
    %8305 = vst [vmem:[#allocation2 + $0x7d8] sm:$0xff] %v8049
    %8306 = vst [vmem:[#allocation2 + $0x7e0] sm:$0xff] %v8050
    %8307 = vst [vmem:[#allocation2 + $0x7e8] sm:$0xff] %v8051
    %8308 = vst [vmem:[#allocation2 + $0x7f0] sm:$0xff] %v8052
    %8309 = vst [vmem:[#allocation2 + $0x7f8] sm:$0xff] %v8053
    // Predicated region
    $region62: #{tpu_custom_call.1} parent=1 // pred_check
      %p8310 = pneg %p130
    $region63: #{tpu_custom_call.1} parent=1 // pred_check_branch
      %8312 = sbr.rel (%p8310) target = $region65
    $region64: #{tpu_custom_call.1} parent=1 // pred_region
      %v8313 = vld [vmem:[#allocation2] sm:$0xff]
      %v8314 = vld [vmem:[#allocation2 + $0x8] sm:$0xff]
      %v8315 = vld [vmem:[#allocation2 + $0x10] sm:$0xff]
      %v8316 = vld [vmem:[#allocation2 + $0x18] sm:$0xff]
      %v8317 = vld [vmem:[#allocation2 + $0x20] sm:$0xff]
      %v8318 = vld [vmem:[#allocation2 + $0x28] sm:$0xff]
      %v8319 = vld [vmem:[#allocation2 + $0x30] sm:$0xff]
      %v8320 = vld [vmem:[#allocation2 + $0x38] sm:$0xff]
      %v8321 = vld [vmem:[#allocation2 + $0x40] sm:$0xff]
      %v8322 = vld [vmem:[#allocation2 + $0x48] sm:$0xff]
      %v8323 = vld [vmem:[#allocation2 + $0x50] sm:$0xff]
      %v8324 = vld [vmem:[#allocation2 + $0x58] sm:$0xff]
      %v8325 = vld [vmem:[#allocation2 + $0x60] sm:$0xff]
      %v8326 = vld [vmem:[#allocation2 + $0x68] sm:$0xff]
      %v8327 = vld [vmem:[#allocation2 + $0x70] sm:$0xff]
      %v8328 = vld [vmem:[#allocation2 + $0x78] sm:$0xff]
      %v8329 = vld [vmem:[#allocation2 + $0x80] sm:$0xff]
      %v8330 = vld [vmem:[#allocation2 + $0x88] sm:$0xff]
      %v8331 = vld [vmem:[#allocation2 + $0x90] sm:$0xff]
      %v8332 = vld [vmem:[#allocation2 + $0x98] sm:$0xff]
      %v8333 = vld [vmem:[#allocation2 + $0xa0] sm:$0xff]
      %v8334 = vld [vmem:[#allocation2 + $0xa8] sm:$0xff]
      %v8335 = vld [vmem:[#allocation2 + $0xb0] sm:$0xff]
      %v8336 = vld [vmem:[#allocation2 + $0xb8] sm:$0xff]
      %v8337 = vld [vmem:[#allocation2 + $0xc0] sm:$0xff]
      %v8338 = vld [vmem:[#allocation2 + $0xc8] sm:$0xff]
      %v8339 = vld [vmem:[#allocation2 + $0xd0] sm:$0xff]
      %v8340 = vld [vmem:[#allocation2 + $0xd8] sm:$0xff]
      %v8341 = vld [vmem:[#allocation2 + $0xe0] sm:$0xff]
      %v8342 = vld [vmem:[#allocation2 + $0xe8] sm:$0xff]
      %v8343 = vld [vmem:[#allocation2 + $0xf0] sm:$0xff]
      %v8344 = vld [vmem:[#allocation2 + $0xf8] sm:$0xff]
      %v8345 = vld [vmem:[#allocation2 + $0x100] sm:$0xff]
      %v8346 = vld [vmem:[#allocation2 + $0x108] sm:$0xff]
      %v8347 = vld [vmem:[#allocation2 + $0x110] sm:$0xff]
      %v8348 = vld [vmem:[#allocation2 + $0x118] sm:$0xff]
      %v8349 = vld [vmem:[#allocation2 + $0x120] sm:$0xff]
      %v8350 = vld [vmem:[#allocation2 + $0x128] sm:$0xff]
      %v8351 = vld [vmem:[#allocation2 + $0x130] sm:$0xff]
      %v8352 = vld [vmem:[#allocation2 + $0x138] sm:$0xff]
      %v8353 = vld [vmem:[#allocation2 + $0x140] sm:$0xff]
      %v8354 = vld [vmem:[#allocation2 + $0x148] sm:$0xff]
      %v8355 = vld [vmem:[#allocation2 + $0x150] sm:$0xff]
      %v8356 = vld [vmem:[#allocation2 + $0x158] sm:$0xff]
      %v8357 = vld [vmem:[#allocation2 + $0x160] sm:$0xff]
      %v8358 = vld [vmem:[#allocation2 + $0x168] sm:$0xff]
      %v8359 = vld [vmem:[#allocation2 + $0x170] sm:$0xff]
      %v8360 = vld [vmem:[#allocation2 + $0x178] sm:$0xff]
      %v8361 = vld [vmem:[#allocation2 + $0x180] sm:$0xff]
      %v8362 = vld [vmem:[#allocation2 + $0x188] sm:$0xff]
      %v8363 = vld [vmem:[#allocation2 + $0x190] sm:$0xff]
      %v8364 = vld [vmem:[#allocation2 + $0x198] sm:$0xff]
      %v8365 = vld [vmem:[#allocation2 + $0x1a0] sm:$0xff]
      %v8366 = vld [vmem:[#allocation2 + $0x1a8] sm:$0xff]
      %v8367 = vld [vmem:[#allocation2 + $0x1b0] sm:$0xff]
      %v8368 = vld [vmem:[#allocation2 + $0x1b8] sm:$0xff]
      %v8369 = vld [vmem:[#allocation2 + $0x1c0] sm:$0xff]
      %v8370 = vld [vmem:[#allocation2 + $0x1c8] sm:$0xff]
      %v8371 = vld [vmem:[#allocation2 + $0x1d0] sm:$0xff]
      %v8372 = vld [vmem:[#allocation2 + $0x1d8] sm:$0xff]
      %v8373 = vld [vmem:[#allocation2 + $0x1e0] sm:$0xff]
      %v8374 = vld [vmem:[#allocation2 + $0x1e8] sm:$0xff]
      %v8375 = vld [vmem:[#allocation2 + $0x1f0] sm:$0xff]
      %v8376 = vld [vmem:[#allocation2 + $0x1f8] sm:$0xff]
      %v8377 = vld [vmem:[#allocation2 + $0x200] sm:$0xff]
      %v8378 = vld [vmem:[#allocation2 + $0x208] sm:$0xff]
      %v8379 = vld [vmem:[#allocation2 + $0x210] sm:$0xff]
      %v8380 = vld [vmem:[#allocation2 + $0x218] sm:$0xff]
      %v8381 = vld [vmem:[#allocation2 + $0x220] sm:$0xff]
      %v8382 = vld [vmem:[#allocation2 + $0x228] sm:$0xff]
      %v8383 = vld [vmem:[#allocation2 + $0x230] sm:$0xff]
      %v8384 = vld [vmem:[#allocation2 + $0x238] sm:$0xff]
      %v8385 = vld [vmem:[#allocation2 + $0x240] sm:$0xff]
      %v8386 = vld [vmem:[#allocation2 + $0x248] sm:$0xff]
      %v8387 = vld [vmem:[#allocation2 + $0x250] sm:$0xff]
      %v8388 = vld [vmem:[#allocation2 + $0x258] sm:$0xff]
      %v8389 = vld [vmem:[#allocation2 + $0x260] sm:$0xff]
      %v8390 = vld [vmem:[#allocation2 + $0x268] sm:$0xff]
      %v8391 = vld [vmem:[#allocation2 + $0x270] sm:$0xff]
      %v8392 = vld [vmem:[#allocation2 + $0x278] sm:$0xff]
      %v8393 = vld [vmem:[#allocation2 + $0x280] sm:$0xff]
      %v8394 = vld [vmem:[#allocation2 + $0x288] sm:$0xff]
      %v8395 = vld [vmem:[#allocation2 + $0x290] sm:$0xff]
      %v8396 = vld [vmem:[#allocation2 + $0x298] sm:$0xff]
      %v8397 = vld [vmem:[#allocation2 + $0x2a0] sm:$0xff]
      %v8398 = vld [vmem:[#allocation2 + $0x2a8] sm:$0xff]
      %v8399 = vld [vmem:[#allocation2 + $0x2b0] sm:$0xff]
      %v8400 = vld [vmem:[#allocation2 + $0x2b8] sm:$0xff]
      %v8401 = vld [vmem:[#allocation2 + $0x2c0] sm:$0xff]
      %v8402 = vld [vmem:[#allocation2 + $0x2c8] sm:$0xff]
      %v8403 = vld [vmem:[#allocation2 + $0x2d0] sm:$0xff]
      %v8404 = vld [vmem:[#allocation2 + $0x2d8] sm:$0xff]
      %v8405 = vld [vmem:[#allocation2 + $0x2e0] sm:$0xff]
      %v8406 = vld [vmem:[#allocation2 + $0x2e8] sm:$0xff]
      %v8407 = vld [vmem:[#allocation2 + $0x2f0] sm:$0xff]
      %v8408 = vld [vmem:[#allocation2 + $0x2f8] sm:$0xff]
      %v8409 = vld [vmem:[#allocation2 + $0x300] sm:$0xff]
      %v8410 = vld [vmem:[#allocation2 + $0x308] sm:$0xff]
      %v8411 = vld [vmem:[#allocation2 + $0x310] sm:$0xff]
      %v8412 = vld [vmem:[#allocation2 + $0x318] sm:$0xff]
      %v8413 = vld [vmem:[#allocation2 + $0x320] sm:$0xff]
      %v8414 = vld [vmem:[#allocation2 + $0x328] sm:$0xff]
      %v8415 = vld [vmem:[#allocation2 + $0x330] sm:$0xff]
      %v8416 = vld [vmem:[#allocation2 + $0x338] sm:$0xff]
      %v8417 = vld [vmem:[#allocation2 + $0x340] sm:$0xff]
      %v8418 = vld [vmem:[#allocation2 + $0x348] sm:$0xff]
      %v8419 = vld [vmem:[#allocation2 + $0x350] sm:$0xff]
      %v8420 = vld [vmem:[#allocation2 + $0x358] sm:$0xff]
      %v8421 = vld [vmem:[#allocation2 + $0x360] sm:$0xff]
      %v8422 = vld [vmem:[#allocation2 + $0x368] sm:$0xff]
      %v8423 = vld [vmem:[#allocation2 + $0x370] sm:$0xff]
      %v8424 = vld [vmem:[#allocation2 + $0x378] sm:$0xff]
      %v8425 = vld [vmem:[#allocation2 + $0x380] sm:$0xff]
      %v8426 = vld [vmem:[#allocation2 + $0x388] sm:$0xff]
      %v8427 = vld [vmem:[#allocation2 + $0x390] sm:$0xff]
      %v8428 = vld [vmem:[#allocation2 + $0x398] sm:$0xff]
      %v8429 = vld [vmem:[#allocation2 + $0x3a0] sm:$0xff]
      %v8430 = vld [vmem:[#allocation2 + $0x3a8] sm:$0xff]
      %v8431 = vld [vmem:[#allocation2 + $0x3b0] sm:$0xff]
      %v8432 = vld [vmem:[#allocation2 + $0x3b8] sm:$0xff]
      %v8433 = vld [vmem:[#allocation2 + $0x3c0] sm:$0xff]
      %v8434 = vld [vmem:[#allocation2 + $0x3c8] sm:$0xff]
      %v8435 = vld [vmem:[#allocation2 + $0x3d0] sm:$0xff]
      %v8436 = vld [vmem:[#allocation2 + $0x3d8] sm:$0xff]
      %v8437 = vld [vmem:[#allocation2 + $0x3e0] sm:$0xff]
      %v8438 = vld [vmem:[#allocation2 + $0x3e8] sm:$0xff]
      %v8439 = vld [vmem:[#allocation2 + $0x3f0] sm:$0xff]
      %v8440 = vld [vmem:[#allocation2 + $0x3f8] sm:$0xff]
      %v8441 = vld [vmem:[#allocation2 + $0x400] sm:$0xff]
      %v8442 = vld [vmem:[#allocation2 + $0x408] sm:$0xff]
      %v8443 = vld [vmem:[#allocation2 + $0x410] sm:$0xff]
      %v8444 = vld [vmem:[#allocation2 + $0x418] sm:$0xff]
      %v8445 = vld [vmem:[#allocation2 + $0x420] sm:$0xff]
      %v8446 = vld [vmem:[#allocation2 + $0x428] sm:$0xff]
      %v8447 = vld [vmem:[#allocation2 + $0x430] sm:$0xff]
      %v8448 = vld [vmem:[#allocation2 + $0x438] sm:$0xff]
      %v8449 = vld [vmem:[#allocation2 + $0x440] sm:$0xff]
      %v8450 = vld [vmem:[#allocation2 + $0x448] sm:$0xff]
      %v8451 = vld [vmem:[#allocation2 + $0x450] sm:$0xff]
      %v8452 = vld [vmem:[#allocation2 + $0x458] sm:$0xff]
      %v8453 = vld [vmem:[#allocation2 + $0x460] sm:$0xff]
      %v8454 = vld [vmem:[#allocation2 + $0x468] sm:$0xff]
      %v8455 = vld [vmem:[#allocation2 + $0x470] sm:$0xff]
      %v8456 = vld [vmem:[#allocation2 + $0x478] sm:$0xff]
      %v8457 = vld [vmem:[#allocation2 + $0x480] sm:$0xff]
      %v8458 = vld [vmem:[#allocation2 + $0x488] sm:$0xff]
      %v8459 = vld [vmem:[#allocation2 + $0x490] sm:$0xff]
      %v8460 = vld [vmem:[#allocation2 + $0x498] sm:$0xff]
      %v8461 = vld [vmem:[#allocation2 + $0x4a0] sm:$0xff]
      %v8462 = vld [vmem:[#allocation2 + $0x4a8] sm:$0xff]
      %v8463 = vld [vmem:[#allocation2 + $0x4b0] sm:$0xff]
      %v8464 = vld [vmem:[#allocation2 + $0x4b8] sm:$0xff]
      %v8465 = vld [vmem:[#allocation2 + $0x4c0] sm:$0xff]
      %v8466 = vld [vmem:[#allocation2 + $0x4c8] sm:$0xff]
      %v8467 = vld [vmem:[#allocation2 + $0x4d0] sm:$0xff]
      %v8468 = vld [vmem:[#allocation2 + $0x4d8] sm:$0xff]
      %v8469 = vld [vmem:[#allocation2 + $0x4e0] sm:$0xff]
      %v8470 = vld [vmem:[#allocation2 + $0x4e8] sm:$0xff]
      %v8471 = vld [vmem:[#allocation2 + $0x4f0] sm:$0xff]
      %v8472 = vld [vmem:[#allocation2 + $0x4f8] sm:$0xff]
      %v8473 = vld [vmem:[#allocation2 + $0x500] sm:$0xff]
      %v8474 = vld [vmem:[#allocation2 + $0x508] sm:$0xff]
      %v8475 = vld [vmem:[#allocation2 + $0x510] sm:$0xff]
      %v8476 = vld [vmem:[#allocation2 + $0x518] sm:$0xff]
      %v8477 = vld [vmem:[#allocation2 + $0x520] sm:$0xff]
      %v8478 = vld [vmem:[#allocation2 + $0x528] sm:$0xff]
      %v8479 = vld [vmem:[#allocation2 + $0x530] sm:$0xff]
      %v8480 = vld [vmem:[#allocation2 + $0x538] sm:$0xff]
      %v8481 = vld [vmem:[#allocation2 + $0x540] sm:$0xff]
      %v8482 = vld [vmem:[#allocation2 + $0x548] sm:$0xff]
      %v8483 = vld [vmem:[#allocation2 + $0x550] sm:$0xff]
      %v8484 = vld [vmem:[#allocation2 + $0x558] sm:$0xff]
      %v8485 = vld [vmem:[#allocation2 + $0x560] sm:$0xff]
      %v8486 = vld [vmem:[#allocation2 + $0x568] sm:$0xff]
      %v8487 = vld [vmem:[#allocation2 + $0x570] sm:$0xff]
      %v8488 = vld [vmem:[#allocation2 + $0x578] sm:$0xff]
      %v8489 = vld [vmem:[#allocation2 + $0x580] sm:$0xff]
      %v8490 = vld [vmem:[#allocation2 + $0x588] sm:$0xff]
      %v8491 = vld [vmem:[#allocation2 + $0x590] sm:$0xff]
      %v8492 = vld [vmem:[#allocation2 + $0x598] sm:$0xff]
      %v8493 = vld [vmem:[#allocation2 + $0x5a0] sm:$0xff]
      %v8494 = vld [vmem:[#allocation2 + $0x5a8] sm:$0xff]
      %v8495 = vld [vmem:[#allocation2 + $0x5b0] sm:$0xff]
      %v8496 = vld [vmem:[#allocation2 + $0x5b8] sm:$0xff]
      %v8497 = vld [vmem:[#allocation2 + $0x5c0] sm:$0xff]
      %v8498 = vld [vmem:[#allocation2 + $0x5c8] sm:$0xff]
      %v8499 = vld [vmem:[#allocation2 + $0x5d0] sm:$0xff]
      %v8500 = vld [vmem:[#allocation2 + $0x5d8] sm:$0xff]
      %v8501 = vld [vmem:[#allocation2 + $0x5e0] sm:$0xff]
      %v8502 = vld [vmem:[#allocation2 + $0x5e8] sm:$0xff]
      %v8503 = vld [vmem:[#allocation2 + $0x5f0] sm:$0xff]
      %v8504 = vld [vmem:[#allocation2 + $0x5f8] sm:$0xff]
      %v8505 = vld [vmem:[#allocation2 + $0x600] sm:$0xff]
      %v8506 = vld [vmem:[#allocation2 + $0x608] sm:$0xff]
      %v8507 = vld [vmem:[#allocation2 + $0x610] sm:$0xff]
      %v8508 = vld [vmem:[#allocation2 + $0x618] sm:$0xff]
      %v8509 = vld [vmem:[#allocation2 + $0x620] sm:$0xff]
      %v8510 = vld [vmem:[#allocation2 + $0x628] sm:$0xff]
      %v8511 = vld [vmem:[#allocation2 + $0x630] sm:$0xff]
      %v8512 = vld [vmem:[#allocation2 + $0x638] sm:$0xff]
      %v8513 = vld [vmem:[#allocation2 + $0x640] sm:$0xff]
      %v8514 = vld [vmem:[#allocation2 + $0x648] sm:$0xff]
      %v8515 = vld [vmem:[#allocation2 + $0x650] sm:$0xff]
      %v8516 = vld [vmem:[#allocation2 + $0x658] sm:$0xff]
      %v8517 = vld [vmem:[#allocation2 + $0x660] sm:$0xff]
      %v8518 = vld [vmem:[#allocation2 + $0x668] sm:$0xff]
      %v8519 = vld [vmem:[#allocation2 + $0x670] sm:$0xff]
      %v8520 = vld [vmem:[#allocation2 + $0x678] sm:$0xff]
      %v8521 = vld [vmem:[#allocation2 + $0x680] sm:$0xff]
      %v8522 = vld [vmem:[#allocation2 + $0x688] sm:$0xff]
      %v8523 = vld [vmem:[#allocation2 + $0x690] sm:$0xff]
      %v8524 = vld [vmem:[#allocation2 + $0x698] sm:$0xff]
      %v8525 = vld [vmem:[#allocation2 + $0x6a0] sm:$0xff]
      %v8526 = vld [vmem:[#allocation2 + $0x6a8] sm:$0xff]
      %v8527 = vld [vmem:[#allocation2 + $0x6b0] sm:$0xff]
      %v8528 = vld [vmem:[#allocation2 + $0x6b8] sm:$0xff]
      %v8529 = vld [vmem:[#allocation2 + $0x6c0] sm:$0xff]
      %v8530 = vld [vmem:[#allocation2 + $0x6c8] sm:$0xff]
      %v8531 = vld [vmem:[#allocation2 + $0x6d0] sm:$0xff]
      %v8532 = vld [vmem:[#allocation2 + $0x6d8] sm:$0xff]
      %v8533 = vld [vmem:[#allocation2 + $0x6e0] sm:$0xff]
      %v8534 = vld [vmem:[#allocation2 + $0x6e8] sm:$0xff]
      %v8535 = vld [vmem:[#allocation2 + $0x6f0] sm:$0xff]
      %v8536 = vld [vmem:[#allocation2 + $0x6f8] sm:$0xff]
      %v8537 = vld [vmem:[#allocation2 + $0x700] sm:$0xff]
      %v8538 = vld [vmem:[#allocation2 + $0x708] sm:$0xff]
      %v8539 = vld [vmem:[#allocation2 + $0x710] sm:$0xff]
      %v8540 = vld [vmem:[#allocation2 + $0x718] sm:$0xff]
      %v8541 = vld [vmem:[#allocation2 + $0x720] sm:$0xff]
      %v8542 = vld [vmem:[#allocation2 + $0x728] sm:$0xff]
      %v8543 = vld [vmem:[#allocation2 + $0x730] sm:$0xff]
      %v8544 = vld [vmem:[#allocation2 + $0x738] sm:$0xff]
      %v8545 = vld [vmem:[#allocation2 + $0x740] sm:$0xff]
      %v8546 = vld [vmem:[#allocation2 + $0x748] sm:$0xff]
      %v8547 = vld [vmem:[#allocation2 + $0x750] sm:$0xff]
      %v8548 = vld [vmem:[#allocation2 + $0x758] sm:$0xff]
      %v8549 = vld [vmem:[#allocation2 + $0x760] sm:$0xff]
      %v8550 = vld [vmem:[#allocation2 + $0x768] sm:$0xff]
      %v8551 = vld [vmem:[#allocation2 + $0x770] sm:$0xff]
      %v8552 = vld [vmem:[#allocation2 + $0x778] sm:$0xff]
      %v8553 = vld [vmem:[#allocation2 + $0x780] sm:$0xff]
      %v8554 = vld [vmem:[#allocation2 + $0x788] sm:$0xff]
      %v8555 = vld [vmem:[#allocation2 + $0x790] sm:$0xff]
      %v8556 = vld [vmem:[#allocation2 + $0x798] sm:$0xff]
      %v8557 = vld [vmem:[#allocation2 + $0x7a0] sm:$0xff]
      %v8558 = vld [vmem:[#allocation2 + $0x7a8] sm:$0xff]
      %v8559 = vld [vmem:[#allocation2 + $0x7b0] sm:$0xff]
      %v8560 = vld [vmem:[#allocation2 + $0x7b8] sm:$0xff]
      %v8561 = vld [vmem:[#allocation2 + $0x7c0] sm:$0xff]
      %v8562 = vld [vmem:[#allocation2 + $0x7c8] sm:$0xff]
      %v8563 = vld [vmem:[#allocation2 + $0x7d0] sm:$0xff]
      %v8564 = vld [vmem:[#allocation2 + $0x7d8] sm:$0xff]
      %v8565 = vld [vmem:[#allocation2 + $0x7e0] sm:$0xff]
      %v8566 = vld [vmem:[#allocation2 + $0x7e8] sm:$0xff]
      %v8567 = vld [vmem:[#allocation2 + $0x7f0] sm:$0xff]
      %v8568 = vld [vmem:[#allocation2 + $0x7f8] sm:$0xff]
      %v8569 = vld [vmem:[#allocation8] sm:$0xff]
      %v8571 = vperm.slane %v8569, 0
      %v8572 = vperm.slane %v8569, 1
      %v8573 = vperm.slane %v8569, 2
      %v8574 = vperm.slane %v8569, 3
      %v8575 = vperm.slane %v8569, 4
      %v8576 = vperm.slane %v8569, 5
      %v8577 = vperm.slane %v8569, 6
      %v8578 = vperm.slane %v8569, 7
      %v8587 = vadd.f32 %v8313, %v8571
      %v8588 = vadd.f32 %v8314, %v8572
      %v8589 = vadd.f32 %v8315, %v8573
      %v8590 = vadd.f32 %v8316, %v8574
      %v8591 = vadd.f32 %v8317, %v8575
      %v8592 = vadd.f32 %v8318, %v8576
      %v8593 = vadd.f32 %v8319, %v8577
      %v8594 = vadd.f32 %v8320, %v8578
      %v8595 = vadd.f32 %v8321, %v8571
      %v8596 = vadd.f32 %v8322, %v8572
      %v8597 = vadd.f32 %v8323, %v8573
      %v8598 = vadd.f32 %v8324, %v8574
      %v8599 = vadd.f32 %v8325, %v8575
      %v8600 = vadd.f32 %v8326, %v8576
      %v8601 = vadd.f32 %v8327, %v8577
      %v8602 = vadd.f32 %v8328, %v8578
      %v8603 = vadd.f32 %v8329, %v8571
      %v8604 = vadd.f32 %v8330, %v8572
      %v8605 = vadd.f32 %v8331, %v8573
      %v8606 = vadd.f32 %v8332, %v8574
      %v8607 = vadd.f32 %v8333, %v8575
      %v8608 = vadd.f32 %v8334, %v8576
      %v8609 = vadd.f32 %v8335, %v8577
      %v8610 = vadd.f32 %v8336, %v8578
      %v8611 = vadd.f32 %v8337, %v8571
      %v8612 = vadd.f32 %v8338, %v8572
      %v8613 = vadd.f32 %v8339, %v8573
      %v8614 = vadd.f32 %v8340, %v8574
      %v8615 = vadd.f32 %v8341, %v8575
      %v8616 = vadd.f32 %v8342, %v8576
      %v8617 = vadd.f32 %v8343, %v8577
      %v8618 = vadd.f32 %v8344, %v8578
      %v8619 = vadd.f32 %v8345, %v8571
      %v8620 = vadd.f32 %v8346, %v8572
      %v8621 = vadd.f32 %v8347, %v8573
      %v8622 = vadd.f32 %v8348, %v8574
      %v8623 = vadd.f32 %v8349, %v8575
      %v8624 = vadd.f32 %v8350, %v8576
      %v8625 = vadd.f32 %v8351, %v8577
      %v8626 = vadd.f32 %v8352, %v8578
      %v8627 = vadd.f32 %v8353, %v8571
      %v8628 = vadd.f32 %v8354, %v8572
      %v8629 = vadd.f32 %v8355, %v8573
      %v8630 = vadd.f32 %v8356, %v8574
      %v8631 = vadd.f32 %v8357, %v8575
      %v8632 = vadd.f32 %v8358, %v8576
      %v8633 = vadd.f32 %v8359, %v8577
      %v8634 = vadd.f32 %v8360, %v8578
      %v8635 = vadd.f32 %v8361, %v8571
      %v8636 = vadd.f32 %v8362, %v8572
      %v8637 = vadd.f32 %v8363, %v8573
      %v8638 = vadd.f32 %v8364, %v8574
      %v8639 = vadd.f32 %v8365, %v8575
      %v8640 = vadd.f32 %v8366, %v8576
      %v8641 = vadd.f32 %v8367, %v8577
      %v8642 = vadd.f32 %v8368, %v8578
      %v8643 = vadd.f32 %v8369, %v8571
      %v8644 = vadd.f32 %v8370, %v8572
      %v8645 = vadd.f32 %v8371, %v8573
      %v8646 = vadd.f32 %v8372, %v8574
      %v8647 = vadd.f32 %v8373, %v8575
      %v8648 = vadd.f32 %v8374, %v8576
      %v8649 = vadd.f32 %v8375, %v8577
      %v8650 = vadd.f32 %v8376, %v8578
      %v8651 = vadd.f32 %v8377, %v8571
      %v8652 = vadd.f32 %v8378, %v8572
      %v8653 = vadd.f32 %v8379, %v8573
      %v8654 = vadd.f32 %v8380, %v8574
      %v8655 = vadd.f32 %v8381, %v8575
      %v8656 = vadd.f32 %v8382, %v8576
      %v8657 = vadd.f32 %v8383, %v8577
      %v8658 = vadd.f32 %v8384, %v8578
      %v8659 = vadd.f32 %v8385, %v8571
      %v8660 = vadd.f32 %v8386, %v8572
      %v8661 = vadd.f32 %v8387, %v8573
      %v8662 = vadd.f32 %v8388, %v8574
      %v8663 = vadd.f32 %v8389, %v8575
      %v8664 = vadd.f32 %v8390, %v8576
      %v8665 = vadd.f32 %v8391, %v8577
      %v8666 = vadd.f32 %v8392, %v8578
      %v8667 = vadd.f32 %v8393, %v8571
      %v8668 = vadd.f32 %v8394, %v8572
      %v8669 = vadd.f32 %v8395, %v8573
      %v8670 = vadd.f32 %v8396, %v8574
      %v8671 = vadd.f32 %v8397, %v8575
      %v8672 = vadd.f32 %v8398, %v8576
      %v8673 = vadd.f32 %v8399, %v8577
      %v8674 = vadd.f32 %v8400, %v8578
      %v8675 = vadd.f32 %v8401, %v8571
      %v8676 = vadd.f32 %v8402, %v8572
      %v8677 = vadd.f32 %v8403, %v8573
      %v8678 = vadd.f32 %v8404, %v8574
      %v8679 = vadd.f32 %v8405, %v8575
      %v8680 = vadd.f32 %v8406, %v8576
      %v8681 = vadd.f32 %v8407, %v8577
      %v8682 = vadd.f32 %v8408, %v8578
      %v8683 = vadd.f32 %v8409, %v8571
      %v8684 = vadd.f32 %v8410, %v8572
      %v8685 = vadd.f32 %v8411, %v8573
      %v8686 = vadd.f32 %v8412, %v8574
      %v8687 = vadd.f32 %v8413, %v8575
      %v8688 = vadd.f32 %v8414, %v8576
      %v8689 = vadd.f32 %v8415, %v8577
      %v8690 = vadd.f32 %v8416, %v8578
      %v8691 = vadd.f32 %v8417, %v8571
      %v8692 = vadd.f32 %v8418, %v8572
      %v8693 = vadd.f32 %v8419, %v8573
      %v8694 = vadd.f32 %v8420, %v8574
      %v8695 = vadd.f32 %v8421, %v8575
      %v8696 = vadd.f32 %v8422, %v8576
      %v8697 = vadd.f32 %v8423, %v8577
      %v8698 = vadd.f32 %v8424, %v8578
      %v8699 = vadd.f32 %v8425, %v8571
      %v8700 = vadd.f32 %v8426, %v8572
      %v8701 = vadd.f32 %v8427, %v8573
      %v8702 = vadd.f32 %v8428, %v8574
      %v8703 = vadd.f32 %v8429, %v8575
      %v8704 = vadd.f32 %v8430, %v8576
      %v8705 = vadd.f32 %v8431, %v8577
      %v8706 = vadd.f32 %v8432, %v8578
      %v8707 = vadd.f32 %v8433, %v8571
      %v8708 = vadd.f32 %v8434, %v8572
      %v8709 = vadd.f32 %v8435, %v8573
      %v8710 = vadd.f32 %v8436, %v8574
      %v8711 = vadd.f32 %v8437, %v8575
      %v8712 = vadd.f32 %v8438, %v8576
      %v8713 = vadd.f32 %v8439, %v8577
      %v8714 = vadd.f32 %v8440, %v8578
      %v8715 = vadd.f32 %v8441, %v8571
      %v8716 = vadd.f32 %v8442, %v8572
      %v8717 = vadd.f32 %v8443, %v8573
      %v8718 = vadd.f32 %v8444, %v8574
      %v8719 = vadd.f32 %v8445, %v8575
      %v8720 = vadd.f32 %v8446, %v8576
      %v8721 = vadd.f32 %v8447, %v8577
      %v8722 = vadd.f32 %v8448, %v8578
      %v8723 = vadd.f32 %v8449, %v8571
      %v8724 = vadd.f32 %v8450, %v8572
      %v8725 = vadd.f32 %v8451, %v8573
      %v8726 = vadd.f32 %v8452, %v8574
      %v8727 = vadd.f32 %v8453, %v8575
      %v8728 = vadd.f32 %v8454, %v8576
      %v8729 = vadd.f32 %v8455, %v8577
      %v8730 = vadd.f32 %v8456, %v8578
      %v8731 = vadd.f32 %v8457, %v8571
      %v8732 = vadd.f32 %v8458, %v8572
      %v8733 = vadd.f32 %v8459, %v8573
      %v8734 = vadd.f32 %v8460, %v8574
      %v8735 = vadd.f32 %v8461, %v8575
      %v8736 = vadd.f32 %v8462, %v8576
      %v8737 = vadd.f32 %v8463, %v8577
      %v8738 = vadd.f32 %v8464, %v8578
      %v8739 = vadd.f32 %v8465, %v8571
      %v8740 = vadd.f32 %v8466, %v8572
      %v8741 = vadd.f32 %v8467, %v8573
      %v8742 = vadd.f32 %v8468, %v8574
      %v8743 = vadd.f32 %v8469, %v8575
      %v8744 = vadd.f32 %v8470, %v8576
      %v8745 = vadd.f32 %v8471, %v8577
      %v8746 = vadd.f32 %v8472, %v8578
      %v8747 = vadd.f32 %v8473, %v8571
      %v8748 = vadd.f32 %v8474, %v8572
      %v8749 = vadd.f32 %v8475, %v8573
      %v8750 = vadd.f32 %v8476, %v8574
      %v8751 = vadd.f32 %v8477, %v8575
      %v8752 = vadd.f32 %v8478, %v8576
      %v8753 = vadd.f32 %v8479, %v8577
      %v8754 = vadd.f32 %v8480, %v8578
      %v8755 = vadd.f32 %v8481, %v8571
      %v8756 = vadd.f32 %v8482, %v8572
      %v8757 = vadd.f32 %v8483, %v8573
      %v8758 = vadd.f32 %v8484, %v8574
      %v8759 = vadd.f32 %v8485, %v8575
      %v8760 = vadd.f32 %v8486, %v8576
      %v8761 = vadd.f32 %v8487, %v8577
      %v8762 = vadd.f32 %v8488, %v8578
      %v8763 = vadd.f32 %v8489, %v8571
      %v8764 = vadd.f32 %v8490, %v8572
      %v8765 = vadd.f32 %v8491, %v8573
      %v8766 = vadd.f32 %v8492, %v8574
      %v8767 = vadd.f32 %v8493, %v8575
      %v8768 = vadd.f32 %v8494, %v8576
      %v8769 = vadd.f32 %v8495, %v8577
      %v8770 = vadd.f32 %v8496, %v8578
      %v8771 = vadd.f32 %v8497, %v8571
      %v8772 = vadd.f32 %v8498, %v8572
      %v8773 = vadd.f32 %v8499, %v8573
      %v8774 = vadd.f32 %v8500, %v8574
      %v8775 = vadd.f32 %v8501, %v8575
      %v8776 = vadd.f32 %v8502, %v8576
      %v8777 = vadd.f32 %v8503, %v8577
      %v8778 = vadd.f32 %v8504, %v8578
      %v8779 = vadd.f32 %v8505, %v8571
      %v8780 = vadd.f32 %v8506, %v8572
      %v8781 = vadd.f32 %v8507, %v8573
      %v8782 = vadd.f32 %v8508, %v8574
      %v8783 = vadd.f32 %v8509, %v8575
      %v8784 = vadd.f32 %v8510, %v8576
      %v8785 = vadd.f32 %v8511, %v8577
      %v8786 = vadd.f32 %v8512, %v8578
      %v8787 = vadd.f32 %v8513, %v8571
      %v8788 = vadd.f32 %v8514, %v8572
      %v8789 = vadd.f32 %v8515, %v8573
      %v8790 = vadd.f32 %v8516, %v8574
      %v8791 = vadd.f32 %v8517, %v8575
      %v8792 = vadd.f32 %v8518, %v8576
      %v8793 = vadd.f32 %v8519, %v8577
      %v8794 = vadd.f32 %v8520, %v8578
      %v8795 = vadd.f32 %v8521, %v8571
      %v8796 = vadd.f32 %v8522, %v8572
      %v8797 = vadd.f32 %v8523, %v8573
      %v8798 = vadd.f32 %v8524, %v8574
      %v8799 = vadd.f32 %v8525, %v8575
      %v8800 = vadd.f32 %v8526, %v8576
      %v8801 = vadd.f32 %v8527, %v8577
      %v8802 = vadd.f32 %v8528, %v8578
      %v8803 = vadd.f32 %v8529, %v8571
      %v8804 = vadd.f32 %v8530, %v8572
      %v8805 = vadd.f32 %v8531, %v8573
      %v8806 = vadd.f32 %v8532, %v8574
      %v8807 = vadd.f32 %v8533, %v8575
      %v8808 = vadd.f32 %v8534, %v8576
      %v8809 = vadd.f32 %v8535, %v8577
      %v8810 = vadd.f32 %v8536, %v8578
      %v8811 = vadd.f32 %v8537, %v8571
      %v8812 = vadd.f32 %v8538, %v8572
      %v8813 = vadd.f32 %v8539, %v8573
      %v8814 = vadd.f32 %v8540, %v8574
      %v8815 = vadd.f32 %v8541, %v8575
      %v8816 = vadd.f32 %v8542, %v8576
      %v8817 = vadd.f32 %v8543, %v8577
      %v8818 = vadd.f32 %v8544, %v8578
      %v8819 = vadd.f32 %v8545, %v8571
      %v8820 = vadd.f32 %v8546, %v8572
      %v8821 = vadd.f32 %v8547, %v8573
      %v8822 = vadd.f32 %v8548, %v8574
      %v8823 = vadd.f32 %v8549, %v8575
      %v8824 = vadd.f32 %v8550, %v8576
      %v8825 = vadd.f32 %v8551, %v8577
      %v8826 = vadd.f32 %v8552, %v8578
      %v8827 = vadd.f32 %v8553, %v8571
      %v8828 = vadd.f32 %v8554, %v8572
      %v8829 = vadd.f32 %v8555, %v8573
      %v8830 = vadd.f32 %v8556, %v8574
      %v8831 = vadd.f32 %v8557, %v8575
      %v8832 = vadd.f32 %v8558, %v8576
      %v8833 = vadd.f32 %v8559, %v8577
      %v8834 = vadd.f32 %v8560, %v8578
      %v8835 = vadd.f32 %v8561, %v8571
      %v8836 = vadd.f32 %v8562, %v8572
      %v8837 = vadd.f32 %v8563, %v8573
      %v8838 = vadd.f32 %v8564, %v8574
      %v8839 = vadd.f32 %v8565, %v8575
      %v8840 = vadd.f32 %v8566, %v8576
      %v8841 = vadd.f32 %v8567, %v8577
      %v8842 = vadd.f32 %v8568, %v8578
      %v8843 = vmax.f32 %v8587, 0.0
      %v8844 = vmax.f32 %v8588, 0.0
      %v8845 = vmax.f32 %v8589, 0.0
      %v8846 = vmax.f32 %v8590, 0.0
      %v8847 = vmax.f32 %v8591, 0.0
      %v8848 = vmax.f32 %v8592, 0.0
      %v8849 = vmax.f32 %v8593, 0.0
      %v8850 = vmax.f32 %v8594, 0.0
      %v8851 = vmax.f32 %v8595, 0.0
      %v8852 = vmax.f32 %v8596, 0.0
      %v8853 = vmax.f32 %v8597, 0.0
      %v8854 = vmax.f32 %v8598, 0.0
      %v8855 = vmax.f32 %v8599, 0.0
      %v8856 = vmax.f32 %v8600, 0.0
      %v8857 = vmax.f32 %v8601, 0.0
      %v8858 = vmax.f32 %v8602, 0.0
      %v8859 = vmax.f32 %v8603, 0.0
      %v8860 = vmax.f32 %v8604, 0.0
      %v8861 = vmax.f32 %v8605, 0.0
      %v8862 = vmax.f32 %v8606, 0.0
      %v8863 = vmax.f32 %v8607, 0.0
      %v8864 = vmax.f32 %v8608, 0.0
      %v8865 = vmax.f32 %v8609, 0.0
      %v8866 = vmax.f32 %v8610, 0.0
      %v8867 = vmax.f32 %v8611, 0.0
      %v8868 = vmax.f32 %v8612, 0.0
      %v8869 = vmax.f32 %v8613, 0.0
      %v8870 = vmax.f32 %v8614, 0.0
      %v8871 = vmax.f32 %v8615, 0.0
      %v8872 = vmax.f32 %v8616, 0.0
      %v8873 = vmax.f32 %v8617, 0.0
      %v8874 = vmax.f32 %v8618, 0.0
      %v8875 = vmax.f32 %v8619, 0.0
      %v8876 = vmax.f32 %v8620, 0.0
      %v8877 = vmax.f32 %v8621, 0.0
      %v8878 = vmax.f32 %v8622, 0.0
      %v8879 = vmax.f32 %v8623, 0.0
      %v8880 = vmax.f32 %v8624, 0.0
      %v8881 = vmax.f32 %v8625, 0.0
      %v8882 = vmax.f32 %v8626, 0.0
      %v8883 = vmax.f32 %v8627, 0.0
      %v8884 = vmax.f32 %v8628, 0.0
      %v8885 = vmax.f32 %v8629, 0.0
      %v8886 = vmax.f32 %v8630, 0.0
      %v8887 = vmax.f32 %v8631, 0.0
      %v8888 = vmax.f32 %v8632, 0.0
      %v8889 = vmax.f32 %v8633, 0.0
      %v8890 = vmax.f32 %v8634, 0.0
      %v8891 = vmax.f32 %v8635, 0.0
      %v8892 = vmax.f32 %v8636, 0.0
      %v8893 = vmax.f32 %v8637, 0.0
      %v8894 = vmax.f32 %v8638, 0.0
      %v8895 = vmax.f32 %v8639, 0.0
      %v8896 = vmax.f32 %v8640, 0.0
      %v8897 = vmax.f32 %v8641, 0.0
      %v8898 = vmax.f32 %v8642, 0.0
      %v8899 = vmax.f32 %v8643, 0.0
      %v8900 = vmax.f32 %v8644, 0.0
      %v8901 = vmax.f32 %v8645, 0.0
      %v8902 = vmax.f32 %v8646, 0.0
      %v8903 = vmax.f32 %v8647, 0.0
      %v8904 = vmax.f32 %v8648, 0.0
      %v8905 = vmax.f32 %v8649, 0.0
      %v8906 = vmax.f32 %v8650, 0.0
      %v8907 = vmax.f32 %v8651, 0.0
      %v8908 = vmax.f32 %v8652, 0.0
      %v8909 = vmax.f32 %v8653, 0.0
      %v8910 = vmax.f32 %v8654, 0.0
      %v8911 = vmax.f32 %v8655, 0.0
      %v8912 = vmax.f32 %v8656, 0.0
      %v8913 = vmax.f32 %v8657, 0.0
      %v8914 = vmax.f32 %v8658, 0.0
      %v8915 = vmax.f32 %v8659, 0.0
      %v8916 = vmax.f32 %v8660, 0.0
      %v8917 = vmax.f32 %v8661, 0.0
      %v8918 = vmax.f32 %v8662, 0.0
      %v8919 = vmax.f32 %v8663, 0.0
      %v8920 = vmax.f32 %v8664, 0.0
      %v8921 = vmax.f32 %v8665, 0.0
      %v8922 = vmax.f32 %v8666, 0.0
      %v8923 = vmax.f32 %v8667, 0.0
      %v8924 = vmax.f32 %v8668, 0.0
      %v8925 = vmax.f32 %v8669, 0.0
      %v8926 = vmax.f32 %v8670, 0.0
      %v8927 = vmax.f32 %v8671, 0.0
      %v8928 = vmax.f32 %v8672, 0.0
      %v8929 = vmax.f32 %v8673, 0.0
      %v8930 = vmax.f32 %v8674, 0.0
      %v8931 = vmax.f32 %v8675, 0.0
      %v8932 = vmax.f32 %v8676, 0.0
      %v8933 = vmax.f32 %v8677, 0.0
      %v8934 = vmax.f32 %v8678, 0.0
      %v8935 = vmax.f32 %v8679, 0.0
      %v8936 = vmax.f32 %v8680, 0.0
      %v8937 = vmax.f32 %v8681, 0.0
      %v8938 = vmax.f32 %v8682, 0.0
      %v8939 = vmax.f32 %v8683, 0.0
      %v8940 = vmax.f32 %v8684, 0.0
      %v8941 = vmax.f32 %v8685, 0.0
      %v8942 = vmax.f32 %v8686, 0.0
      %v8943 = vmax.f32 %v8687, 0.0
      %v8944 = vmax.f32 %v8688, 0.0
      %v8945 = vmax.f32 %v8689, 0.0
      %v8946 = vmax.f32 %v8690, 0.0
      %v8947 = vmax.f32 %v8691, 0.0
      %v8948 = vmax.f32 %v8692, 0.0
      %v8949 = vmax.f32 %v8693, 0.0
      %v8950 = vmax.f32 %v8694, 0.0
      %v8951 = vmax.f32 %v8695, 0.0
      %v8952 = vmax.f32 %v8696, 0.0
      %v8953 = vmax.f32 %v8697, 0.0
      %v8954 = vmax.f32 %v8698, 0.0
      %v8955 = vmax.f32 %v8699, 0.0
      %v8956 = vmax.f32 %v8700, 0.0
      %v8957 = vmax.f32 %v8701, 0.0
      %v8958 = vmax.f32 %v8702, 0.0
      %v8959 = vmax.f32 %v8703, 0.0
      %v8960 = vmax.f32 %v8704, 0.0
      %v8961 = vmax.f32 %v8705, 0.0
      %v8962 = vmax.f32 %v8706, 0.0
      %v8963 = vmax.f32 %v8707, 0.0
      %v8964 = vmax.f32 %v8708, 0.0
      %v8965 = vmax.f32 %v8709, 0.0
      %v8966 = vmax.f32 %v8710, 0.0
      %v8967 = vmax.f32 %v8711, 0.0
      %v8968 = vmax.f32 %v8712, 0.0
      %v8969 = vmax.f32 %v8713, 0.0
      %v8970 = vmax.f32 %v8714, 0.0
      %v8971 = vmax.f32 %v8715, 0.0
      %v8972 = vmax.f32 %v8716, 0.0
      %v8973 = vmax.f32 %v8717, 0.0
      %v8974 = vmax.f32 %v8718, 0.0
      %v8975 = vmax.f32 %v8719, 0.0
      %v8976 = vmax.f32 %v8720, 0.0
      %v8977 = vmax.f32 %v8721, 0.0
      %v8978 = vmax.f32 %v8722, 0.0
      %v8979 = vmax.f32 %v8723, 0.0
      %v8980 = vmax.f32 %v8724, 0.0
      %v8981 = vmax.f32 %v8725, 0.0
      %v8982 = vmax.f32 %v8726, 0.0
      %v8983 = vmax.f32 %v8727, 0.0
      %v8984 = vmax.f32 %v8728, 0.0
      %v8985 = vmax.f32 %v8729, 0.0
      %v8986 = vmax.f32 %v8730, 0.0
      %v8987 = vmax.f32 %v8731, 0.0
      %v8988 = vmax.f32 %v8732, 0.0
      %v8989 = vmax.f32 %v8733, 0.0
      %v8990 = vmax.f32 %v8734, 0.0
      %v8991 = vmax.f32 %v8735, 0.0
      %v8992 = vmax.f32 %v8736, 0.0
      %v8993 = vmax.f32 %v8737, 0.0
      %v8994 = vmax.f32 %v8738, 0.0
      %v8995 = vmax.f32 %v8739, 0.0
      %v8996 = vmax.f32 %v8740, 0.0
      %v8997 = vmax.f32 %v8741, 0.0
      %v8998 = vmax.f32 %v8742, 0.0
      %v8999 = vmax.f32 %v8743, 0.0
      %v9000 = vmax.f32 %v8744, 0.0
      %v9001 = vmax.f32 %v8745, 0.0
      %v9002 = vmax.f32 %v8746, 0.0
      %v9003 = vmax.f32 %v8747, 0.0
      %v9004 = vmax.f32 %v8748, 0.0
      %v9005 = vmax.f32 %v8749, 0.0
      %v9006 = vmax.f32 %v8750, 0.0
      %v9007 = vmax.f32 %v8751, 0.0
      %v9008 = vmax.f32 %v8752, 0.0
      %v9009 = vmax.f32 %v8753, 0.0
      %v9010 = vmax.f32 %v8754, 0.0
      %v9011 = vmax.f32 %v8755, 0.0
      %v9012 = vmax.f32 %v8756, 0.0
      %v9013 = vmax.f32 %v8757, 0.0
      %v9014 = vmax.f32 %v8758, 0.0
      %v9015 = vmax.f32 %v8759, 0.0
      %v9016 = vmax.f32 %v8760, 0.0
      %v9017 = vmax.f32 %v8761, 0.0
      %v9018 = vmax.f32 %v8762, 0.0
      %v9019 = vmax.f32 %v8763, 0.0
      %v9020 = vmax.f32 %v8764, 0.0
      %v9021 = vmax.f32 %v8765, 0.0
      %v9022 = vmax.f32 %v8766, 0.0
      %v9023 = vmax.f32 %v8767, 0.0
      %v9024 = vmax.f32 %v8768, 0.0
      %v9025 = vmax.f32 %v8769, 0.0
      %v9026 = vmax.f32 %v8770, 0.0
      %v9027 = vmax.f32 %v8771, 0.0
      %v9028 = vmax.f32 %v8772, 0.0
      %v9029 = vmax.f32 %v8773, 0.0
      %v9030 = vmax.f32 %v8774, 0.0
      %v9031 = vmax.f32 %v8775, 0.0
      %v9032 = vmax.f32 %v8776, 0.0
      %v9033 = vmax.f32 %v8777, 0.0
      %v9034 = vmax.f32 %v8778, 0.0
      %v9035 = vmax.f32 %v8779, 0.0
      %v9036 = vmax.f32 %v8780, 0.0
      %v9037 = vmax.f32 %v8781, 0.0
      %v9038 = vmax.f32 %v8782, 0.0
      %v9039 = vmax.f32 %v8783, 0.0
      %v9040 = vmax.f32 %v8784, 0.0
      %v9041 = vmax.f32 %v8785, 0.0
      %v9042 = vmax.f32 %v8786, 0.0
      %v9043 = vmax.f32 %v8787, 0.0
      %v9044 = vmax.f32 %v8788, 0.0
      %v9045 = vmax.f32 %v8789, 0.0
      %v9046 = vmax.f32 %v8790, 0.0
      %v9047 = vmax.f32 %v8791, 0.0
      %v9048 = vmax.f32 %v8792, 0.0
      %v9049 = vmax.f32 %v8793, 0.0
      %v9050 = vmax.f32 %v8794, 0.0
      %v9051 = vmax.f32 %v8795, 0.0
      %v9052 = vmax.f32 %v8796, 0.0
      %v9053 = vmax.f32 %v8797, 0.0
      %v9054 = vmax.f32 %v8798, 0.0
      %v9055 = vmax.f32 %v8799, 0.0
      %v9056 = vmax.f32 %v8800, 0.0
      %v9057 = vmax.f32 %v8801, 0.0
      %v9058 = vmax.f32 %v8802, 0.0
      %v9059 = vmax.f32 %v8803, 0.0
      %v9060 = vmax.f32 %v8804, 0.0
      %v9061 = vmax.f32 %v8805, 0.0
      %v9062 = vmax.f32 %v8806, 0.0
      %v9063 = vmax.f32 %v8807, 0.0
      %v9064 = vmax.f32 %v8808, 0.0
      %v9065 = vmax.f32 %v8809, 0.0
      %v9066 = vmax.f32 %v8810, 0.0
      %v9067 = vmax.f32 %v8811, 0.0
      %v9068 = vmax.f32 %v8812, 0.0
      %v9069 = vmax.f32 %v8813, 0.0
      %v9070 = vmax.f32 %v8814, 0.0
      %v9071 = vmax.f32 %v8815, 0.0
      %v9072 = vmax.f32 %v8816, 0.0
      %v9073 = vmax.f32 %v8817, 0.0
      %v9074 = vmax.f32 %v8818, 0.0
      %v9075 = vmax.f32 %v8819, 0.0
      %v9076 = vmax.f32 %v8820, 0.0
      %v9077 = vmax.f32 %v8821, 0.0
      %v9078 = vmax.f32 %v8822, 0.0
      %v9079 = vmax.f32 %v8823, 0.0
      %v9080 = vmax.f32 %v8824, 0.0
      %v9081 = vmax.f32 %v8825, 0.0
      %v9082 = vmax.f32 %v8826, 0.0
      %v9083 = vmax.f32 %v8827, 0.0
      %v9084 = vmax.f32 %v8828, 0.0
      %v9085 = vmax.f32 %v8829, 0.0
      %v9086 = vmax.f32 %v8830, 0.0
      %v9087 = vmax.f32 %v8831, 0.0
      %v9088 = vmax.f32 %v8832, 0.0
      %v9089 = vmax.f32 %v8833, 0.0
      %v9090 = vmax.f32 %v8834, 0.0
      %v9091 = vmax.f32 %v8835, 0.0
      %v9092 = vmax.f32 %v8836, 0.0
      %v9093 = vmax.f32 %v8837, 0.0
      %v9094 = vmax.f32 %v8838, 0.0
      %v9095 = vmax.f32 %v8839, 0.0
      %v9096 = vmax.f32 %v8840, 0.0
      %v9097 = vmax.f32 %v8841, 0.0
      %v9098 = vmax.f32 %v8842, 0.0
      %v9099 = vpack.c.bf16 %v8851, %v8843
      %v9100 = vpack.c.bf16 %v8852, %v8844
      %v9101 = vpack.c.bf16 %v8853, %v8845
      %v9102 = vpack.c.bf16 %v8854, %v8846
      %v9103 = vpack.c.bf16 %v8855, %v8847
      %v9104 = vpack.c.bf16 %v8856, %v8848
      %v9105 = vpack.c.bf16 %v8857, %v8849
      %v9106 = vpack.c.bf16 %v8858, %v8850
      %v9107 = vpack.c.bf16 %v8867, %v8859
      %v9108 = vpack.c.bf16 %v8868, %v8860
      %v9109 = vpack.c.bf16 %v8869, %v8861
      %v9110 = vpack.c.bf16 %v8870, %v8862
      %v9111 = vpack.c.bf16 %v8871, %v8863
      %v9112 = vpack.c.bf16 %v8872, %v8864
      %v9113 = vpack.c.bf16 %v8873, %v8865
      %v9114 = vpack.c.bf16 %v8874, %v8866
      %v9115 = vpack.c.bf16 %v8883, %v8875
      %v9116 = vpack.c.bf16 %v8884, %v8876
      %v9117 = vpack.c.bf16 %v8885, %v8877
      %v9118 = vpack.c.bf16 %v8886, %v8878
      %v9119 = vpack.c.bf16 %v8887, %v8879
      %v9120 = vpack.c.bf16 %v8888, %v8880
      %v9121 = vpack.c.bf16 %v8889, %v8881
      %v9122 = vpack.c.bf16 %v8890, %v8882
      %v9123 = vpack.c.bf16 %v8899, %v8891
      %v9124 = vpack.c.bf16 %v8900, %v8892
      %v9125 = vpack.c.bf16 %v8901, %v8893
      %v9126 = vpack.c.bf16 %v8902, %v8894
      %v9127 = vpack.c.bf16 %v8903, %v8895
      %v9128 = vpack.c.bf16 %v8904, %v8896
      %v9129 = vpack.c.bf16 %v8905, %v8897
      %v9130 = vpack.c.bf16 %v8906, %v8898
      %v9131 = vpack.c.bf16 %v8915, %v8907
      %v9132 = vpack.c.bf16 %v8916, %v8908
      %v9133 = vpack.c.bf16 %v8917, %v8909
      %v9134 = vpack.c.bf16 %v8918, %v8910
      %v9135 = vpack.c.bf16 %v8919, %v8911
      %v9136 = vpack.c.bf16 %v8920, %v8912
      %v9137 = vpack.c.bf16 %v8921, %v8913
      %v9138 = vpack.c.bf16 %v8922, %v8914
      %v9139 = vpack.c.bf16 %v8931, %v8923
      %v9140 = vpack.c.bf16 %v8932, %v8924
      %v9141 = vpack.c.bf16 %v8933, %v8925
      %v9142 = vpack.c.bf16 %v8934, %v8926
      %v9143 = vpack.c.bf16 %v8935, %v8927
      %v9144 = vpack.c.bf16 %v8936, %v8928
      %v9145 = vpack.c.bf16 %v8937, %v8929
      %v9146 = vpack.c.bf16 %v8938, %v8930
      %v9147 = vpack.c.bf16 %v8947, %v8939
      %v9148 = vpack.c.bf16 %v8948, %v8940
      %v9149 = vpack.c.bf16 %v8949, %v8941
      %v9150 = vpack.c.bf16 %v8950, %v8942
      %v9151 = vpack.c.bf16 %v8951, %v8943
      %v9152 = vpack.c.bf16 %v8952, %v8944
      %v9153 = vpack.c.bf16 %v8953, %v8945
      %v9154 = vpack.c.bf16 %v8954, %v8946
      %v9155 = vpack.c.bf16 %v8963, %v8955
      %v9156 = vpack.c.bf16 %v8964, %v8956
      %v9157 = vpack.c.bf16 %v8965, %v8957
      %v9158 = vpack.c.bf16 %v8966, %v8958
      %v9159 = vpack.c.bf16 %v8967, %v8959
      %v9160 = vpack.c.bf16 %v8968, %v8960
      %v9161 = vpack.c.bf16 %v8969, %v8961
      %v9162 = vpack.c.bf16 %v8970, %v8962
      %v9163 = vpack.c.bf16 %v8979, %v8971
      %v9164 = vpack.c.bf16 %v8980, %v8972
      %v9165 = vpack.c.bf16 %v8981, %v8973
      %v9166 = vpack.c.bf16 %v8982, %v8974
      %v9167 = vpack.c.bf16 %v8983, %v8975
      %v9168 = vpack.c.bf16 %v8984, %v8976
      %v9169 = vpack.c.bf16 %v8985, %v8977
      %v9170 = vpack.c.bf16 %v8986, %v8978
      %v9171 = vpack.c.bf16 %v8995, %v8987
      %v9172 = vpack.c.bf16 %v8996, %v8988
      %v9173 = vpack.c.bf16 %v8997, %v8989
      %v9174 = vpack.c.bf16 %v8998, %v8990
      %v9175 = vpack.c.bf16 %v8999, %v8991
      %v9176 = vpack.c.bf16 %v9000, %v8992
      %v9177 = vpack.c.bf16 %v9001, %v8993
      %v9178 = vpack.c.bf16 %v9002, %v8994
      %v9179 = vpack.c.bf16 %v9011, %v9003
      %v9180 = vpack.c.bf16 %v9012, %v9004
      %v9181 = vpack.c.bf16 %v9013, %v9005
      %v9182 = vpack.c.bf16 %v9014, %v9006
      %v9183 = vpack.c.bf16 %v9015, %v9007
      %v9184 = vpack.c.bf16 %v9016, %v9008
      %v9185 = vpack.c.bf16 %v9017, %v9009
      %v9186 = vpack.c.bf16 %v9018, %v9010
      %v9187 = vpack.c.bf16 %v9027, %v9019
      %v9188 = vpack.c.bf16 %v9028, %v9020
      %v9189 = vpack.c.bf16 %v9029, %v9021
      %v9190 = vpack.c.bf16 %v9030, %v9022
      %v9191 = vpack.c.bf16 %v9031, %v9023
      %v9192 = vpack.c.bf16 %v9032, %v9024
      %v9193 = vpack.c.bf16 %v9033, %v9025
      %v9194 = vpack.c.bf16 %v9034, %v9026
      %v9195 = vpack.c.bf16 %v9043, %v9035
      %v9196 = vpack.c.bf16 %v9044, %v9036
      %v9197 = vpack.c.bf16 %v9045, %v9037
      %v9198 = vpack.c.bf16 %v9046, %v9038
      %v9199 = vpack.c.bf16 %v9047, %v9039
      %v9200 = vpack.c.bf16 %v9048, %v9040
      %v9201 = vpack.c.bf16 %v9049, %v9041
      %v9202 = vpack.c.bf16 %v9050, %v9042
      %v9203 = vpack.c.bf16 %v9059, %v9051
      %v9204 = vpack.c.bf16 %v9060, %v9052
      %v9205 = vpack.c.bf16 %v9061, %v9053
      %v9206 = vpack.c.bf16 %v9062, %v9054
      %v9207 = vpack.c.bf16 %v9063, %v9055
      %v9208 = vpack.c.bf16 %v9064, %v9056
      %v9209 = vpack.c.bf16 %v9065, %v9057
      %v9210 = vpack.c.bf16 %v9066, %v9058
      %v9211 = vpack.c.bf16 %v9075, %v9067
      %v9212 = vpack.c.bf16 %v9076, %v9068
      %v9213 = vpack.c.bf16 %v9077, %v9069
      %v9214 = vpack.c.bf16 %v9078, %v9070
      %v9215 = vpack.c.bf16 %v9079, %v9071
      %v9216 = vpack.c.bf16 %v9080, %v9072
      %v9217 = vpack.c.bf16 %v9081, %v9073
      %v9218 = vpack.c.bf16 %v9082, %v9074
      %v9219 = vpack.c.bf16 %v9091, %v9083
      %v9220 = vpack.c.bf16 %v9092, %v9084
      %v9221 = vpack.c.bf16 %v9093, %v9085
      %v9222 = vpack.c.bf16 %v9094, %v9086
      %v9223 = vpack.c.bf16 %v9095, %v9087
      %v9224 = vpack.c.bf16 %v9096, %v9088
      %v9225 = vpack.c.bf16 %v9097, %v9089
      %v9226 = vpack.c.bf16 %v9098, %v9090
      %v9227 = vld [vmem:[#allocation9] sm:$0xf]
      %v9228 = vld [vmem:[#allocation9 + $0x4] sm:$0xf]
      %v9229 = vld [vmem:[#allocation9 + $0x8] sm:$0xf]
      %v9230 = vld [vmem:[#allocation9 + $0xc] sm:$0xf]
      %v9231 = vld [vmem:[#allocation9 + $0x10] sm:$0xf]
      %v9232 = vld [vmem:[#allocation9 + $0x14] sm:$0xf]
      %v9233 = vld [vmem:[#allocation9 + $0x18] sm:$0xf]
      %v9234 = vld [vmem:[#allocation9 + $0x1c] sm:$0xf]
      %v9235 = vld [vmem:[#allocation9 + $0x20] sm:$0xf]
      %v9236 = vld [vmem:[#allocation9 + $0x24] sm:$0xf]
      %v9237 = vld [vmem:[#allocation9 + $0x28] sm:$0xf]
      %v9238 = vld [vmem:[#allocation9 + $0x2c] sm:$0xf]
      %v9239 = vld [vmem:[#allocation9 + $0x30] sm:$0xf]
      %v9240 = vld [vmem:[#allocation9 + $0x34] sm:$0xf]
      %v9241 = vld [vmem:[#allocation9 + $0x38] sm:$0xf]
      %v9242 = vld [vmem:[#allocation9 + $0x3c] sm:$0xf]
      %v9243 = vld [vmem:[#allocation9 + $0x40] sm:$0xf]
      %v9244 = vld [vmem:[#allocation9 + $0x44] sm:$0xf]
      %v9245 = vld [vmem:[#allocation9 + $0x48] sm:$0xf]
      %v9246 = vld [vmem:[#allocation9 + $0x4c] sm:$0xf]
      %v9247 = vld [vmem:[#allocation9 + $0x50] sm:$0xf]
      %v9248 = vld [vmem:[#allocation9 + $0x54] sm:$0xf]
      %v9249 = vld [vmem:[#allocation9 + $0x58] sm:$0xf]
      %v9250 = vld [vmem:[#allocation9 + $0x5c] sm:$0xf]
      %v9251 = vld [vmem:[#allocation9 + $0x60] sm:$0xf]
      %v9252 = vld [vmem:[#allocation9 + $0x64] sm:$0xf]
      %v9253 = vld [vmem:[#allocation9 + $0x68] sm:$0xf]
      %v9254 = vld [vmem:[#allocation9 + $0x6c] sm:$0xf]
      %v9255 = vld [vmem:[#allocation9 + $0x70] sm:$0xf]
      %v9256 = vld [vmem:[#allocation9 + $0x74] sm:$0xf]
      %v9257 = vld [vmem:[#allocation9 + $0x78] sm:$0xf]
      %v9258 = vld [vmem:[#allocation9 + $0x7c] sm:$0xf]
      %v9259 = vld [vmem:[#allocation9 + $0x80] sm:$0xf]
      %v9260 = vld [vmem:[#allocation9 + $0x84] sm:$0xf]
      %v9261 = vld [vmem:[#allocation9 + $0x88] sm:$0xf]
      %v9262 = vld [vmem:[#allocation9 + $0x8c] sm:$0xf]
      %v9263 = vld [vmem:[#allocation9 + $0x90] sm:$0xf]
      %v9264 = vld [vmem:[#allocation9 + $0x94] sm:$0xf]
      %v9265 = vld [vmem:[#allocation9 + $0x98] sm:$0xf]
      %v9266 = vld [vmem:[#allocation9 + $0x9c] sm:$0xf]
      %v9267 = vld [vmem:[#allocation9 + $0xa0] sm:$0xf]
      %v9268 = vld [vmem:[#allocation9 + $0xa4] sm:$0xf]
      %v9269 = vld [vmem:[#allocation9 + $0xa8] sm:$0xf]
      %v9270 = vld [vmem:[#allocation9 + $0xac] sm:$0xf]
      %v9271 = vld [vmem:[#allocation9 + $0xb0] sm:$0xf]
      %v9272 = vld [vmem:[#allocation9 + $0xb4] sm:$0xf]
      %v9273 = vld [vmem:[#allocation9 + $0xb8] sm:$0xf]
      %v9274 = vld [vmem:[#allocation9 + $0xbc] sm:$0xf]
      %v9275 = vld [vmem:[#allocation9 + $0xc0] sm:$0xf]
      %v9276 = vld [vmem:[#allocation9 + $0xc4] sm:$0xf]
      %v9277 = vld [vmem:[#allocation9 + $0xc8] sm:$0xf]
      %v9278 = vld [vmem:[#allocation9 + $0xcc] sm:$0xf]
      %v9279 = vld [vmem:[#allocation9 + $0xd0] sm:$0xf]
      %v9280 = vld [vmem:[#allocation9 + $0xd4] sm:$0xf]
      %v9281 = vld [vmem:[#allocation9 + $0xd8] sm:$0xf]
      %v9282 = vld [vmem:[#allocation9 + $0xdc] sm:$0xf]
      %v9283 = vld [vmem:[#allocation9 + $0xe0] sm:$0xf]
      %v9284 = vld [vmem:[#allocation9 + $0xe4] sm:$0xf]
      %v9285 = vld [vmem:[#allocation9 + $0xe8] sm:$0xf]
      %v9286 = vld [vmem:[#allocation9 + $0xec] sm:$0xf]
      %v9287 = vld [vmem:[#allocation9 + $0xf0] sm:$0xf]
      %v9288 = vld [vmem:[#allocation9 + $0xf4] sm:$0xf]
      %v9289 = vld [vmem:[#allocation9 + $0xf8] sm:$0xf]
      %v9290 = vld [vmem:[#allocation9 + $0xfc] sm:$0xf]
      %v9291 = vld [vmem:[#allocation9 + $0x100] sm:$0xf]
      %v9292 = vld [vmem:[#allocation9 + $0x104] sm:$0xf]
      %v9293 = vld [vmem:[#allocation9 + $0x108] sm:$0xf]
      %v9294 = vld [vmem:[#allocation9 + $0x10c] sm:$0xf]
      %v9295 = vld [vmem:[#allocation9 + $0x110] sm:$0xf]
      %v9296 = vld [vmem:[#allocation9 + $0x114] sm:$0xf]
      %v9297 = vld [vmem:[#allocation9 + $0x118] sm:$0xf]
      %v9298 = vld [vmem:[#allocation9 + $0x11c] sm:$0xf]
      %v9299 = vld [vmem:[#allocation9 + $0x120] sm:$0xf]
      %v9300 = vld [vmem:[#allocation9 + $0x124] sm:$0xf]
      %v9301 = vld [vmem:[#allocation9 + $0x128] sm:$0xf]
      %v9302 = vld [vmem:[#allocation9 + $0x12c] sm:$0xf]
      %v9303 = vld [vmem:[#allocation9 + $0x130] sm:$0xf]
      %v9304 = vld [vmem:[#allocation9 + $0x134] sm:$0xf]
      %v9305 = vld [vmem:[#allocation9 + $0x138] sm:$0xf]
      %v9306 = vld [vmem:[#allocation9 + $0x13c] sm:$0xf]
      %v9307 = vld [vmem:[#allocation9 + $0x140] sm:$0xf]
      %v9308 = vld [vmem:[#allocation9 + $0x144] sm:$0xf]
      %v9309 = vld [vmem:[#allocation9 + $0x148] sm:$0xf]
      %v9310 = vld [vmem:[#allocation9 + $0x14c] sm:$0xf]
      %v9311 = vld [vmem:[#allocation9 + $0x150] sm:$0xf]
      %v9312 = vld [vmem:[#allocation9 + $0x154] sm:$0xf]
      %v9313 = vld [vmem:[#allocation9 + $0x158] sm:$0xf]
      %v9314 = vld [vmem:[#allocation9 + $0x15c] sm:$0xf]
      %v9315 = vld [vmem:[#allocation9 + $0x160] sm:$0xf]
      %v9316 = vld [vmem:[#allocation9 + $0x164] sm:$0xf]
      %v9317 = vld [vmem:[#allocation9 + $0x168] sm:$0xf]
      %v9318 = vld [vmem:[#allocation9 + $0x16c] sm:$0xf]
      %v9319 = vld [vmem:[#allocation9 + $0x170] sm:$0xf]
      %v9320 = vld [vmem:[#allocation9 + $0x174] sm:$0xf]
      %v9321 = vld [vmem:[#allocation9 + $0x178] sm:$0xf]
      %v9322 = vld [vmem:[#allocation9 + $0x17c] sm:$0xf]
      %v9323 = vld [vmem:[#allocation9 + $0x180] sm:$0xf]
      %v9324 = vld [vmem:[#allocation9 + $0x184] sm:$0xf]
      %v9325 = vld [vmem:[#allocation9 + $0x188] sm:$0xf]
      %v9326 = vld [vmem:[#allocation9 + $0x18c] sm:$0xf]
      %v9327 = vld [vmem:[#allocation9 + $0x190] sm:$0xf]
      %v9328 = vld [vmem:[#allocation9 + $0x194] sm:$0xf]
      %v9329 = vld [vmem:[#allocation9 + $0x198] sm:$0xf]
      %v9330 = vld [vmem:[#allocation9 + $0x19c] sm:$0xf]
      %v9331 = vld [vmem:[#allocation9 + $0x1a0] sm:$0xf]
      %v9332 = vld [vmem:[#allocation9 + $0x1a4] sm:$0xf]
      %v9333 = vld [vmem:[#allocation9 + $0x1a8] sm:$0xf]
      %v9334 = vld [vmem:[#allocation9 + $0x1ac] sm:$0xf]
      %v9335 = vld [vmem:[#allocation9 + $0x1b0] sm:$0xf]
      %v9336 = vld [vmem:[#allocation9 + $0x1b4] sm:$0xf]
      %v9337 = vld [vmem:[#allocation9 + $0x1b8] sm:$0xf]
      %v9338 = vld [vmem:[#allocation9 + $0x1bc] sm:$0xf]
      %v9339 = vld [vmem:[#allocation9 + $0x1c0] sm:$0xf]
      %v9340 = vld [vmem:[#allocation9 + $0x1c4] sm:$0xf]
      %v9341 = vld [vmem:[#allocation9 + $0x1c8] sm:$0xf]
      %v9342 = vld [vmem:[#allocation9 + $0x1cc] sm:$0xf]
      %v9343 = vld [vmem:[#allocation9 + $0x1d0] sm:$0xf]
      %v9344 = vld [vmem:[#allocation9 + $0x1d4] sm:$0xf]
      %v9345 = vld [vmem:[#allocation9 + $0x1d8] sm:$0xf]
      %v9346 = vld [vmem:[#allocation9 + $0x1dc] sm:$0xf]
      %v9347 = vld [vmem:[#allocation9 + $0x1e0] sm:$0xf]
      %v9348 = vld [vmem:[#allocation9 + $0x1e4] sm:$0xf]
      %v9349 = vld [vmem:[#allocation9 + $0x1e8] sm:$0xf]
      %v9350 = vld [vmem:[#allocation9 + $0x1ec] sm:$0xf]
      %v9351 = vld [vmem:[#allocation9 + $0x1f0] sm:$0xf]
      %v9352 = vld [vmem:[#allocation9 + $0x1f4] sm:$0xf]
      %v9353 = vld [vmem:[#allocation9 + $0x1f8] sm:$0xf]
      %v9354 = vld [vmem:[#allocation9 + $0x1fc] sm:$0xf]
      %v9355 = vld [vmem:[#allocation11] sm:$0x1]
      %v9357 = vperm.slane %v9355, 0
      %v9487 = vunpack.c.l.b16 %v9227
      %v9488 = vunpack.c.l.b16 %v9228
      %v9489 = vunpack.c.l.b16 %v9229
      %v9490 = vunpack.c.l.b16 %v9230
      %v9491 = vunpack.c.l.b16 %v9231
      %v9492 = vunpack.c.l.b16 %v9232
      %v9493 = vunpack.c.l.b16 %v9233
      %v9494 = vunpack.c.l.b16 %v9234
      %v9495 = vunpack.c.l.b16 %v9235
      %v9496 = vunpack.c.l.b16 %v9236
      %v9497 = vunpack.c.l.b16 %v9237
      %v9498 = vunpack.c.l.b16 %v9238
      %v9499 = vunpack.c.l.b16 %v9239
      %v9500 = vunpack.c.l.b16 %v9240
      %v9501 = vunpack.c.l.b16 %v9241
      %v9502 = vunpack.c.l.b16 %v9242
      %v9503 = vunpack.c.l.b16 %v9243
      %v9504 = vunpack.c.l.b16 %v9244
      %v9505 = vunpack.c.l.b16 %v9245
      %v9506 = vunpack.c.l.b16 %v9246
      %v9507 = vunpack.c.l.b16 %v9247
      %v9508 = vunpack.c.l.b16 %v9248
      %v9509 = vunpack.c.l.b16 %v9249
      %v9510 = vunpack.c.l.b16 %v9250
      %v9511 = vunpack.c.l.b16 %v9251
      %v9512 = vunpack.c.l.b16 %v9252
      %v9513 = vunpack.c.l.b16 %v9253
      %v9514 = vunpack.c.l.b16 %v9254
      %v9515 = vunpack.c.l.b16 %v9255
      %v9516 = vunpack.c.l.b16 %v9256
      %v9517 = vunpack.c.l.b16 %v9257
      %v9518 = vunpack.c.l.b16 %v9258
      %v9519 = vunpack.c.l.b16 %v9259
      %v9520 = vunpack.c.l.b16 %v9260
      %v9521 = vunpack.c.l.b16 %v9261
      %v9522 = vunpack.c.l.b16 %v9262
      %v9523 = vunpack.c.l.b16 %v9263
      %v9524 = vunpack.c.l.b16 %v9264
      %v9525 = vunpack.c.l.b16 %v9265
      %v9526 = vunpack.c.l.b16 %v9266
      %v9527 = vunpack.c.l.b16 %v9267
      %v9528 = vunpack.c.l.b16 %v9268
      %v9529 = vunpack.c.l.b16 %v9269
      %v9530 = vunpack.c.l.b16 %v9270
      %v9531 = vunpack.c.l.b16 %v9271
      %v9532 = vunpack.c.l.b16 %v9272
      %v9533 = vunpack.c.l.b16 %v9273
      %v9534 = vunpack.c.l.b16 %v9274
      %v9535 = vunpack.c.l.b16 %v9275
      %v9536 = vunpack.c.l.b16 %v9276
      %v9537 = vunpack.c.l.b16 %v9277
      %v9538 = vunpack.c.l.b16 %v9278
      %v9539 = vunpack.c.l.b16 %v9279
      %v9540 = vunpack.c.l.b16 %v9280
      %v9541 = vunpack.c.l.b16 %v9281
      %v9542 = vunpack.c.l.b16 %v9282
      %v9543 = vunpack.c.l.b16 %v9283
      %v9544 = vunpack.c.l.b16 %v9284
      %v9545 = vunpack.c.l.b16 %v9285
      %v9546 = vunpack.c.l.b16 %v9286
      %v9547 = vunpack.c.l.b16 %v9287
      %v9548 = vunpack.c.l.b16 %v9288
      %v9549 = vunpack.c.l.b16 %v9289
      %v9550 = vunpack.c.l.b16 %v9290
      %v9551 = vunpack.c.l.b16 %v9291
      %v9552 = vunpack.c.l.b16 %v9292
      %v9553 = vunpack.c.l.b16 %v9293
      %v9554 = vunpack.c.l.b16 %v9294
      %v9555 = vunpack.c.l.b16 %v9295
      %v9556 = vunpack.c.l.b16 %v9296
      %v9557 = vunpack.c.l.b16 %v9297
      %v9558 = vunpack.c.l.b16 %v9298
      %v9559 = vunpack.c.l.b16 %v9299
      %v9560 = vunpack.c.l.b16 %v9300
      %v9561 = vunpack.c.l.b16 %v9301
      %v9562 = vunpack.c.l.b16 %v9302
      %v9563 = vunpack.c.l.b16 %v9303
      %v9564 = vunpack.c.l.b16 %v9304
      %v9565 = vunpack.c.l.b16 %v9305
      %v9566 = vunpack.c.l.b16 %v9306
      %v9567 = vunpack.c.l.b16 %v9307
      %v9568 = vunpack.c.l.b16 %v9308
      %v9569 = vunpack.c.l.b16 %v9309
      %v9570 = vunpack.c.l.b16 %v9310
      %v9571 = vunpack.c.l.b16 %v9311
      %v9572 = vunpack.c.l.b16 %v9312
      %v9573 = vunpack.c.l.b16 %v9313
      %v9574 = vunpack.c.l.b16 %v9314
      %v9575 = vunpack.c.l.b16 %v9315
      %v9576 = vunpack.c.l.b16 %v9316
      %v9577 = vunpack.c.l.b16 %v9317
      %v9578 = vunpack.c.l.b16 %v9318
      %v9579 = vunpack.c.l.b16 %v9319
      %v9580 = vunpack.c.l.b16 %v9320
      %v9581 = vunpack.c.l.b16 %v9321
      %v9582 = vunpack.c.l.b16 %v9322
      %v9583 = vunpack.c.l.b16 %v9323
      %v9584 = vunpack.c.l.b16 %v9324
      %v9585 = vunpack.c.l.b16 %v9325
      %v9586 = vunpack.c.l.b16 %v9326
      %v9587 = vunpack.c.l.b16 %v9327
      %v9588 = vunpack.c.l.b16 %v9328
      %v9589 = vunpack.c.l.b16 %v9329
      %v9590 = vunpack.c.l.b16 %v9330
      %v9591 = vunpack.c.l.b16 %v9331
      %v9592 = vunpack.c.l.b16 %v9332
      %v9593 = vunpack.c.l.b16 %v9333
      %v9594 = vunpack.c.l.b16 %v9334
      %v9595 = vunpack.c.l.b16 %v9335
      %v9596 = vunpack.c.l.b16 %v9336
      %v9597 = vunpack.c.l.b16 %v9337
      %v9598 = vunpack.c.l.b16 %v9338
      %v9599 = vunpack.c.l.b16 %v9339
      %v9600 = vunpack.c.l.b16 %v9340
      %v9601 = vunpack.c.l.b16 %v9341
      %v9602 = vunpack.c.l.b16 %v9342
      %v9603 = vunpack.c.l.b16 %v9343
      %v9604 = vunpack.c.l.b16 %v9344
      %v9605 = vunpack.c.l.b16 %v9345
      %v9606 = vunpack.c.l.b16 %v9346
      %v9607 = vunpack.c.l.b16 %v9347
      %v9608 = vunpack.c.l.b16 %v9348
      %v9609 = vunpack.c.l.b16 %v9349
      %v9610 = vunpack.c.l.b16 %v9350
      %v9611 = vunpack.c.l.b16 %v9351
      %v9612 = vunpack.c.l.b16 %v9352
      %v9613 = vunpack.c.l.b16 %v9353
      %v9614 = vunpack.c.l.b16 %v9354
      %v9615 = vpack.c.b16 %v9488, %v9487
      %v9616 = vpack.c.b16 %v9490, %v9489
      %v9617 = vpack.c.b16 %v9492, %v9491
      %v9618 = vpack.c.b16 %v9494, %v9493
      %v9619 = vpack.c.b16 %v9496, %v9495
      %v9620 = vpack.c.b16 %v9498, %v9497
      %v9621 = vpack.c.b16 %v9500, %v9499
      %v9622 = vpack.c.b16 %v9502, %v9501
      %v9623 = vpack.c.b16 %v9504, %v9503
      %v9624 = vpack.c.b16 %v9506, %v9505
      %v9625 = vpack.c.b16 %v9508, %v9507
      %v9626 = vpack.c.b16 %v9510, %v9509
      %v9627 = vpack.c.b16 %v9512, %v9511
      %v9628 = vpack.c.b16 %v9514, %v9513
      %v9629 = vpack.c.b16 %v9516, %v9515
      %v9630 = vpack.c.b16 %v9518, %v9517
      %v9631 = vpack.c.b16 %v9520, %v9519
      %v9632 = vpack.c.b16 %v9522, %v9521
      %v9633 = vpack.c.b16 %v9524, %v9523
      %v9634 = vpack.c.b16 %v9526, %v9525
      %v9635 = vpack.c.b16 %v9528, %v9527
      %v9636 = vpack.c.b16 %v9530, %v9529
      %v9637 = vpack.c.b16 %v9532, %v9531
      %v9638 = vpack.c.b16 %v9534, %v9533
      %v9639 = vpack.c.b16 %v9536, %v9535
      %v9640 = vpack.c.b16 %v9538, %v9537
      %v9641 = vpack.c.b16 %v9540, %v9539
      %v9642 = vpack.c.b16 %v9542, %v9541
      %v9643 = vpack.c.b16 %v9544, %v9543
      %v9644 = vpack.c.b16 %v9546, %v9545
      %v9645 = vpack.c.b16 %v9548, %v9547
      %v9646 = vpack.c.b16 %v9550, %v9549
      %v9647 = vpack.c.b16 %v9552, %v9551
      %v9648 = vpack.c.b16 %v9554, %v9553
      %v9649 = vpack.c.b16 %v9556, %v9555
      %v9650 = vpack.c.b16 %v9558, %v9557
      %v9651 = vpack.c.b16 %v9560, %v9559
      %v9652 = vpack.c.b16 %v9562, %v9561
      %v9653 = vpack.c.b16 %v9564, %v9563
      %v9654 = vpack.c.b16 %v9566, %v9565
      %v9655 = vpack.c.b16 %v9568, %v9567
      %v9656 = vpack.c.b16 %v9570, %v9569
      %v9657 = vpack.c.b16 %v9572, %v9571
      %v9658 = vpack.c.b16 %v9574, %v9573
      %v9659 = vpack.c.b16 %v9576, %v9575
      %v9660 = vpack.c.b16 %v9578, %v9577
      %v9661 = vpack.c.b16 %v9580, %v9579
      %v9662 = vpack.c.b16 %v9582, %v9581
      %v9663 = vpack.c.b16 %v9584, %v9583
      %v9664 = vpack.c.b16 %v9586, %v9585
      %v9665 = vpack.c.b16 %v9588, %v9587
      %v9666 = vpack.c.b16 %v9590, %v9589
      %v9667 = vpack.c.b16 %v9592, %v9591
      %v9668 = vpack.c.b16 %v9594, %v9593
      %v9669 = vpack.c.b16 %v9596, %v9595
      %v9670 = vpack.c.b16 %v9598, %v9597
      %v9671 = vpack.c.b16 %v9600, %v9599
      %v9672 = vpack.c.b16 %v9602, %v9601
      %v9673 = vpack.c.b16 %v9604, %v9603
      %v9674 = vpack.c.b16 %v9606, %v9605
      %v9675 = vpack.c.b16 %v9608, %v9607
      %v9676 = vpack.c.b16 %v9610, %v9609
      %v9677 = vpack.c.b16 %v9612, %v9611
      %v9678 = vpack.c.b16 %v9614, %v9613
      %9743 = vmatpush.bf16.msra.mxu0 %v9622
      %9744 = vmatpush.bf16.msra.mxu0 %v9621
      %9745 = vmatpush.bf16.msra.mxu0 %v9620
      %9746 = vmatpush.bf16.msra.mxu0 %v9619
      %9747 = vmatpush.bf16.msra.mxu0 %v9618
      %9748 = vmatpush.bf16.msra.mxu0 %v9617
      %9749 = vmatpush.bf16.msra.mxu0 %v9616
      %9750 = vmatpush.bf16.msra.mxu0 %v9615
      %9751 = vmatmul.bf16.gmra.mxu0 %v9099
      %v9752 = vpop.f32.mrf.mxu0
      %v9753 = vadd.f32 %v9357, %v9752
      %v9754 = vpop.f32.mrf.mxu0
      %v9755 = vadd.f32 %v9357, %v9754
      %9756 = vmatmul.bf16.gmra.mxu0 %v9107
      %v9757 = vpop.f32.mrf.mxu0
      %v9758 = vadd.f32 %v9357, %v9757
      %v9759 = vpop.f32.mrf.mxu0
      %v9760 = vadd.f32 %v9357, %v9759
      %9761 = vmatmul.bf16.gmra.mxu0 %v9115
      %v9762 = vpop.f32.mrf.mxu0
      %v9763 = vadd.f32 %v9357, %v9762
      %v9764 = vpop.f32.mrf.mxu0
      %v9765 = vadd.f32 %v9357, %v9764
      %9766 = vmatmul.bf16.gmra.mxu0 %v9123
      %v9767 = vpop.f32.mrf.mxu0
      %v9768 = vadd.f32 %v9357, %v9767
      %v9769 = vpop.f32.mrf.mxu0
      %v9770 = vadd.f32 %v9357, %v9769
      %9771 = vmatmul.bf16.gmra.mxu0 %v9131
      %v9772 = vpop.f32.mrf.mxu0
      %v9773 = vadd.f32 %v9357, %v9772
      %v9774 = vpop.f32.mrf.mxu0
      %v9775 = vadd.f32 %v9357, %v9774
      %9776 = vmatmul.bf16.gmra.mxu0 %v9139
      %v9777 = vpop.f32.mrf.mxu0
      %v9778 = vadd.f32 %v9357, %v9777
      %v9779 = vpop.f32.mrf.mxu0
      %v9780 = vadd.f32 %v9357, %v9779
      %9781 = vmatmul.bf16.gmra.mxu0 %v9147
      %v9782 = vpop.f32.mrf.mxu0
      %v9783 = vadd.f32 %v9357, %v9782
      %v9784 = vpop.f32.mrf.mxu0
      %v9785 = vadd.f32 %v9357, %v9784
      %9786 = vmatmul.bf16.gmra.mxu0 %v9155
      %v9787 = vpop.f32.mrf.mxu0
      %v9788 = vadd.f32 %v9357, %v9787
      %v9789 = vpop.f32.mrf.mxu0
      %v9790 = vadd.f32 %v9357, %v9789
      %9791 = vmatmul.bf16.gmra.mxu0 %v9163
      %v9792 = vpop.f32.mrf.mxu0
      %v9793 = vadd.f32 %v9357, %v9792
      %v9794 = vpop.f32.mrf.mxu0
      %v9795 = vadd.f32 %v9357, %v9794
      %9796 = vmatmul.bf16.gmra.mxu0 %v9171
      %v9797 = vpop.f32.mrf.mxu0
      %v9798 = vadd.f32 %v9357, %v9797
      %v9799 = vpop.f32.mrf.mxu0
      %v9800 = vadd.f32 %v9357, %v9799
      %9801 = vmatmul.bf16.gmra.mxu0 %v9179
      %v9802 = vpop.f32.mrf.mxu0
      %v9803 = vadd.f32 %v9357, %v9802
      %v9804 = vpop.f32.mrf.mxu0
      %v9805 = vadd.f32 %v9357, %v9804
      %9806 = vmatmul.bf16.gmra.mxu0 %v9187
      %v9807 = vpop.f32.mrf.mxu0
      %v9808 = vadd.f32 %v9357, %v9807
      %v9809 = vpop.f32.mrf.mxu0
      %v9810 = vadd.f32 %v9357, %v9809
      %9811 = vmatmul.bf16.gmra.mxu0 %v9195
      %v9812 = vpop.f32.mrf.mxu0
      %v9813 = vadd.f32 %v9357, %v9812
      %v9814 = vpop.f32.mrf.mxu0
      %v9815 = vadd.f32 %v9357, %v9814
      %9816 = vmatmul.bf16.gmra.mxu0 %v9203
      %v9817 = vpop.f32.mrf.mxu0
      %v9818 = vadd.f32 %v9357, %v9817
      %v9819 = vpop.f32.mrf.mxu0
      %v9820 = vadd.f32 %v9357, %v9819
      %9821 = vmatmul.bf16.gmra.mxu0 %v9211
      %v9822 = vpop.f32.mrf.mxu0
      %v9823 = vadd.f32 %v9357, %v9822
      %v9824 = vpop.f32.mrf.mxu0
      %v9825 = vadd.f32 %v9357, %v9824
      %9826 = vmatmul.bf16.gmra.mxu0 %v9219
      %v9827 = vpop.f32.mrf.mxu0
      %v9828 = vadd.f32 %v9357, %v9827
      %v9829 = vpop.f32.mrf.mxu0
      %v9830 = vadd.f32 %v9357, %v9829
      %9831 = vdwg.mxu0
      %9832 = vmatpush.bf16.msra.mxu0 %v9630
      %9833 = vmatpush.bf16.msra.mxu0 %v9629
      %9834 = vmatpush.bf16.msra.mxu0 %v9628
      %9835 = vmatpush.bf16.msra.mxu0 %v9627
      %9836 = vmatpush.bf16.msra.mxu0 %v9626
      %9837 = vmatpush.bf16.msra.mxu0 %v9625
      %9838 = vmatpush.bf16.msra.mxu0 %v9624
      %9839 = vmatpush.bf16.msra.mxu0 %v9623
      %9840 = vmatmul.bf16.gmra.mxu0 %v9100
      %v9841 = vpop.f32.mrf.mxu0
      %v9842 = vadd.f32 %v9753, %v9841
      %v9843 = vpop.f32.mrf.mxu0
      %v9844 = vadd.f32 %v9755, %v9843
      %9845 = vmatmul.bf16.gmra.mxu0 %v9108
      %v9846 = vpop.f32.mrf.mxu0
      %v9847 = vadd.f32 %v9758, %v9846
      %v9848 = vpop.f32.mrf.mxu0
      %v9849 = vadd.f32 %v9760, %v9848
      %9850 = vmatmul.bf16.gmra.mxu0 %v9116
      %v9851 = vpop.f32.mrf.mxu0
      %v9852 = vadd.f32 %v9763, %v9851
      %v9853 = vpop.f32.mrf.mxu0
      %v9854 = vadd.f32 %v9765, %v9853
      %9855 = vmatmul.bf16.gmra.mxu0 %v9124
      %v9856 = vpop.f32.mrf.mxu0
      %v9857 = vadd.f32 %v9768, %v9856
      %v9858 = vpop.f32.mrf.mxu0
      %v9859 = vadd.f32 %v9770, %v9858
      %9860 = vmatmul.bf16.gmra.mxu0 %v9132
      %v9861 = vpop.f32.mrf.mxu0
      %v9862 = vadd.f32 %v9773, %v9861
      %v9863 = vpop.f32.mrf.mxu0
      %v9864 = vadd.f32 %v9775, %v9863
      %9865 = vmatmul.bf16.gmra.mxu0 %v9140
      %v9866 = vpop.f32.mrf.mxu0
      %v9867 = vadd.f32 %v9778, %v9866
      %v9868 = vpop.f32.mrf.mxu0
      %v9869 = vadd.f32 %v9780, %v9868
      %9870 = vmatmul.bf16.gmra.mxu0 %v9148
      %v9871 = vpop.f32.mrf.mxu0
      %v9872 = vadd.f32 %v9783, %v9871
      %v9873 = vpop.f32.mrf.mxu0
      %v9874 = vadd.f32 %v9785, %v9873
      %9875 = vmatmul.bf16.gmra.mxu0 %v9156
      %v9876 = vpop.f32.mrf.mxu0
      %v9877 = vadd.f32 %v9788, %v9876
      %v9878 = vpop.f32.mrf.mxu0
      %v9879 = vadd.f32 %v9790, %v9878
      %9880 = vmatmul.bf16.gmra.mxu0 %v9164
      %v9881 = vpop.f32.mrf.mxu0
      %v9882 = vadd.f32 %v9793, %v9881
      %v9883 = vpop.f32.mrf.mxu0
      %v9884 = vadd.f32 %v9795, %v9883
      %9885 = vmatmul.bf16.gmra.mxu0 %v9172
      %v9886 = vpop.f32.mrf.mxu0
      %v9887 = vadd.f32 %v9798, %v9886
      %v9888 = vpop.f32.mrf.mxu0
      %v9889 = vadd.f32 %v9800, %v9888
      %9890 = vmatmul.bf16.gmra.mxu0 %v9180
      %v9891 = vpop.f32.mrf.mxu0
      %v9892 = vadd.f32 %v9803, %v9891
      %v9893 = vpop.f32.mrf.mxu0
      %v9894 = vadd.f32 %v9805, %v9893
      %9895 = vmatmul.bf16.gmra.mxu0 %v9188
      %v9896 = vpop.f32.mrf.mxu0
      %v9897 = vadd.f32 %v9808, %v9896
      %v9898 = vpop.f32.mrf.mxu0
      %v9899 = vadd.f32 %v9810, %v9898
      %9900 = vmatmul.bf16.gmra.mxu0 %v9196
      %v9901 = vpop.f32.mrf.mxu0
      %v9902 = vadd.f32 %v9813, %v9901
      %v9903 = vpop.f32.mrf.mxu0
      %v9904 = vadd.f32 %v9815, %v9903
      %9905 = vmatmul.bf16.gmra.mxu0 %v9204
      %v9906 = vpop.f32.mrf.mxu0
      %v9907 = vadd.f32 %v9818, %v9906
      %v9908 = vpop.f32.mrf.mxu0
      %v9909 = vadd.f32 %v9820, %v9908
      %9910 = vmatmul.bf16.gmra.mxu0 %v9212
      %v9911 = vpop.f32.mrf.mxu0
      %v9912 = vadd.f32 %v9823, %v9911
      %v9913 = vpop.f32.mrf.mxu0
      %v9914 = vadd.f32 %v9825, %v9913
      %9915 = vmatmul.bf16.gmra.mxu0 %v9220
      %v9916 = vpop.f32.mrf.mxu0
      %v9917 = vadd.f32 %v9828, %v9916
      %v9918 = vpop.f32.mrf.mxu0
      %v9919 = vadd.f32 %v9830, %v9918
      %9920 = vdwg.mxu0
      %9921 = vmatpush.bf16.msra.mxu0 %v9638
      %9922 = vmatpush.bf16.msra.mxu0 %v9637
      %9923 = vmatpush.bf16.msra.mxu0 %v9636
      %9924 = vmatpush.bf16.msra.mxu0 %v9635
      %9925 = vmatpush.bf16.msra.mxu0 %v9634
      %9926 = vmatpush.bf16.msra.mxu0 %v9633
      %9927 = vmatpush.bf16.msra.mxu0 %v9632
      %9928 = vmatpush.bf16.msra.mxu0 %v9631
      %9929 = vmatmul.bf16.gmra.mxu0 %v9101
      %v9930 = vpop.f32.mrf.mxu0
      %v9931 = vadd.f32 %v9842, %v9930
      %v9932 = vpop.f32.mrf.mxu0
      %v9933 = vadd.f32 %v9844, %v9932
      %9934 = vmatmul.bf16.gmra.mxu0 %v9109
      %v9935 = vpop.f32.mrf.mxu0
      %v9936 = vadd.f32 %v9847, %v9935
      %v9937 = vpop.f32.mrf.mxu0
      %v9938 = vadd.f32 %v9849, %v9937
      %9939 = vmatmul.bf16.gmra.mxu0 %v9117
      %v9940 = vpop.f32.mrf.mxu0
      %v9941 = vadd.f32 %v9852, %v9940
      %v9942 = vpop.f32.mrf.mxu0
      %v9943 = vadd.f32 %v9854, %v9942
      %9944 = vmatmul.bf16.gmra.mxu0 %v9125
      %v9945 = vpop.f32.mrf.mxu0
      %v9946 = vadd.f32 %v9857, %v9945
      %v9947 = vpop.f32.mrf.mxu0
      %v9948 = vadd.f32 %v9859, %v9947
      %9949 = vmatmul.bf16.gmra.mxu0 %v9133
      %v9950 = vpop.f32.mrf.mxu0
      %v9951 = vadd.f32 %v9862, %v9950
      %v9952 = vpop.f32.mrf.mxu0
      %v9953 = vadd.f32 %v9864, %v9952
      %9954 = vmatmul.bf16.gmra.mxu0 %v9141
      %v9955 = vpop.f32.mrf.mxu0
      %v9956 = vadd.f32 %v9867, %v9955
      %v9957 = vpop.f32.mrf.mxu0
      %v9958 = vadd.f32 %v9869, %v9957
      %9959 = vmatmul.bf16.gmra.mxu0 %v9149
      %v9960 = vpop.f32.mrf.mxu0
      %v9961 = vadd.f32 %v9872, %v9960
      %v9962 = vpop.f32.mrf.mxu0
      %v9963 = vadd.f32 %v9874, %v9962
      %9964 = vmatmul.bf16.gmra.mxu0 %v9157
      %v9965 = vpop.f32.mrf.mxu0
      %v9966 = vadd.f32 %v9877, %v9965
      %v9967 = vpop.f32.mrf.mxu0
      %v9968 = vadd.f32 %v9879, %v9967
      %9969 = vmatmul.bf16.gmra.mxu0 %v9165
      %v9970 = vpop.f32.mrf.mxu0
      %v9971 = vadd.f32 %v9882, %v9970
      %v9972 = vpop.f32.mrf.mxu0
      %v9973 = vadd.f32 %v9884, %v9972
      %9974 = vmatmul.bf16.gmra.mxu0 %v9173
      %v9975 = vpop.f32.mrf.mxu0
      %v9976 = vadd.f32 %v9887, %v9975
      %v9977 = vpop.f32.mrf.mxu0
      %v9978 = vadd.f32 %v9889, %v9977
      %9979 = vmatmul.bf16.gmra.mxu0 %v9181
      %v9980 = vpop.f32.mrf.mxu0
      %v9981 = vadd.f32 %v9892, %v9980
      %v9982 = vpop.f32.mrf.mxu0
      %v9983 = vadd.f32 %v9894, %v9982
      %9984 = vmatmul.bf16.gmra.mxu0 %v9189
      %v9985 = vpop.f32.mrf.mxu0
      %v9986 = vadd.f32 %v9897, %v9985
      %v9987 = vpop.f32.mrf.mxu0
      %v9988 = vadd.f32 %v9899, %v9987
      %9989 = vmatmul.bf16.gmra.mxu0 %v9197
      %v9990 = vpop.f32.mrf.mxu0
      %v9991 = vadd.f32 %v9902, %v9990
      %v9992 = vpop.f32.mrf.mxu0
      %v9993 = vadd.f32 %v9904, %v9992
      %9994 = vmatmul.bf16.gmra.mxu0 %v9205
      %v9995 = vpop.f32.mrf.mxu0
      %v9996 = vadd.f32 %v9907, %v9995
      %v9997 = vpop.f32.mrf.mxu0
      %v9998 = vadd.f32 %v9909, %v9997
      %9999 = vmatmul.bf16.gmra.mxu0 %v9213
      %v10000 = vpop.f32.mrf.mxu0
      %v10001 = vadd.f32 %v9912, %v10000
      %v10002 = vpop.f32.mrf.mxu0
      %v10003 = vadd.f32 %v9914, %v10002
      %10004 = vmatmul.bf16.gmra.mxu0 %v9221
      %v10005 = vpop.f32.mrf.mxu0
      %v10006 = vadd.f32 %v9917, %v10005
      %v10007 = vpop.f32.mrf.mxu0
      %v10008 = vadd.f32 %v9919, %v10007
      %10009 = vdwg.mxu0
      %10010 = vmatpush.bf16.msra.mxu0 %v9646
      %10011 = vmatpush.bf16.msra.mxu0 %v9645
      %10012 = vmatpush.bf16.msra.mxu0 %v9644
      %10013 = vmatpush.bf16.msra.mxu0 %v9643
      %10014 = vmatpush.bf16.msra.mxu0 %v9642
      %10015 = vmatpush.bf16.msra.mxu0 %v9641
      %10016 = vmatpush.bf16.msra.mxu0 %v9640
      %10017 = vmatpush.bf16.msra.mxu0 %v9639
      %10018 = vmatmul.bf16.gmra.mxu0 %v9102
      %v10019 = vpop.f32.mrf.mxu0
      %v10020 = vadd.f32 %v9931, %v10019
      %v10021 = vpop.f32.mrf.mxu0
      %v10022 = vadd.f32 %v9933, %v10021
      %10023 = vmatmul.bf16.gmra.mxu0 %v9110
      %v10024 = vpop.f32.mrf.mxu0
      %v10025 = vadd.f32 %v9936, %v10024
      %v10026 = vpop.f32.mrf.mxu0
      %v10027 = vadd.f32 %v9938, %v10026
      %10028 = vmatmul.bf16.gmra.mxu0 %v9118
      %v10029 = vpop.f32.mrf.mxu0
      %v10030 = vadd.f32 %v9941, %v10029
      %v10031 = vpop.f32.mrf.mxu0
      %v10032 = vadd.f32 %v9943, %v10031
      %10033 = vmatmul.bf16.gmra.mxu0 %v9126
      %v10034 = vpop.f32.mrf.mxu0
      %v10035 = vadd.f32 %v9946, %v10034
      %v10036 = vpop.f32.mrf.mxu0
      %v10037 = vadd.f32 %v9948, %v10036
      %10038 = vmatmul.bf16.gmra.mxu0 %v9134
      %v10039 = vpop.f32.mrf.mxu0
      %v10040 = vadd.f32 %v9951, %v10039
      %v10041 = vpop.f32.mrf.mxu0
      %v10042 = vadd.f32 %v9953, %v10041
      %10043 = vmatmul.bf16.gmra.mxu0 %v9142
      %v10044 = vpop.f32.mrf.mxu0
      %v10045 = vadd.f32 %v9956, %v10044
      %v10046 = vpop.f32.mrf.mxu0
      %v10047 = vadd.f32 %v9958, %v10046
      %10048 = vmatmul.bf16.gmra.mxu0 %v9150
      %v10049 = vpop.f32.mrf.mxu0
      %v10050 = vadd.f32 %v9961, %v10049
      %v10051 = vpop.f32.mrf.mxu0
      %v10052 = vadd.f32 %v9963, %v10051
      %10053 = vmatmul.bf16.gmra.mxu0 %v9158
      %v10054 = vpop.f32.mrf.mxu0
      %v10055 = vadd.f32 %v9966, %v10054
      %v10056 = vpop.f32.mrf.mxu0
      %v10057 = vadd.f32 %v9968, %v10056
      %10058 = vmatmul.bf16.gmra.mxu0 %v9166
      %v10059 = vpop.f32.mrf.mxu0
      %v10060 = vadd.f32 %v9971, %v10059
      %v10061 = vpop.f32.mrf.mxu0
      %v10062 = vadd.f32 %v9973, %v10061
      %10063 = vmatmul.bf16.gmra.mxu0 %v9174
      %v10064 = vpop.f32.mrf.mxu0
      %v10065 = vadd.f32 %v9976, %v10064
      %v10066 = vpop.f32.mrf.mxu0
      %v10067 = vadd.f32 %v9978, %v10066
      %10068 = vmatmul.bf16.gmra.mxu0 %v9182
      %v10069 = vpop.f32.mrf.mxu0
      %v10070 = vadd.f32 %v9981, %v10069
      %v10071 = vpop.f32.mrf.mxu0
      %v10072 = vadd.f32 %v9983, %v10071
      %10073 = vmatmul.bf16.gmra.mxu0 %v9190
      %v10074 = vpop.f32.mrf.mxu0
      %v10075 = vadd.f32 %v9986, %v10074
      %v10076 = vpop.f32.mrf.mxu0
      %v10077 = vadd.f32 %v9988, %v10076
      %10078 = vmatmul.bf16.gmra.mxu0 %v9198
      %v10079 = vpop.f32.mrf.mxu0
      %v10080 = vadd.f32 %v9991, %v10079
      %v10081 = vpop.f32.mrf.mxu0
      %v10082 = vadd.f32 %v9993, %v10081
      %10083 = vmatmul.bf16.gmra.mxu0 %v9206
      %v10084 = vpop.f32.mrf.mxu0
      %v10085 = vadd.f32 %v9996, %v10084
      %v10086 = vpop.f32.mrf.mxu0
      %v10087 = vadd.f32 %v9998, %v10086
      %10088 = vmatmul.bf16.gmra.mxu0 %v9214
      %v10089 = vpop.f32.mrf.mxu0
      %v10090 = vadd.f32 %v10001, %v10089
      %v10091 = vpop.f32.mrf.mxu0
      %v10092 = vadd.f32 %v10003, %v10091
      %10093 = vmatmul.bf16.gmra.mxu0 %v9222
      %v10094 = vpop.f32.mrf.mxu0
      %v10095 = vadd.f32 %v10006, %v10094
      %v10096 = vpop.f32.mrf.mxu0
      %v10097 = vadd.f32 %v10008, %v10096
      %10098 = vdwg.mxu0
      %10099 = vmatpush.bf16.msra.mxu0 %v9654
      %10100 = vmatpush.bf16.msra.mxu0 %v9653
      %10101 = vmatpush.bf16.msra.mxu0 %v9652
      %10102 = vmatpush.bf16.msra.mxu0 %v9651
      %10103 = vmatpush.bf16.msra.mxu0 %v9650
      %10104 = vmatpush.bf16.msra.mxu0 %v9649
      %10105 = vmatpush.bf16.msra.mxu0 %v9648
      %10106 = vmatpush.bf16.msra.mxu0 %v9647
      %10107 = vmatmul.bf16.gmra.mxu0 %v9103
      %v10108 = vpop.f32.mrf.mxu0
      %v10109 = vadd.f32 %v10020, %v10108
      %v10110 = vpop.f32.mrf.mxu0
      %v10111 = vadd.f32 %v10022, %v10110
      %10112 = vmatmul.bf16.gmra.mxu0 %v9111
      %v10113 = vpop.f32.mrf.mxu0
      %v10114 = vadd.f32 %v10025, %v10113
      %v10115 = vpop.f32.mrf.mxu0
      %v10116 = vadd.f32 %v10027, %v10115
      %10117 = vmatmul.bf16.gmra.mxu0 %v9119
      %v10118 = vpop.f32.mrf.mxu0
      %v10119 = vadd.f32 %v10030, %v10118
      %v10120 = vpop.f32.mrf.mxu0
      %v10121 = vadd.f32 %v10032, %v10120
      %10122 = vmatmul.bf16.gmra.mxu0 %v9127
      %v10123 = vpop.f32.mrf.mxu0
      %v10124 = vadd.f32 %v10035, %v10123
      %v10125 = vpop.f32.mrf.mxu0
      %v10126 = vadd.f32 %v10037, %v10125
      %10127 = vmatmul.bf16.gmra.mxu0 %v9135
      %v10128 = vpop.f32.mrf.mxu0
      %v10129 = vadd.f32 %v10040, %v10128
      %v10130 = vpop.f32.mrf.mxu0
      %v10131 = vadd.f32 %v10042, %v10130
      %10132 = vmatmul.bf16.gmra.mxu0 %v9143
      %v10133 = vpop.f32.mrf.mxu0
      %v10134 = vadd.f32 %v10045, %v10133
      %v10135 = vpop.f32.mrf.mxu0
      %v10136 = vadd.f32 %v10047, %v10135
      %10137 = vmatmul.bf16.gmra.mxu0 %v9151
      %v10138 = vpop.f32.mrf.mxu0
      %v10139 = vadd.f32 %v10050, %v10138
      %v10140 = vpop.f32.mrf.mxu0
      %v10141 = vadd.f32 %v10052, %v10140
      %10142 = vmatmul.bf16.gmra.mxu0 %v9159
      %v10143 = vpop.f32.mrf.mxu0
      %v10144 = vadd.f32 %v10055, %v10143
      %v10145 = vpop.f32.mrf.mxu0
      %v10146 = vadd.f32 %v10057, %v10145
      %10147 = vmatmul.bf16.gmra.mxu0 %v9167
      %v10148 = vpop.f32.mrf.mxu0
      %v10149 = vadd.f32 %v10060, %v10148
      %v10150 = vpop.f32.mrf.mxu0
      %v10151 = vadd.f32 %v10062, %v10150
      %10152 = vmatmul.bf16.gmra.mxu0 %v9175
      %v10153 = vpop.f32.mrf.mxu0
      %v10154 = vadd.f32 %v10065, %v10153
      %v10155 = vpop.f32.mrf.mxu0
      %v10156 = vadd.f32 %v10067, %v10155
      %10157 = vmatmul.bf16.gmra.mxu0 %v9183
      %v10158 = vpop.f32.mrf.mxu0
      %v10159 = vadd.f32 %v10070, %v10158
      %v10160 = vpop.f32.mrf.mxu0
      %v10161 = vadd.f32 %v10072, %v10160
      %10162 = vmatmul.bf16.gmra.mxu0 %v9191
      %v10163 = vpop.f32.mrf.mxu0
      %v10164 = vadd.f32 %v10075, %v10163
      %v10165 = vpop.f32.mrf.mxu0
      %v10166 = vadd.f32 %v10077, %v10165
      %10167 = vmatmul.bf16.gmra.mxu0 %v9199
      %v10168 = vpop.f32.mrf.mxu0
      %v10169 = vadd.f32 %v10080, %v10168
      %v10170 = vpop.f32.mrf.mxu0
      %v10171 = vadd.f32 %v10082, %v10170
      %10172 = vmatmul.bf16.gmra.mxu0 %v9207
      %v10173 = vpop.f32.mrf.mxu0
      %v10174 = vadd.f32 %v10085, %v10173
      %v10175 = vpop.f32.mrf.mxu0
      %v10176 = vadd.f32 %v10087, %v10175
      %10177 = vmatmul.bf16.gmra.mxu0 %v9215
      %v10178 = vpop.f32.mrf.mxu0
      %v10179 = vadd.f32 %v10090, %v10178
      %v10180 = vpop.f32.mrf.mxu0
      %v10181 = vadd.f32 %v10092, %v10180
      %10182 = vmatmul.bf16.gmra.mxu0 %v9223
      %v10183 = vpop.f32.mrf.mxu0
      %v10184 = vadd.f32 %v10095, %v10183
      %v10185 = vpop.f32.mrf.mxu0
      %v10186 = vadd.f32 %v10097, %v10185
      %10187 = vdwg.mxu0
      %10188 = vmatpush.bf16.msra.mxu0 %v9662
      %10189 = vmatpush.bf16.msra.mxu0 %v9661
      %10190 = vmatpush.bf16.msra.mxu0 %v9660
      %10191 = vmatpush.bf16.msra.mxu0 %v9659
      %10192 = vmatpush.bf16.msra.mxu0 %v9658
      %10193 = vmatpush.bf16.msra.mxu0 %v9657
      %10194 = vmatpush.bf16.msra.mxu0 %v9656
      %10195 = vmatpush.bf16.msra.mxu0 %v9655
      %10196 = vmatmul.bf16.gmra.mxu0 %v9104
      %v10197 = vpop.f32.mrf.mxu0
      %v10198 = vadd.f32 %v10109, %v10197
      %v10199 = vpop.f32.mrf.mxu0
      %v10200 = vadd.f32 %v10111, %v10199
      %10201 = vmatmul.bf16.gmra.mxu0 %v9112
      %v10202 = vpop.f32.mrf.mxu0
      %v10203 = vadd.f32 %v10114, %v10202
      %v10204 = vpop.f32.mrf.mxu0
      %v10205 = vadd.f32 %v10116, %v10204
      %10206 = vmatmul.bf16.gmra.mxu0 %v9120
      %v10207 = vpop.f32.mrf.mxu0
      %v10208 = vadd.f32 %v10119, %v10207
      %v10209 = vpop.f32.mrf.mxu0
      %v10210 = vadd.f32 %v10121, %v10209
      %10211 = vmatmul.bf16.gmra.mxu0 %v9128
      %v10212 = vpop.f32.mrf.mxu0
      %v10213 = vadd.f32 %v10124, %v10212
      %v10214 = vpop.f32.mrf.mxu0
      %v10215 = vadd.f32 %v10126, %v10214
      %10216 = vmatmul.bf16.gmra.mxu0 %v9136
      %v10217 = vpop.f32.mrf.mxu0
      %v10218 = vadd.f32 %v10129, %v10217
      %v10219 = vpop.f32.mrf.mxu0
      %v10220 = vadd.f32 %v10131, %v10219
      %10221 = vmatmul.bf16.gmra.mxu0 %v9144
      %v10222 = vpop.f32.mrf.mxu0
      %v10223 = vadd.f32 %v10134, %v10222
      %v10224 = vpop.f32.mrf.mxu0
      %v10225 = vadd.f32 %v10136, %v10224
      %10226 = vmatmul.bf16.gmra.mxu0 %v9152
      %v10227 = vpop.f32.mrf.mxu0
      %v10228 = vadd.f32 %v10139, %v10227
      %v10229 = vpop.f32.mrf.mxu0
      %v10230 = vadd.f32 %v10141, %v10229
      %10231 = vmatmul.bf16.gmra.mxu0 %v9160
      %v10232 = vpop.f32.mrf.mxu0
      %v10233 = vadd.f32 %v10144, %v10232
      %v10234 = vpop.f32.mrf.mxu0
      %v10235 = vadd.f32 %v10146, %v10234
      %10236 = vmatmul.bf16.gmra.mxu0 %v9168
      %v10237 = vpop.f32.mrf.mxu0
      %v10238 = vadd.f32 %v10149, %v10237
      %v10239 = vpop.f32.mrf.mxu0
      %v10240 = vadd.f32 %v10151, %v10239
      %10241 = vmatmul.bf16.gmra.mxu0 %v9176
      %v10242 = vpop.f32.mrf.mxu0
      %v10243 = vadd.f32 %v10154, %v10242
      %v10244 = vpop.f32.mrf.mxu0
      %v10245 = vadd.f32 %v10156, %v10244
      %10246 = vmatmul.bf16.gmra.mxu0 %v9184
      %v10247 = vpop.f32.mrf.mxu0
      %v10248 = vadd.f32 %v10159, %v10247
      %v10249 = vpop.f32.mrf.mxu0
      %v10250 = vadd.f32 %v10161, %v10249
      %10251 = vmatmul.bf16.gmra.mxu0 %v9192
      %v10252 = vpop.f32.mrf.mxu0
      %v10253 = vadd.f32 %v10164, %v10252
      %v10254 = vpop.f32.mrf.mxu0
      %v10255 = vadd.f32 %v10166, %v10254
      %10256 = vmatmul.bf16.gmra.mxu0 %v9200
      %v10257 = vpop.f32.mrf.mxu0
      %v10258 = vadd.f32 %v10169, %v10257
      %v10259 = vpop.f32.mrf.mxu0
      %v10260 = vadd.f32 %v10171, %v10259
      %10261 = vmatmul.bf16.gmra.mxu0 %v9208
      %v10262 = vpop.f32.mrf.mxu0
      %v10263 = vadd.f32 %v10174, %v10262
      %v10264 = vpop.f32.mrf.mxu0
      %v10265 = vadd.f32 %v10176, %v10264
      %10266 = vmatmul.bf16.gmra.mxu0 %v9216
      %v10267 = vpop.f32.mrf.mxu0
      %v10268 = vadd.f32 %v10179, %v10267
      %v10269 = vpop.f32.mrf.mxu0
      %v10270 = vadd.f32 %v10181, %v10269
      %10271 = vmatmul.bf16.gmra.mxu0 %v9224
      %v10272 = vpop.f32.mrf.mxu0
      %v10273 = vadd.f32 %v10184, %v10272
      %v10274 = vpop.f32.mrf.mxu0
      %v10275 = vadd.f32 %v10186, %v10274
      %10276 = vdwg.mxu0
      %10277 = vmatpush.bf16.msra.mxu0 %v9670
      %10278 = vmatpush.bf16.msra.mxu0 %v9669
      %10279 = vmatpush.bf16.msra.mxu0 %v9668
      %10280 = vmatpush.bf16.msra.mxu0 %v9667
      %10281 = vmatpush.bf16.msra.mxu0 %v9666
      %10282 = vmatpush.bf16.msra.mxu0 %v9665
      %10283 = vmatpush.bf16.msra.mxu0 %v9664
      %10284 = vmatpush.bf16.msra.mxu0 %v9663
      %10285 = vmatmul.bf16.gmra.mxu0 %v9105
      %v10286 = vpop.f32.mrf.mxu0
      %v10287 = vadd.f32 %v10198, %v10286
      %v10288 = vpop.f32.mrf.mxu0
      %v10289 = vadd.f32 %v10200, %v10288
      %10290 = vmatmul.bf16.gmra.mxu0 %v9113
      %v10291 = vpop.f32.mrf.mxu0
      %v10292 = vadd.f32 %v10203, %v10291
      %v10293 = vpop.f32.mrf.mxu0
      %v10294 = vadd.f32 %v10205, %v10293
      %10295 = vmatmul.bf16.gmra.mxu0 %v9121
      %v10296 = vpop.f32.mrf.mxu0
      %v10297 = vadd.f32 %v10208, %v10296
      %v10298 = vpop.f32.mrf.mxu0
      %v10299 = vadd.f32 %v10210, %v10298
      %10300 = vmatmul.bf16.gmra.mxu0 %v9129
      %v10301 = vpop.f32.mrf.mxu0
      %v10302 = vadd.f32 %v10213, %v10301
      %v10303 = vpop.f32.mrf.mxu0
      %v10304 = vadd.f32 %v10215, %v10303
      %10305 = vmatmul.bf16.gmra.mxu0 %v9137
      %v10306 = vpop.f32.mrf.mxu0
      %v10307 = vadd.f32 %v10218, %v10306
      %v10308 = vpop.f32.mrf.mxu0
      %v10309 = vadd.f32 %v10220, %v10308
      %10310 = vmatmul.bf16.gmra.mxu0 %v9145
      %v10311 = vpop.f32.mrf.mxu0
      %v10312 = vadd.f32 %v10223, %v10311
      %v10313 = vpop.f32.mrf.mxu0
      %v10314 = vadd.f32 %v10225, %v10313
      %10315 = vmatmul.bf16.gmra.mxu0 %v9153
      %v10316 = vpop.f32.mrf.mxu0
      %v10317 = vadd.f32 %v10228, %v10316
      %v10318 = vpop.f32.mrf.mxu0
      %v10319 = vadd.f32 %v10230, %v10318
      %10320 = vmatmul.bf16.gmra.mxu0 %v9161
      %v10321 = vpop.f32.mrf.mxu0
      %v10322 = vadd.f32 %v10233, %v10321
      %v10323 = vpop.f32.mrf.mxu0
      %v10324 = vadd.f32 %v10235, %v10323
      %10325 = vmatmul.bf16.gmra.mxu0 %v9169
      %v10326 = vpop.f32.mrf.mxu0
      %v10327 = vadd.f32 %v10238, %v10326
      %v10328 = vpop.f32.mrf.mxu0
      %v10329 = vadd.f32 %v10240, %v10328
      %10330 = vmatmul.bf16.gmra.mxu0 %v9177
      %v10331 = vpop.f32.mrf.mxu0
      %v10332 = vadd.f32 %v10243, %v10331
      %v10333 = vpop.f32.mrf.mxu0
      %v10334 = vadd.f32 %v10245, %v10333
      %10335 = vmatmul.bf16.gmra.mxu0 %v9185
      %v10336 = vpop.f32.mrf.mxu0
      %v10337 = vadd.f32 %v10248, %v10336
      %v10338 = vpop.f32.mrf.mxu0
      %v10339 = vadd.f32 %v10250, %v10338
      %10340 = vmatmul.bf16.gmra.mxu0 %v9193
      %v10341 = vpop.f32.mrf.mxu0
      %v10342 = vadd.f32 %v10253, %v10341
      %v10343 = vpop.f32.mrf.mxu0
      %v10344 = vadd.f32 %v10255, %v10343
      %10345 = vmatmul.bf16.gmra.mxu0 %v9201
      %v10346 = vpop.f32.mrf.mxu0
      %v10347 = vadd.f32 %v10258, %v10346
      %v10348 = vpop.f32.mrf.mxu0
      %v10349 = vadd.f32 %v10260, %v10348
      %10350 = vmatmul.bf16.gmra.mxu0 %v9209
      %v10351 = vpop.f32.mrf.mxu0
      %v10352 = vadd.f32 %v10263, %v10351
      %v10353 = vpop.f32.mrf.mxu0
      %v10354 = vadd.f32 %v10265, %v10353
      %10355 = vmatmul.bf16.gmra.mxu0 %v9217
      %v10356 = vpop.f32.mrf.mxu0
      %v10357 = vadd.f32 %v10268, %v10356
      %v10358 = vpop.f32.mrf.mxu0
      %v10359 = vadd.f32 %v10270, %v10358
      %10360 = vmatmul.bf16.gmra.mxu0 %v9225
      %v10361 = vpop.f32.mrf.mxu0
      %v10362 = vadd.f32 %v10273, %v10361
      %v10363 = vpop.f32.mrf.mxu0
      %v10364 = vadd.f32 %v10275, %v10363
      %10365 = vdwg.mxu0
      %10366 = vmatpush.bf16.msra.mxu0 %v9678
      %10367 = vmatpush.bf16.msra.mxu0 %v9677
      %10368 = vmatpush.bf16.msra.mxu0 %v9676
      %10369 = vmatpush.bf16.msra.mxu0 %v9675
      %10370 = vmatpush.bf16.msra.mxu0 %v9674
      %10371 = vmatpush.bf16.msra.mxu0 %v9673
      %10372 = vmatpush.bf16.msra.mxu0 %v9672
      %10373 = vmatpush.bf16.msra.mxu0 %v9671
      %10374 = vmatmul.bf16.gmra.mxu0 %v9106
      %v10375 = vpop.f32.mrf.mxu0
      %v10376 = vadd.f32 %v10287, %v10375
      %v10377 = vpop.f32.mrf.mxu0
      %v10378 = vadd.f32 %v10289, %v10377
      %10379 = vmatmul.bf16.gmra.mxu0 %v9114
      %v10380 = vpop.f32.mrf.mxu0
      %v10381 = vadd.f32 %v10292, %v10380
      %v10382 = vpop.f32.mrf.mxu0
      %v10383 = vadd.f32 %v10294, %v10382
      %10384 = vmatmul.bf16.gmra.mxu0 %v9122
      %v10385 = vpop.f32.mrf.mxu0
      %v10386 = vadd.f32 %v10297, %v10385
      %v10387 = vpop.f32.mrf.mxu0
      %v10388 = vadd.f32 %v10299, %v10387
      %10389 = vmatmul.bf16.gmra.mxu0 %v9130
      %v10390 = vpop.f32.mrf.mxu0
      %v10391 = vadd.f32 %v10302, %v10390
      %v10392 = vpop.f32.mrf.mxu0
      %v10393 = vadd.f32 %v10304, %v10392
      %10394 = vmatmul.bf16.gmra.mxu0 %v9138
      %v10395 = vpop.f32.mrf.mxu0
      %v10396 = vadd.f32 %v10307, %v10395
      %v10397 = vpop.f32.mrf.mxu0
      %v10398 = vadd.f32 %v10309, %v10397
      %10399 = vmatmul.bf16.gmra.mxu0 %v9146
      %v10400 = vpop.f32.mrf.mxu0
      %v10401 = vadd.f32 %v10312, %v10400
      %v10402 = vpop.f32.mrf.mxu0
      %v10403 = vadd.f32 %v10314, %v10402
      %10404 = vmatmul.bf16.gmra.mxu0 %v9154
      %v10405 = vpop.f32.mrf.mxu0
      %v10406 = vadd.f32 %v10317, %v10405
      %v10407 = vpop.f32.mrf.mxu0
      %v10408 = vadd.f32 %v10319, %v10407
      %10409 = vmatmul.bf16.gmra.mxu0 %v9162
      %v10410 = vpop.f32.mrf.mxu0
      %v10411 = vadd.f32 %v10322, %v10410
      %v10412 = vpop.f32.mrf.mxu0
      %v10413 = vadd.f32 %v10324, %v10412
      %10414 = vmatmul.bf16.gmra.mxu0 %v9170
      %v10415 = vpop.f32.mrf.mxu0
      %v10416 = vadd.f32 %v10327, %v10415
      %v10417 = vpop.f32.mrf.mxu0
      %v10418 = vadd.f32 %v10329, %v10417
      %10419 = vmatmul.bf16.gmra.mxu0 %v9178
      %v10420 = vpop.f32.mrf.mxu0
      %v10421 = vadd.f32 %v10332, %v10420
      %v10422 = vpop.f32.mrf.mxu0
      %v10423 = vadd.f32 %v10334, %v10422
      %10424 = vmatmul.bf16.gmra.mxu0 %v9186
      %v10425 = vpop.f32.mrf.mxu0
      %v10426 = vadd.f32 %v10337, %v10425
      %v10427 = vpop.f32.mrf.mxu0
      %v10428 = vadd.f32 %v10339, %v10427
      %10429 = vmatmul.bf16.gmra.mxu0 %v9194
      %v10430 = vpop.f32.mrf.mxu0
      %v10431 = vadd.f32 %v10342, %v10430
      %v10432 = vpop.f32.mrf.mxu0
      %v10433 = vadd.f32 %v10344, %v10432
      %10434 = vmatmul.bf16.gmra.mxu0 %v9202
      %v10435 = vpop.f32.mrf.mxu0
      %v10436 = vadd.f32 %v10347, %v10435
      %v10437 = vpop.f32.mrf.mxu0
      %v10438 = vadd.f32 %v10349, %v10437
      %10439 = vmatmul.bf16.gmra.mxu0 %v9210
      %v10440 = vpop.f32.mrf.mxu0
      %v10441 = vadd.f32 %v10352, %v10440
      %v10442 = vpop.f32.mrf.mxu0
      %v10443 = vadd.f32 %v10354, %v10442
      %10444 = vmatmul.bf16.gmra.mxu0 %v9218
      %v10445 = vpop.f32.mrf.mxu0
      %v10446 = vadd.f32 %v10357, %v10445
      %v10447 = vpop.f32.mrf.mxu0
      %v10448 = vadd.f32 %v10359, %v10447
      %10449 = vmatmul.bf16.gmra.mxu0 %v9226
      %v10450 = vpop.f32.mrf.mxu0
      %v10451 = vadd.f32 %v10362, %v10450
      %v10452 = vpop.f32.mrf.mxu0
      %v10453 = vadd.f32 %v10364, %v10452
      %10454 = vdwg.mxu0
      %v10455 = vmax.f32 %v10376, 0.0
      %v10456 = vmax.f32 %v10378, 0.0
      %v10457 = vmax.f32 %v10381, 0.0
      %v10458 = vmax.f32 %v10383, 0.0
      %v10459 = vmax.f32 %v10386, 0.0
      %v10460 = vmax.f32 %v10388, 0.0
      %v10461 = vmax.f32 %v10391, 0.0
      %v10462 = vmax.f32 %v10393, 0.0
      %v10463 = vmax.f32 %v10396, 0.0
      %v10464 = vmax.f32 %v10398, 0.0
      %v10465 = vmax.f32 %v10401, 0.0
      %v10466 = vmax.f32 %v10403, 0.0
      %v10467 = vmax.f32 %v10406, 0.0
      %v10468 = vmax.f32 %v10408, 0.0
      %v10469 = vmax.f32 %v10411, 0.0
      %v10470 = vmax.f32 %v10413, 0.0
      %v10471 = vmax.f32 %v10416, 0.0
      %v10472 = vmax.f32 %v10418, 0.0
      %v10473 = vmax.f32 %v10421, 0.0
      %v10474 = vmax.f32 %v10423, 0.0
      %v10475 = vmax.f32 %v10426, 0.0
      %v10476 = vmax.f32 %v10428, 0.0
      %v10477 = vmax.f32 %v10431, 0.0
      %v10478 = vmax.f32 %v10433, 0.0
      %v10479 = vmax.f32 %v10436, 0.0
      %v10480 = vmax.f32 %v10438, 0.0
      %v10481 = vmax.f32 %v10441, 0.0
      %v10482 = vmax.f32 %v10443, 0.0
      %v10483 = vmax.f32 %v10446, 0.0
      %v10484 = vmax.f32 %v10448, 0.0
      %v10485 = vmax.f32 %v10451, 0.0
      %v10486 = vmax.f32 %v10453, 0.0
      %v10487 = vpack.c.bf16 %v10456, %v10455
      %v10488 = vpack.c.bf16 %v10458, %v10457
      %v10489 = vpack.c.bf16 %v10460, %v10459
      %v10490 = vpack.c.bf16 %v10462, %v10461
      %v10491 = vpack.c.bf16 %v10464, %v10463
      %v10492 = vpack.c.bf16 %v10466, %v10465
      %v10493 = vpack.c.bf16 %v10468, %v10467
      %v10494 = vpack.c.bf16 %v10470, %v10469
      %v10495 = vpack.c.bf16 %v10472, %v10471
      %v10496 = vpack.c.bf16 %v10474, %v10473
      %v10497 = vpack.c.bf16 %v10476, %v10475
      %v10498 = vpack.c.bf16 %v10478, %v10477
      %v10499 = vpack.c.bf16 %v10480, %v10479
      %v10500 = vpack.c.bf16 %v10482, %v10481
      %v10501 = vpack.c.bf16 %v10484, %v10483
      %v10502 = vpack.c.bf16 %v10486, %v10485
      %v10503 = vld [vmem:[#allocation12] sm:$0xf]
      %v10504 = vld [vmem:[#allocation12 + $0x4] sm:$0xf]
      %v10505 = vld [vmem:[#allocation12 + $0x8] sm:$0xf]
      %v10506 = vld [vmem:[#allocation12 + $0xc] sm:$0xf]
      %v10507 = vld [vmem:[#allocation12 + $0x10] sm:$0xf]
      %v10508 = vld [vmem:[#allocation12 + $0x14] sm:$0xf]
      %v10509 = vld [vmem:[#allocation12 + $0x18] sm:$0xf]
      %v10510 = vld [vmem:[#allocation12 + $0x1c] sm:$0xf]
      %v10511 = vld [vmem:[#allocation12 + $0x20] sm:$0xf]
      %v10512 = vld [vmem:[#allocation12 + $0x24] sm:$0xf]
      %v10513 = vld [vmem:[#allocation12 + $0x28] sm:$0xf]
      %v10514 = vld [vmem:[#allocation12 + $0x2c] sm:$0xf]
      %v10515 = vld [vmem:[#allocation12 + $0x30] sm:$0xf]
      %v10516 = vld [vmem:[#allocation12 + $0x34] sm:$0xf]
      %v10517 = vld [vmem:[#allocation12 + $0x38] sm:$0xf]
      %v10518 = vld [vmem:[#allocation12 + $0x3c] sm:$0xf]
      %v10519 = vld [vmem:[#allocation14] sm:$0x1]
      %v10521 = vperm.slane %v10519, 0
      %v10539 = vunpack.c.l.b16 %v10503
      %v10540 = vunpack.c.l.b16 %v10504
      %v10541 = vunpack.c.l.b16 %v10505
      %v10542 = vunpack.c.l.b16 %v10506
      %v10543 = vunpack.c.l.b16 %v10507
      %v10544 = vunpack.c.l.b16 %v10508
      %v10545 = vunpack.c.l.b16 %v10509
      %v10546 = vunpack.c.l.b16 %v10510
      %v10547 = vunpack.c.l.b16 %v10511
      %v10548 = vunpack.c.l.b16 %v10512
      %v10549 = vunpack.c.l.b16 %v10513
      %v10550 = vunpack.c.l.b16 %v10514
      %v10551 = vunpack.c.l.b16 %v10515
      %v10552 = vunpack.c.l.b16 %v10516
      %v10553 = vunpack.c.l.b16 %v10517
      %v10554 = vunpack.c.l.b16 %v10518
      %v10555 = vpack.c.b16 %v10540, %v10539
      %v10556 = vpack.c.b16 %v10542, %v10541
      %v10557 = vpack.c.b16 %v10544, %v10543
      %v10558 = vpack.c.b16 %v10546, %v10545
      %v10559 = vpack.c.b16 %v10548, %v10547
      %v10560 = vpack.c.b16 %v10550, %v10549
      %v10561 = vpack.c.b16 %v10552, %v10551
      %v10562 = vpack.c.b16 %v10554, %v10553
      %10571 = vmatpush.bf16.msra.mxu0 %v10562
      %10572 = vmatpush.bf16.msra.mxu0 %v10561
      %10573 = vmatpush.bf16.msra.mxu0 %v10560
      %10574 = vmatpush.bf16.msra.mxu0 %v10559
      %10575 = vmatpush.bf16.msra.mxu0 %v10558
      %10576 = vmatpush.bf16.msra.mxu0 %v10557
      %10577 = vmatpush.bf16.msra.mxu0 %v10556
      %10578 = vmatpush.bf16.msra.mxu0 %v10555
      %10579 = vmatmul.bf16.gmra.mxu0 %v10487
      %v10580 = vpop.f32.mrf.mxu0
      %v10581 = vadd.f32 %v10521, %v10580
      %v10582 = vpop.f32.mrf.mxu0
      %v10583 = vadd.f32 %v10521, %v10582
      %10584 = vmatmul.bf16.gmra.mxu0 %v10488
      %v10585 = vpop.f32.mrf.mxu0
      %v10586 = vadd.f32 %v10521, %v10585
      %v10587 = vpop.f32.mrf.mxu0
      %v10588 = vadd.f32 %v10521, %v10587
      %10589 = vmatmul.bf16.gmra.mxu0 %v10489
      %v10590 = vpop.f32.mrf.mxu0
      %v10591 = vadd.f32 %v10521, %v10590
      %v10592 = vpop.f32.mrf.mxu0
      %v10593 = vadd.f32 %v10521, %v10592
      %10594 = vmatmul.bf16.gmra.mxu0 %v10490
      %v10595 = vpop.f32.mrf.mxu0
      %v10596 = vadd.f32 %v10521, %v10595
      %v10597 = vpop.f32.mrf.mxu0
      %v10598 = vadd.f32 %v10521, %v10597
      %10599 = vmatmul.bf16.gmra.mxu0 %v10491
      %v10600 = vpop.f32.mrf.mxu0
      %v10601 = vadd.f32 %v10521, %v10600
      %v10602 = vpop.f32.mrf.mxu0
      %v10603 = vadd.f32 %v10521, %v10602
      %10604 = vmatmul.bf16.gmra.mxu0 %v10492
      %v10605 = vpop.f32.mrf.mxu0
      %v10606 = vadd.f32 %v10521, %v10605
      %v10607 = vpop.f32.mrf.mxu0
      %v10608 = vadd.f32 %v10521, %v10607
      %10609 = vmatmul.bf16.gmra.mxu0 %v10493
      %v10610 = vpop.f32.mrf.mxu0
      %v10611 = vadd.f32 %v10521, %v10610
      %v10612 = vpop.f32.mrf.mxu0
      %v10613 = vadd.f32 %v10521, %v10612
      %10614 = vmatmul.bf16.gmra.mxu0 %v10494
      %v10615 = vpop.f32.mrf.mxu0
      %v10616 = vadd.f32 %v10521, %v10615
      %v10617 = vpop.f32.mrf.mxu0
      %v10618 = vadd.f32 %v10521, %v10617
      %10619 = vmatmul.bf16.gmra.mxu0 %v10495
      %v10620 = vpop.f32.mrf.mxu0
      %v10621 = vadd.f32 %v10521, %v10620
      %v10622 = vpop.f32.mrf.mxu0
      %v10623 = vadd.f32 %v10521, %v10622
      %10624 = vmatmul.bf16.gmra.mxu0 %v10496
      %v10625 = vpop.f32.mrf.mxu0
      %v10626 = vadd.f32 %v10521, %v10625
      %v10627 = vpop.f32.mrf.mxu0
      %v10628 = vadd.f32 %v10521, %v10627
      %10629 = vmatmul.bf16.gmra.mxu0 %v10497
      %v10630 = vpop.f32.mrf.mxu0
      %v10631 = vadd.f32 %v10521, %v10630
      %v10632 = vpop.f32.mrf.mxu0
      %v10633 = vadd.f32 %v10521, %v10632
      %10634 = vmatmul.bf16.gmra.mxu0 %v10498
      %v10635 = vpop.f32.mrf.mxu0
      %v10636 = vadd.f32 %v10521, %v10635
      %v10637 = vpop.f32.mrf.mxu0
      %v10638 = vadd.f32 %v10521, %v10637
      %10639 = vmatmul.bf16.gmra.mxu0 %v10499
      %v10640 = vpop.f32.mrf.mxu0
      %v10641 = vadd.f32 %v10521, %v10640
      %v10642 = vpop.f32.mrf.mxu0
      %v10643 = vadd.f32 %v10521, %v10642
      %10644 = vmatmul.bf16.gmra.mxu0 %v10500
      %v10645 = vpop.f32.mrf.mxu0
      %v10646 = vadd.f32 %v10521, %v10645
      %v10647 = vpop.f32.mrf.mxu0
      %v10648 = vadd.f32 %v10521, %v10647
      %10649 = vmatmul.bf16.gmra.mxu0 %v10501
      %v10650 = vpop.f32.mrf.mxu0
      %v10651 = vadd.f32 %v10521, %v10650
      %v10652 = vpop.f32.mrf.mxu0
      %v10653 = vadd.f32 %v10521, %v10652
      %10654 = vmatmul.bf16.gmra.mxu0 %v10502
      %v10655 = vpop.f32.mrf.mxu0
      %v10656 = vadd.f32 %v10521, %v10655
      %v10657 = vpop.f32.mrf.mxu0
      %v10658 = vadd.f32 %v10521, %v10657
      %10659 = vdwg.mxu0
      %10660 = vst [vmem:[#allocation15] sm:$0xff] %v10581
      %10661 = vst [vmem:[#allocation15 + $0x8] sm:$0xff] %v10583
      %10662 = vst [vmem:[#allocation15 + $0x10] sm:$0xff] %v10586
      %10663 = vst [vmem:[#allocation15 + $0x18] sm:$0xff] %v10588
      %10664 = vst [vmem:[#allocation15 + $0x20] sm:$0xff] %v10591
      %10665 = vst [vmem:[#allocation15 + $0x28] sm:$0xff] %v10593
      %10666 = vst [vmem:[#allocation15 + $0x30] sm:$0xff] %v10596
      %10667 = vst [vmem:[#allocation15 + $0x38] sm:$0xff] %v10598
      %10668 = vst [vmem:[#allocation15 + $0x40] sm:$0xff] %v10601
      %10669 = vst [vmem:[#allocation15 + $0x48] sm:$0xff] %v10603
      %10670 = vst [vmem:[#allocation15 + $0x50] sm:$0xff] %v10606
      %10671 = vst [vmem:[#allocation15 + $0x58] sm:$0xff] %v10608
      %10672 = vst [vmem:[#allocation15 + $0x60] sm:$0xff] %v10611
      %10673 = vst [vmem:[#allocation15 + $0x68] sm:$0xff] %v10613
      %10674 = vst [vmem:[#allocation15 + $0x70] sm:$0xff] %v10616
      %10675 = vst [vmem:[#allocation15 + $0x78] sm:$0xff] %v10618
      %10676 = vst [vmem:[#allocation15 + $0x80] sm:$0xff] %v10621
      %10677 = vst [vmem:[#allocation15 + $0x88] sm:$0xff] %v10623
      %10678 = vst [vmem:[#allocation15 + $0x90] sm:$0xff] %v10626
      %10679 = vst [vmem:[#allocation15 + $0x98] sm:$0xff] %v10628
      %10680 = vst [vmem:[#allocation15 + $0xa0] sm:$0xff] %v10631
      %10681 = vst [vmem:[#allocation15 + $0xa8] sm:$0xff] %v10633
      %10682 = vst [vmem:[#allocation15 + $0xb0] sm:$0xff] %v10636
      %10683 = vst [vmem:[#allocation15 + $0xb8] sm:$0xff] %v10638
      %10684 = vst [vmem:[#allocation15 + $0xc0] sm:$0xff] %v10641
      %10685 = vst [vmem:[#allocation15 + $0xc8] sm:$0xff] %v10643
      %10686 = vst [vmem:[#allocation15 + $0xd0] sm:$0xff] %v10646
      %10687 = vst [vmem:[#allocation15 + $0xd8] sm:$0xff] %v10648
      %10688 = vst [vmem:[#allocation15 + $0xe0] sm:$0xff] %v10651
      %10689 = vst [vmem:[#allocation15 + $0xe8] sm:$0xff] %v10653
      %10690 = vst [vmem:[#allocation15 + $0xf0] sm:$0xff] %v10656
      %10691 = vst [vmem:[#allocation15 + $0xf8] sm:$0xff] %v10658
    $region65: #{tpu_custom_call.1} parent=1 // pred_fallthru
      _
    // Predicated region
    $region66: #{tpu_custom_call.1} parent=1 // pred_check
      _
    $region67: #{tpu_custom_call.1} parent=1 // pred_check_branch
      %10693 = sbr.rel (0) target = $region69
    $region68: #{tpu_custom_call.1} parent=1 // pred_region
      %10695 = vsyncadd [#allocation5], 0
      %s10696 = sshll.u32 [#allocation15], 4
      %s10697 = int_to_ptr.vmem [resolvable:$true] %s10696
      %s10698 = sshll.u32 %s7, 4
      %s10699 = int_to_ptr.hbm [resolvable:$true] %s10698
      %10704 = dma.vmem_to_hbm [thread:$0]  %s10697, 4096, %s10699, [#allocation5], 128, 128, 8
    $region69: #{tpu_custom_call.1} parent=1 // pred_fallthru
      _
    // Predicated region
    $region70: #{tpu_custom_call.1} parent=1 // pred_check
      _
    $region71: #{tpu_custom_call.1} parent=1 // pred_check_branch
      %10706 = sbr.rel (0) target = $region73
    $region72: #{tpu_custom_call.1} parent=1 // pred_region
      %10708 = dma.done [#allocation5], 4096
    $region73: #{tpu_custom_call.1} parent=1 // pred_fallthru
      _
    %10709 = vsyncpa [#allocation4], 1
    %10710 = vsyncpa [#allocation7], 1
    %10711 = vsyncpa [#allocation10], 1
    %10712 = vsyncpa [#allocation13], 1
    %10713 = vsyncpa [#allocation5], 1

</llo_original>
